<compile_context>
chip_gen: v5e
topology: v5e:2x2
jax: 0.10.0
libtpu: 0.0.40
codegen_flags: <defaults>
</compile_context>

<pallas_src>
import jax
import jax.numpy as jnp
import numpy as np
from jax.experimental import pallas as pl
from jax.experimental.pallas import tpu as pltpu

EPS = 1e-5  # nn.BatchNorm2d default eps


# ---------------- fused Pallas kernel ----------------

def _resblock_kernel(x_ref, w1_ref, w2_ref, gamma_ref, beta_ref, out_ref,
                     xpad_ref, y_ref):
    """Fused conv1 -> BatchNorm (batch stats) -> ReLU -> conv2 -> + residual."""
    N, H, W, C = x_ref.shape
    HW = H * W
    M = N * HW

    # Zero the haloed scratch exactly once; only the interior is rewritten below,
    # so the 1-pixel border stays zero for both convolutions (SAME zero padding).
    xpad_ref[...] = jnp.zeros_like(xpad_ref)

    def conv3x3(w_ref):
        # 3x3 conv as 9 shifted whole-batch (M, C) @ (C, C) bf16 MXU matmuls,
        # accumulated in f32.  One f32->bf16 cast per tap, at the MXU input.
        acc = None
        for t in range(9):
            ky, kx = t // 3, t % 3
            tap = xpad_ref[:, ky:ky + H, kx:kx + W, :].reshape(M, C)
            part = jnp.dot(tap.astype(jnp.bfloat16), w_ref[t],
                           preferred_element_type=jnp.float32)
            acc = part if acc is None else acc + part
        return acc                                               # (M, C) f32

    # ---- conv1 over the whole batch (interior writes per image; halo stays 0) --
    for n in range(N):                                           # N small & static
        xpad_ref[n, 1:H + 1, 1:W + 1, :] = x_ref[n]
    y_ref[...] = conv3x3(w1_ref)

    # ---- BatchNorm2d training-mode batch statistics over all N*H*W rows -------
    y = y_ref[...]
    mean = jnp.sum(y, axis=0, keepdims=True) * (1.0 / M)         # (1, C)
    var = jnp.maximum(jnp.sum(y * y, axis=0, keepdims=True) * (1.0 / M)
                      - mean * mean, 0.0)                        # biased, one-pass
    scale = gamma_ref[...] * jax.lax.rsqrt(var + EPS)            # (1, C)
    shift = beta_ref[...] - mean * scale
    # TODO(synk): one-pass var = E[y^2]-mean^2 is cancellation-prone if |mean|>>std;
    # switch to a centered two-pass if this is reused at scale.
    # TODO(synk): BatchNorm running_mean/running_var side-effect updates are not
    # reproduced; they do not affect the training-mode forward output.

    # ---- normalize + affine + ReLU (f32), rebuild halo interior, conv2, residual
    h = jnp.maximum(y * scale + shift, 0.0)                      # (M, C) f32
    for n in range(N):
        xpad_ref[n, 1:H + 1, 1:W + 1, :] = h[n * HW:(n + 1) * HW, :].reshape(H, W, C)
    acc = conv3x3(w2_ref)
    out_ref[...] = (acc + x_ref[...].reshape(M, C)).reshape(N, H, W, C)


# ---------------- wrapper ----------------

def _weight_taps(w):
    """PyTorch (Cout, Cin, 3, 3) -> (9, Cin, Cout) bf16, tap index t = ky*3 + kx."""
    c_out, c_in, kh, kw = w.shape
    return jnp.transpose(w, (2, 3, 1, 0)).reshape(kh * kw, c_in, c_out).astype(jnp.bfloat16)


@jax.jit
def resnet_forward(x_nchw, w1, w2, gamma, beta):
    N, C, H, W = x_nchw.shape
    x = jnp.transpose(x_nchw, (0, 2, 3, 1)).astype(jnp.float32)      # NHWC f32
    w1t = _weight_taps(w1)
    w2t = _weight_taps(w2)
    gamma2 = gamma.reshape(1, C).astype(jnp.float32)
    beta2 = beta.reshape(1, C).astype(jnp.float32)
    M = N * H * W

    vmem = pl.BlockSpec(memory_space=pltpu.MemorySpace.VMEM)         # whole array, VMEM-resident

    out = pl.pallas_call(
        _resblock_kernel,
        in_specs=[vmem, vmem, vmem, vmem, vmem],
        out_specs=vmem,
        out_shape=jax.ShapeDtypeStruct((N, H, W, C), jnp.float32),
        scratch_shapes=[
            pltpu.VMEM((N, H + 2, W + 2, C), jnp.float32),   # zero-haloed batch activation
            pltpu.VMEM((M, C), jnp.float32),                 # conv1 output y (BN input)
        ],
        compiler_params=pltpu.CompilerParams(vmem_limit_bytes=32 * 1024 * 1024),
        cost_estimate=pl.CostEstimate(
            flops=2 * 2 * M * 9 * C * C,                     # two 3x3 convs
            transcendentals=C,                               # rsqrt over channels
            bytes_accessed=(2 * M * C * 4                    # x in + out
                            + 2 * 9 * C * C * 2              # both weight stacks (bf16)
                            + 2 * C * 4),                    # gamma, beta
        ),
    )(x, w1t, w2t, gamma2, beta2)

    return jnp.transpose(out, (0, 3, 1, 2))                          # back to NCHW


# ---------------- pure-JAX reference (all f32, highest precision) ----------------

def resnet_reference(x_nchw, w1, w2, gamma, beta):
    x = jnp.transpose(x_nchw, (0, 2, 3, 1)).astype(jnp.float32)

    def conv(inp, w):
        return jax.lax.conv_general_dilated(
            inp, jnp.transpose(w, (2, 3, 1, 0)), (1, 1), "SAME",
            dimension_numbers=("NHWC", "HWIO", "NHWC"),
            precision=jax.lax.Precision.HIGHEST)

    y = conv(x, w1)
    mean = jnp.mean(y, axis=(0, 1, 2), keepdims=True)
    var = jnp.mean((y - mean) ** 2, axis=(0, 1, 2), keepdims=True)   # biased
    h = jnp.maximum((y - mean) * jax.lax.rsqrt(var + EPS) * gamma + beta, 0.0)
    return jnp.transpose(conv(h, w2) + x, (0, 3, 1, 2))


# ---------------- main ----------------

if __name__ == "__main__":
    key = jax.random.PRNGKey(0)
    k_x, k_w1, k_w2 = jax.random.split(key, 3)

    N, C, H, W = 2, 16, 16, 16                       # Conv2d(16, 16, 3) => 16 channels
    x = jax.random.normal(k_x, (N, C, H, W), dtype=jnp.float32)
    # PyTorch weight layout (Cout, Cin, Kh, Kw), bias=False
    w1 = 0.1 * jax.random.normal(k_w1, (C, C, 3, 3), dtype=jnp.float32)
    w2 = 0.1 * jax.random.normal(k_w2, (C, C, 3, 3), dtype=jnp.float32)
    gamma = jnp.ones((C,), dtype=jnp.float32)        # nn.BatchNorm2d default affine init
    beta = jnp.zeros((C,), dtype=jnp.float32)

    out = jax.block_until_ready(resnet_forward(x, w1, w2, gamma, beta))
    ref = jax.block_until_ready(resnet_reference(x, w1, w2, gamma, beta))

    assert out.shape == (N, C, H, W) and out.dtype == jnp.float32
    # Tolerance sized for bf16 MXU inputs (kernel) vs. an all-f32 HIGHEST-precision
    # reference: expected absolute error is a few 1e-3 on O(1) outputs.
    np.testing.assert_allclose(np.asarray(out), np.asarray(ref), rtol=2e-2, atol=2e-2)

    print("KERNEL_OK")
</pallas_src>

<mosaic_0001>
module attributes {stable_mosaic.version = 11 : i64} {
  func.func @_resblock_kernel(%arg0: memref<2x16x16x16xf32, #tpu.memory_space<vmem>>, %arg1: memref<9x16x16xbf16, #tpu.memory_space<vmem>>, %arg2: memref<9x16x16xbf16, #tpu.memory_space<vmem>>, %arg3: memref<1x16xf32, #tpu.memory_space<vmem>>, %arg4: memref<1x16xf32, #tpu.memory_space<vmem>>, %arg5: memref<2x16x16x16xf32, #tpu.memory_space<vmem>>, %arg6: memref<2x18x18x16xf32, #tpu.memory_space<vmem>>, %arg7: memref<512x16xf32, #tpu.memory_space<vmem>>) attributes {dimension_semantics = [], scalar_prefetch = 0 : i64, scratch_operands = 2 : i64, tpu.core_type = #tpu.core_type<tc>} {
    %cst = arith.constant 0.000000e+00 : f32
    %0 = vector.broadcast %cst : f32 to vector<2x18x18x16xf32>
    %c0 = arith.constant 0 : index
    %c0_0 = arith.constant 0 : index
    %c0_1 = arith.constant 0 : index
    %c0_2 = arith.constant 0 : index
    %1 = vector.load %arg6[%c0, %c0_0, %c0_1, %c0_2] : memref<2x18x18x16xf32, #tpu.memory_space<vmem>>, vector<2x18x18x16xf32>
    tpu.vector_store %arg6[%c0, %c0_0, %c0_1, %c0_2], %0 {strides = array<i32>} : memref<2x18x18x16xf32, #tpu.memory_space<vmem>>, vector<2x18x18x16xf32>,
    %c0_3 = arith.constant 0 : index
    %c0_4 = arith.constant 0 : index
    %c0_5 = arith.constant 0 : index
    %c0_6 = arith.constant 0 : index
    %2 = vector.load %arg0[%c0_3, %c0_4, %c0_5, %c0_6] : memref<2x16x16x16xf32, #tpu.memory_space<vmem>>, vector<1x16x16x16xf32>
    %3 = vector.shape_cast %2 : vector<1x16x16x16xf32> to vector<16x16x16xf32>
    %c0_7 = arith.constant 0 : index
    %c1 = arith.constant 1 : index
    %c1_8 = arith.constant 1 : index
    %c0_9 = arith.constant 0 : index
    %4 = vector.load %arg6[%c0_7, %c1, %c1_8, %c0_9] : memref<2x18x18x16xf32, #tpu.memory_space<vmem>>, vector<1x16x16x16xf32>
    %5 = vector.shape_cast %4 : vector<1x16x16x16xf32> to vector<16x16x16xf32>
    %6 = vector.shape_cast %3 : vector<16x16x16xf32> to vector<1x16x16x16xf32>
    tpu.vector_store %arg6[%c0_7, %c1, %c1_8, %c0_9], %6 {strides = array<i32>} : memref<2x18x18x16xf32, #tpu.memory_space<vmem>>, vector<1x16x16x16xf32>,
    %c1_10 = arith.constant 1 : index
    %c0_11 = arith.constant 0 : index
    %c0_12 = arith.constant 0 : index
    %c0_13 = arith.constant 0 : index
    %7 = vector.load %arg0[%c1_10, %c0_11, %c0_12, %c0_13] : memref<2x16x16x16xf32, #tpu.memory_space<vmem>>, vector<1x16x16x16xf32>
    %8 = vector.shape_cast %7 : vector<1x16x16x16xf32> to vector<16x16x16xf32>
    %c1_14 = arith.constant 1 : index
    %c1_15 = arith.constant 1 : index
    %c1_16 = arith.constant 1 : index
    %c0_17 = arith.constant 0 : index
    %9 = vector.load %arg6[%c1_14, %c1_15, %c1_16, %c0_17] : memref<2x18x18x16xf32, #tpu.memory_space<vmem>>, vector<1x16x16x16xf32>
    %10 = vector.shape_cast %9 : vector<1x16x16x16xf32> to vector<16x16x16xf32>
    %11 = vector.shape_cast %8 : vector<16x16x16xf32> to vector<1x16x16x16xf32>
    tpu.vector_store %arg6[%c1_14, %c1_15, %c1_16, %c0_17], %11 {strides = array<i32>} : memref<2x18x18x16xf32, #tpu.memory_space<vmem>>, vector<1x16x16x16xf32>,
    %c0_18 = arith.constant 0 : index
    %c0_19 = arith.constant 0 : index
    %c0_20 = arith.constant 0 : index
    %c0_21 = arith.constant 0 : index
    %12 = vector.load %arg6[%c0_18, %c0_19, %c0_20, %c0_21] : memref<2x18x18x16xf32, #tpu.memory_space<vmem>>, vector<2x16x16x16xf32>
    %13 = vector.shape_cast %12 : vector<2x16x16x16xf32> to vector<512x16xf32>
    %14 = arith.truncf %13 : vector<512x16xf32> to vector<512x16xbf16>
    %c0_22 = arith.constant 0 : index
    %c0_23 = arith.constant 0 : index
    %c0_24 = arith.constant 0 : index
    %15 = vector.load %arg1[%c0_22, %c0_23, %c0_24] : memref<9x16x16xbf16, #tpu.memory_space<vmem>>, vector<1x16x16xbf16>
    %16 = vector.shape_cast %15 : vector<1x16x16xbf16> to vector<16x16xbf16>
    %cst_25 = arith.constant dense<0.000000e+00> : vector<512x16xf32>
    %17 = tpu.matmul %14, %16, %cst_25 {dimension_numbers = #tpu.dot_dimension_numbers<[1], [0], [0], [1], [0, 0, 1, 1], [], []>} : vector<512x16xbf16>, vector<16x16xbf16>, vector<512x16xf32> -> vector<512x16xf32>
    %c0_26 = arith.constant 0 : index
    %c0_27 = arith.constant 0 : index
    %c1_28 = arith.constant 1 : index
    %c0_29 = arith.constant 0 : index
    %18 = vector.load %arg6[%c0_26, %c0_27, %c1_28, %c0_29] : memref<2x18x18x16xf32, #tpu.memory_space<vmem>>, vector<2x16x16x16xf32>
    %19 = vector.shape_cast %18 : vector<2x16x16x16xf32> to vector<512x16xf32>
    %20 = arith.truncf %19 : vector<512x16xf32> to vector<512x16xbf16>
    %c1_30 = arith.constant 1 : index
    %c0_31 = arith.constant 0 : index
    %c0_32 = arith.constant 0 : index
    %21 = vector.load %arg1[%c1_30, %c0_31, %c0_32] : memref<9x16x16xbf16, #tpu.memory_space<vmem>>, vector<1x16x16xbf16>
    %22 = vector.shape_cast %21 : vector<1x16x16xbf16> to vector<16x16xbf16>
    %cst_33 = arith.constant dense<0.000000e+00> : vector<512x16xf32>
    %23 = tpu.matmul %20, %22, %cst_33 {dimension_numbers = #tpu.dot_dimension_numbers<[1], [0], [0], [1], [0, 0, 1, 1], [], []>} : vector<512x16xbf16>, vector<16x16xbf16>, vector<512x16xf32> -> vector<512x16xf32>
    %24 = arith.addf %17, %23 : vector<512x16xf32>
    %c0_34 = arith.constant 0 : index
    %c0_35 = arith.constant 0 : index
    %c2 = arith.constant 2 : index
    %c0_36 = arith.constant 0 : index
    %25 = vector.load %arg6[%c0_34, %c0_35, %c2, %c0_36] : memref<2x18x18x16xf32, #tpu.memory_space<vmem>>, vector<2x16x16x16xf32>
    %26 = vector.shape_cast %25 : vector<2x16x16x16xf32> to vector<512x16xf32>
    %27 = arith.truncf %26 : vector<512x16xf32> to vector<512x16xbf16>
    %c2_37 = arith.constant 2 : index
    %c0_38 = arith.constant 0 : index
    %c0_39 = arith.constant 0 : index
    %28 = vector.load %arg1[%c2_37, %c0_38, %c0_39] : memref<9x16x16xbf16, #tpu.memory_space<vmem>>, vector<1x16x16xbf16>
    %29 = vector.shape_cast %28 : vector<1x16x16xbf16> to vector<16x16xbf16>
    %cst_40 = arith.constant dense<0.000000e+00> : vector<512x16xf32>
    %30 = tpu.matmul %27, %29, %cst_40 {dimension_numbers = #tpu.dot_dimension_numbers<[1], [0], [0], [1], [0, 0, 1, 1], [], []>} : vector<512x16xbf16>, vector<16x16xbf16>, vector<512x16xf32> -> vector<512x16xf32>
    %31 = arith.addf %24, %30 : vector<512x16xf32>
    %c0_41 = arith.constant 0 : index
    %c1_42 = arith.constant 1 : index
    %c0_43 = arith.constant 0 : index
    %c0_44 = arith.constant 0 : index
    %32 = vector.load %arg6[%c0_41, %c1_42, %c0_43, %c0_44] : memref<2x18x18x16xf32, #tpu.memory_space<vmem>>, vector<2x16x16x16xf32>
    %33 = vector.shape_cast %32 : vector<2x16x16x16xf32> to vector<512x16xf32>
    %34 = arith.truncf %33 : vector<512x16xf32> to vector<512x16xbf16>
    %c3 = arith.constant 3 : index
    %c0_45 = arith.constant 0 : index
    %c0_46 = arith.constant 0 : index
    %35 = vector.load %arg1[%c3, %c0_45, %c0_46] : memref<9x16x16xbf16, #tpu.memory_space<vmem>>, vector<1x16x16xbf16>
    %36 = vector.shape_cast %35 : vector<1x16x16xbf16> to vector<16x16xbf16>
    %cst_47 = arith.constant dense<0.000000e+00> : vector<512x16xf32>
    %37 = tpu.matmul %34, %36, %cst_47 {dimension_numbers = #tpu.dot_dimension_numbers<[1], [0], [0], [1], [0, 0, 1, 1], [], []>} : vector<512x16xbf16>, vector<16x16xbf16>, vector<512x16xf32> -> vector<512x16xf32>
    %38 = arith.addf %31, %37 : vector<512x16xf32>
    %c0_48 = arith.constant 0 : index
    %c1_49 = arith.constant 1 : index
    %c1_50 = arith.constant 1 : index
    %c0_51 = arith.constant 0 : index
    %39 = vector.load %arg6[%c0_48, %c1_49, %c1_50, %c0_51] : memref<2x18x18x16xf32, #tpu.memory_space<vmem>>, vector<2x16x16x16xf32>
    %40 = vector.shape_cast %39 : vector<2x16x16x16xf32> to vector<512x16xf32>
    %41 = arith.truncf %40 : vector<512x16xf32> to vector<512x16xbf16>
    %c4 = arith.constant 4 : index
    %c0_52 = arith.constant 0 : index
    %c0_53 = arith.constant 0 : index
    %42 = vector.load %arg1[%c4, %c0_52, %c0_53] : memref<9x16x16xbf16, #tpu.memory_space<vmem>>, vector<1x16x16xbf16>
    %43 = vector.shape_cast %42 : vector<1x16x16xbf16> to vector<16x16xbf16>
    %cst_54 = arith.constant dense<0.000000e+00> : vector<512x16xf32>
    %44 = tpu.matmul %41, %43, %cst_54 {dimension_numbers = #tpu.dot_dimension_numbers<[1], [0], [0], [1], [0, 0, 1, 1], [], []>} : vector<512x16xbf16>, vector<16x16xbf16>, vector<512x16xf32> -> vector<512x16xf32>
    %45 = arith.addf %38, %44 : vector<512x16xf32>
    %c0_55 = arith.constant 0 : index
    %c1_56 = arith.constant 1 : index
    %c2_57 = arith.constant 2 : index
    %c0_58 = arith.constant 0 : index
    %46 = vector.load %arg6[%c0_55, %c1_56, %c2_57, %c0_58] : memref<2x18x18x16xf32, #tpu.memory_space<vmem>>, vector<2x16x16x16xf32>
    %47 = vector.shape_cast %46 : vector<2x16x16x16xf32> to vector<512x16xf32>
    %48 = arith.truncf %47 : vector<512x16xf32> to vector<512x16xbf16>
    %c5 = arith.constant 5 : index
    %c0_59 = arith.constant 0 : index
    %c0_60 = arith.constant 0 : index
    %49 = vector.load %arg1[%c5, %c0_59, %c0_60] : memref<9x16x16xbf16, #tpu.memory_space<vmem>>, vector<1x16x16xbf16>
    %50 = vector.shape_cast %49 : vector<1x16x16xbf16> to vector<16x16xbf16>
    %cst_61 = arith.constant dense<0.000000e+00> : vector<512x16xf32>
    %51 = tpu.matmul %48, %50, %cst_61 {dimension_numbers = #tpu.dot_dimension_numbers<[1], [0], [0], [1], [0, 0, 1, 1], [], []>} : vector<512x16xbf16>, vector<16x16xbf16>, vector<512x16xf32> -> vector<512x16xf32>
    %52 = arith.addf %45, %51 : vector<512x16xf32>
    %c0_62 = arith.constant 0 : index
    %c2_63 = arith.constant 2 : index
    %c0_64 = arith.constant 0 : index
    %c0_65 = arith.constant 0 : index
    %53 = vector.load %arg6[%c0_62, %c2_63, %c0_64, %c0_65] : memref<2x18x18x16xf32, #tpu.memory_space<vmem>>, vector<2x16x16x16xf32>
    %54 = vector.shape_cast %53 : vector<2x16x16x16xf32> to vector<512x16xf32>
    %55 = arith.truncf %54 : vector<512x16xf32> to vector<512x16xbf16>
    %c6 = arith.constant 6 : index
    %c0_66 = arith.constant 0 : index
    %c0_67 = arith.constant 0 : index
    %56 = vector.load %arg1[%c6, %c0_66, %c0_67] : memref<9x16x16xbf16, #tpu.memory_space<vmem>>, vector<1x16x16xbf16>
    %57 = vector.shape_cast %56 : vector<1x16x16xbf16> to vector<16x16xbf16>
    %cst_68 = arith.constant dense<0.000000e+00> : vector<512x16xf32>
    %58 = tpu.matmul %55, %57, %cst_68 {dimension_numbers = #tpu.dot_dimension_numbers<[1], [0], [0], [1], [0, 0, 1, 1], [], []>} : vector<512x16xbf16>, vector<16x16xbf16>, vector<512x16xf32> -> vector<512x16xf32>
    %59 = arith.addf %52, %58 : vector<512x16xf32>
    %c0_69 = arith.constant 0 : index
    %c2_70 = arith.constant 2 : index
    %c1_71 = arith.constant 1 : index
    %c0_72 = arith.constant 0 : index
    %60 = vector.load %arg6[%c0_69, %c2_70, %c1_71, %c0_72] : memref<2x18x18x16xf32, #tpu.memory_space<vmem>>, vector<2x16x16x16xf32>
    %61 = vector.shape_cast %60 : vector<2x16x16x16xf32> to vector<512x16xf32>
    %62 = arith.truncf %61 : vector<512x16xf32> to vector<512x16xbf16>
    %c7 = arith.constant 7 : index
    %c0_73 = arith.constant 0 : index
    %c0_74 = arith.constant 0 : index
    %63 = vector.load %arg1[%c7, %c0_73, %c0_74] : memref<9x16x16xbf16, #tpu.memory_space<vmem>>, vector<1x16x16xbf16>
    %64 = vector.shape_cast %63 : vector<1x16x16xbf16> to vector<16x16xbf16>
    %cst_75 = arith.constant dense<0.000000e+00> : vector<512x16xf32>
    %65 = tpu.matmul %62, %64, %cst_75 {dimension_numbers = #tpu.dot_dimension_numbers<[1], [0], [0], [1], [0, 0, 1, 1], [], []>} : vector<512x16xbf16>, vector<16x16xbf16>, vector<512x16xf32> -> vector<512x16xf32>
    %66 = arith.addf %59, %65 : vector<512x16xf32>
    %c0_76 = arith.constant 0 : index
    %c2_77 = arith.constant 2 : index
    %c2_78 = arith.constant 2 : index
    %c0_79 = arith.constant 0 : index
    %67 = vector.load %arg6[%c0_76, %c2_77, %c2_78, %c0_79] : memref<2x18x18x16xf32, #tpu.memory_space<vmem>>, vector<2x16x16x16xf32>
    %68 = vector.shape_cast %67 : vector<2x16x16x16xf32> to vector<512x16xf32>
    %69 = arith.truncf %68 : vector<512x16xf32> to vector<512x16xbf16>
    %c8 = arith.constant 8 : index
    %c0_80 = arith.constant 0 : index
    %c0_81 = arith.constant 0 : index
    %70 = vector.load %arg1[%c8, %c0_80, %c0_81] : memref<9x16x16xbf16, #tpu.memory_space<vmem>>, vector<1x16x16xbf16>
    %71 = vector.shape_cast %70 : vector<1x16x16xbf16> to vector<16x16xbf16>
    %cst_82 = arith.constant dense<0.000000e+00> : vector<512x16xf32>
    %72 = tpu.matmul %69, %71, %cst_82 {dimension_numbers = #tpu.dot_dimension_numbers<[1], [0], [0], [1], [0, 0, 1, 1], [], []>} : vector<512x16xbf16>, vector<16x16xbf16>, vector<512x16xf32> -> vector<512x16xf32>
    %73 = arith.addf %66, %72 : vector<512x16xf32>
    %c0_83 = arith.constant 0 : index
    %c0_84 = arith.constant 0 : index
    %74 = vector.load %arg7[%c0_83, %c0_84] : memref<512x16xf32, #tpu.memory_space<vmem>>, vector<512x16xf32>
    tpu.vector_store %arg7[%c0_83, %c0_84], %73 {strides = array<i32>} : memref<512x16xf32, #tpu.memory_space<vmem>>, vector<512x16xf32>,
    %c0_85 = arith.constant 0 : index
    %c0_86 = arith.constant 0 : index
    %75 = vector.load %arg7[%c0_85, %c0_86] : memref<512x16xf32, #tpu.memory_space<vmem>>, vector<512x16xf32>
    %cst_87 = arith.constant dense<0.000000e+00> : vector<16xf32>
    %76 = vector.multi_reduction <add>, %75, %cst_87 [0] : vector<512x16xf32> to vector<16xf32>
    %77 = vector.shape_cast %76 : vector<16xf32> to vector<1x16xf32>
    %cst_88 = arith.constant 0.001953125 : f32
    %78 = vector.broadcast %cst_88 : f32 to vector<1x16xf32>
    %79 = arith.mulf %77, %78 : vector<1x16xf32>
    %80 = arith.mulf %75, %75 : vector<512x16xf32>
    %cst_89 = arith.constant dense<0.000000e+00> : vector<16xf32>
    %81 = vector.multi_reduction <add>, %80, %cst_89 [0] : vector<512x16xf32> to vector<16xf32>
    %82 = vector.shape_cast %81 : vector<16xf32> to vector<1x16xf32>
    %cst_90 = arith.constant 0.001953125 : f32
    %83 = vector.broadcast %cst_90 : f32 to vector<1x16xf32>
    %84 = arith.mulf %82, %83 : vector<1x16xf32>
    %85 = arith.mulf %79, %79 : vector<1x16xf32>
    %86 = arith.subf %84, %85 : vector<1x16xf32>
    %cst_91 = arith.constant 0.000000e+00 : f32
    %87 = vector.broadcast %cst_91 : f32 to vector<1x16xf32>
    %88 = arith.maximumf %86, %87 : vector<1x16xf32>
    %c0_92 = arith.constant 0 : index
    %c0_93 = arith.constant 0 : index
    %89 = vector.load %arg3[%c0_92, %c0_93] : memref<1x16xf32, #tpu.memory_space<vmem>>, vector<1x16xf32>
    %cst_94 = arith.constant 9.99999974E-6 : f32
    %90 = vector.broadcast %cst_94 : f32 to vector<1x16xf32>
    %91 = arith.addf %88, %90 : vector<1x16xf32>
    %92 = math.rsqrt %91 : vector<1x16xf32>
    %93 = arith.mulf %89, %92 : vector<1x16xf32>
    %c0_95 = arith.constant 0 : index
    %c0_96 = arith.constant 0 : index
    %94 = vector.load %arg4[%c0_95, %c0_96] : memref<1x16xf32, #tpu.memory_space<vmem>>, vector<1x16xf32>
    %95 = arith.mulf %79, %93 : vector<1x16xf32>
    %96 = arith.subf %94, %95 : vector<1x16xf32>
    %97 = vector.broadcast %93 : vector<1x16xf32> to vector<512x16xf32>
    %98 = arith.mulf %75, %97 : vector<512x16xf32>
    %99 = vector.broadcast %96 : vector<1x16xf32> to vector<512x16xf32>
    %100 = arith.addf %98, %99 : vector<512x16xf32>
    %cst_97 = arith.constant 0.000000e+00 : f32
    %101 = vector.broadcast %cst_97 : f32 to vector<512x16xf32>
    %102 = arith.maximumf %100, %101 : vector<512x16xf32>
    %103 = vector.extract_strided_slice %102 {offsets = [0, 0], sizes = [256, 16], strides = [1, 1]} : vector<512x16xf32> to vector<256x16xf32>
    %104 = vector.shape_cast %103 : vector<256x16xf32> to vector<16x16x16xf32>
    %c0_98 = arith.constant 0 : index
    %c1_99 = arith.constant 1 : index
    %c1_100 = arith.constant 1 : index
    %c0_101 = arith.constant 0 : index
    %105 = vector.load %arg6[%c0_98, %c1_99, %c1_100, %c0_101] : memref<2x18x18x16xf32, #tpu.memory_space<vmem>>, vector<1x16x16x16xf32>
    %106 = vector.shape_cast %105 : vector<1x16x16x16xf32> to vector<16x16x16xf32>
    %107 = vector.shape_cast %104 : vector<16x16x16xf32> to vector<1x16x16x16xf32>
    tpu.vector_store %arg6[%c0_98, %c1_99, %c1_100, %c0_101], %107 {strides = array<i32>} : memref<2x18x18x16xf32, #tpu.memory_space<vmem>>, vector<1x16x16x16xf32>,
    %108 = vector.extract_strided_slice %102 {offsets = [256, 0], sizes = [256, 16], strides = [1, 1]} : vector<512x16xf32> to vector<256x16xf32>
    %109 = vector.shape_cast %108 : vector<256x16xf32> to vector<16x16x16xf32>
    %c1_102 = arith.constant 1 : index
    %c1_103 = arith.constant 1 : index
    %c1_104 = arith.constant 1 : index
    %c0_105 = arith.constant 0 : index
    %110 = vector.load %arg6[%c1_102, %c1_103, %c1_104, %c0_105] : memref<2x18x18x16xf32, #tpu.memory_space<vmem>>, vector<1x16x16x16xf32>
    %111 = vector.shape_cast %110 : vector<1x16x16x16xf32> to vector<16x16x16xf32>
    %112 = vector.shape_cast %109 : vector<16x16x16xf32> to vector<1x16x16x16xf32>
    tpu.vector_store %arg6[%c1_102, %c1_103, %c1_104, %c0_105], %112 {strides = array<i32>} : memref<2x18x18x16xf32, #tpu.memory_space<vmem>>, vector<1x16x16x16xf32>,
    %c0_106 = arith.constant 0 : index
    %c0_107 = arith.constant 0 : index
    %c0_108 = arith.constant 0 : index
    %c0_109 = arith.constant 0 : index
    %113 = vector.load %arg6[%c0_106, %c0_107, %c0_108, %c0_109] : memref<2x18x18x16xf32, #tpu.memory_space<vmem>>, vector<2x16x16x16xf32>
    %114 = vector.shape_cast %113 : vector<2x16x16x16xf32> to vector<512x16xf32>
    %115 = arith.truncf %114 : vector<512x16xf32> to vector<512x16xbf16>
    %c0_110 = arith.constant 0 : index
    %c0_111 = arith.constant 0 : index
    %c0_112 = arith.constant 0 : index
    %116 = vector.load %arg2[%c0_110, %c0_111, %c0_112] : memref<9x16x16xbf16, #tpu.memory_space<vmem>>, vector<1x16x16xbf16>
    %117 = vector.shape_cast %116 : vector<1x16x16xbf16> to vector<16x16xbf16>
    %cst_113 = arith.constant dense<0.000000e+00> : vector<512x16xf32>
    %118 = tpu.matmul %115, %117, %cst_113 {dimension_numbers = #tpu.dot_dimension_numbers<[1], [0], [0], [1], [0, 0, 1, 1], [], []>} : vector<512x16xbf16>, vector<16x16xbf16>, vector<512x16xf32> -> vector<512x16xf32>
    %c0_114 = arith.constant 0 : index
    %c0_115 = arith.constant 0 : index
    %c1_116 = arith.constant 1 : index
    %c0_117 = arith.constant 0 : index
    %119 = vector.load %arg6[%c0_114, %c0_115, %c1_116, %c0_117] : memref<2x18x18x16xf32, #tpu.memory_space<vmem>>, vector<2x16x16x16xf32>
    %120 = vector.shape_cast %119 : vector<2x16x16x16xf32> to vector<512x16xf32>
    %121 = arith.truncf %120 : vector<512x16xf32> to vector<512x16xbf16>
    %c1_118 = arith.constant 1 : index
    %c0_119 = arith.constant 0 : index
    %c0_120 = arith.constant 0 : index
    %122 = vector.load %arg2[%c1_118, %c0_119, %c0_120] : memref<9x16x16xbf16, #tpu.memory_space<vmem>>, vector<1x16x16xbf16>
    %123 = vector.shape_cast %122 : vector<1x16x16xbf16> to vector<16x16xbf16>
    %cst_121 = arith.constant dense<0.000000e+00> : vector<512x16xf32>
    %124 = tpu.matmul %121, %123, %cst_121 {dimension_numbers = #tpu.dot_dimension_numbers<[1], [0], [0], [1], [0, 0, 1, 1], [], []>} : vector<512x16xbf16>, vector<16x16xbf16>, vector<512x16xf32> -> vector<512x16xf32>
    %125 = arith.addf %118, %124 : vector<512x16xf32>
    %c0_122 = arith.constant 0 : index
    %c0_123 = arith.constant 0 : index
    %c2_124 = arith.constant 2 : index
    %c0_125 = arith.constant 0 : index
    %126 = vector.load %arg6[%c0_122, %c0_123, %c2_124, %c0_125] : memref<2x18x18x16xf32, #tpu.memory_space<vmem>>, vector<2x16x16x16xf32>
    %127 = vector.shape_cast %126 : vector<2x16x16x16xf32> to vector<512x16xf32>
    %128 = arith.truncf %127 : vector<512x16xf32> to vector<512x16xbf16>
    %c2_126 = arith.constant 2 : index
    %c0_127 = arith.constant 0 : index
    %c0_128 = arith.constant 0 : index
    %129 = vector.load %arg2[%c2_126, %c0_127, %c0_128] : memref<9x16x16xbf16, #tpu.memory_space<vmem>>, vector<1x16x16xbf16>
    %130 = vector.shape_cast %129 : vector<1x16x16xbf16> to vector<16x16xbf16>
    %cst_129 = arith.constant dense<0.000000e+00> : vector<512x16xf32>
    %131 = tpu.matmul %128, %130, %cst_129 {dimension_numbers = #tpu.dot_dimension_numbers<[1], [0], [0], [1], [0, 0, 1, 1], [], []>} : vector<512x16xbf16>, vector<16x16xbf16>, vector<512x16xf32> -> vector<512x16xf32>
    %132 = arith.addf %125, %131 : vector<512x16xf32>
    %c0_130 = arith.constant 0 : index
    %c1_131 = arith.constant 1 : index
    %c0_132 = arith.constant 0 : index
    %c0_133 = arith.constant 0 : index
    %133 = vector.load %arg6[%c0_130, %c1_131, %c0_132, %c0_133] : memref<2x18x18x16xf32, #tpu.memory_space<vmem>>, vector<2x16x16x16xf32>
    %134 = vector.shape_cast %133 : vector<2x16x16x16xf32> to vector<512x16xf32>
    %135 = arith.truncf %134 : vector<512x16xf32> to vector<512x16xbf16>
    %c3_134 = arith.constant 3 : index
    %c0_135 = arith.constant 0 : index
    %c0_136 = arith.constant 0 : index
    %136 = vector.load %arg2[%c3_134, %c0_135, %c0_136] : memref<9x16x16xbf16, #tpu.memory_space<vmem>>, vector<1x16x16xbf16>
    %137 = vector.shape_cast %136 : vector<1x16x16xbf16> to vector<16x16xbf16>
    %cst_137 = arith.constant dense<0.000000e+00> : vector<512x16xf32>
    %138 = tpu.matmul %135, %137, %cst_137 {dimension_numbers = #tpu.dot_dimension_numbers<[1], [0], [0], [1], [0, 0, 1, 1], [], []>} : vector<512x16xbf16>, vector<16x16xbf16>, vector<512x16xf32> -> vector<512x16xf32>
    %139 = arith.addf %132, %138 : vector<512x16xf32>
    %c0_138 = arith.constant 0 : index
    %c1_139 = arith.constant 1 : index
    %c1_140 = arith.constant 1 : index
    %c0_141 = arith.constant 0 : index
    %140 = vector.load %arg6[%c0_138, %c1_139, %c1_140, %c0_141] : memref<2x18x18x16xf32, #tpu.memory_space<vmem>>, vector<2x16x16x16xf32>
    %141 = vector.shape_cast %140 : vector<2x16x16x16xf32> to vector<512x16xf32>
    %142 = arith.truncf %141 : vector<512x16xf32> to vector<512x16xbf16>
    %c4_142 = arith.constant 4 : index
    %c0_143 = arith.constant 0 : index
    %c0_144 = arith.constant 0 : index
    %143 = vector.load %arg2[%c4_142, %c0_143, %c0_144] : memref<9x16x16xbf16, #tpu.memory_space<vmem>>, vector<1x16x16xbf16>
    %144 = vector.shape_cast %143 : vector<1x16x16xbf16> to vector<16x16xbf16>
    %cst_145 = arith.constant dense<0.000000e+00> : vector<512x16xf32>
    %145 = tpu.matmul %142, %144, %cst_145 {dimension_numbers = #tpu.dot_dimension_numbers<[1], [0], [0], [1], [0, 0, 1, 1], [], []>} : vector<512x16xbf16>, vector<16x16xbf16>, vector<512x16xf32> -> vector<512x16xf32>
    %146 = arith.addf %139, %145 : vector<512x16xf32>
    %c0_146 = arith.constant 0 : index
    %c1_147 = arith.constant 1 : index
    %c2_148 = arith.constant 2 : index
    %c0_149 = arith.constant 0 : index
    %147 = vector.load %arg6[%c0_146, %c1_147, %c2_148, %c0_149] : memref<2x18x18x16xf32, #tpu.memory_space<vmem>>, vector<2x16x16x16xf32>
    %148 = vector.shape_cast %147 : vector<2x16x16x16xf32> to vector<512x16xf32>
    %149 = arith.truncf %148 : vector<512x16xf32> to vector<512x16xbf16>
    %c5_150 = arith.constant 5 : index
    %c0_151 = arith.constant 0 : index
    %c0_152 = arith.constant 0 : index
    %150 = vector.load %arg2[%c5_150, %c0_151, %c0_152] : memref<9x16x16xbf16, #tpu.memory_space<vmem>>, vector<1x16x16xbf16>
    %151 = vector.shape_cast %150 : vector<1x16x16xbf16> to vector<16x16xbf16>
    %cst_153 = arith.constant dense<0.000000e+00> : vector<512x16xf32>
    %152 = tpu.matmul %149, %151, %cst_153 {dimension_numbers = #tpu.dot_dimension_numbers<[1], [0], [0], [1], [0, 0, 1, 1], [], []>} : vector<512x16xbf16>, vector<16x16xbf16>, vector<512x16xf32> -> vector<512x16xf32>
    %153 = arith.addf %146, %152 : vector<512x16xf32>
    %c0_154 = arith.constant 0 : index
    %c2_155 = arith.constant 2 : index
    %c0_156 = arith.constant 0 : index
    %c0_157 = arith.constant 0 : index
    %154 = vector.load %arg6[%c0_154, %c2_155, %c0_156, %c0_157] : memref<2x18x18x16xf32, #tpu.memory_space<vmem>>, vector<2x16x16x16xf32>
    %155 = vector.shape_cast %154 : vector<2x16x16x16xf32> to vector<512x16xf32>
    %156 = arith.truncf %155 : vector<512x16xf32> to vector<512x16xbf16>
    %c6_158 = arith.constant 6 : index
    %c0_159 = arith.constant 0 : index
    %c0_160 = arith.constant 0 : index
    %157 = vector.load %arg2[%c6_158, %c0_159, %c0_160] : memref<9x16x16xbf16, #tpu.memory_space<vmem>>, vector<1x16x16xbf16>
    %158 = vector.shape_cast %157 : vector<1x16x16xbf16> to vector<16x16xbf16>
    %cst_161 = arith.constant dense<0.000000e+00> : vector<512x16xf32>
    %159 = tpu.matmul %156, %158, %cst_161 {dimension_numbers = #tpu.dot_dimension_numbers<[1], [0], [0], [1], [0, 0, 1, 1], [], []>} : vector<512x16xbf16>, vector<16x16xbf16>, vector<512x16xf32> -> vector<512x16xf32>
    %160 = arith.addf %153, %159 : vector<512x16xf32>
    %c0_162 = arith.constant 0 : index
    %c2_163 = arith.constant 2 : index
    %c1_164 = arith.constant 1 : index
    %c0_165 = arith.constant 0 : index
    %161 = vector.load %arg6[%c0_162, %c2_163, %c1_164, %c0_165] : memref<2x18x18x16xf32, #tpu.memory_space<vmem>>, vector<2x16x16x16xf32>
    %162 = vector.shape_cast %161 : vector<2x16x16x16xf32> to vector<512x16xf32>
    %163 = arith.truncf %162 : vector<512x16xf32> to vector<512x16xbf16>
    %c7_166 = arith.constant 7 : index
    %c0_167 = arith.constant 0 : index
    %c0_168 = arith.constant 0 : index
    %164 = vector.load %arg2[%c7_166, %c0_167, %c0_168] : memref<9x16x16xbf16, #tpu.memory_space<vmem>>, vector<1x16x16xbf16>
    %165 = vector.shape_cast %164 : vector<1x16x16xbf16> to vector<16x16xbf16>
    %cst_169 = arith.constant dense<0.000000e+00> : vector<512x16xf32>
    %166 = tpu.matmul %163, %165, %cst_169 {dimension_numbers = #tpu.dot_dimension_numbers<[1], [0], [0], [1], [0, 0, 1, 1], [], []>} : vector<512x16xbf16>, vector<16x16xbf16>, vector<512x16xf32> -> vector<512x16xf32>
    %167 = arith.addf %160, %166 : vector<512x16xf32>
    %c0_170 = arith.constant 0 : index
    %c2_171 = arith.constant 2 : index
    %c2_172 = arith.constant 2 : index
    %c0_173 = arith.constant 0 : index
    %168 = vector.load %arg6[%c0_170, %c2_171, %c2_172, %c0_173] : memref<2x18x18x16xf32, #tpu.memory_space<vmem>>, vector<2x16x16x16xf32>
    %169 = vector.shape_cast %168 : vector<2x16x16x16xf32> to vector<512x16xf32>
    %170 = arith.truncf %169 : vector<512x16xf32> to vector<512x16xbf16>
    %c8_174 = arith.constant 8 : index
    %c0_175 = arith.constant 0 : index
    %c0_176 = arith.constant 0 : index
    %171 = vector.load %arg2[%c8_174, %c0_175, %c0_176] : memref<9x16x16xbf16, #tpu.memory_space<vmem>>, vector<1x16x16xbf16>
    %172 = vector.shape_cast %171 : vector<1x16x16xbf16> to vector<16x16xbf16>
    %cst_177 = arith.constant dense<0.000000e+00> : vector<512x16xf32>
    %173 = tpu.matmul %170, %172, %cst_177 {dimension_numbers = #tpu.dot_dimension_numbers<[1], [0], [0], [1], [0, 0, 1, 1], [], []>} : vector<512x16xbf16>, vector<16x16xbf16>, vector<512x16xf32> -> vector<512x16xf32>
    %174 = arith.addf %167, %173 : vector<512x16xf32>
    %c0_178 = arith.constant 0 : index
    %c0_179 = arith.constant 0 : index
    %c0_180 = arith.constant 0 : index
    %c0_181 = arith.constant 0 : index
    %175 = vector.load %arg0[%c0_178, %c0_179, %c0_180, %c0_181] : memref<2x16x16x16xf32, #tpu.memory_space<vmem>>, vector<2x16x16x16xf32>
    %176 = vector.shape_cast %175 : vector<2x16x16x16xf32> to vector<512x16xf32>
    %177 = arith.addf %174, %176 : vector<512x16xf32>
    %178 = vector.shape_cast %177 : vector<512x16xf32> to vector<2x16x16x16xf32>
    %c0_182 = arith.constant 0 : index
    %c0_183 = arith.constant 0 : index
    %c0_184 = arith.constant 0 : index
    %c0_185 = arith.constant 0 : index
    %179 = vector.load %arg5[%c0_182, %c0_183, %c0_184, %c0_185] : memref<2x16x16x16xf32, #tpu.memory_space<vmem>>, vector<2x16x16x16xf32>
    tpu.vector_store %arg5[%c0_182, %c0_183, %c0_184, %c0_185], %178 {strides = array<i32>} : memref<2x16x16x16xf32, #tpu.memory_space<vmem>>, vector<2x16x16x16xf32>,
    return
  }
}

</mosaic_0001>

<llo_original>
// kernel: resnet_forward.1
$region0: #{resnet_forward.1}
  #allocation0 [shape = 'u32[]', space=smem, size = 0x4, offset = 0x4, fixed_abs, tag = 'smem constant byte address 0x4 - core index']
  #allocation1 [shape = 'u32[72,128]{1,0:T(1,128)}', space=vmem, size = 0x9000, scoped, tag = 'internal scratch']
  #allocation2 [shape = 'f32[2,18,18,16]{3,2,1,0:T(8,128)}', space=vmem, size = 0x6c000, scoped, tag = 'scratch operand']
  #allocation3 [shape = 'f32[512,16]{1,0:T(8,128)}', space=vmem, size = 0x40000, scoped, tag = 'scratch operand']
  %s0 = inlined_call_operand.vmem [shape: f32[2,16,16,16], index: 0, kind: input, shape index: {}]
  %s1 = inlined_call_operand.vmem [shape: bf16[9,16,16], index: 1, kind: input, shape index: {}]
  %s2 = inlined_call_operand.vmem [shape: bf16[9,16,16], index: 2, kind: input, shape index: {}]
  %s3 = inlined_call_operand.vmem [shape: f32[1,16], index: 3, kind: input, shape index: {}]
  %s4 = inlined_call_operand.vmem [shape: f32[1,16], index: 4, kind: input, shape index: {}]
  %s5 = inlined_call_operand.vmem [shape: f32[2,16,16,16], index: 5, kind: output, shape index: {}]
  %s6 = sld [smem:[#allocation0]]
  $region30: #{resnet_forward.1} parent=0
    _
  %s8 = ssub.s32 1, %s6
  %s9 = scalar_select 0, %s8, %s6
  // Predicated region
  $region2: #{resnet_forward.1} parent=0 // pred_check
    _
  $region3: #{resnet_forward.1} parent=0 // pred_check_branch
    %11 = sbr.rel (0) target = $region5
  $region4: #{resnet_forward.1} parent=0 // pred_region
    _
  $region5: #{resnet_forward.1} parent=0 // pred_fallthru
    _
  // Predicated region
  $region6: #{resnet_forward.1} parent=0 // pred_check
    _
  $region7: #{resnet_forward.1} parent=0 // pred_check_branch
    %13 = sbr.rel (0) target = $region9
  $region8: #{resnet_forward.1} parent=0 // pred_region
    _
  $region9: #{resnet_forward.1} parent=0 // pred_fallthru
    _
  // Predicated region
  $region10: #{resnet_forward.1} parent=0 // pred_check
    _
  $region11: #{resnet_forward.1} parent=0 // pred_check_branch
    %15 = sbr.rel (0) target = $region13
  $region12: #{resnet_forward.1} parent=0 // pred_region
    _
  $region13: #{resnet_forward.1} parent=0 // pred_fallthru
    _
  // Predicated region
  $region14: #{resnet_forward.1} parent=0 // pred_check
    _
  $region15: #{resnet_forward.1} parent=0 // pred_check_branch
    %17 = sbr.rel (0) target = $region17
  $region16: #{resnet_forward.1} parent=0 // pred_region
    _
  $region17: #{resnet_forward.1} parent=0 // pred_fallthru
    _
  // Predicated region
  $region18: #{resnet_forward.1} parent=0 // pred_check
    _
  $region19: #{resnet_forward.1} parent=0 // pred_check_branch
    %19 = sbr.rel (0) target = $region21
  $region20: #{resnet_forward.1} parent=0 // pred_region
    _
  $region21: #{resnet_forward.1} parent=0 // pred_fallthru
    _
  %vm21 = vcmask 130048
  %22 = vst.msk [vmem:[#allocation2] sm:$0xff] %vm21, 0.0
  %23 = vst.msk [vmem:[#allocation2 + $0x8] sm:$0xff] %vm21, 0.0
  %vm24 = vcmask 123904
  %25 = vst.msk [vmem:[#allocation2 + $0x10] sm:$0x3] %vm24, 0.0
  %26 = vst.msk [vmem:[#allocation2 + $0x18] sm:$0xff] %vm21, 0.0
  %27 = vst.msk [vmem:[#allocation2 + $0x20] sm:$0xff] %vm21, 0.0
  %28 = vst.msk [vmem:[#allocation2 + $0x28] sm:$0x3] %vm24, 0.0
  %29 = vst.msk [vmem:[#allocation2 + $0x30] sm:$0xff] %vm21, 0.0
  %30 = vst.msk [vmem:[#allocation2 + $0x38] sm:$0xff] %vm21, 0.0
  %31 = vst.msk [vmem:[#allocation2 + $0x40] sm:$0x3] %vm24, 0.0
  %32 = vst.msk [vmem:[#allocation2 + $0x48] sm:$0xff] %vm21, 0.0
  %33 = vst.msk [vmem:[#allocation2 + $0x50] sm:$0xff] %vm21, 0.0
  %34 = vst.msk [vmem:[#allocation2 + $0x58] sm:$0x3] %vm24, 0.0
  %35 = vst.msk [vmem:[#allocation2 + $0x60] sm:$0xff] %vm21, 0.0
  %36 = vst.msk [vmem:[#allocation2 + $0x68] sm:$0xff] %vm21, 0.0
  %37 = vst.msk [vmem:[#allocation2 + $0x70] sm:$0x3] %vm24, 0.0
  %38 = vst.msk [vmem:[#allocation2 + $0x78] sm:$0xff] %vm21, 0.0
  %39 = vst.msk [vmem:[#allocation2 + $0x80] sm:$0xff] %vm21, 0.0
  %40 = vst.msk [vmem:[#allocation2 + $0x88] sm:$0x3] %vm24, 0.0
  %41 = vst.msk [vmem:[#allocation2 + $0x90] sm:$0xff] %vm21, 0.0
  %42 = vst.msk [vmem:[#allocation2 + $0x98] sm:$0xff] %vm21, 0.0
  %43 = vst.msk [vmem:[#allocation2 + $0xa0] sm:$0x3] %vm24, 0.0
  %44 = vst.msk [vmem:[#allocation2 + $0xa8] sm:$0xff] %vm21, 0.0
  %45 = vst.msk [vmem:[#allocation2 + $0xb0] sm:$0xff] %vm21, 0.0
  %46 = vst.msk [vmem:[#allocation2 + $0xb8] sm:$0x3] %vm24, 0.0
  %47 = vst.msk [vmem:[#allocation2 + $0xc0] sm:$0xff] %vm21, 0.0
  %48 = vst.msk [vmem:[#allocation2 + $0xc8] sm:$0xff] %vm21, 0.0
  %49 = vst.msk [vmem:[#allocation2 + $0xd0] sm:$0x3] %vm24, 0.0
  %50 = vst.msk [vmem:[#allocation2 + $0xd8] sm:$0xff] %vm21, 0.0
  %51 = vst.msk [vmem:[#allocation2 + $0xe0] sm:$0xff] %vm21, 0.0
  %52 = vst.msk [vmem:[#allocation2 + $0xe8] sm:$0x3] %vm24, 0.0
  %53 = vst.msk [vmem:[#allocation2 + $0xf0] sm:$0xff] %vm21, 0.0
  %54 = vst.msk [vmem:[#allocation2 + $0xf8] sm:$0xff] %vm21, 0.0
  %55 = vst.msk [vmem:[#allocation2 + $0x100] sm:$0x3] %vm24, 0.0
  %56 = vst.msk [vmem:[#allocation2 + $0x108] sm:$0xff] %vm21, 0.0
  %57 = vst.msk [vmem:[#allocation2 + $0x110] sm:$0xff] %vm21, 0.0
  %58 = vst.msk [vmem:[#allocation2 + $0x118] sm:$0x3] %vm24, 0.0
  %59 = vst.msk [vmem:[#allocation2 + $0x120] sm:$0xff] %vm21, 0.0
  %60 = vst.msk [vmem:[#allocation2 + $0x128] sm:$0xff] %vm21, 0.0
  %61 = vst.msk [vmem:[#allocation2 + $0x130] sm:$0x3] %vm24, 0.0
  %62 = vst.msk [vmem:[#allocation2 + $0x138] sm:$0xff] %vm21, 0.0
  %63 = vst.msk [vmem:[#allocation2 + $0x140] sm:$0xff] %vm21, 0.0
  %64 = vst.msk [vmem:[#allocation2 + $0x148] sm:$0x3] %vm24, 0.0
  %65 = vst.msk [vmem:[#allocation2 + $0x150] sm:$0xff] %vm21, 0.0
  %66 = vst.msk [vmem:[#allocation2 + $0x158] sm:$0xff] %vm21, 0.0
  %67 = vst.msk [vmem:[#allocation2 + $0x160] sm:$0x3] %vm24, 0.0
  %68 = vst.msk [vmem:[#allocation2 + $0x168] sm:$0xff] %vm21, 0.0
  %69 = vst.msk [vmem:[#allocation2 + $0x170] sm:$0xff] %vm21, 0.0
  %70 = vst.msk [vmem:[#allocation2 + $0x178] sm:$0x3] %vm24, 0.0
  %71 = vst.msk [vmem:[#allocation2 + $0x180] sm:$0xff] %vm21, 0.0
  %72 = vst.msk [vmem:[#allocation2 + $0x188] sm:$0xff] %vm21, 0.0
  %73 = vst.msk [vmem:[#allocation2 + $0x190] sm:$0x3] %vm24, 0.0
  %74 = vst.msk [vmem:[#allocation2 + $0x198] sm:$0xff] %vm21, 0.0
  %75 = vst.msk [vmem:[#allocation2 + $0x1a0] sm:$0xff] %vm21, 0.0
  %76 = vst.msk [vmem:[#allocation2 + $0x1a8] sm:$0x3] %vm24, 0.0
  %77 = vst.msk [vmem:[#allocation2 + $0x1b0] sm:$0xff] %vm21, 0.0
  %78 = vst.msk [vmem:[#allocation2 + $0x1b8] sm:$0xff] %vm21, 0.0
  %79 = vst.msk [vmem:[#allocation2 + $0x1c0] sm:$0x3] %vm24, 0.0
  %80 = vst.msk [vmem:[#allocation2 + $0x1c8] sm:$0xff] %vm21, 0.0
  %81 = vst.msk [vmem:[#allocation2 + $0x1d0] sm:$0xff] %vm21, 0.0
  %82 = vst.msk [vmem:[#allocation2 + $0x1d8] sm:$0x3] %vm24, 0.0
  %83 = vst.msk [vmem:[#allocation2 + $0x1e0] sm:$0xff] %vm21, 0.0
  %84 = vst.msk [vmem:[#allocation2 + $0x1e8] sm:$0xff] %vm21, 0.0
  %85 = vst.msk [vmem:[#allocation2 + $0x1f0] sm:$0x3] %vm24, 0.0
  %86 = vst.msk [vmem:[#allocation2 + $0x1f8] sm:$0xff] %vm21, 0.0
  %87 = vst.msk [vmem:[#allocation2 + $0x200] sm:$0xff] %vm21, 0.0
  %88 = vst.msk [vmem:[#allocation2 + $0x208] sm:$0x3] %vm24, 0.0
  %89 = vst.msk [vmem:[#allocation2 + $0x210] sm:$0xff] %vm21, 0.0
  %90 = vst.msk [vmem:[#allocation2 + $0x218] sm:$0xff] %vm21, 0.0
  %91 = vst.msk [vmem:[#allocation2 + $0x220] sm:$0x3] %vm24, 0.0
  %92 = vst.msk [vmem:[#allocation2 + $0x228] sm:$0xff] %vm21, 0.0
  %93 = vst.msk [vmem:[#allocation2 + $0x230] sm:$0xff] %vm21, 0.0
  %94 = vst.msk [vmem:[#allocation2 + $0x238] sm:$0x3] %vm24, 0.0
  %95 = vst.msk [vmem:[#allocation2 + $0x240] sm:$0xff] %vm21, 0.0
  %96 = vst.msk [vmem:[#allocation2 + $0x248] sm:$0xff] %vm21, 0.0
  %97 = vst.msk [vmem:[#allocation2 + $0x250] sm:$0x3] %vm24, 0.0
  %98 = vst.msk [vmem:[#allocation2 + $0x258] sm:$0xff] %vm21, 0.0
  %99 = vst.msk [vmem:[#allocation2 + $0x260] sm:$0xff] %vm21, 0.0
  %100 = vst.msk [vmem:[#allocation2 + $0x268] sm:$0x3] %vm24, 0.0
  %101 = vst.msk [vmem:[#allocation2 + $0x270] sm:$0xff] %vm21, 0.0
  %102 = vst.msk [vmem:[#allocation2 + $0x278] sm:$0xff] %vm21, 0.0
  %103 = vst.msk [vmem:[#allocation2 + $0x280] sm:$0x3] %vm24, 0.0
  %104 = vst.msk [vmem:[#allocation2 + $0x288] sm:$0xff] %vm21, 0.0
  %105 = vst.msk [vmem:[#allocation2 + $0x290] sm:$0xff] %vm21, 0.0
  %106 = vst.msk [vmem:[#allocation2 + $0x298] sm:$0x3] %vm24, 0.0
  %107 = vst.msk [vmem:[#allocation2 + $0x2a0] sm:$0xff] %vm21, 0.0
  %108 = vst.msk [vmem:[#allocation2 + $0x2a8] sm:$0xff] %vm21, 0.0
  %109 = vst.msk [vmem:[#allocation2 + $0x2b0] sm:$0x3] %vm24, 0.0
  %110 = vst.msk [vmem:[#allocation2 + $0x2b8] sm:$0xff] %vm21, 0.0
  %111 = vst.msk [vmem:[#allocation2 + $0x2c0] sm:$0xff] %vm21, 0.0
  %112 = vst.msk [vmem:[#allocation2 + $0x2c8] sm:$0x3] %vm24, 0.0
  %113 = vst.msk [vmem:[#allocation2 + $0x2d0] sm:$0xff] %vm21, 0.0
  %114 = vst.msk [vmem:[#allocation2 + $0x2d8] sm:$0xff] %vm21, 0.0
  %115 = vst.msk [vmem:[#allocation2 + $0x2e0] sm:$0x3] %vm24, 0.0
  %116 = vst.msk [vmem:[#allocation2 + $0x2e8] sm:$0xff] %vm21, 0.0
  %117 = vst.msk [vmem:[#allocation2 + $0x2f0] sm:$0xff] %vm21, 0.0
  %118 = vst.msk [vmem:[#allocation2 + $0x2f8] sm:$0x3] %vm24, 0.0
  %119 = vst.msk [vmem:[#allocation2 + $0x300] sm:$0xff] %vm21, 0.0
  %120 = vst.msk [vmem:[#allocation2 + $0x308] sm:$0xff] %vm21, 0.0
  %121 = vst.msk [vmem:[#allocation2 + $0x310] sm:$0x3] %vm24, 0.0
  %122 = vst.msk [vmem:[#allocation2 + $0x318] sm:$0xff] %vm21, 0.0
  %123 = vst.msk [vmem:[#allocation2 + $0x320] sm:$0xff] %vm21, 0.0
  %124 = vst.msk [vmem:[#allocation2 + $0x328] sm:$0x3] %vm24, 0.0
  %125 = vst.msk [vmem:[#allocation2 + $0x330] sm:$0xff] %vm21, 0.0
  %126 = vst.msk [vmem:[#allocation2 + $0x338] sm:$0xff] %vm21, 0.0
  %127 = vst.msk [vmem:[#allocation2 + $0x340] sm:$0x3] %vm24, 0.0
  %128 = vst.msk [vmem:[#allocation2 + $0x348] sm:$0xff] %vm21, 0.0
  %129 = vst.msk [vmem:[#allocation2 + $0x350] sm:$0xff] %vm21, 0.0
  %130 = vst.msk [vmem:[#allocation2 + $0x358] sm:$0x3] %vm24, 0.0
  %v131 = vld [vmem:[%s0] sm:$0xff]
  %v132 = vld [vmem:[%s0 + $0x8] sm:$0xff]
  %v133 = vld [vmem:[%s0 + $0x10] sm:$0xff]
  %v134 = vld [vmem:[%s0 + $0x18] sm:$0xff]
  %v135 = vld [vmem:[%s0 + $0x20] sm:$0xff]
  %v136 = vld [vmem:[%s0 + $0x28] sm:$0xff]
  %v137 = vld [vmem:[%s0 + $0x30] sm:$0xff]
  %v138 = vld [vmem:[%s0 + $0x38] sm:$0xff]
  %v139 = vld [vmem:[%s0 + $0x40] sm:$0xff]
  %v140 = vld [vmem:[%s0 + $0x48] sm:$0xff]
  %v141 = vld [vmem:[%s0 + $0x50] sm:$0xff]
  %v142 = vld [vmem:[%s0 + $0x58] sm:$0xff]
  %v143 = vld [vmem:[%s0 + $0x60] sm:$0xff]
  %v144 = vld [vmem:[%s0 + $0x68] sm:$0xff]
  %v145 = vld [vmem:[%s0 + $0x70] sm:$0xff]
  %v146 = vld [vmem:[%s0 + $0x78] sm:$0xff]
  %v147 = vld [vmem:[%s0 + $0x80] sm:$0xff]
  %v148 = vld [vmem:[%s0 + $0x88] sm:$0xff]
  %v149 = vld [vmem:[%s0 + $0x90] sm:$0xff]
  %v150 = vld [vmem:[%s0 + $0x98] sm:$0xff]
  %v151 = vld [vmem:[%s0 + $0xa0] sm:$0xff]
  %v152 = vld [vmem:[%s0 + $0xa8] sm:$0xff]
  %v153 = vld [vmem:[%s0 + $0xb0] sm:$0xff]
  %v154 = vld [vmem:[%s0 + $0xb8] sm:$0xff]
  %v155 = vld [vmem:[%s0 + $0xc0] sm:$0xff]
  %v156 = vld [vmem:[%s0 + $0xc8] sm:$0xff]
  %v157 = vld [vmem:[%s0 + $0xd0] sm:$0xff]
  %v158 = vld [vmem:[%s0 + $0xd8] sm:$0xff]
  %v159 = vld [vmem:[%s0 + $0xe0] sm:$0xff]
  %v160 = vld [vmem:[%s0 + $0xe8] sm:$0xff]
  %v161 = vld [vmem:[%s0 + $0xf0] sm:$0xff]
  %v162 = vld [vmem:[%s0 + $0xf8] sm:$0xff]
  %s163 = scalar_lea.vmem [#allocation2], 24
  %164 = vst.msk [vmem:[%s163 + $0x1] sm:$0xff] %vm21, %v131
  %165 = vst.msk [vmem:[%s163 + $0x9] sm:$0xff] %vm21, %v132
  %166 = vst.msk [vmem:[%s163 + $0x19] sm:$0xff] %vm21, %v133
  %167 = vst.msk [vmem:[%s163 + $0x21] sm:$0xff] %vm21, %v134
  %168 = vst.msk [vmem:[%s163 + $0x31] sm:$0xff] %vm21, %v135
  %169 = vst.msk [vmem:[%s163 + $0x39] sm:$0xff] %vm21, %v136
  %170 = vst.msk [vmem:[%s163 + $0x49] sm:$0xff] %vm21, %v137
  %171 = vst.msk [vmem:[%s163 + $0x51] sm:$0xff] %vm21, %v138
  %172 = vst.msk [vmem:[%s163 + $0x61] sm:$0xff] %vm21, %v139
  %173 = vst.msk [vmem:[%s163 + $0x69] sm:$0xff] %vm21, %v140
  %174 = vst.msk [vmem:[%s163 + $0x79] sm:$0xff] %vm21, %v141
  %175 = vst.msk [vmem:[%s163 + $0x81] sm:$0xff] %vm21, %v142
  %176 = vst.msk [vmem:[%s163 + $0x91] sm:$0xff] %vm21, %v143
  %177 = vst.msk [vmem:[%s163 + $0x99] sm:$0xff] %vm21, %v144
  %178 = vst.msk [vmem:[%s163 + $0xa9] sm:$0xff] %vm21, %v145
  %179 = vst.msk [vmem:[%s163 + $0xb1] sm:$0xff] %vm21, %v146
  %180 = vst.msk [vmem:[%s163 + $0xc1] sm:$0xff] %vm21, %v147
  %181 = vst.msk [vmem:[%s163 + $0xc9] sm:$0xff] %vm21, %v148
  %182 = vst.msk [vmem:[%s163 + $0xd9] sm:$0xff] %vm21, %v149
  %183 = vst.msk [vmem:[%s163 + $0xe1] sm:$0xff] %vm21, %v150
  %184 = vst.msk [vmem:[%s163 + $0xf1] sm:$0xff] %vm21, %v151
  %185 = vst.msk [vmem:[%s163 + $0xf9] sm:$0xff] %vm21, %v152
  %186 = vst.msk [vmem:[%s163 + $0x109] sm:$0xff] %vm21, %v153
  %187 = vst.msk [vmem:[%s163 + $0x111] sm:$0xff] %vm21, %v154
  %188 = vst.msk [vmem:[%s163 + $0x121] sm:$0xff] %vm21, %v155
  %189 = vst.msk [vmem:[%s163 + $0x129] sm:$0xff] %vm21, %v156
  %190 = vst.msk [vmem:[%s163 + $0x139] sm:$0xff] %vm21, %v157
  %191 = vst.msk [vmem:[%s163 + $0x141] sm:$0xff] %vm21, %v158
  %192 = vst.msk [vmem:[%s163 + $0x151] sm:$0xff] %vm21, %v159
  %193 = vst.msk [vmem:[%s163 + $0x159] sm:$0xff] %vm21, %v160
  %194 = vst.msk [vmem:[%s163 + $0x169] sm:$0xff] %vm21, %v161
  %195 = vst.msk [vmem:[%s163 + $0x171] sm:$0xff] %vm21, %v162
  %s196 = scalar_lea.vmem %s0, 256
  %v197 = vld [vmem:[%s196] sm:$0xff]
  %v198 = vld [vmem:[%s196 + $0x8] sm:$0xff]
  %v199 = vld [vmem:[%s196 + $0x10] sm:$0xff]
  %v200 = vld [vmem:[%s196 + $0x18] sm:$0xff]
  %v201 = vld [vmem:[%s196 + $0x20] sm:$0xff]
  %v202 = vld [vmem:[%s196 + $0x28] sm:$0xff]
  %v203 = vld [vmem:[%s196 + $0x30] sm:$0xff]
  %v204 = vld [vmem:[%s196 + $0x38] sm:$0xff]
  %v205 = vld [vmem:[%s196 + $0x40] sm:$0xff]
  %v206 = vld [vmem:[%s196 + $0x48] sm:$0xff]
  %v207 = vld [vmem:[%s196 + $0x50] sm:$0xff]
  %v208 = vld [vmem:[%s196 + $0x58] sm:$0xff]
  %v209 = vld [vmem:[%s196 + $0x60] sm:$0xff]
  %v210 = vld [vmem:[%s196 + $0x68] sm:$0xff]
  %v211 = vld [vmem:[%s196 + $0x70] sm:$0xff]
  %v212 = vld [vmem:[%s196 + $0x78] sm:$0xff]
  %v213 = vld [vmem:[%s196 + $0x80] sm:$0xff]
  %v214 = vld [vmem:[%s196 + $0x88] sm:$0xff]
  %v215 = vld [vmem:[%s196 + $0x90] sm:$0xff]
  %v216 = vld [vmem:[%s196 + $0x98] sm:$0xff]
  %v217 = vld [vmem:[%s196 + $0xa0] sm:$0xff]
  %v218 = vld [vmem:[%s196 + $0xa8] sm:$0xff]
  %v219 = vld [vmem:[%s196 + $0xb0] sm:$0xff]
  %v220 = vld [vmem:[%s196 + $0xb8] sm:$0xff]
  %v221 = vld [vmem:[%s196 + $0xc0] sm:$0xff]
  %v222 = vld [vmem:[%s196 + $0xc8] sm:$0xff]
  %v223 = vld [vmem:[%s196 + $0xd0] sm:$0xff]
  %v224 = vld [vmem:[%s196 + $0xd8] sm:$0xff]
  %v225 = vld [vmem:[%s196 + $0xe0] sm:$0xff]
  %v226 = vld [vmem:[%s196 + $0xe8] sm:$0xff]
  %v227 = vld [vmem:[%s196 + $0xf0] sm:$0xff]
  %v228 = vld [vmem:[%s196 + $0xf8] sm:$0xff]
  %s229 = scalar_lea.vmem [#allocation2], 456
  %230 = vst.msk [vmem:[%s229 + $0x1] sm:$0xff] %vm21, %v197
  %231 = vst.msk [vmem:[%s229 + $0x9] sm:$0xff] %vm21, %v198
  %232 = vst.msk [vmem:[%s229 + $0x19] sm:$0xff] %vm21, %v199
  %233 = vst.msk [vmem:[%s229 + $0x21] sm:$0xff] %vm21, %v200
  %234 = vst.msk [vmem:[%s229 + $0x31] sm:$0xff] %vm21, %v201
  %235 = vst.msk [vmem:[%s229 + $0x39] sm:$0xff] %vm21, %v202
  %236 = vst.msk [vmem:[%s229 + $0x49] sm:$0xff] %vm21, %v203
  %237 = vst.msk [vmem:[%s229 + $0x51] sm:$0xff] %vm21, %v204
  %238 = vst.msk [vmem:[%s229 + $0x61] sm:$0xff] %vm21, %v205
  %239 = vst.msk [vmem:[%s229 + $0x69] sm:$0xff] %vm21, %v206
  %240 = vst.msk [vmem:[%s229 + $0x79] sm:$0xff] %vm21, %v207
  %241 = vst.msk [vmem:[%s229 + $0x81] sm:$0xff] %vm21, %v208
  %242 = vst.msk [vmem:[%s229 + $0x91] sm:$0xff] %vm21, %v209
  %243 = vst.msk [vmem:[%s229 + $0x99] sm:$0xff] %vm21, %v210
  %244 = vst.msk [vmem:[%s229 + $0xa9] sm:$0xff] %vm21, %v211
  %245 = vst.msk [vmem:[%s229 + $0xb1] sm:$0xff] %vm21, %v212
  %246 = vst.msk [vmem:[%s229 + $0xc1] sm:$0xff] %vm21, %v213
  %247 = vst.msk [vmem:[%s229 + $0xc9] sm:$0xff] %vm21, %v214
  %248 = vst.msk [vmem:[%s229 + $0xd9] sm:$0xff] %vm21, %v215
  %249 = vst.msk [vmem:[%s229 + $0xe1] sm:$0xff] %vm21, %v216
  %250 = vst.msk [vmem:[%s229 + $0xf1] sm:$0xff] %vm21, %v217
  %251 = vst.msk [vmem:[%s229 + $0xf9] sm:$0xff] %vm21, %v218
  %252 = vst.msk [vmem:[%s229 + $0x109] sm:$0xff] %vm21, %v219
  %253 = vst.msk [vmem:[%s229 + $0x111] sm:$0xff] %vm21, %v220
  %254 = vst.msk [vmem:[%s229 + $0x121] sm:$0xff] %vm21, %v221
  %255 = vst.msk [vmem:[%s229 + $0x129] sm:$0xff] %vm21, %v222
  %256 = vst.msk [vmem:[%s229 + $0x139] sm:$0xff] %vm21, %v223
  %257 = vst.msk [vmem:[%s229 + $0x141] sm:$0xff] %vm21, %v224
  %258 = vst.msk [vmem:[%s229 + $0x151] sm:$0xff] %vm21, %v225
  %259 = vst.msk [vmem:[%s229 + $0x159] sm:$0xff] %vm21, %v226
  %260 = vst.msk [vmem:[%s229 + $0x169] sm:$0xff] %vm21, %v227
  %261 = vst.msk [vmem:[%s229 + $0x171] sm:$0xff] %vm21, %v228
  %v262 = vld [vmem:[#allocation2] sm:$0xff]
  %v263 = vld [vmem:[#allocation2 + $0x8] sm:$0xff]
  %v264 = vld [vmem:[#allocation2 + $0x18] sm:$0xff]
  %v265 = vld [vmem:[#allocation2 + $0x20] sm:$0xff]
  %v266 = vld [vmem:[#allocation2 + $0x30] sm:$0xff]
  %v267 = vld [vmem:[#allocation2 + $0x38] sm:$0xff]
  %v268 = vld [vmem:[#allocation2 + $0x48] sm:$0xff]
  %v269 = vld [vmem:[#allocation2 + $0x50] sm:$0xff]
  %v270 = vld [vmem:[#allocation2 + $0x60] sm:$0xff]
  %v271 = vld [vmem:[#allocation2 + $0x68] sm:$0xff]
  %v272 = vld [vmem:[#allocation2 + $0x78] sm:$0xff]
  %v273 = vld [vmem:[#allocation2 + $0x80] sm:$0xff]
  %v274 = vld [vmem:[#allocation2 + $0x90] sm:$0xff]
  %v275 = vld [vmem:[#allocation2 + $0x98] sm:$0xff]
  %v276 = vld [vmem:[#allocation2 + $0xa8] sm:$0xff]
  %v277 = vld [vmem:[#allocation2 + $0xb0] sm:$0xff]
  %v278 = vld [vmem:[#allocation2 + $0xc0] sm:$0xff]
  %v279 = vld [vmem:[#allocation2 + $0xc8] sm:$0xff]
  %v280 = vld [vmem:[#allocation2 + $0xd8] sm:$0xff]
  %v281 = vld [vmem:[#allocation2 + $0xe0] sm:$0xff]
  %v282 = vld [vmem:[#allocation2 + $0xf0] sm:$0xff]
  %v283 = vld [vmem:[#allocation2 + $0xf8] sm:$0xff]
  %v284 = vld [vmem:[#allocation2 + $0x108] sm:$0xff]
  %v285 = vld [vmem:[#allocation2 + $0x110] sm:$0xff]
  %v286 = vld [vmem:[#allocation2 + $0x120] sm:$0xff]
  %v287 = vld [vmem:[#allocation2 + $0x128] sm:$0xff]
  %v288 = vld [vmem:[#allocation2 + $0x138] sm:$0xff]
  %v289 = vld [vmem:[#allocation2 + $0x140] sm:$0xff]
  %v290 = vld [vmem:[#allocation2 + $0x150] sm:$0xff]
  %v291 = vld [vmem:[#allocation2 + $0x158] sm:$0xff]
  %v292 = vld [vmem:[#allocation2 + $0x168] sm:$0xff]
  %v293 = vld [vmem:[#allocation2 + $0x170] sm:$0xff]
  %v294 = vld [vmem:[#allocation2 + $0x1b0] sm:$0xff]
  %v295 = vld [vmem:[#allocation2 + $0x1b8] sm:$0xff]
  %v296 = vld [vmem:[#allocation2 + $0x1c8] sm:$0xff]
  %v297 = vld [vmem:[#allocation2 + $0x1d0] sm:$0xff]
  %v298 = vld [vmem:[#allocation2 + $0x1e0] sm:$0xff]
  %v299 = vld [vmem:[#allocation2 + $0x1e8] sm:$0xff]
  %v300 = vld [vmem:[#allocation2 + $0x1f8] sm:$0xff]
  %v301 = vld [vmem:[#allocation2 + $0x200] sm:$0xff]
  %v302 = vld [vmem:[#allocation2 + $0x210] sm:$0xff]
  %v303 = vld [vmem:[#allocation2 + $0x218] sm:$0xff]
  %v304 = vld [vmem:[#allocation2 + $0x228] sm:$0xff]
  %v305 = vld [vmem:[#allocation2 + $0x230] sm:$0xff]
  %v306 = vld [vmem:[#allocation2 + $0x240] sm:$0xff]
  %v307 = vld [vmem:[#allocation2 + $0x248] sm:$0xff]
  %v308 = vld [vmem:[#allocation2 + $0x258] sm:$0xff]
  %v309 = vld [vmem:[#allocation2 + $0x260] sm:$0xff]
  %v310 = vld [vmem:[#allocation2 + $0x270] sm:$0xff]
  %v311 = vld [vmem:[#allocation2 + $0x278] sm:$0xff]
  %v312 = vld [vmem:[#allocation2 + $0x288] sm:$0xff]
  %v313 = vld [vmem:[#allocation2 + $0x290] sm:$0xff]
  %v314 = vld [vmem:[#allocation2 + $0x2a0] sm:$0xff]
  %v315 = vld [vmem:[#allocation2 + $0x2a8] sm:$0xff]
  %v316 = vld [vmem:[#allocation2 + $0x2b8] sm:$0xff]
  %v317 = vld [vmem:[#allocation2 + $0x2c0] sm:$0xff]
  %v318 = vld [vmem:[#allocation2 + $0x2d0] sm:$0xff]
  %v319 = vld [vmem:[#allocation2 + $0x2d8] sm:$0xff]
  %v320 = vld [vmem:[#allocation2 + $0x2e8] sm:$0xff]
  %v321 = vld [vmem:[#allocation2 + $0x2f0] sm:$0xff]
  %v322 = vld [vmem:[#allocation2 + $0x300] sm:$0xff]
  %v323 = vld [vmem:[#allocation2 + $0x308] sm:$0xff]
  %v324 = vld [vmem:[#allocation2 + $0x318] sm:$0xff]
  %v325 = vld [vmem:[#allocation2 + $0x320] sm:$0xff]
  %v326 = vpack.c.bf16 %v263, %v262
  %v327 = vpack.c.bf16 %v265, %v264
  %v328 = vpack.c.bf16 %v267, %v266
  %v329 = vpack.c.bf16 %v269, %v268
  %v330 = vpack.c.bf16 %v271, %v270
  %v331 = vpack.c.bf16 %v273, %v272
  %v332 = vpack.c.bf16 %v275, %v274
  %v333 = vpack.c.bf16 %v277, %v276
  %v334 = vpack.c.bf16 %v279, %v278
  %v335 = vpack.c.bf16 %v281, %v280
  %v336 = vpack.c.bf16 %v283, %v282
  %v337 = vpack.c.bf16 %v285, %v284
  %v338 = vpack.c.bf16 %v287, %v286
  %v339 = vpack.c.bf16 %v289, %v288
  %v340 = vpack.c.bf16 %v291, %v290
  %v341 = vpack.c.bf16 %v293, %v292
  %v342 = vpack.c.bf16 %v295, %v294
  %v343 = vpack.c.bf16 %v297, %v296
  %v344 = vpack.c.bf16 %v299, %v298
  %v345 = vpack.c.bf16 %v301, %v300
  %v346 = vpack.c.bf16 %v303, %v302
  %v347 = vpack.c.bf16 %v305, %v304
  %v348 = vpack.c.bf16 %v307, %v306
  %v349 = vpack.c.bf16 %v309, %v308
  %v350 = vpack.c.bf16 %v311, %v310
  %v351 = vpack.c.bf16 %v313, %v312
  %v352 = vpack.c.bf16 %v315, %v314
  %v353 = vpack.c.bf16 %v317, %v316
  %v354 = vpack.c.bf16 %v319, %v318
  %v355 = vpack.c.bf16 %v321, %v320
  %v356 = vpack.c.bf16 %v323, %v322
  %v357 = vpack.c.bf16 %v325, %v324
  %v358 = vld [vmem:[%s1] sm:$0xf]
  %v359 = vld [vmem:[%s1 + $0x4] sm:$0xf]
  %v360 = vld [vmem:[#allocation2 + $0x1] sm:$0xff]
  %v361 = vld [vmem:[#allocation2 + $0x9] sm:$0xff]
  %v362 = vld [vmem:[#allocation2 + $0x19] sm:$0xff]
  %v363 = vld [vmem:[#allocation2 + $0x21] sm:$0xff]
  %v364 = vld [vmem:[#allocation2 + $0x31] sm:$0xff]
  %v365 = vld [vmem:[#allocation2 + $0x39] sm:$0xff]
  %v366 = vld [vmem:[#allocation2 + $0x49] sm:$0xff]
  %v367 = vld [vmem:[#allocation2 + $0x51] sm:$0xff]
  %v368 = vld [vmem:[#allocation2 + $0x61] sm:$0xff]
  %v369 = vld [vmem:[#allocation2 + $0x69] sm:$0xff]
  %v370 = vld [vmem:[#allocation2 + $0x79] sm:$0xff]
  %v371 = vld [vmem:[#allocation2 + $0x81] sm:$0xff]
  %v372 = vld [vmem:[#allocation2 + $0x91] sm:$0xff]
  %v373 = vld [vmem:[#allocation2 + $0x99] sm:$0xff]
  %v374 = vld [vmem:[#allocation2 + $0xa9] sm:$0xff]
  %v375 = vld [vmem:[#allocation2 + $0xb1] sm:$0xff]
  %v376 = vld [vmem:[#allocation2 + $0xc1] sm:$0xff]
  %v377 = vld [vmem:[#allocation2 + $0xc9] sm:$0xff]
  %v378 = vld [vmem:[#allocation2 + $0xd9] sm:$0xff]
  %v379 = vld [vmem:[#allocation2 + $0xe1] sm:$0xff]
  %v380 = vld [vmem:[#allocation2 + $0xf1] sm:$0xff]
  %v381 = vld [vmem:[#allocation2 + $0xf9] sm:$0xff]
  %v382 = vld [vmem:[#allocation2 + $0x109] sm:$0xff]
  %v383 = vld [vmem:[#allocation2 + $0x111] sm:$0xff]
  %v384 = vld [vmem:[#allocation2 + $0x121] sm:$0xff]
  %v385 = vld [vmem:[#allocation2 + $0x129] sm:$0xff]
  %v386 = vld [vmem:[#allocation2 + $0x139] sm:$0xff]
  %v387 = vld [vmem:[#allocation2 + $0x141] sm:$0xff]
  %v388 = vld [vmem:[#allocation2 + $0x151] sm:$0xff]
  %v389 = vld [vmem:[#allocation2 + $0x159] sm:$0xff]
  %v390 = vld [vmem:[#allocation2 + $0x169] sm:$0xff]
  %v391 = vld [vmem:[#allocation2 + $0x171] sm:$0xff]
  %v392 = vld [vmem:[#allocation2 + $0x1b1] sm:$0xff]
  %v393 = vld [vmem:[#allocation2 + $0x1b9] sm:$0xff]
  %v394 = vld [vmem:[#allocation2 + $0x1c9] sm:$0xff]
  %v395 = vld [vmem:[#allocation2 + $0x1d1] sm:$0xff]
  %v396 = vld [vmem:[#allocation2 + $0x1e1] sm:$0xff]
  %v397 = vld [vmem:[#allocation2 + $0x1e9] sm:$0xff]
  %v398 = vld [vmem:[#allocation2 + $0x1f9] sm:$0xff]
  %v399 = vld [vmem:[#allocation2 + $0x201] sm:$0xff]
  %v400 = vld [vmem:[#allocation2 + $0x211] sm:$0xff]
  %v401 = vld [vmem:[#allocation2 + $0x219] sm:$0xff]
  %v402 = vld [vmem:[#allocation2 + $0x229] sm:$0xff]
  %v403 = vld [vmem:[#allocation2 + $0x231] sm:$0xff]
  %v404 = vld [vmem:[#allocation2 + $0x241] sm:$0xff]
  %v405 = vld [vmem:[#allocation2 + $0x249] sm:$0xff]
  %v406 = vld [vmem:[#allocation2 + $0x259] sm:$0xff]
  %v407 = vld [vmem:[#allocation2 + $0x261] sm:$0xff]
  %v408 = vld [vmem:[#allocation2 + $0x271] sm:$0xff]
  %v409 = vld [vmem:[#allocation2 + $0x279] sm:$0xff]
  %v410 = vld [vmem:[#allocation2 + $0x289] sm:$0xff]
  %v411 = vld [vmem:[#allocation2 + $0x291] sm:$0xff]
  %v412 = vld [vmem:[#allocation2 + $0x2a1] sm:$0xff]
  %v413 = vld [vmem:[#allocation2 + $0x2a9] sm:$0xff]
  %v414 = vld [vmem:[#allocation2 + $0x2b9] sm:$0xff]
  %v415 = vld [vmem:[#allocation2 + $0x2c1] sm:$0xff]
  %v416 = vld [vmem:[#allocation2 + $0x2d1] sm:$0xff]
  %v417 = vld [vmem:[#allocation2 + $0x2d9] sm:$0xff]
  %v418 = vld [vmem:[#allocation2 + $0x2e9] sm:$0xff]
  %v419 = vld [vmem:[#allocation2 + $0x2f1] sm:$0xff]
  %v420 = vld [vmem:[#allocation2 + $0x301] sm:$0xff]
  %v421 = vld [vmem:[#allocation2 + $0x309] sm:$0xff]
  %v422 = vld [vmem:[#allocation2 + $0x319] sm:$0xff]
  %v423 = vld [vmem:[#allocation2 + $0x321] sm:$0xff]
  %v424 = vpack.c.bf16 %v361, %v360
  %v425 = vpack.c.bf16 %v363, %v362
  %v426 = vpack.c.bf16 %v365, %v364
  %v427 = vpack.c.bf16 %v367, %v366
  %v428 = vpack.c.bf16 %v369, %v368
  %v429 = vpack.c.bf16 %v371, %v370
  %v430 = vpack.c.bf16 %v373, %v372
  %v431 = vpack.c.bf16 %v375, %v374
  %v432 = vpack.c.bf16 %v377, %v376
  %v433 = vpack.c.bf16 %v379, %v378
  %v434 = vpack.c.bf16 %v381, %v380
  %v435 = vpack.c.bf16 %v383, %v382
  %v436 = vpack.c.bf16 %v385, %v384
  %v437 = vpack.c.bf16 %v387, %v386
  %v438 = vpack.c.bf16 %v389, %v388
  %v439 = vpack.c.bf16 %v391, %v390
  %v440 = vpack.c.bf16 %v393, %v392
  %v441 = vpack.c.bf16 %v395, %v394
  %v442 = vpack.c.bf16 %v397, %v396
  %v443 = vpack.c.bf16 %v399, %v398
  %v444 = vpack.c.bf16 %v401, %v400
  %v445 = vpack.c.bf16 %v403, %v402
  %v446 = vpack.c.bf16 %v405, %v404
  %v447 = vpack.c.bf16 %v407, %v406
  %v448 = vpack.c.bf16 %v409, %v408
  %v449 = vpack.c.bf16 %v411, %v410
  %v450 = vpack.c.bf16 %v413, %v412
  %v451 = vpack.c.bf16 %v415, %v414
  %v452 = vpack.c.bf16 %v417, %v416
  %v453 = vpack.c.bf16 %v419, %v418
  %v454 = vpack.c.bf16 %v421, %v420
  %v455 = vpack.c.bf16 %v423, %v422
  %s456 = scalar_lea.vmem %s1, 8
  %v457 = vld [vmem:[%s456] sm:$0xf]
  %v458 = vld [vmem:[%s456 + $0x4] sm:$0xf]
  %v461 = vunpack.c.l.b16 %v457
  %v462 = vunpack.c.l.b16 %v458
  %v463 = vpack.c.b16 %v462, %v461
  %v466 = vsel %vm21, %v424, 0
  %v469 = vsel %vm21, %v425, 0
  %v472 = vsel %vm21, %v426, 0
  %v475 = vsel %vm21, %v427, 0
  %v478 = vsel %vm21, %v428, 0
  %v481 = vsel %vm21, %v429, 0
  %v484 = vsel %vm21, %v430, 0
  %v487 = vsel %vm21, %v431, 0
  %v490 = vsel %vm21, %v432, 0
  %v493 = vsel %vm21, %v433, 0
  %v496 = vsel %vm21, %v434, 0
  %v499 = vsel %vm21, %v435, 0
  %v502 = vsel %vm21, %v436, 0
  %v505 = vsel %vm21, %v437, 0
  %v508 = vsel %vm21, %v438, 0
  %v511 = vsel %vm21, %v439, 0
  %v514 = vsel %vm21, %v440, 0
  %v517 = vsel %vm21, %v441, 0
  %v520 = vsel %vm21, %v442, 0
  %v523 = vsel %vm21, %v443, 0
  %v526 = vsel %vm21, %v444, 0
  %v529 = vsel %vm21, %v445, 0
  %v532 = vsel %vm21, %v446, 0
  %v535 = vsel %vm21, %v447, 0
  %v538 = vsel %vm21, %v448, 0
  %v541 = vsel %vm21, %v449, 0
  %v544 = vsel %vm21, %v450, 0
  %v547 = vsel %vm21, %v451, 0
  %v550 = vsel %vm21, %v452, 0
  %v553 = vsel %vm21, %v453, 0
  %v556 = vsel %vm21, %v454, 0
  %v559 = vsel %vm21, %v455, 0
  %561 = vmatpush.bf16.msra.mxu0 0
  %562 = vmatpush.bf16.msra.mxu0 0
  %563 = vmatpush.bf16.msra.mxu0 0
  %564 = vmatpush.bf16.msra.mxu0 0
  %565 = vmatpush.bf16.msra.mxu0 0
  %566 = vmatpush.bf16.msra.mxu0 0
  %567 = vmatpush.bf16.msra.mxu0 0
  %568 = vmatpush.bf16.msra.mxu0 %v463
  %569 = vmatmul.bf16.gmra.mxu0 %v466
  %v570 = vpop.f32.mrf.mxu0
  %v571 = vadd.f32 0.0, %v570
  %v572 = vpop.f32.mrf.mxu0
  %v573 = vadd.f32 0.0, %v572
  %574 = vmatmul.bf16.gmra.mxu0 %v469
  %v575 = vpop.f32.mrf.mxu0
  %v576 = vadd.f32 0.0, %v575
  %v577 = vpop.f32.mrf.mxu0
  %v578 = vadd.f32 0.0, %v577
  %579 = vmatmul.bf16.gmra.mxu0 %v472
  %v580 = vpop.f32.mrf.mxu0
  %v581 = vadd.f32 0.0, %v580
  %v582 = vpop.f32.mrf.mxu0
  %v583 = vadd.f32 0.0, %v582
  %584 = vmatmul.bf16.gmra.mxu0 %v475
  %v585 = vpop.f32.mrf.mxu0
  %v586 = vadd.f32 0.0, %v585
  %v587 = vpop.f32.mrf.mxu0
  %v588 = vadd.f32 0.0, %v587
  %589 = vmatmul.bf16.gmra.mxu0 %v478
  %v590 = vpop.f32.mrf.mxu0
  %v591 = vadd.f32 0.0, %v590
  %v592 = vpop.f32.mrf.mxu0
  %v593 = vadd.f32 0.0, %v592
  %594 = vmatmul.bf16.gmra.mxu0 %v481
  %v595 = vpop.f32.mrf.mxu0
  %v596 = vadd.f32 0.0, %v595
  %v597 = vpop.f32.mrf.mxu0
  %v598 = vadd.f32 0.0, %v597
  %599 = vmatmul.bf16.gmra.mxu0 %v484
  %v600 = vpop.f32.mrf.mxu0
  %v601 = vadd.f32 0.0, %v600
  %v602 = vpop.f32.mrf.mxu0
  %v603 = vadd.f32 0.0, %v602
  %604 = vmatmul.bf16.gmra.mxu0 %v487
  %v605 = vpop.f32.mrf.mxu0
  %v606 = vadd.f32 0.0, %v605
  %v607 = vpop.f32.mrf.mxu0
  %v608 = vadd.f32 0.0, %v607
  %609 = vmatmul.bf16.gmra.mxu0 %v490
  %v610 = vpop.f32.mrf.mxu0
  %v611 = vadd.f32 0.0, %v610
  %v612 = vpop.f32.mrf.mxu0
  %v613 = vadd.f32 0.0, %v612
  %614 = vmatmul.bf16.gmra.mxu0 %v493
  %v615 = vpop.f32.mrf.mxu0
  %v616 = vadd.f32 0.0, %v615
  %v617 = vpop.f32.mrf.mxu0
  %v618 = vadd.f32 0.0, %v617
  %619 = vmatmul.bf16.gmra.mxu0 %v496
  %v620 = vpop.f32.mrf.mxu0
  %v621 = vadd.f32 0.0, %v620
  %v622 = vpop.f32.mrf.mxu0
  %v623 = vadd.f32 0.0, %v622
  %624 = vmatmul.bf16.gmra.mxu0 %v499
  %v625 = vpop.f32.mrf.mxu0
  %v626 = vadd.f32 0.0, %v625
  %v627 = vpop.f32.mrf.mxu0
  %v628 = vadd.f32 0.0, %v627
  %629 = vmatmul.bf16.gmra.mxu0 %v502
  %v630 = vpop.f32.mrf.mxu0
  %v631 = vadd.f32 0.0, %v630
  %v632 = vpop.f32.mrf.mxu0
  %v633 = vadd.f32 0.0, %v632
  %634 = vmatmul.bf16.gmra.mxu0 %v505
  %v635 = vpop.f32.mrf.mxu0
  %v636 = vadd.f32 0.0, %v635
  %v637 = vpop.f32.mrf.mxu0
  %v638 = vadd.f32 0.0, %v637
  %639 = vmatmul.bf16.gmra.mxu0 %v508
  %v640 = vpop.f32.mrf.mxu0
  %v641 = vadd.f32 0.0, %v640
  %v642 = vpop.f32.mrf.mxu0
  %v643 = vadd.f32 0.0, %v642
  %644 = vmatmul.bf16.gmra.mxu0 %v511
  %v645 = vpop.f32.mrf.mxu0
  %v646 = vadd.f32 0.0, %v645
  %v647 = vpop.f32.mrf.mxu0
  %v648 = vadd.f32 0.0, %v647
  %649 = vmatmul.bf16.gmra.mxu0 %v514
  %v650 = vpop.f32.mrf.mxu0
  %v651 = vadd.f32 0.0, %v650
  %v652 = vpop.f32.mrf.mxu0
  %v653 = vadd.f32 0.0, %v652
  %654 = vmatmul.bf16.gmra.mxu0 %v517
  %v655 = vpop.f32.mrf.mxu0
  %v656 = vadd.f32 0.0, %v655
  %v657 = vpop.f32.mrf.mxu0
  %v658 = vadd.f32 0.0, %v657
  %659 = vmatmul.bf16.gmra.mxu0 %v520
  %v660 = vpop.f32.mrf.mxu0
  %v661 = vadd.f32 0.0, %v660
  %v662 = vpop.f32.mrf.mxu0
  %v663 = vadd.f32 0.0, %v662
  %664 = vmatmul.bf16.gmra.mxu0 %v523
  %v665 = vpop.f32.mrf.mxu0
  %v666 = vadd.f32 0.0, %v665
  %v667 = vpop.f32.mrf.mxu0
  %v668 = vadd.f32 0.0, %v667
  %669 = vmatmul.bf16.gmra.mxu0 %v526
  %v670 = vpop.f32.mrf.mxu0
  %v671 = vadd.f32 0.0, %v670
  %v672 = vpop.f32.mrf.mxu0
  %v673 = vadd.f32 0.0, %v672
  %674 = vmatmul.bf16.gmra.mxu0 %v529
  %v675 = vpop.f32.mrf.mxu0
  %v676 = vadd.f32 0.0, %v675
  %v677 = vpop.f32.mrf.mxu0
  %v678 = vadd.f32 0.0, %v677
  %679 = vmatmul.bf16.gmra.mxu0 %v532
  %v680 = vpop.f32.mrf.mxu0
  %v681 = vadd.f32 0.0, %v680
  %v682 = vpop.f32.mrf.mxu0
  %v683 = vadd.f32 0.0, %v682
  %684 = vmatmul.bf16.gmra.mxu0 %v535
  %v685 = vpop.f32.mrf.mxu0
  %v686 = vadd.f32 0.0, %v685
  %v687 = vpop.f32.mrf.mxu0
  %v688 = vadd.f32 0.0, %v687
  %689 = vmatmul.bf16.gmra.mxu0 %v538
  %v690 = vpop.f32.mrf.mxu0
  %v691 = vadd.f32 0.0, %v690
  %v692 = vpop.f32.mrf.mxu0
  %v693 = vadd.f32 0.0, %v692
  %694 = vmatmul.bf16.gmra.mxu0 %v541
  %v695 = vpop.f32.mrf.mxu0
  %v696 = vadd.f32 0.0, %v695
  %v697 = vpop.f32.mrf.mxu0
  %v698 = vadd.f32 0.0, %v697
  %699 = vmatmul.bf16.gmra.mxu0 %v544
  %v700 = vpop.f32.mrf.mxu0
  %v701 = vadd.f32 0.0, %v700
  %v702 = vpop.f32.mrf.mxu0
  %v703 = vadd.f32 0.0, %v702
  %704 = vmatmul.bf16.gmra.mxu0 %v547
  %v705 = vpop.f32.mrf.mxu0
  %v706 = vadd.f32 0.0, %v705
  %v707 = vpop.f32.mrf.mxu0
  %v708 = vadd.f32 0.0, %v707
  %709 = vmatmul.bf16.gmra.mxu0 %v550
  %v710 = vpop.f32.mrf.mxu0
  %v711 = vadd.f32 0.0, %v710
  %v712 = vpop.f32.mrf.mxu0
  %v713 = vadd.f32 0.0, %v712
  %714 = vmatmul.bf16.gmra.mxu0 %v553
  %v715 = vpop.f32.mrf.mxu0
  %v716 = vadd.f32 0.0, %v715
  %v717 = vpop.f32.mrf.mxu0
  %v718 = vadd.f32 0.0, %v717
  %719 = vmatmul.bf16.gmra.mxu0 %v556
  %v720 = vpop.f32.mrf.mxu0
  %v721 = vadd.f32 0.0, %v720
  %v722 = vpop.f32.mrf.mxu0
  %v723 = vadd.f32 0.0, %v722
  %724 = vmatmul.bf16.gmra.mxu0 %v559
  %v725 = vpop.f32.mrf.mxu0
  %v726 = vadd.f32 0.0, %v725
  %v727 = vpop.f32.mrf.mxu0
  %v728 = vadd.f32 0.0, %v727
  %729 = vdwg.mxu0
  %v732 = vunpack.c.l.b16 %v358
  %v733 = vunpack.c.l.b16 %v359
  %v734 = vpack.c.b16 %v733, %v732
  %v737 = vsel %vm21, %v326, 0
  %v740 = vsel %vm21, %v327, 0
  %v743 = vsel %vm21, %v328, 0
  %v746 = vsel %vm21, %v329, 0
  %v749 = vsel %vm21, %v330, 0
  %v752 = vsel %vm21, %v331, 0
  %v755 = vsel %vm21, %v332, 0
  %v758 = vsel %vm21, %v333, 0
  %v761 = vsel %vm21, %v334, 0
  %v764 = vsel %vm21, %v335, 0
  %v767 = vsel %vm21, %v336, 0
  %v770 = vsel %vm21, %v337, 0
  %v773 = vsel %vm21, %v338, 0
  %v776 = vsel %vm21, %v339, 0
  %v779 = vsel %vm21, %v340, 0
  %v782 = vsel %vm21, %v341, 0
  %v785 = vsel %vm21, %v342, 0
  %v788 = vsel %vm21, %v343, 0
  %v791 = vsel %vm21, %v344, 0
  %v794 = vsel %vm21, %v345, 0
  %v797 = vsel %vm21, %v346, 0
  %v800 = vsel %vm21, %v347, 0
  %v803 = vsel %vm21, %v348, 0
  %v806 = vsel %vm21, %v349, 0
  %v809 = vsel %vm21, %v350, 0
  %v812 = vsel %vm21, %v351, 0
  %v815 = vsel %vm21, %v352, 0
  %v818 = vsel %vm21, %v353, 0
  %v821 = vsel %vm21, %v354, 0
  %v824 = vsel %vm21, %v355, 0
  %v827 = vsel %vm21, %v356, 0
  %v830 = vsel %vm21, %v357, 0
  %832 = vmatpush.bf16.msra.mxu0 0
  %833 = vmatpush.bf16.msra.mxu0 0
  %834 = vmatpush.bf16.msra.mxu0 0
  %835 = vmatpush.bf16.msra.mxu0 0
  %836 = vmatpush.bf16.msra.mxu0 0
  %837 = vmatpush.bf16.msra.mxu0 0
  %838 = vmatpush.bf16.msra.mxu0 0
  %839 = vmatpush.bf16.msra.mxu0 %v734
  %840 = vmatmul.bf16.gmra.mxu0 %v737
  %v841 = vpop.f32.mrf.mxu0
  %v842 = vadd.f32 %v571, %v841
  %v843 = vpop.f32.mrf.mxu0
  %v844 = vadd.f32 %v573, %v843
  %845 = vmatmul.bf16.gmra.mxu0 %v740
  %v846 = vpop.f32.mrf.mxu0
  %v847 = vadd.f32 %v576, %v846
  %v848 = vpop.f32.mrf.mxu0
  %v849 = vadd.f32 %v578, %v848
  %850 = vmatmul.bf16.gmra.mxu0 %v743
  %v851 = vpop.f32.mrf.mxu0
  %v852 = vadd.f32 %v581, %v851
  %v853 = vpop.f32.mrf.mxu0
  %v854 = vadd.f32 %v583, %v853
  %855 = vmatmul.bf16.gmra.mxu0 %v746
  %v856 = vpop.f32.mrf.mxu0
  %v857 = vadd.f32 %v586, %v856
  %v858 = vpop.f32.mrf.mxu0
  %v859 = vadd.f32 %v588, %v858
  %860 = vmatmul.bf16.gmra.mxu0 %v749
  %v861 = vpop.f32.mrf.mxu0
  %v862 = vadd.f32 %v591, %v861
  %v863 = vpop.f32.mrf.mxu0
  %v864 = vadd.f32 %v593, %v863
  %865 = vmatmul.bf16.gmra.mxu0 %v752
  %v866 = vpop.f32.mrf.mxu0
  %v867 = vadd.f32 %v596, %v866
  %v868 = vpop.f32.mrf.mxu0
  %v869 = vadd.f32 %v598, %v868
  %870 = vmatmul.bf16.gmra.mxu0 %v755
  %v871 = vpop.f32.mrf.mxu0
  %v872 = vadd.f32 %v601, %v871
  %v873 = vpop.f32.mrf.mxu0
  %v874 = vadd.f32 %v603, %v873
  %875 = vmatmul.bf16.gmra.mxu0 %v758
  %v876 = vpop.f32.mrf.mxu0
  %v877 = vadd.f32 %v606, %v876
  %v878 = vpop.f32.mrf.mxu0
  %v879 = vadd.f32 %v608, %v878
  %880 = vmatmul.bf16.gmra.mxu0 %v761
  %v881 = vpop.f32.mrf.mxu0
  %v882 = vadd.f32 %v611, %v881
  %v883 = vpop.f32.mrf.mxu0
  %v884 = vadd.f32 %v613, %v883
  %885 = vmatmul.bf16.gmra.mxu0 %v764
  %v886 = vpop.f32.mrf.mxu0
  %v887 = vadd.f32 %v616, %v886
  %v888 = vpop.f32.mrf.mxu0
  %v889 = vadd.f32 %v618, %v888
  %890 = vmatmul.bf16.gmra.mxu0 %v767
  %v891 = vpop.f32.mrf.mxu0
  %v892 = vadd.f32 %v621, %v891
  %v893 = vpop.f32.mrf.mxu0
  %v894 = vadd.f32 %v623, %v893
  %895 = vmatmul.bf16.gmra.mxu0 %v770
  %v896 = vpop.f32.mrf.mxu0
  %v897 = vadd.f32 %v626, %v896
  %v898 = vpop.f32.mrf.mxu0
  %v899 = vadd.f32 %v628, %v898
  %900 = vmatmul.bf16.gmra.mxu0 %v773
  %v901 = vpop.f32.mrf.mxu0
  %v902 = vadd.f32 %v631, %v901
  %v903 = vpop.f32.mrf.mxu0
  %v904 = vadd.f32 %v633, %v903
  %905 = vmatmul.bf16.gmra.mxu0 %v776
  %v906 = vpop.f32.mrf.mxu0
  %v907 = vadd.f32 %v636, %v906
  %v908 = vpop.f32.mrf.mxu0
  %v909 = vadd.f32 %v638, %v908
  %910 = vmatmul.bf16.gmra.mxu0 %v779
  %v911 = vpop.f32.mrf.mxu0
  %v912 = vadd.f32 %v641, %v911
  %v913 = vpop.f32.mrf.mxu0
  %v914 = vadd.f32 %v643, %v913
  %915 = vmatmul.bf16.gmra.mxu0 %v782
  %v916 = vpop.f32.mrf.mxu0
  %v917 = vadd.f32 %v646, %v916
  %v918 = vpop.f32.mrf.mxu0
  %v919 = vadd.f32 %v648, %v918
  %920 = vmatmul.bf16.gmra.mxu0 %v785
  %v921 = vpop.f32.mrf.mxu0
  %v922 = vadd.f32 %v651, %v921
  %v923 = vpop.f32.mrf.mxu0
  %v924 = vadd.f32 %v653, %v923
  %925 = vmatmul.bf16.gmra.mxu0 %v788
  %v926 = vpop.f32.mrf.mxu0
  %v927 = vadd.f32 %v656, %v926
  %v928 = vpop.f32.mrf.mxu0
  %v929 = vadd.f32 %v658, %v928
  %930 = vmatmul.bf16.gmra.mxu0 %v791
  %v931 = vpop.f32.mrf.mxu0
  %v932 = vadd.f32 %v661, %v931
  %v933 = vpop.f32.mrf.mxu0
  %v934 = vadd.f32 %v663, %v933
  %935 = vmatmul.bf16.gmra.mxu0 %v794
  %v936 = vpop.f32.mrf.mxu0
  %v937 = vadd.f32 %v666, %v936
  %v938 = vpop.f32.mrf.mxu0
  %v939 = vadd.f32 %v668, %v938
  %940 = vmatmul.bf16.gmra.mxu0 %v797
  %v941 = vpop.f32.mrf.mxu0
  %v942 = vadd.f32 %v671, %v941
  %v943 = vpop.f32.mrf.mxu0
  %v944 = vadd.f32 %v673, %v943
  %945 = vmatmul.bf16.gmra.mxu0 %v800
  %v946 = vpop.f32.mrf.mxu0
  %v947 = vadd.f32 %v676, %v946
  %v948 = vpop.f32.mrf.mxu0
  %v949 = vadd.f32 %v678, %v948
  %950 = vmatmul.bf16.gmra.mxu0 %v803
  %v951 = vpop.f32.mrf.mxu0
  %v952 = vadd.f32 %v681, %v951
  %v953 = vpop.f32.mrf.mxu0
  %v954 = vadd.f32 %v683, %v953
  %955 = vmatmul.bf16.gmra.mxu0 %v806
  %v956 = vpop.f32.mrf.mxu0
  %v957 = vadd.f32 %v686, %v956
  %v958 = vpop.f32.mrf.mxu0
  %v959 = vadd.f32 %v688, %v958
  %960 = vmatmul.bf16.gmra.mxu0 %v809
  %v961 = vpop.f32.mrf.mxu0
  %v962 = vadd.f32 %v691, %v961
  %v963 = vpop.f32.mrf.mxu0
  %v964 = vadd.f32 %v693, %v963
  %965 = vmatmul.bf16.gmra.mxu0 %v812
  %v966 = vpop.f32.mrf.mxu0
  %v967 = vadd.f32 %v696, %v966
  %v968 = vpop.f32.mrf.mxu0
  %v969 = vadd.f32 %v698, %v968
  %970 = vmatmul.bf16.gmra.mxu0 %v815
  %v971 = vpop.f32.mrf.mxu0
  %v972 = vadd.f32 %v701, %v971
  %v973 = vpop.f32.mrf.mxu0
  %v974 = vadd.f32 %v703, %v973
  %975 = vmatmul.bf16.gmra.mxu0 %v818
  %v976 = vpop.f32.mrf.mxu0
  %v977 = vadd.f32 %v706, %v976
  %v978 = vpop.f32.mrf.mxu0
  %v979 = vadd.f32 %v708, %v978
  %980 = vmatmul.bf16.gmra.mxu0 %v821
  %v981 = vpop.f32.mrf.mxu0
  %v982 = vadd.f32 %v711, %v981
  %v983 = vpop.f32.mrf.mxu0
  %v984 = vadd.f32 %v713, %v983
  %985 = vmatmul.bf16.gmra.mxu0 %v824
  %v986 = vpop.f32.mrf.mxu0
  %v987 = vadd.f32 %v716, %v986
  %v988 = vpop.f32.mrf.mxu0
  %v989 = vadd.f32 %v718, %v988
  %990 = vmatmul.bf16.gmra.mxu0 %v827
  %v991 = vpop.f32.mrf.mxu0
  %v992 = vadd.f32 %v721, %v991
  %v993 = vpop.f32.mrf.mxu0
  %v994 = vadd.f32 %v723, %v993
  %995 = vmatmul.bf16.gmra.mxu0 %v830
  %v996 = vpop.f32.mrf.mxu0
  %v997 = vadd.f32 %v726, %v996
  %v998 = vpop.f32.mrf.mxu0
  %v999 = vadd.f32 %v728, %v998
  %1000 = vdwg.mxu0
  %v1001 = vld [vmem:[#allocation2 + $0x2] sm:$0xff]
  %v1002 = vld [vmem:[#allocation2 + $0xa] sm:$0xff]
  %v1003 = vld [vmem:[#allocation2 + $0x1a] sm:$0xff]
  %v1004 = vld [vmem:[#allocation2 + $0x22] sm:$0xff]
  %v1005 = vld [vmem:[#allocation2 + $0x32] sm:$0xff]
  %v1006 = vld [vmem:[#allocation2 + $0x3a] sm:$0xff]
  %v1007 = vld [vmem:[#allocation2 + $0x4a] sm:$0xff]
  %v1008 = vld [vmem:[#allocation2 + $0x52] sm:$0xff]
  %v1009 = vld [vmem:[#allocation2 + $0x62] sm:$0xff]
  %v1010 = vld [vmem:[#allocation2 + $0x6a] sm:$0xff]
  %v1011 = vld [vmem:[#allocation2 + $0x7a] sm:$0xff]
  %v1012 = vld [vmem:[#allocation2 + $0x82] sm:$0xff]
  %v1013 = vld [vmem:[#allocation2 + $0x92] sm:$0xff]
  %v1014 = vld [vmem:[#allocation2 + $0x9a] sm:$0xff]
  %v1015 = vld [vmem:[#allocation2 + $0xaa] sm:$0xff]
  %v1016 = vld [vmem:[#allocation2 + $0xb2] sm:$0xff]
  %v1017 = vld [vmem:[#allocation2 + $0xc2] sm:$0xff]
  %v1018 = vld [vmem:[#allocation2 + $0xca] sm:$0xff]
  %v1019 = vld [vmem:[#allocation2 + $0xda] sm:$0xff]
  %v1020 = vld [vmem:[#allocation2 + $0xe2] sm:$0xff]
  %v1021 = vld [vmem:[#allocation2 + $0xf2] sm:$0xff]
  %v1022 = vld [vmem:[#allocation2 + $0xfa] sm:$0xff]
  %v1023 = vld [vmem:[#allocation2 + $0x10a] sm:$0xff]
  %v1024 = vld [vmem:[#allocation2 + $0x112] sm:$0xff]
  %v1025 = vld [vmem:[#allocation2 + $0x122] sm:$0xff]
  %v1026 = vld [vmem:[#allocation2 + $0x12a] sm:$0xff]
  %v1027 = vld [vmem:[#allocation2 + $0x13a] sm:$0xff]
  %v1028 = vld [vmem:[#allocation2 + $0x142] sm:$0xff]
  %v1029 = vld [vmem:[#allocation2 + $0x152] sm:$0xff]
  %v1030 = vld [vmem:[#allocation2 + $0x15a] sm:$0xff]
  %v1031 = vld [vmem:[#allocation2 + $0x16a] sm:$0xff]
  %v1032 = vld [vmem:[#allocation2 + $0x172] sm:$0xff]
  %v1033 = vld [vmem:[#allocation2 + $0x1b2] sm:$0xff]
  %v1034 = vld [vmem:[#allocation2 + $0x1ba] sm:$0xff]
  %v1035 = vld [vmem:[#allocation2 + $0x1ca] sm:$0xff]
  %v1036 = vld [vmem:[#allocation2 + $0x1d2] sm:$0xff]
  %v1037 = vld [vmem:[#allocation2 + $0x1e2] sm:$0xff]
  %v1038 = vld [vmem:[#allocation2 + $0x1ea] sm:$0xff]
  %v1039 = vld [vmem:[#allocation2 + $0x1fa] sm:$0xff]
  %v1040 = vld [vmem:[#allocation2 + $0x202] sm:$0xff]
  %v1041 = vld [vmem:[#allocation2 + $0x212] sm:$0xff]
  %v1042 = vld [vmem:[#allocation2 + $0x21a] sm:$0xff]
  %v1043 = vld [vmem:[#allocation2 + $0x22a] sm:$0xff]
  %v1044 = vld [vmem:[#allocation2 + $0x232] sm:$0xff]
  %v1045 = vld [vmem:[#allocation2 + $0x242] sm:$0xff]
  %v1046 = vld [vmem:[#allocation2 + $0x24a] sm:$0xff]
  %v1047 = vld [vmem:[#allocation2 + $0x25a] sm:$0xff]
  %v1048 = vld [vmem:[#allocation2 + $0x262] sm:$0xff]
  %v1049 = vld [vmem:[#allocation2 + $0x272] sm:$0xff]
  %v1050 = vld [vmem:[#allocation2 + $0x27a] sm:$0xff]
  %v1051 = vld [vmem:[#allocation2 + $0x28a] sm:$0xff]
  %v1052 = vld [vmem:[#allocation2 + $0x292] sm:$0xff]
  %v1053 = vld [vmem:[#allocation2 + $0x2a2] sm:$0xff]
  %v1054 = vld [vmem:[#allocation2 + $0x2aa] sm:$0xff]
  %v1055 = vld [vmem:[#allocation2 + $0x2ba] sm:$0xff]
  %v1056 = vld [vmem:[#allocation2 + $0x2c2] sm:$0xff]
  %v1057 = vld [vmem:[#allocation2 + $0x2d2] sm:$0xff]
  %v1058 = vld [vmem:[#allocation2 + $0x2da] sm:$0xff]
  %v1059 = vld [vmem:[#allocation2 + $0x2ea] sm:$0xff]
  %v1060 = vld [vmem:[#allocation2 + $0x2f2] sm:$0xff]
  %v1061 = vld [vmem:[#allocation2 + $0x302] sm:$0xff]
  %v1062 = vld [vmem:[#allocation2 + $0x30a] sm:$0xff]
  %v1063 = vld [vmem:[#allocation2 + $0x31a] sm:$0xff]
  %v1064 = vld [vmem:[#allocation2 + $0x322] sm:$0xff]
  %v1065 = vpack.c.bf16 %v1002, %v1001
  %v1066 = vpack.c.bf16 %v1004, %v1003
  %v1067 = vpack.c.bf16 %v1006, %v1005
  %v1068 = vpack.c.bf16 %v1008, %v1007
  %v1069 = vpack.c.bf16 %v1010, %v1009
  %v1070 = vpack.c.bf16 %v1012, %v1011
  %v1071 = vpack.c.bf16 %v1014, %v1013
  %v1072 = vpack.c.bf16 %v1016, %v1015
  %v1073 = vpack.c.bf16 %v1018, %v1017
  %v1074 = vpack.c.bf16 %v1020, %v1019
  %v1075 = vpack.c.bf16 %v1022, %v1021
  %v1076 = vpack.c.bf16 %v1024, %v1023
  %v1077 = vpack.c.bf16 %v1026, %v1025
  %v1078 = vpack.c.bf16 %v1028, %v1027
  %v1079 = vpack.c.bf16 %v1030, %v1029
  %v1080 = vpack.c.bf16 %v1032, %v1031
  %v1081 = vpack.c.bf16 %v1034, %v1033
  %v1082 = vpack.c.bf16 %v1036, %v1035
  %v1083 = vpack.c.bf16 %v1038, %v1037
  %v1084 = vpack.c.bf16 %v1040, %v1039
  %v1085 = vpack.c.bf16 %v1042, %v1041
  %v1086 = vpack.c.bf16 %v1044, %v1043
  %v1087 = vpack.c.bf16 %v1046, %v1045
  %v1088 = vpack.c.bf16 %v1048, %v1047
  %v1089 = vpack.c.bf16 %v1050, %v1049
  %v1090 = vpack.c.bf16 %v1052, %v1051
  %v1091 = vpack.c.bf16 %v1054, %v1053
  %v1092 = vpack.c.bf16 %v1056, %v1055
  %v1093 = vpack.c.bf16 %v1058, %v1057
  %v1094 = vpack.c.bf16 %v1060, %v1059
  %v1095 = vpack.c.bf16 %v1062, %v1061
  %v1096 = vpack.c.bf16 %v1064, %v1063
  %s1097 = scalar_lea.vmem %s1, 16
  %v1098 = vld [vmem:[%s1097] sm:$0xf]
  %v1099 = vld [vmem:[%s1097 + $0x4] sm:$0xf]
  %v1102 = vunpack.c.l.b16 %v1098
  %v1103 = vunpack.c.l.b16 %v1099
  %v1104 = vpack.c.b16 %v1103, %v1102
  %v1107 = vsel %vm21, %v1065, 0
  %v1110 = vsel %vm21, %v1066, 0
  %v1113 = vsel %vm21, %v1067, 0
  %v1116 = vsel %vm21, %v1068, 0
  %v1119 = vsel %vm21, %v1069, 0
  %v1122 = vsel %vm21, %v1070, 0
  %v1125 = vsel %vm21, %v1071, 0
  %v1128 = vsel %vm21, %v1072, 0
  %v1131 = vsel %vm21, %v1073, 0
  %v1134 = vsel %vm21, %v1074, 0
  %v1137 = vsel %vm21, %v1075, 0
  %v1140 = vsel %vm21, %v1076, 0
  %v1143 = vsel %vm21, %v1077, 0
  %v1146 = vsel %vm21, %v1078, 0
  %v1149 = vsel %vm21, %v1079, 0
  %v1152 = vsel %vm21, %v1080, 0
  %v1155 = vsel %vm21, %v1081, 0
  %v1158 = vsel %vm21, %v1082, 0
  %v1161 = vsel %vm21, %v1083, 0
  %v1164 = vsel %vm21, %v1084, 0
  %v1167 = vsel %vm21, %v1085, 0
  %v1170 = vsel %vm21, %v1086, 0
  %v1173 = vsel %vm21, %v1087, 0
  %v1176 = vsel %vm21, %v1088, 0
  %v1179 = vsel %vm21, %v1089, 0
  %v1182 = vsel %vm21, %v1090, 0
  %v1185 = vsel %vm21, %v1091, 0
  %v1188 = vsel %vm21, %v1092, 0
  %v1191 = vsel %vm21, %v1093, 0
  %v1194 = vsel %vm21, %v1094, 0
  %v1197 = vsel %vm21, %v1095, 0
  %v1200 = vsel %vm21, %v1096, 0
  %1202 = vmatpush.bf16.msra.mxu0 0
  %1203 = vmatpush.bf16.msra.mxu0 0
  %1204 = vmatpush.bf16.msra.mxu0 0
  %1205 = vmatpush.bf16.msra.mxu0 0
  %1206 = vmatpush.bf16.msra.mxu0 0
  %1207 = vmatpush.bf16.msra.mxu0 0
  %1208 = vmatpush.bf16.msra.mxu0 0
  %1209 = vmatpush.bf16.msra.mxu0 %v1104
  %1210 = vmatmul.bf16.gmra.mxu0 %v1107
  %v1211 = vpop.f32.mrf.mxu0
  %v1212 = vadd.f32 0.0, %v1211
  %v1213 = vpop.f32.mrf.mxu0
  %v1214 = vadd.f32 0.0, %v1213
  %1215 = vmatmul.bf16.gmra.mxu0 %v1110
  %v1216 = vpop.f32.mrf.mxu0
  %v1217 = vadd.f32 0.0, %v1216
  %v1218 = vpop.f32.mrf.mxu0
  %v1219 = vadd.f32 0.0, %v1218
  %1220 = vmatmul.bf16.gmra.mxu0 %v1113
  %v1221 = vpop.f32.mrf.mxu0
  %v1222 = vadd.f32 0.0, %v1221
  %v1223 = vpop.f32.mrf.mxu0
  %v1224 = vadd.f32 0.0, %v1223
  %1225 = vmatmul.bf16.gmra.mxu0 %v1116
  %v1226 = vpop.f32.mrf.mxu0
  %v1227 = vadd.f32 0.0, %v1226
  %v1228 = vpop.f32.mrf.mxu0
  %v1229 = vadd.f32 0.0, %v1228
  %1230 = vmatmul.bf16.gmra.mxu0 %v1119
  %v1231 = vpop.f32.mrf.mxu0
  %v1232 = vadd.f32 0.0, %v1231
  %v1233 = vpop.f32.mrf.mxu0
  %v1234 = vadd.f32 0.0, %v1233
  %1235 = vmatmul.bf16.gmra.mxu0 %v1122
  %v1236 = vpop.f32.mrf.mxu0
  %v1237 = vadd.f32 0.0, %v1236
  %v1238 = vpop.f32.mrf.mxu0
  %v1239 = vadd.f32 0.0, %v1238
  %1240 = vmatmul.bf16.gmra.mxu0 %v1125
  %v1241 = vpop.f32.mrf.mxu0
  %v1242 = vadd.f32 0.0, %v1241
  %v1243 = vpop.f32.mrf.mxu0
  %v1244 = vadd.f32 0.0, %v1243
  %1245 = vmatmul.bf16.gmra.mxu0 %v1128
  %v1246 = vpop.f32.mrf.mxu0
  %v1247 = vadd.f32 0.0, %v1246
  %v1248 = vpop.f32.mrf.mxu0
  %v1249 = vadd.f32 0.0, %v1248
  %1250 = vmatmul.bf16.gmra.mxu0 %v1131
  %v1251 = vpop.f32.mrf.mxu0
  %v1252 = vadd.f32 0.0, %v1251
  %v1253 = vpop.f32.mrf.mxu0
  %v1254 = vadd.f32 0.0, %v1253
  %1255 = vmatmul.bf16.gmra.mxu0 %v1134
  %v1256 = vpop.f32.mrf.mxu0
  %v1257 = vadd.f32 0.0, %v1256
  %v1258 = vpop.f32.mrf.mxu0
  %v1259 = vadd.f32 0.0, %v1258
  %1260 = vmatmul.bf16.gmra.mxu0 %v1137
  %v1261 = vpop.f32.mrf.mxu0
  %v1262 = vadd.f32 0.0, %v1261
  %v1263 = vpop.f32.mrf.mxu0
  %v1264 = vadd.f32 0.0, %v1263
  %1265 = vmatmul.bf16.gmra.mxu0 %v1140
  %v1266 = vpop.f32.mrf.mxu0
  %v1267 = vadd.f32 0.0, %v1266
  %v1268 = vpop.f32.mrf.mxu0
  %v1269 = vadd.f32 0.0, %v1268
  %1270 = vmatmul.bf16.gmra.mxu0 %v1143
  %v1271 = vpop.f32.mrf.mxu0
  %v1272 = vadd.f32 0.0, %v1271
  %v1273 = vpop.f32.mrf.mxu0
  %v1274 = vadd.f32 0.0, %v1273
  %1275 = vmatmul.bf16.gmra.mxu0 %v1146
  %v1276 = vpop.f32.mrf.mxu0
  %v1277 = vadd.f32 0.0, %v1276
  %v1278 = vpop.f32.mrf.mxu0
  %v1279 = vadd.f32 0.0, %v1278
  %1280 = vmatmul.bf16.gmra.mxu0 %v1149
  %v1281 = vpop.f32.mrf.mxu0
  %v1282 = vadd.f32 0.0, %v1281
  %v1283 = vpop.f32.mrf.mxu0
  %v1284 = vadd.f32 0.0, %v1283
  %1285 = vmatmul.bf16.gmra.mxu0 %v1152
  %v1286 = vpop.f32.mrf.mxu0
  %v1287 = vadd.f32 0.0, %v1286
  %v1288 = vpop.f32.mrf.mxu0
  %v1289 = vadd.f32 0.0, %v1288
  %1290 = vmatmul.bf16.gmra.mxu0 %v1155
  %v1291 = vpop.f32.mrf.mxu0
  %v1292 = vadd.f32 0.0, %v1291
  %v1293 = vpop.f32.mrf.mxu0
  %v1294 = vadd.f32 0.0, %v1293
  %1295 = vmatmul.bf16.gmra.mxu0 %v1158
  %v1296 = vpop.f32.mrf.mxu0
  %v1297 = vadd.f32 0.0, %v1296
  %v1298 = vpop.f32.mrf.mxu0
  %v1299 = vadd.f32 0.0, %v1298
  %1300 = vmatmul.bf16.gmra.mxu0 %v1161
  %v1301 = vpop.f32.mrf.mxu0
  %v1302 = vadd.f32 0.0, %v1301
  %v1303 = vpop.f32.mrf.mxu0
  %v1304 = vadd.f32 0.0, %v1303
  %1305 = vmatmul.bf16.gmra.mxu0 %v1164
  %v1306 = vpop.f32.mrf.mxu0
  %v1307 = vadd.f32 0.0, %v1306
  %v1308 = vpop.f32.mrf.mxu0
  %v1309 = vadd.f32 0.0, %v1308
  %1310 = vmatmul.bf16.gmra.mxu0 %v1167
  %v1311 = vpop.f32.mrf.mxu0
  %v1312 = vadd.f32 0.0, %v1311
  %v1313 = vpop.f32.mrf.mxu0
  %v1314 = vadd.f32 0.0, %v1313
  %1315 = vmatmul.bf16.gmra.mxu0 %v1170
  %v1316 = vpop.f32.mrf.mxu0
  %v1317 = vadd.f32 0.0, %v1316
  %v1318 = vpop.f32.mrf.mxu0
  %v1319 = vadd.f32 0.0, %v1318
  %1320 = vmatmul.bf16.gmra.mxu0 %v1173
  %v1321 = vpop.f32.mrf.mxu0
  %v1322 = vadd.f32 0.0, %v1321
  %v1323 = vpop.f32.mrf.mxu0
  %v1324 = vadd.f32 0.0, %v1323
  %1325 = vmatmul.bf16.gmra.mxu0 %v1176
  %v1326 = vpop.f32.mrf.mxu0
  %v1327 = vadd.f32 0.0, %v1326
  %v1328 = vpop.f32.mrf.mxu0
  %v1329 = vadd.f32 0.0, %v1328
  %1330 = vmatmul.bf16.gmra.mxu0 %v1179
  %v1331 = vpop.f32.mrf.mxu0
  %v1332 = vadd.f32 0.0, %v1331
  %v1333 = vpop.f32.mrf.mxu0
  %v1334 = vadd.f32 0.0, %v1333
  %1335 = vmatmul.bf16.gmra.mxu0 %v1182
  %v1336 = vpop.f32.mrf.mxu0
  %v1337 = vadd.f32 0.0, %v1336
  %v1338 = vpop.f32.mrf.mxu0
  %v1339 = vadd.f32 0.0, %v1338
  %1340 = vmatmul.bf16.gmra.mxu0 %v1185
  %v1341 = vpop.f32.mrf.mxu0
  %v1342 = vadd.f32 0.0, %v1341
  %v1343 = vpop.f32.mrf.mxu0
  %v1344 = vadd.f32 0.0, %v1343
  %1345 = vmatmul.bf16.gmra.mxu0 %v1188
  %v1346 = vpop.f32.mrf.mxu0
  %v1347 = vadd.f32 0.0, %v1346
  %v1348 = vpop.f32.mrf.mxu0
  %v1349 = vadd.f32 0.0, %v1348
  %1350 = vmatmul.bf16.gmra.mxu0 %v1191
  %v1351 = vpop.f32.mrf.mxu0
  %v1352 = vadd.f32 0.0, %v1351
  %v1353 = vpop.f32.mrf.mxu0
  %v1354 = vadd.f32 0.0, %v1353
  %1355 = vmatmul.bf16.gmra.mxu0 %v1194
  %v1356 = vpop.f32.mrf.mxu0
  %v1357 = vadd.f32 0.0, %v1356
  %v1358 = vpop.f32.mrf.mxu0
  %v1359 = vadd.f32 0.0, %v1358
  %1360 = vmatmul.bf16.gmra.mxu0 %v1197
  %v1361 = vpop.f32.mrf.mxu0
  %v1362 = vadd.f32 0.0, %v1361
  %v1363 = vpop.f32.mrf.mxu0
  %v1364 = vadd.f32 0.0, %v1363
  %1365 = vmatmul.bf16.gmra.mxu0 %v1200
  %v1366 = vpop.f32.mrf.mxu0
  %v1367 = vadd.f32 0.0, %v1366
  %v1368 = vpop.f32.mrf.mxu0
  %v1369 = vadd.f32 0.0, %v1368
  %1370 = vdwg.mxu0
  %v1371 = vadd.f32 %v842, %v1212
  %v1372 = vadd.f32 %v844, %v1214
  %v1373 = vadd.f32 %v847, %v1217
  %v1374 = vadd.f32 %v849, %v1219
  %v1375 = vadd.f32 %v852, %v1222
  %v1376 = vadd.f32 %v854, %v1224
  %v1377 = vadd.f32 %v857, %v1227
  %v1378 = vadd.f32 %v859, %v1229
  %v1379 = vadd.f32 %v862, %v1232
  %v1380 = vadd.f32 %v864, %v1234
  %v1381 = vadd.f32 %v867, %v1237
  %v1382 = vadd.f32 %v869, %v1239
  %v1383 = vadd.f32 %v872, %v1242
  %v1384 = vadd.f32 %v874, %v1244
  %v1385 = vadd.f32 %v877, %v1247
  %v1386 = vadd.f32 %v879, %v1249
  %v1387 = vadd.f32 %v882, %v1252
  %v1388 = vadd.f32 %v884, %v1254
  %v1389 = vadd.f32 %v887, %v1257
  %v1390 = vadd.f32 %v889, %v1259
  %v1391 = vadd.f32 %v892, %v1262
  %v1392 = vadd.f32 %v894, %v1264
  %v1393 = vadd.f32 %v897, %v1267
  %v1394 = vadd.f32 %v899, %v1269
  %v1395 = vadd.f32 %v902, %v1272
  %v1396 = vadd.f32 %v904, %v1274
  %v1397 = vadd.f32 %v907, %v1277
  %v1398 = vadd.f32 %v909, %v1279
  %v1399 = vadd.f32 %v912, %v1282
  %v1400 = vadd.f32 %v914, %v1284
  %v1401 = vadd.f32 %v917, %v1287
  %v1402 = vadd.f32 %v919, %v1289
  %v1403 = vadd.f32 %v922, %v1292
  %v1404 = vadd.f32 %v924, %v1294
  %v1405 = vadd.f32 %v927, %v1297
  %v1406 = vadd.f32 %v929, %v1299
  %v1407 = vadd.f32 %v932, %v1302
  %v1408 = vadd.f32 %v934, %v1304
  %v1409 = vadd.f32 %v937, %v1307
  %v1410 = vadd.f32 %v939, %v1309
  %v1411 = vadd.f32 %v942, %v1312
  %v1412 = vadd.f32 %v944, %v1314
  %v1413 = vadd.f32 %v947, %v1317
  %v1414 = vadd.f32 %v949, %v1319
  %v1415 = vadd.f32 %v952, %v1322
  %v1416 = vadd.f32 %v954, %v1324
  %v1417 = vadd.f32 %v957, %v1327
  %v1418 = vadd.f32 %v959, %v1329
  %v1419 = vadd.f32 %v962, %v1332
  %v1420 = vadd.f32 %v964, %v1334
  %v1421 = vadd.f32 %v967, %v1337
  %v1422 = vadd.f32 %v969, %v1339
  %v1423 = vadd.f32 %v972, %v1342
  %v1424 = vadd.f32 %v974, %v1344
  %v1425 = vadd.f32 %v977, %v1347
  %v1426 = vadd.f32 %v979, %v1349
  %v1427 = vadd.f32 %v982, %v1352
  %v1428 = vadd.f32 %v984, %v1354
  %v1429 = vadd.f32 %v987, %v1357
  %v1430 = vadd.f32 %v989, %v1359
  %v1431 = vadd.f32 %v992, %v1362
  %v1432 = vadd.f32 %v994, %v1364
  %v1433 = vadd.f32 %v997, %v1367
  %v1434 = vadd.f32 %v999, %v1369
  %v1435 = vld [vmem:[%s163] sm:$0xff]
  %v1436 = vld [vmem:[%s163 + $0x8] sm:$0xff]
  %v1437 = vld [vmem:[%s163 + $0x18] sm:$0xff]
  %v1438 = vld [vmem:[%s163 + $0x20] sm:$0xff]
  %v1439 = vld [vmem:[%s163 + $0x30] sm:$0xff]
  %v1440 = vld [vmem:[%s163 + $0x38] sm:$0xff]
  %v1441 = vld [vmem:[%s163 + $0x48] sm:$0xff]
  %v1442 = vld [vmem:[%s163 + $0x50] sm:$0xff]
  %v1443 = vld [vmem:[%s163 + $0x60] sm:$0xff]
  %v1444 = vld [vmem:[%s163 + $0x68] sm:$0xff]
  %v1445 = vld [vmem:[%s163 + $0x78] sm:$0xff]
  %v1446 = vld [vmem:[%s163 + $0x80] sm:$0xff]
  %v1447 = vld [vmem:[%s163 + $0x90] sm:$0xff]
  %v1448 = vld [vmem:[%s163 + $0x98] sm:$0xff]
  %v1449 = vld [vmem:[%s163 + $0xa8] sm:$0xff]
  %v1450 = vld [vmem:[%s163 + $0xb0] sm:$0xff]
  %v1451 = vld [vmem:[%s163 + $0xc0] sm:$0xff]
  %v1452 = vld [vmem:[%s163 + $0xc8] sm:$0xff]
  %v1453 = vld [vmem:[%s163 + $0xd8] sm:$0xff]
  %v1454 = vld [vmem:[%s163 + $0xe0] sm:$0xff]
  %v1455 = vld [vmem:[%s163 + $0xf0] sm:$0xff]
  %v1456 = vld [vmem:[%s163 + $0xf8] sm:$0xff]
  %v1457 = vld [vmem:[%s163 + $0x108] sm:$0xff]
  %v1458 = vld [vmem:[%s163 + $0x110] sm:$0xff]
  %v1459 = vld [vmem:[%s163 + $0x120] sm:$0xff]
  %v1460 = vld [vmem:[%s163 + $0x128] sm:$0xff]
  %v1461 = vld [vmem:[%s163 + $0x138] sm:$0xff]
  %v1462 = vld [vmem:[%s163 + $0x140] sm:$0xff]
  %v1463 = vld [vmem:[%s163 + $0x150] sm:$0xff]
  %v1464 = vld [vmem:[%s163 + $0x158] sm:$0xff]
  %v1465 = vld [vmem:[%s163 + $0x168] sm:$0xff]
  %v1466 = vld [vmem:[%s163 + $0x170] sm:$0xff]
  %v1467 = vld [vmem:[%s163 + $0x1b0] sm:$0xff]
  %v1468 = vld [vmem:[%s163 + $0x1b8] sm:$0xff]
  %v1469 = vld [vmem:[%s163 + $0x1c8] sm:$0xff]
  %v1470 = vld [vmem:[%s163 + $0x1d0] sm:$0xff]
  %v1471 = vld [vmem:[%s163 + $0x1e0] sm:$0xff]
  %v1472 = vld [vmem:[%s163 + $0x1e8] sm:$0xff]
  %v1473 = vld [vmem:[%s163 + $0x1f8] sm:$0xff]
  %v1474 = vld [vmem:[%s163 + $0x200] sm:$0xff]
  %v1475 = vld [vmem:[%s163 + $0x210] sm:$0xff]
  %v1476 = vld [vmem:[%s163 + $0x218] sm:$0xff]
  %v1477 = vld [vmem:[%s163 + $0x228] sm:$0xff]
  %v1478 = vld [vmem:[%s163 + $0x230] sm:$0xff]
  %v1479 = vld [vmem:[%s163 + $0x240] sm:$0xff]
  %v1480 = vld [vmem:[%s163 + $0x248] sm:$0xff]
  %v1481 = vld [vmem:[%s163 + $0x258] sm:$0xff]
  %v1482 = vld [vmem:[%s163 + $0x260] sm:$0xff]
  %v1483 = vld [vmem:[%s163 + $0x270] sm:$0xff]
  %v1484 = vld [vmem:[%s163 + $0x278] sm:$0xff]
  %v1485 = vld [vmem:[%s163 + $0x288] sm:$0xff]
  %v1486 = vld [vmem:[%s163 + $0x290] sm:$0xff]
  %v1487 = vld [vmem:[%s163 + $0x2a0] sm:$0xff]
  %v1488 = vld [vmem:[%s163 + $0x2a8] sm:$0xff]
  %v1489 = vld [vmem:[%s163 + $0x2b8] sm:$0xff]
  %v1490 = vld [vmem:[%s163 + $0x2c0] sm:$0xff]
  %v1491 = vld [vmem:[%s163 + $0x2d0] sm:$0xff]
  %v1492 = vld [vmem:[%s163 + $0x2d8] sm:$0xff]
  %v1493 = vld [vmem:[%s163 + $0x2e8] sm:$0xff]
  %v1494 = vld [vmem:[%s163 + $0x2f0] sm:$0xff]
  %v1495 = vld [vmem:[%s163 + $0x300] sm:$0xff]
  %v1496 = vld [vmem:[%s163 + $0x308] sm:$0xff]
  %v1497 = vld [vmem:[%s163 + $0x318] sm:$0xff]
  %v1498 = vld [vmem:[%s163 + $0x320] sm:$0xff]
  %v1499 = vpack.c.bf16 %v1436, %v1435
  %v1500 = vpack.c.bf16 %v1438, %v1437
  %v1501 = vpack.c.bf16 %v1440, %v1439
  %v1502 = vpack.c.bf16 %v1442, %v1441
  %v1503 = vpack.c.bf16 %v1444, %v1443
  %v1504 = vpack.c.bf16 %v1446, %v1445
  %v1505 = vpack.c.bf16 %v1448, %v1447
  %v1506 = vpack.c.bf16 %v1450, %v1449
  %v1507 = vpack.c.bf16 %v1452, %v1451
  %v1508 = vpack.c.bf16 %v1454, %v1453
  %v1509 = vpack.c.bf16 %v1456, %v1455
  %v1510 = vpack.c.bf16 %v1458, %v1457
  %v1511 = vpack.c.bf16 %v1460, %v1459
  %v1512 = vpack.c.bf16 %v1462, %v1461
  %v1513 = vpack.c.bf16 %v1464, %v1463
  %v1514 = vpack.c.bf16 %v1466, %v1465
  %v1515 = vpack.c.bf16 %v1468, %v1467
  %v1516 = vpack.c.bf16 %v1470, %v1469
  %v1517 = vpack.c.bf16 %v1472, %v1471
  %v1518 = vpack.c.bf16 %v1474, %v1473
  %v1519 = vpack.c.bf16 %v1476, %v1475
  %v1520 = vpack.c.bf16 %v1478, %v1477
  %v1521 = vpack.c.bf16 %v1480, %v1479
  %v1522 = vpack.c.bf16 %v1482, %v1481
  %v1523 = vpack.c.bf16 %v1484, %v1483
  %v1524 = vpack.c.bf16 %v1486, %v1485
  %v1525 = vpack.c.bf16 %v1488, %v1487
  %v1526 = vpack.c.bf16 %v1490, %v1489
  %v1527 = vpack.c.bf16 %v1492, %v1491
  %v1528 = vpack.c.bf16 %v1494, %v1493
  %v1529 = vpack.c.bf16 %v1496, %v1495
  %v1530 = vpack.c.bf16 %v1498, %v1497
  %s1531 = scalar_lea.vmem %s1, 24
  %v1532 = vld [vmem:[%s1531] sm:$0xf]
  %v1533 = vld [vmem:[%s1531 + $0x4] sm:$0xf]
  %v1536 = vunpack.c.l.b16 %v1532
  %v1537 = vunpack.c.l.b16 %v1533
  %v1538 = vpack.c.b16 %v1537, %v1536
  %v1541 = vsel %vm21, %v1499, 0
  %v1544 = vsel %vm21, %v1500, 0
  %v1547 = vsel %vm21, %v1501, 0
  %v1550 = vsel %vm21, %v1502, 0
  %v1553 = vsel %vm21, %v1503, 0
  %v1556 = vsel %vm21, %v1504, 0
  %v1559 = vsel %vm21, %v1505, 0
  %v1562 = vsel %vm21, %v1506, 0
  %v1565 = vsel %vm21, %v1507, 0
  %v1568 = vsel %vm21, %v1508, 0
  %v1571 = vsel %vm21, %v1509, 0
  %v1574 = vsel %vm21, %v1510, 0
  %v1577 = vsel %vm21, %v1511, 0
  %v1580 = vsel %vm21, %v1512, 0
  %v1583 = vsel %vm21, %v1513, 0
  %v1586 = vsel %vm21, %v1514, 0
  %v1589 = vsel %vm21, %v1515, 0
  %v1592 = vsel %vm21, %v1516, 0
  %v1595 = vsel %vm21, %v1517, 0
  %v1598 = vsel %vm21, %v1518, 0
  %v1601 = vsel %vm21, %v1519, 0
  %v1604 = vsel %vm21, %v1520, 0
  %v1607 = vsel %vm21, %v1521, 0
  %v1610 = vsel %vm21, %v1522, 0
  %v1613 = vsel %vm21, %v1523, 0
  %v1616 = vsel %vm21, %v1524, 0
  %v1619 = vsel %vm21, %v1525, 0
  %v1622 = vsel %vm21, %v1526, 0
  %v1625 = vsel %vm21, %v1527, 0
  %v1628 = vsel %vm21, %v1528, 0
  %v1631 = vsel %vm21, %v1529, 0
  %v1634 = vsel %vm21, %v1530, 0
  %1636 = vmatpush.bf16.msra.mxu0 0
  %1637 = vmatpush.bf16.msra.mxu0 0
  %1638 = vmatpush.bf16.msra.mxu0 0
  %1639 = vmatpush.bf16.msra.mxu0 0
  %1640 = vmatpush.bf16.msra.mxu0 0
  %1641 = vmatpush.bf16.msra.mxu0 0
  %1642 = vmatpush.bf16.msra.mxu0 0
  %1643 = vmatpush.bf16.msra.mxu0 %v1538
  %1644 = vmatmul.bf16.gmra.mxu0 %v1541
  %v1645 = vpop.f32.mrf.mxu0
  %v1646 = vadd.f32 0.0, %v1645
  %v1647 = vpop.f32.mrf.mxu0
  %v1648 = vadd.f32 0.0, %v1647
  %1649 = vmatmul.bf16.gmra.mxu0 %v1544
  %v1650 = vpop.f32.mrf.mxu0
  %v1651 = vadd.f32 0.0, %v1650
  %v1652 = vpop.f32.mrf.mxu0
  %v1653 = vadd.f32 0.0, %v1652
  %1654 = vmatmul.bf16.gmra.mxu0 %v1547
  %v1655 = vpop.f32.mrf.mxu0
  %v1656 = vadd.f32 0.0, %v1655
  %v1657 = vpop.f32.mrf.mxu0
  %v1658 = vadd.f32 0.0, %v1657
  %1659 = vmatmul.bf16.gmra.mxu0 %v1550
  %v1660 = vpop.f32.mrf.mxu0
  %v1661 = vadd.f32 0.0, %v1660
  %v1662 = vpop.f32.mrf.mxu0
  %v1663 = vadd.f32 0.0, %v1662
  %1664 = vmatmul.bf16.gmra.mxu0 %v1553
  %v1665 = vpop.f32.mrf.mxu0
  %v1666 = vadd.f32 0.0, %v1665
  %v1667 = vpop.f32.mrf.mxu0
  %v1668 = vadd.f32 0.0, %v1667
  %1669 = vmatmul.bf16.gmra.mxu0 %v1556
  %v1670 = vpop.f32.mrf.mxu0
  %v1671 = vadd.f32 0.0, %v1670
  %v1672 = vpop.f32.mrf.mxu0
  %v1673 = vadd.f32 0.0, %v1672
  %1674 = vmatmul.bf16.gmra.mxu0 %v1559
  %v1675 = vpop.f32.mrf.mxu0
  %v1676 = vadd.f32 0.0, %v1675
  %v1677 = vpop.f32.mrf.mxu0
  %v1678 = vadd.f32 0.0, %v1677
  %1679 = vmatmul.bf16.gmra.mxu0 %v1562
  %v1680 = vpop.f32.mrf.mxu0
  %v1681 = vadd.f32 0.0, %v1680
  %v1682 = vpop.f32.mrf.mxu0
  %v1683 = vadd.f32 0.0, %v1682
  %1684 = vmatmul.bf16.gmra.mxu0 %v1565
  %v1685 = vpop.f32.mrf.mxu0
  %v1686 = vadd.f32 0.0, %v1685
  %v1687 = vpop.f32.mrf.mxu0
  %v1688 = vadd.f32 0.0, %v1687
  %1689 = vmatmul.bf16.gmra.mxu0 %v1568
  %v1690 = vpop.f32.mrf.mxu0
  %v1691 = vadd.f32 0.0, %v1690
  %v1692 = vpop.f32.mrf.mxu0
  %v1693 = vadd.f32 0.0, %v1692
  %1694 = vmatmul.bf16.gmra.mxu0 %v1571
  %v1695 = vpop.f32.mrf.mxu0
  %v1696 = vadd.f32 0.0, %v1695
  %v1697 = vpop.f32.mrf.mxu0
  %v1698 = vadd.f32 0.0, %v1697
  %1699 = vmatmul.bf16.gmra.mxu0 %v1574
  %v1700 = vpop.f32.mrf.mxu0
  %v1701 = vadd.f32 0.0, %v1700
  %v1702 = vpop.f32.mrf.mxu0
  %v1703 = vadd.f32 0.0, %v1702
  %1704 = vmatmul.bf16.gmra.mxu0 %v1577
  %v1705 = vpop.f32.mrf.mxu0
  %v1706 = vadd.f32 0.0, %v1705
  %v1707 = vpop.f32.mrf.mxu0
  %v1708 = vadd.f32 0.0, %v1707
  %1709 = vmatmul.bf16.gmra.mxu0 %v1580
  %v1710 = vpop.f32.mrf.mxu0
  %v1711 = vadd.f32 0.0, %v1710
  %v1712 = vpop.f32.mrf.mxu0
  %v1713 = vadd.f32 0.0, %v1712
  %1714 = vmatmul.bf16.gmra.mxu0 %v1583
  %v1715 = vpop.f32.mrf.mxu0
  %v1716 = vadd.f32 0.0, %v1715
  %v1717 = vpop.f32.mrf.mxu0
  %v1718 = vadd.f32 0.0, %v1717
  %1719 = vmatmul.bf16.gmra.mxu0 %v1586
  %v1720 = vpop.f32.mrf.mxu0
  %v1721 = vadd.f32 0.0, %v1720
  %v1722 = vpop.f32.mrf.mxu0
  %v1723 = vadd.f32 0.0, %v1722
  %1724 = vmatmul.bf16.gmra.mxu0 %v1589
  %v1725 = vpop.f32.mrf.mxu0
  %v1726 = vadd.f32 0.0, %v1725
  %v1727 = vpop.f32.mrf.mxu0
  %v1728 = vadd.f32 0.0, %v1727
  %1729 = vmatmul.bf16.gmra.mxu0 %v1592
  %v1730 = vpop.f32.mrf.mxu0
  %v1731 = vadd.f32 0.0, %v1730
  %v1732 = vpop.f32.mrf.mxu0
  %v1733 = vadd.f32 0.0, %v1732
  %1734 = vmatmul.bf16.gmra.mxu0 %v1595
  %v1735 = vpop.f32.mrf.mxu0
  %v1736 = vadd.f32 0.0, %v1735
  %v1737 = vpop.f32.mrf.mxu0
  %v1738 = vadd.f32 0.0, %v1737
  %1739 = vmatmul.bf16.gmra.mxu0 %v1598
  %v1740 = vpop.f32.mrf.mxu0
  %v1741 = vadd.f32 0.0, %v1740
  %v1742 = vpop.f32.mrf.mxu0
  %v1743 = vadd.f32 0.0, %v1742
  %1744 = vmatmul.bf16.gmra.mxu0 %v1601
  %v1745 = vpop.f32.mrf.mxu0
  %v1746 = vadd.f32 0.0, %v1745
  %v1747 = vpop.f32.mrf.mxu0
  %v1748 = vadd.f32 0.0, %v1747
  %1749 = vmatmul.bf16.gmra.mxu0 %v1604
  %v1750 = vpop.f32.mrf.mxu0
  %v1751 = vadd.f32 0.0, %v1750
  %v1752 = vpop.f32.mrf.mxu0
  %v1753 = vadd.f32 0.0, %v1752
  %1754 = vmatmul.bf16.gmra.mxu0 %v1607
  %v1755 = vpop.f32.mrf.mxu0
  %v1756 = vadd.f32 0.0, %v1755
  %v1757 = vpop.f32.mrf.mxu0
  %v1758 = vadd.f32 0.0, %v1757
  %1759 = vmatmul.bf16.gmra.mxu0 %v1610
  %v1760 = vpop.f32.mrf.mxu0
  %v1761 = vadd.f32 0.0, %v1760
  %v1762 = vpop.f32.mrf.mxu0
  %v1763 = vadd.f32 0.0, %v1762
  %1764 = vmatmul.bf16.gmra.mxu0 %v1613
  %v1765 = vpop.f32.mrf.mxu0
  %v1766 = vadd.f32 0.0, %v1765
  %v1767 = vpop.f32.mrf.mxu0
  %v1768 = vadd.f32 0.0, %v1767
  %1769 = vmatmul.bf16.gmra.mxu0 %v1616
  %v1770 = vpop.f32.mrf.mxu0
  %v1771 = vadd.f32 0.0, %v1770
  %v1772 = vpop.f32.mrf.mxu0
  %v1773 = vadd.f32 0.0, %v1772
  %1774 = vmatmul.bf16.gmra.mxu0 %v1619
  %v1775 = vpop.f32.mrf.mxu0
  %v1776 = vadd.f32 0.0, %v1775
  %v1777 = vpop.f32.mrf.mxu0
  %v1778 = vadd.f32 0.0, %v1777
  %1779 = vmatmul.bf16.gmra.mxu0 %v1622
  %v1780 = vpop.f32.mrf.mxu0
  %v1781 = vadd.f32 0.0, %v1780
  %v1782 = vpop.f32.mrf.mxu0
  %v1783 = vadd.f32 0.0, %v1782
  %1784 = vmatmul.bf16.gmra.mxu0 %v1625
  %v1785 = vpop.f32.mrf.mxu0
  %v1786 = vadd.f32 0.0, %v1785
  %v1787 = vpop.f32.mrf.mxu0
  %v1788 = vadd.f32 0.0, %v1787
  %1789 = vmatmul.bf16.gmra.mxu0 %v1628
  %v1790 = vpop.f32.mrf.mxu0
  %v1791 = vadd.f32 0.0, %v1790
  %v1792 = vpop.f32.mrf.mxu0
  %v1793 = vadd.f32 0.0, %v1792
  %1794 = vmatmul.bf16.gmra.mxu0 %v1631
  %v1795 = vpop.f32.mrf.mxu0
  %v1796 = vadd.f32 0.0, %v1795
  %v1797 = vpop.f32.mrf.mxu0
  %v1798 = vadd.f32 0.0, %v1797
  %1799 = vmatmul.bf16.gmra.mxu0 %v1634
  %v1800 = vpop.f32.mrf.mxu0
  %v1801 = vadd.f32 0.0, %v1800
  %v1802 = vpop.f32.mrf.mxu0
  %v1803 = vadd.f32 0.0, %v1802
  %1804 = vdwg.mxu0
  %v1805 = vadd.f32 %v1371, %v1646
  %v1806 = vadd.f32 %v1372, %v1648
  %v1807 = vadd.f32 %v1373, %v1651
  %v1808 = vadd.f32 %v1374, %v1653
  %v1809 = vadd.f32 %v1375, %v1656
  %v1810 = vadd.f32 %v1376, %v1658
  %v1811 = vadd.f32 %v1377, %v1661
  %v1812 = vadd.f32 %v1378, %v1663
  %v1813 = vadd.f32 %v1379, %v1666
  %v1814 = vadd.f32 %v1380, %v1668
  %v1815 = vadd.f32 %v1381, %v1671
  %v1816 = vadd.f32 %v1382, %v1673
  %v1817 = vadd.f32 %v1383, %v1676
  %v1818 = vadd.f32 %v1384, %v1678
  %v1819 = vadd.f32 %v1385, %v1681
  %v1820 = vadd.f32 %v1386, %v1683
  %v1821 = vadd.f32 %v1387, %v1686
  %v1822 = vadd.f32 %v1388, %v1688
  %v1823 = vadd.f32 %v1389, %v1691
  %v1824 = vadd.f32 %v1390, %v1693
  %v1825 = vadd.f32 %v1391, %v1696
  %v1826 = vadd.f32 %v1392, %v1698
  %v1827 = vadd.f32 %v1393, %v1701
  %v1828 = vadd.f32 %v1394, %v1703
  %v1829 = vadd.f32 %v1395, %v1706
  %v1830 = vadd.f32 %v1396, %v1708
  %v1831 = vadd.f32 %v1397, %v1711
  %v1832 = vadd.f32 %v1398, %v1713
  %v1833 = vadd.f32 %v1399, %v1716
  %v1834 = vadd.f32 %v1400, %v1718
  %v1835 = vadd.f32 %v1401, %v1721
  %v1836 = vadd.f32 %v1402, %v1723
  %v1837 = vadd.f32 %v1403, %v1726
  %v1838 = vadd.f32 %v1404, %v1728
  %v1839 = vadd.f32 %v1405, %v1731
  %v1840 = vadd.f32 %v1406, %v1733
  %v1841 = vadd.f32 %v1407, %v1736
  %v1842 = vadd.f32 %v1408, %v1738
  %v1843 = vadd.f32 %v1409, %v1741
  %v1844 = vadd.f32 %v1410, %v1743
  %v1845 = vadd.f32 %v1411, %v1746
  %v1846 = vadd.f32 %v1412, %v1748
  %v1847 = vadd.f32 %v1413, %v1751
  %v1848 = vadd.f32 %v1414, %v1753
  %v1849 = vadd.f32 %v1415, %v1756
  %v1850 = vadd.f32 %v1416, %v1758
  %v1851 = vadd.f32 %v1417, %v1761
  %v1852 = vadd.f32 %v1418, %v1763
  %v1853 = vadd.f32 %v1419, %v1766
  %v1854 = vadd.f32 %v1420, %v1768
  %v1855 = vadd.f32 %v1421, %v1771
  %v1856 = vadd.f32 %v1422, %v1773
  %v1857 = vadd.f32 %v1423, %v1776
  %v1858 = vadd.f32 %v1424, %v1778
  %v1859 = vadd.f32 %v1425, %v1781
  %v1860 = vadd.f32 %v1426, %v1783
  %v1861 = vadd.f32 %v1427, %v1786
  %v1862 = vadd.f32 %v1428, %v1788
  %v1863 = vadd.f32 %v1429, %v1791
  %v1864 = vadd.f32 %v1430, %v1793
  %v1865 = vadd.f32 %v1431, %v1796
  %v1866 = vadd.f32 %v1432, %v1798
  %v1867 = vadd.f32 %v1433, %v1801
  %v1868 = vadd.f32 %v1434, %v1803
  %v1869 = vld [vmem:[%s163 + $0x1] sm:$0xff]
  %v1870 = vld [vmem:[%s163 + $0x9] sm:$0xff]
  %v1871 = vld [vmem:[%s163 + $0x19] sm:$0xff]
  %v1872 = vld [vmem:[%s163 + $0x21] sm:$0xff]
  %v1873 = vld [vmem:[%s163 + $0x31] sm:$0xff]
  %v1874 = vld [vmem:[%s163 + $0x39] sm:$0xff]
  %v1875 = vld [vmem:[%s163 + $0x49] sm:$0xff]
  %v1876 = vld [vmem:[%s163 + $0x51] sm:$0xff]
  %v1877 = vld [vmem:[%s163 + $0x61] sm:$0xff]
  %v1878 = vld [vmem:[%s163 + $0x69] sm:$0xff]
  %v1879 = vld [vmem:[%s163 + $0x79] sm:$0xff]
  %v1880 = vld [vmem:[%s163 + $0x81] sm:$0xff]
  %v1881 = vld [vmem:[%s163 + $0x91] sm:$0xff]
  %v1882 = vld [vmem:[%s163 + $0x99] sm:$0xff]
  %v1883 = vld [vmem:[%s163 + $0xa9] sm:$0xff]
  %v1884 = vld [vmem:[%s163 + $0xb1] sm:$0xff]
  %v1885 = vld [vmem:[%s163 + $0xc1] sm:$0xff]
  %v1886 = vld [vmem:[%s163 + $0xc9] sm:$0xff]
  %v1887 = vld [vmem:[%s163 + $0xd9] sm:$0xff]
  %v1888 = vld [vmem:[%s163 + $0xe1] sm:$0xff]
  %v1889 = vld [vmem:[%s163 + $0xf1] sm:$0xff]
  %v1890 = vld [vmem:[%s163 + $0xf9] sm:$0xff]
  %v1891 = vld [vmem:[%s163 + $0x109] sm:$0xff]
  %v1892 = vld [vmem:[%s163 + $0x111] sm:$0xff]
  %v1893 = vld [vmem:[%s163 + $0x121] sm:$0xff]
  %v1894 = vld [vmem:[%s163 + $0x129] sm:$0xff]
  %v1895 = vld [vmem:[%s163 + $0x139] sm:$0xff]
  %v1896 = vld [vmem:[%s163 + $0x141] sm:$0xff]
  %v1897 = vld [vmem:[%s163 + $0x151] sm:$0xff]
  %v1898 = vld [vmem:[%s163 + $0x159] sm:$0xff]
  %v1899 = vld [vmem:[%s163 + $0x169] sm:$0xff]
  %v1900 = vld [vmem:[%s163 + $0x171] sm:$0xff]
  %v1901 = vld [vmem:[%s163 + $0x1b1] sm:$0xff]
  %v1902 = vld [vmem:[%s163 + $0x1b9] sm:$0xff]
  %v1903 = vld [vmem:[%s163 + $0x1c9] sm:$0xff]
  %v1904 = vld [vmem:[%s163 + $0x1d1] sm:$0xff]
  %v1905 = vld [vmem:[%s163 + $0x1e1] sm:$0xff]
  %v1906 = vld [vmem:[%s163 + $0x1e9] sm:$0xff]
  %v1907 = vld [vmem:[%s163 + $0x1f9] sm:$0xff]
  %v1908 = vld [vmem:[%s163 + $0x201] sm:$0xff]
  %v1909 = vld [vmem:[%s163 + $0x211] sm:$0xff]
  %v1910 = vld [vmem:[%s163 + $0x219] sm:$0xff]
  %v1911 = vld [vmem:[%s163 + $0x229] sm:$0xff]
  %v1912 = vld [vmem:[%s163 + $0x231] sm:$0xff]
  %v1913 = vld [vmem:[%s163 + $0x241] sm:$0xff]
  %v1914 = vld [vmem:[%s163 + $0x249] sm:$0xff]
  %v1915 = vld [vmem:[%s163 + $0x259] sm:$0xff]
  %v1916 = vld [vmem:[%s163 + $0x261] sm:$0xff]
  %v1917 = vld [vmem:[%s163 + $0x271] sm:$0xff]
  %v1918 = vld [vmem:[%s163 + $0x279] sm:$0xff]
  %v1919 = vld [vmem:[%s163 + $0x289] sm:$0xff]
  %v1920 = vld [vmem:[%s163 + $0x291] sm:$0xff]
  %v1921 = vld [vmem:[%s163 + $0x2a1] sm:$0xff]
  %v1922 = vld [vmem:[%s163 + $0x2a9] sm:$0xff]
  %v1923 = vld [vmem:[%s163 + $0x2b9] sm:$0xff]
  %v1924 = vld [vmem:[%s163 + $0x2c1] sm:$0xff]
  %v1925 = vld [vmem:[%s163 + $0x2d1] sm:$0xff]
  %v1926 = vld [vmem:[%s163 + $0x2d9] sm:$0xff]
  %v1927 = vld [vmem:[%s163 + $0x2e9] sm:$0xff]
  %v1928 = vld [vmem:[%s163 + $0x2f1] sm:$0xff]
  %v1929 = vld [vmem:[%s163 + $0x301] sm:$0xff]
  %v1930 = vld [vmem:[%s163 + $0x309] sm:$0xff]
  %v1931 = vld [vmem:[%s163 + $0x319] sm:$0xff]
  %v1932 = vld [vmem:[%s163 + $0x321] sm:$0xff]
  %v1933 = vpack.c.bf16 %v1870, %v1869
  %v1934 = vpack.c.bf16 %v1872, %v1871
  %v1935 = vpack.c.bf16 %v1874, %v1873
  %v1936 = vpack.c.bf16 %v1876, %v1875
  %v1937 = vpack.c.bf16 %v1878, %v1877
  %v1938 = vpack.c.bf16 %v1880, %v1879
  %v1939 = vpack.c.bf16 %v1882, %v1881
  %v1940 = vpack.c.bf16 %v1884, %v1883
  %v1941 = vpack.c.bf16 %v1886, %v1885
  %v1942 = vpack.c.bf16 %v1888, %v1887
  %v1943 = vpack.c.bf16 %v1890, %v1889
  %v1944 = vpack.c.bf16 %v1892, %v1891
  %v1945 = vpack.c.bf16 %v1894, %v1893
  %v1946 = vpack.c.bf16 %v1896, %v1895
  %v1947 = vpack.c.bf16 %v1898, %v1897
  %v1948 = vpack.c.bf16 %v1900, %v1899
  %v1949 = vpack.c.bf16 %v1902, %v1901
  %v1950 = vpack.c.bf16 %v1904, %v1903
  %v1951 = vpack.c.bf16 %v1906, %v1905
  %v1952 = vpack.c.bf16 %v1908, %v1907
  %v1953 = vpack.c.bf16 %v1910, %v1909
  %v1954 = vpack.c.bf16 %v1912, %v1911
  %v1955 = vpack.c.bf16 %v1914, %v1913
  %v1956 = vpack.c.bf16 %v1916, %v1915
  %v1957 = vpack.c.bf16 %v1918, %v1917
  %v1958 = vpack.c.bf16 %v1920, %v1919
  %v1959 = vpack.c.bf16 %v1922, %v1921
  %v1960 = vpack.c.bf16 %v1924, %v1923
  %v1961 = vpack.c.bf16 %v1926, %v1925
  %v1962 = vpack.c.bf16 %v1928, %v1927
  %v1963 = vpack.c.bf16 %v1930, %v1929
  %v1964 = vpack.c.bf16 %v1932, %v1931
  %s1965 = scalar_lea.vmem %s1, 32
  %v1966 = vld [vmem:[%s1965] sm:$0xf]
  %v1967 = vld [vmem:[%s1965 + $0x4] sm:$0xf]
  %v1970 = vunpack.c.l.b16 %v1966
  %v1971 = vunpack.c.l.b16 %v1967
  %v1972 = vpack.c.b16 %v1971, %v1970
  %v1975 = vsel %vm21, %v1933, 0
  %v1978 = vsel %vm21, %v1934, 0
  %v1981 = vsel %vm21, %v1935, 0
  %v1984 = vsel %vm21, %v1936, 0
  %v1987 = vsel %vm21, %v1937, 0
  %v1990 = vsel %vm21, %v1938, 0
  %v1993 = vsel %vm21, %v1939, 0
  %v1996 = vsel %vm21, %v1940, 0
  %v1999 = vsel %vm21, %v1941, 0
  %v2002 = vsel %vm21, %v1942, 0
  %v2005 = vsel %vm21, %v1943, 0
  %v2008 = vsel %vm21, %v1944, 0
  %v2011 = vsel %vm21, %v1945, 0
  %v2014 = vsel %vm21, %v1946, 0
  %v2017 = vsel %vm21, %v1947, 0
  %v2020 = vsel %vm21, %v1948, 0
  %v2023 = vsel %vm21, %v1949, 0
  %v2026 = vsel %vm21, %v1950, 0
  %v2029 = vsel %vm21, %v1951, 0
  %v2032 = vsel %vm21, %v1952, 0
  %v2035 = vsel %vm21, %v1953, 0
  %v2038 = vsel %vm21, %v1954, 0
  %v2041 = vsel %vm21, %v1955, 0
  %v2044 = vsel %vm21, %v1956, 0
  %v2047 = vsel %vm21, %v1957, 0
  %v2050 = vsel %vm21, %v1958, 0
  %v2053 = vsel %vm21, %v1959, 0
  %v2056 = vsel %vm21, %v1960, 0
  %v2059 = vsel %vm21, %v1961, 0
  %v2062 = vsel %vm21, %v1962, 0
  %v2065 = vsel %vm21, %v1963, 0
  %v2068 = vsel %vm21, %v1964, 0
  %2070 = vmatpush.bf16.msra.mxu0 0
  %2071 = vmatpush.bf16.msra.mxu0 0
  %2072 = vmatpush.bf16.msra.mxu0 0
  %2073 = vmatpush.bf16.msra.mxu0 0
  %2074 = vmatpush.bf16.msra.mxu0 0
  %2075 = vmatpush.bf16.msra.mxu0 0
  %2076 = vmatpush.bf16.msra.mxu0 0
  %2077 = vmatpush.bf16.msra.mxu0 %v1972
  %2078 = vmatmul.bf16.gmra.mxu0 %v1975
  %v2079 = vpop.f32.mrf.mxu0
  %v2080 = vadd.f32 0.0, %v2079
  %v2081 = vpop.f32.mrf.mxu0
  %v2082 = vadd.f32 0.0, %v2081
  %2083 = vmatmul.bf16.gmra.mxu0 %v1978
  %v2084 = vpop.f32.mrf.mxu0
  %v2085 = vadd.f32 0.0, %v2084
  %v2086 = vpop.f32.mrf.mxu0
  %v2087 = vadd.f32 0.0, %v2086
  %2088 = vmatmul.bf16.gmra.mxu0 %v1981
  %v2089 = vpop.f32.mrf.mxu0
  %v2090 = vadd.f32 0.0, %v2089
  %v2091 = vpop.f32.mrf.mxu0
  %v2092 = vadd.f32 0.0, %v2091
  %2093 = vmatmul.bf16.gmra.mxu0 %v1984
  %v2094 = vpop.f32.mrf.mxu0
  %v2095 = vadd.f32 0.0, %v2094
  %v2096 = vpop.f32.mrf.mxu0
  %v2097 = vadd.f32 0.0, %v2096
  %2098 = vmatmul.bf16.gmra.mxu0 %v1987
  %v2099 = vpop.f32.mrf.mxu0
  %v2100 = vadd.f32 0.0, %v2099
  %v2101 = vpop.f32.mrf.mxu0
  %v2102 = vadd.f32 0.0, %v2101
  %2103 = vmatmul.bf16.gmra.mxu0 %v1990
  %v2104 = vpop.f32.mrf.mxu0
  %v2105 = vadd.f32 0.0, %v2104
  %v2106 = vpop.f32.mrf.mxu0
  %v2107 = vadd.f32 0.0, %v2106
  %2108 = vmatmul.bf16.gmra.mxu0 %v1993
  %v2109 = vpop.f32.mrf.mxu0
  %v2110 = vadd.f32 0.0, %v2109
  %v2111 = vpop.f32.mrf.mxu0
  %v2112 = vadd.f32 0.0, %v2111
  %2113 = vmatmul.bf16.gmra.mxu0 %v1996
  %v2114 = vpop.f32.mrf.mxu0
  %v2115 = vadd.f32 0.0, %v2114
  %v2116 = vpop.f32.mrf.mxu0
  %v2117 = vadd.f32 0.0, %v2116
  %2118 = vmatmul.bf16.gmra.mxu0 %v1999
  %v2119 = vpop.f32.mrf.mxu0
  %v2120 = vadd.f32 0.0, %v2119
  %v2121 = vpop.f32.mrf.mxu0
  %v2122 = vadd.f32 0.0, %v2121
  %2123 = vmatmul.bf16.gmra.mxu0 %v2002
  %v2124 = vpop.f32.mrf.mxu0
  %v2125 = vadd.f32 0.0, %v2124
  %v2126 = vpop.f32.mrf.mxu0
  %v2127 = vadd.f32 0.0, %v2126
  %2128 = vmatmul.bf16.gmra.mxu0 %v2005
  %v2129 = vpop.f32.mrf.mxu0
  %v2130 = vadd.f32 0.0, %v2129
  %v2131 = vpop.f32.mrf.mxu0
  %v2132 = vadd.f32 0.0, %v2131
  %2133 = vmatmul.bf16.gmra.mxu0 %v2008
  %v2134 = vpop.f32.mrf.mxu0
  %v2135 = vadd.f32 0.0, %v2134
  %v2136 = vpop.f32.mrf.mxu0
  %v2137 = vadd.f32 0.0, %v2136
  %2138 = vmatmul.bf16.gmra.mxu0 %v2011
  %v2139 = vpop.f32.mrf.mxu0
  %v2140 = vadd.f32 0.0, %v2139
  %v2141 = vpop.f32.mrf.mxu0
  %v2142 = vadd.f32 0.0, %v2141
  %2143 = vmatmul.bf16.gmra.mxu0 %v2014
  %v2144 = vpop.f32.mrf.mxu0
  %v2145 = vadd.f32 0.0, %v2144
  %v2146 = vpop.f32.mrf.mxu0
  %v2147 = vadd.f32 0.0, %v2146
  %2148 = vmatmul.bf16.gmra.mxu0 %v2017
  %v2149 = vpop.f32.mrf.mxu0
  %v2150 = vadd.f32 0.0, %v2149
  %v2151 = vpop.f32.mrf.mxu0
  %v2152 = vadd.f32 0.0, %v2151
  %2153 = vmatmul.bf16.gmra.mxu0 %v2020
  %v2154 = vpop.f32.mrf.mxu0
  %v2155 = vadd.f32 0.0, %v2154
  %v2156 = vpop.f32.mrf.mxu0
  %v2157 = vadd.f32 0.0, %v2156
  %2158 = vmatmul.bf16.gmra.mxu0 %v2023
  %v2159 = vpop.f32.mrf.mxu0
  %v2160 = vadd.f32 0.0, %v2159
  %v2161 = vpop.f32.mrf.mxu0
  %v2162 = vadd.f32 0.0, %v2161
  %2163 = vmatmul.bf16.gmra.mxu0 %v2026
  %v2164 = vpop.f32.mrf.mxu0
  %v2165 = vadd.f32 0.0, %v2164
  %v2166 = vpop.f32.mrf.mxu0
  %v2167 = vadd.f32 0.0, %v2166
  %2168 = vmatmul.bf16.gmra.mxu0 %v2029
  %v2169 = vpop.f32.mrf.mxu0
  %v2170 = vadd.f32 0.0, %v2169
  %v2171 = vpop.f32.mrf.mxu0
  %v2172 = vadd.f32 0.0, %v2171
  %2173 = vmatmul.bf16.gmra.mxu0 %v2032
  %v2174 = vpop.f32.mrf.mxu0
  %v2175 = vadd.f32 0.0, %v2174
  %v2176 = vpop.f32.mrf.mxu0
  %v2177 = vadd.f32 0.0, %v2176
  %2178 = vmatmul.bf16.gmra.mxu0 %v2035
  %v2179 = vpop.f32.mrf.mxu0
  %v2180 = vadd.f32 0.0, %v2179
  %v2181 = vpop.f32.mrf.mxu0
  %v2182 = vadd.f32 0.0, %v2181
  %2183 = vmatmul.bf16.gmra.mxu0 %v2038
  %v2184 = vpop.f32.mrf.mxu0
  %v2185 = vadd.f32 0.0, %v2184
  %v2186 = vpop.f32.mrf.mxu0
  %v2187 = vadd.f32 0.0, %v2186
  %2188 = vmatmul.bf16.gmra.mxu0 %v2041
  %v2189 = vpop.f32.mrf.mxu0
  %v2190 = vadd.f32 0.0, %v2189
  %v2191 = vpop.f32.mrf.mxu0
  %v2192 = vadd.f32 0.0, %v2191
  %2193 = vmatmul.bf16.gmra.mxu0 %v2044
  %v2194 = vpop.f32.mrf.mxu0
  %v2195 = vadd.f32 0.0, %v2194
  %v2196 = vpop.f32.mrf.mxu0
  %v2197 = vadd.f32 0.0, %v2196
  %2198 = vmatmul.bf16.gmra.mxu0 %v2047
  %v2199 = vpop.f32.mrf.mxu0
  %v2200 = vadd.f32 0.0, %v2199
  %v2201 = vpop.f32.mrf.mxu0
  %v2202 = vadd.f32 0.0, %v2201
  %2203 = vmatmul.bf16.gmra.mxu0 %v2050
  %v2204 = vpop.f32.mrf.mxu0
  %v2205 = vadd.f32 0.0, %v2204
  %v2206 = vpop.f32.mrf.mxu0
  %v2207 = vadd.f32 0.0, %v2206
  %2208 = vmatmul.bf16.gmra.mxu0 %v2053
  %v2209 = vpop.f32.mrf.mxu0
  %v2210 = vadd.f32 0.0, %v2209
  %v2211 = vpop.f32.mrf.mxu0
  %v2212 = vadd.f32 0.0, %v2211
  %2213 = vmatmul.bf16.gmra.mxu0 %v2056
  %v2214 = vpop.f32.mrf.mxu0
  %v2215 = vadd.f32 0.0, %v2214
  %v2216 = vpop.f32.mrf.mxu0
  %v2217 = vadd.f32 0.0, %v2216
  %2218 = vmatmul.bf16.gmra.mxu0 %v2059
  %v2219 = vpop.f32.mrf.mxu0
  %v2220 = vadd.f32 0.0, %v2219
  %v2221 = vpop.f32.mrf.mxu0
  %v2222 = vadd.f32 0.0, %v2221
  %2223 = vmatmul.bf16.gmra.mxu0 %v2062
  %v2224 = vpop.f32.mrf.mxu0
  %v2225 = vadd.f32 0.0, %v2224
  %v2226 = vpop.f32.mrf.mxu0
  %v2227 = vadd.f32 0.0, %v2226
  %2228 = vmatmul.bf16.gmra.mxu0 %v2065
  %v2229 = vpop.f32.mrf.mxu0
  %v2230 = vadd.f32 0.0, %v2229
  %v2231 = vpop.f32.mrf.mxu0
  %v2232 = vadd.f32 0.0, %v2231
  %2233 = vmatmul.bf16.gmra.mxu0 %v2068
  %v2234 = vpop.f32.mrf.mxu0
  %v2235 = vadd.f32 0.0, %v2234
  %v2236 = vpop.f32.mrf.mxu0
  %v2237 = vadd.f32 0.0, %v2236
  %2238 = vdwg.mxu0
  %v2239 = vadd.f32 %v1805, %v2080
  %v2240 = vadd.f32 %v1806, %v2082
  %v2241 = vadd.f32 %v1807, %v2085
  %v2242 = vadd.f32 %v1808, %v2087
  %v2243 = vadd.f32 %v1809, %v2090
  %v2244 = vadd.f32 %v1810, %v2092
  %v2245 = vadd.f32 %v1811, %v2095
  %v2246 = vadd.f32 %v1812, %v2097
  %v2247 = vadd.f32 %v1813, %v2100
  %v2248 = vadd.f32 %v1814, %v2102
  %v2249 = vadd.f32 %v1815, %v2105
  %v2250 = vadd.f32 %v1816, %v2107
  %v2251 = vadd.f32 %v1817, %v2110
  %v2252 = vadd.f32 %v1818, %v2112
  %v2253 = vadd.f32 %v1819, %v2115
  %v2254 = vadd.f32 %v1820, %v2117
  %v2255 = vadd.f32 %v1821, %v2120
  %v2256 = vadd.f32 %v1822, %v2122
  %v2257 = vadd.f32 %v1823, %v2125
  %v2258 = vadd.f32 %v1824, %v2127
  %v2259 = vadd.f32 %v1825, %v2130
  %v2260 = vadd.f32 %v1826, %v2132
  %v2261 = vadd.f32 %v1827, %v2135
  %v2262 = vadd.f32 %v1828, %v2137
  %v2263 = vadd.f32 %v1829, %v2140
  %v2264 = vadd.f32 %v1830, %v2142
  %v2265 = vadd.f32 %v1831, %v2145
  %v2266 = vadd.f32 %v1832, %v2147
  %v2267 = vadd.f32 %v1833, %v2150
  %v2268 = vadd.f32 %v1834, %v2152
  %v2269 = vadd.f32 %v1835, %v2155
  %v2270 = vadd.f32 %v1836, %v2157
  %v2271 = vadd.f32 %v1837, %v2160
  %v2272 = vadd.f32 %v1838, %v2162
  %v2273 = vadd.f32 %v1839, %v2165
  %v2274 = vadd.f32 %v1840, %v2167
  %v2275 = vadd.f32 %v1841, %v2170
  %v2276 = vadd.f32 %v1842, %v2172
  %v2277 = vadd.f32 %v1843, %v2175
  %v2278 = vadd.f32 %v1844, %v2177
  %v2279 = vadd.f32 %v1845, %v2180
  %v2280 = vadd.f32 %v1846, %v2182
  %v2281 = vadd.f32 %v1847, %v2185
  %v2282 = vadd.f32 %v1848, %v2187
  %v2283 = vadd.f32 %v1849, %v2190
  %v2284 = vadd.f32 %v1850, %v2192
  %v2285 = vadd.f32 %v1851, %v2195
  %v2286 = vadd.f32 %v1852, %v2197
  %v2287 = vadd.f32 %v1853, %v2200
  %v2288 = vadd.f32 %v1854, %v2202
  %v2289 = vadd.f32 %v1855, %v2205
  %v2290 = vadd.f32 %v1856, %v2207
  %v2291 = vadd.f32 %v1857, %v2210
  %v2292 = vadd.f32 %v1858, %v2212
  %v2293 = vadd.f32 %v1859, %v2215
  %v2294 = vadd.f32 %v1860, %v2217
  %v2295 = vadd.f32 %v1861, %v2220
  %v2296 = vadd.f32 %v1862, %v2222
  %v2297 = vadd.f32 %v1863, %v2225
  %v2298 = vadd.f32 %v1864, %v2227
  %v2299 = vadd.f32 %v1865, %v2230
  %v2300 = vadd.f32 %v1866, %v2232
  %v2301 = vadd.f32 %v1867, %v2235
  %v2302 = vadd.f32 %v1868, %v2237
  %v2303 = vld [vmem:[%s163 + $0x2] sm:$0xff]
  %v2304 = vld [vmem:[%s163 + $0xa] sm:$0xff]
  %v2305 = vld [vmem:[%s163 + $0x1a] sm:$0xff]
  %v2306 = vld [vmem:[%s163 + $0x22] sm:$0xff]
  %v2307 = vld [vmem:[%s163 + $0x32] sm:$0xff]
  %v2308 = vld [vmem:[%s163 + $0x3a] sm:$0xff]
  %v2309 = vld [vmem:[%s163 + $0x4a] sm:$0xff]
  %v2310 = vld [vmem:[%s163 + $0x52] sm:$0xff]
  %v2311 = vld [vmem:[%s163 + $0x62] sm:$0xff]
  %v2312 = vld [vmem:[%s163 + $0x6a] sm:$0xff]
  %v2313 = vld [vmem:[%s163 + $0x7a] sm:$0xff]
  %v2314 = vld [vmem:[%s163 + $0x82] sm:$0xff]
  %v2315 = vld [vmem:[%s163 + $0x92] sm:$0xff]
  %v2316 = vld [vmem:[%s163 + $0x9a] sm:$0xff]
  %v2317 = vld [vmem:[%s163 + $0xaa] sm:$0xff]
  %v2318 = vld [vmem:[%s163 + $0xb2] sm:$0xff]
  %v2319 = vld [vmem:[%s163 + $0xc2] sm:$0xff]
  %v2320 = vld [vmem:[%s163 + $0xca] sm:$0xff]
  %v2321 = vld [vmem:[%s163 + $0xda] sm:$0xff]
  %v2322 = vld [vmem:[%s163 + $0xe2] sm:$0xff]
  %v2323 = vld [vmem:[%s163 + $0xf2] sm:$0xff]
  %v2324 = vld [vmem:[%s163 + $0xfa] sm:$0xff]
  %v2325 = vld [vmem:[%s163 + $0x10a] sm:$0xff]
  %v2326 = vld [vmem:[%s163 + $0x112] sm:$0xff]
  %v2327 = vld [vmem:[%s163 + $0x122] sm:$0xff]
  %v2328 = vld [vmem:[%s163 + $0x12a] sm:$0xff]
  %v2329 = vld [vmem:[%s163 + $0x13a] sm:$0xff]
  %v2330 = vld [vmem:[%s163 + $0x142] sm:$0xff]
  %v2331 = vld [vmem:[%s163 + $0x152] sm:$0xff]
  %v2332 = vld [vmem:[%s163 + $0x15a] sm:$0xff]
  %v2333 = vld [vmem:[%s163 + $0x16a] sm:$0xff]
  %v2334 = vld [vmem:[%s163 + $0x172] sm:$0xff]
  %v2335 = vld [vmem:[%s163 + $0x1b2] sm:$0xff]
  %v2336 = vld [vmem:[%s163 + $0x1ba] sm:$0xff]
  %v2337 = vld [vmem:[%s163 + $0x1ca] sm:$0xff]
  %v2338 = vld [vmem:[%s163 + $0x1d2] sm:$0xff]
  %v2339 = vld [vmem:[%s163 + $0x1e2] sm:$0xff]
  %v2340 = vld [vmem:[%s163 + $0x1ea] sm:$0xff]
  %v2341 = vld [vmem:[%s163 + $0x1fa] sm:$0xff]
  %v2342 = vld [vmem:[%s163 + $0x202] sm:$0xff]
  %v2343 = vld [vmem:[%s163 + $0x212] sm:$0xff]
  %v2344 = vld [vmem:[%s163 + $0x21a] sm:$0xff]
  %v2345 = vld [vmem:[%s163 + $0x22a] sm:$0xff]
  %v2346 = vld [vmem:[%s163 + $0x232] sm:$0xff]
  %v2347 = vld [vmem:[%s163 + $0x242] sm:$0xff]
  %v2348 = vld [vmem:[%s163 + $0x24a] sm:$0xff]
  %v2349 = vld [vmem:[%s163 + $0x25a] sm:$0xff]
  %v2350 = vld [vmem:[%s163 + $0x262] sm:$0xff]
  %v2351 = vld [vmem:[%s163 + $0x272] sm:$0xff]
  %v2352 = vld [vmem:[%s163 + $0x27a] sm:$0xff]
  %v2353 = vld [vmem:[%s163 + $0x28a] sm:$0xff]
  %v2354 = vld [vmem:[%s163 + $0x292] sm:$0xff]
  %v2355 = vld [vmem:[%s163 + $0x2a2] sm:$0xff]
  %v2356 = vld [vmem:[%s163 + $0x2aa] sm:$0xff]
  %v2357 = vld [vmem:[%s163 + $0x2ba] sm:$0xff]
  %v2358 = vld [vmem:[%s163 + $0x2c2] sm:$0xff]
  %v2359 = vld [vmem:[%s163 + $0x2d2] sm:$0xff]
  %v2360 = vld [vmem:[%s163 + $0x2da] sm:$0xff]
  %v2361 = vld [vmem:[%s163 + $0x2ea] sm:$0xff]
  %v2362 = vld [vmem:[%s163 + $0x2f2] sm:$0xff]
  %v2363 = vld [vmem:[%s163 + $0x302] sm:$0xff]
  %v2364 = vld [vmem:[%s163 + $0x30a] sm:$0xff]
  %v2365 = vld [vmem:[%s163 + $0x31a] sm:$0xff]
  %v2366 = vld [vmem:[%s163 + $0x322] sm:$0xff]
  %v2367 = vpack.c.bf16 %v2304, %v2303
  %v2368 = vpack.c.bf16 %v2306, %v2305
  %v2369 = vpack.c.bf16 %v2308, %v2307
  %v2370 = vpack.c.bf16 %v2310, %v2309
  %v2371 = vpack.c.bf16 %v2312, %v2311
  %v2372 = vpack.c.bf16 %v2314, %v2313
  %v2373 = vpack.c.bf16 %v2316, %v2315
  %v2374 = vpack.c.bf16 %v2318, %v2317
  %v2375 = vpack.c.bf16 %v2320, %v2319
  %v2376 = vpack.c.bf16 %v2322, %v2321
  %v2377 = vpack.c.bf16 %v2324, %v2323
  %v2378 = vpack.c.bf16 %v2326, %v2325
  %v2379 = vpack.c.bf16 %v2328, %v2327
  %v2380 = vpack.c.bf16 %v2330, %v2329
  %v2381 = vpack.c.bf16 %v2332, %v2331
  %v2382 = vpack.c.bf16 %v2334, %v2333
  %v2383 = vpack.c.bf16 %v2336, %v2335
  %v2384 = vpack.c.bf16 %v2338, %v2337
  %v2385 = vpack.c.bf16 %v2340, %v2339
  %v2386 = vpack.c.bf16 %v2342, %v2341
  %v2387 = vpack.c.bf16 %v2344, %v2343
  %v2388 = vpack.c.bf16 %v2346, %v2345
  %v2389 = vpack.c.bf16 %v2348, %v2347
  %v2390 = vpack.c.bf16 %v2350, %v2349
  %v2391 = vpack.c.bf16 %v2352, %v2351
  %v2392 = vpack.c.bf16 %v2354, %v2353
  %v2393 = vpack.c.bf16 %v2356, %v2355
  %v2394 = vpack.c.bf16 %v2358, %v2357
  %v2395 = vpack.c.bf16 %v2360, %v2359
  %v2396 = vpack.c.bf16 %v2362, %v2361
  %v2397 = vpack.c.bf16 %v2364, %v2363
  %v2398 = vpack.c.bf16 %v2366, %v2365
  %s2399 = scalar_lea.vmem %s1, 40
  %v2400 = vld [vmem:[%s2399] sm:$0xf]
  %v2401 = vld [vmem:[%s2399 + $0x4] sm:$0xf]
  %v2404 = vunpack.c.l.b16 %v2400
  %v2405 = vunpack.c.l.b16 %v2401
  %v2406 = vpack.c.b16 %v2405, %v2404
  %v2409 = vsel %vm21, %v2367, 0
  %v2412 = vsel %vm21, %v2368, 0
  %v2415 = vsel %vm21, %v2369, 0
  %v2418 = vsel %vm21, %v2370, 0
  %v2421 = vsel %vm21, %v2371, 0
  %v2424 = vsel %vm21, %v2372, 0
  %v2427 = vsel %vm21, %v2373, 0
  %v2430 = vsel %vm21, %v2374, 0
  %v2433 = vsel %vm21, %v2375, 0
  %v2436 = vsel %vm21, %v2376, 0
  %v2439 = vsel %vm21, %v2377, 0
  %v2442 = vsel %vm21, %v2378, 0
  %v2445 = vsel %vm21, %v2379, 0
  %v2448 = vsel %vm21, %v2380, 0
  %v2451 = vsel %vm21, %v2381, 0
  %v2454 = vsel %vm21, %v2382, 0
  %v2457 = vsel %vm21, %v2383, 0
  %v2460 = vsel %vm21, %v2384, 0
  %v2463 = vsel %vm21, %v2385, 0
  %v2466 = vsel %vm21, %v2386, 0
  %v2469 = vsel %vm21, %v2387, 0
  %v2472 = vsel %vm21, %v2388, 0
  %v2475 = vsel %vm21, %v2389, 0
  %v2478 = vsel %vm21, %v2390, 0
  %v2481 = vsel %vm21, %v2391, 0
  %v2484 = vsel %vm21, %v2392, 0
  %v2487 = vsel %vm21, %v2393, 0
  %v2490 = vsel %vm21, %v2394, 0
  %v2493 = vsel %vm21, %v2395, 0
  %v2496 = vsel %vm21, %v2396, 0
  %v2499 = vsel %vm21, %v2397, 0
  %v2502 = vsel %vm21, %v2398, 0
  %2504 = vmatpush.bf16.msra.mxu0 0
  %2505 = vmatpush.bf16.msra.mxu0 0
  %2506 = vmatpush.bf16.msra.mxu0 0
  %2507 = vmatpush.bf16.msra.mxu0 0
  %2508 = vmatpush.bf16.msra.mxu0 0
  %2509 = vmatpush.bf16.msra.mxu0 0
  %2510 = vmatpush.bf16.msra.mxu0 0
  %2511 = vmatpush.bf16.msra.mxu0 %v2406
  %2512 = vmatmul.bf16.gmra.mxu0 %v2409
  %v2513 = vpop.f32.mrf.mxu0
  %v2514 = vadd.f32 0.0, %v2513
  %v2515 = vpop.f32.mrf.mxu0
  %v2516 = vadd.f32 0.0, %v2515
  %2517 = vmatmul.bf16.gmra.mxu0 %v2412
  %v2518 = vpop.f32.mrf.mxu0
  %v2519 = vadd.f32 0.0, %v2518
  %v2520 = vpop.f32.mrf.mxu0
  %v2521 = vadd.f32 0.0, %v2520
  %2522 = vmatmul.bf16.gmra.mxu0 %v2415
  %v2523 = vpop.f32.mrf.mxu0
  %v2524 = vadd.f32 0.0, %v2523
  %v2525 = vpop.f32.mrf.mxu0
  %v2526 = vadd.f32 0.0, %v2525
  %2527 = vmatmul.bf16.gmra.mxu0 %v2418
  %v2528 = vpop.f32.mrf.mxu0
  %v2529 = vadd.f32 0.0, %v2528
  %v2530 = vpop.f32.mrf.mxu0
  %v2531 = vadd.f32 0.0, %v2530
  %2532 = vmatmul.bf16.gmra.mxu0 %v2421
  %v2533 = vpop.f32.mrf.mxu0
  %v2534 = vadd.f32 0.0, %v2533
  %v2535 = vpop.f32.mrf.mxu0
  %v2536 = vadd.f32 0.0, %v2535
  %2537 = vmatmul.bf16.gmra.mxu0 %v2424
  %v2538 = vpop.f32.mrf.mxu0
  %v2539 = vadd.f32 0.0, %v2538
  %v2540 = vpop.f32.mrf.mxu0
  %v2541 = vadd.f32 0.0, %v2540
  %2542 = vmatmul.bf16.gmra.mxu0 %v2427
  %v2543 = vpop.f32.mrf.mxu0
  %v2544 = vadd.f32 0.0, %v2543
  %v2545 = vpop.f32.mrf.mxu0
  %v2546 = vadd.f32 0.0, %v2545
  %2547 = vmatmul.bf16.gmra.mxu0 %v2430
  %v2548 = vpop.f32.mrf.mxu0
  %v2549 = vadd.f32 0.0, %v2548
  %v2550 = vpop.f32.mrf.mxu0
  %v2551 = vadd.f32 0.0, %v2550
  %2552 = vmatmul.bf16.gmra.mxu0 %v2433
  %v2553 = vpop.f32.mrf.mxu0
  %v2554 = vadd.f32 0.0, %v2553
  %v2555 = vpop.f32.mrf.mxu0
  %v2556 = vadd.f32 0.0, %v2555
  %2557 = vmatmul.bf16.gmra.mxu0 %v2436
  %v2558 = vpop.f32.mrf.mxu0
  %v2559 = vadd.f32 0.0, %v2558
  %v2560 = vpop.f32.mrf.mxu0
  %v2561 = vadd.f32 0.0, %v2560
  %2562 = vmatmul.bf16.gmra.mxu0 %v2439
  %v2563 = vpop.f32.mrf.mxu0
  %v2564 = vadd.f32 0.0, %v2563
  %v2565 = vpop.f32.mrf.mxu0
  %v2566 = vadd.f32 0.0, %v2565
  %2567 = vmatmul.bf16.gmra.mxu0 %v2442
  %v2568 = vpop.f32.mrf.mxu0
  %v2569 = vadd.f32 0.0, %v2568
  %v2570 = vpop.f32.mrf.mxu0
  %v2571 = vadd.f32 0.0, %v2570
  %2572 = vmatmul.bf16.gmra.mxu0 %v2445
  %v2573 = vpop.f32.mrf.mxu0
  %v2574 = vadd.f32 0.0, %v2573
  %v2575 = vpop.f32.mrf.mxu0
  %v2576 = vadd.f32 0.0, %v2575
  %2577 = vmatmul.bf16.gmra.mxu0 %v2448
  %v2578 = vpop.f32.mrf.mxu0
  %v2579 = vadd.f32 0.0, %v2578
  %v2580 = vpop.f32.mrf.mxu0
  %v2581 = vadd.f32 0.0, %v2580
  %2582 = vmatmul.bf16.gmra.mxu0 %v2451
  %v2583 = vpop.f32.mrf.mxu0
  %v2584 = vadd.f32 0.0, %v2583
  %v2585 = vpop.f32.mrf.mxu0
  %v2586 = vadd.f32 0.0, %v2585
  %2587 = vmatmul.bf16.gmra.mxu0 %v2454
  %v2588 = vpop.f32.mrf.mxu0
  %v2589 = vadd.f32 0.0, %v2588
  %v2590 = vpop.f32.mrf.mxu0
  %v2591 = vadd.f32 0.0, %v2590
  %2592 = vmatmul.bf16.gmra.mxu0 %v2457
  %v2593 = vpop.f32.mrf.mxu0
  %v2594 = vadd.f32 0.0, %v2593
  %v2595 = vpop.f32.mrf.mxu0
  %v2596 = vadd.f32 0.0, %v2595
  %2597 = vmatmul.bf16.gmra.mxu0 %v2460
  %v2598 = vpop.f32.mrf.mxu0
  %v2599 = vadd.f32 0.0, %v2598
  %v2600 = vpop.f32.mrf.mxu0
  %v2601 = vadd.f32 0.0, %v2600
  %2602 = vmatmul.bf16.gmra.mxu0 %v2463
  %v2603 = vpop.f32.mrf.mxu0
  %v2604 = vadd.f32 0.0, %v2603
  %v2605 = vpop.f32.mrf.mxu0
  %v2606 = vadd.f32 0.0, %v2605
  %2607 = vmatmul.bf16.gmra.mxu0 %v2466
  %v2608 = vpop.f32.mrf.mxu0
  %v2609 = vadd.f32 0.0, %v2608
  %v2610 = vpop.f32.mrf.mxu0
  %v2611 = vadd.f32 0.0, %v2610
  %2612 = vmatmul.bf16.gmra.mxu0 %v2469
  %v2613 = vpop.f32.mrf.mxu0
  %v2614 = vadd.f32 0.0, %v2613
  %v2615 = vpop.f32.mrf.mxu0
  %v2616 = vadd.f32 0.0, %v2615
  %2617 = vmatmul.bf16.gmra.mxu0 %v2472
  %v2618 = vpop.f32.mrf.mxu0
  %v2619 = vadd.f32 0.0, %v2618
  %v2620 = vpop.f32.mrf.mxu0
  %v2621 = vadd.f32 0.0, %v2620
  %2622 = vmatmul.bf16.gmra.mxu0 %v2475
  %v2623 = vpop.f32.mrf.mxu0
  %v2624 = vadd.f32 0.0, %v2623
  %v2625 = vpop.f32.mrf.mxu0
  %v2626 = vadd.f32 0.0, %v2625
  %2627 = vmatmul.bf16.gmra.mxu0 %v2478
  %v2628 = vpop.f32.mrf.mxu0
  %v2629 = vadd.f32 0.0, %v2628
  %v2630 = vpop.f32.mrf.mxu0
  %v2631 = vadd.f32 0.0, %v2630
  %2632 = vmatmul.bf16.gmra.mxu0 %v2481
  %v2633 = vpop.f32.mrf.mxu0
  %v2634 = vadd.f32 0.0, %v2633
  %v2635 = vpop.f32.mrf.mxu0
  %v2636 = vadd.f32 0.0, %v2635
  %2637 = vmatmul.bf16.gmra.mxu0 %v2484
  %v2638 = vpop.f32.mrf.mxu0
  %v2639 = vadd.f32 0.0, %v2638
  %v2640 = vpop.f32.mrf.mxu0
  %v2641 = vadd.f32 0.0, %v2640
  %2642 = vmatmul.bf16.gmra.mxu0 %v2487
  %v2643 = vpop.f32.mrf.mxu0
  %v2644 = vadd.f32 0.0, %v2643
  %v2645 = vpop.f32.mrf.mxu0
  %v2646 = vadd.f32 0.0, %v2645
  %2647 = vmatmul.bf16.gmra.mxu0 %v2490
  %v2648 = vpop.f32.mrf.mxu0
  %v2649 = vadd.f32 0.0, %v2648
  %v2650 = vpop.f32.mrf.mxu0
  %v2651 = vadd.f32 0.0, %v2650
  %2652 = vmatmul.bf16.gmra.mxu0 %v2493
  %v2653 = vpop.f32.mrf.mxu0
  %v2654 = vadd.f32 0.0, %v2653
  %v2655 = vpop.f32.mrf.mxu0
  %v2656 = vadd.f32 0.0, %v2655
  %2657 = vmatmul.bf16.gmra.mxu0 %v2496
  %v2658 = vpop.f32.mrf.mxu0
  %v2659 = vadd.f32 0.0, %v2658
  %v2660 = vpop.f32.mrf.mxu0
  %v2661 = vadd.f32 0.0, %v2660
  %2662 = vmatmul.bf16.gmra.mxu0 %v2499
  %v2663 = vpop.f32.mrf.mxu0
  %v2664 = vadd.f32 0.0, %v2663
  %v2665 = vpop.f32.mrf.mxu0
  %v2666 = vadd.f32 0.0, %v2665
  %2667 = vmatmul.bf16.gmra.mxu0 %v2502
  %v2668 = vpop.f32.mrf.mxu0
  %v2669 = vadd.f32 0.0, %v2668
  %v2670 = vpop.f32.mrf.mxu0
  %v2671 = vadd.f32 0.0, %v2670
  %2672 = vdwg.mxu0
  %v2673 = vadd.f32 %v2239, %v2514
  %v2674 = vadd.f32 %v2240, %v2516
  %v2675 = vadd.f32 %v2241, %v2519
  %v2676 = vadd.f32 %v2242, %v2521
  %v2677 = vadd.f32 %v2243, %v2524
  %v2678 = vadd.f32 %v2244, %v2526
  %v2679 = vadd.f32 %v2245, %v2529
  %v2680 = vadd.f32 %v2246, %v2531
  %v2681 = vadd.f32 %v2247, %v2534
  %v2682 = vadd.f32 %v2248, %v2536
  %v2683 = vadd.f32 %v2249, %v2539
  %v2684 = vadd.f32 %v2250, %v2541
  %v2685 = vadd.f32 %v2251, %v2544
  %v2686 = vadd.f32 %v2252, %v2546
  %v2687 = vadd.f32 %v2253, %v2549
  %v2688 = vadd.f32 %v2254, %v2551
  %v2689 = vadd.f32 %v2255, %v2554
  %v2690 = vadd.f32 %v2256, %v2556
  %v2691 = vadd.f32 %v2257, %v2559
  %v2692 = vadd.f32 %v2258, %v2561
  %v2693 = vadd.f32 %v2259, %v2564
  %v2694 = vadd.f32 %v2260, %v2566
  %v2695 = vadd.f32 %v2261, %v2569
  %v2696 = vadd.f32 %v2262, %v2571
  %v2697 = vadd.f32 %v2263, %v2574
  %v2698 = vadd.f32 %v2264, %v2576
  %v2699 = vadd.f32 %v2265, %v2579
  %v2700 = vadd.f32 %v2266, %v2581
  %v2701 = vadd.f32 %v2267, %v2584
  %v2702 = vadd.f32 %v2268, %v2586
  %v2703 = vadd.f32 %v2269, %v2589
  %v2704 = vadd.f32 %v2270, %v2591
  %v2705 = vadd.f32 %v2271, %v2594
  %v2706 = vadd.f32 %v2272, %v2596
  %v2707 = vadd.f32 %v2273, %v2599
  %v2708 = vadd.f32 %v2274, %v2601
  %v2709 = vadd.f32 %v2275, %v2604
  %v2710 = vadd.f32 %v2276, %v2606
  %v2711 = vadd.f32 %v2277, %v2609
  %v2712 = vadd.f32 %v2278, %v2611
  %v2713 = vadd.f32 %v2279, %v2614
  %v2714 = vadd.f32 %v2280, %v2616
  %v2715 = vadd.f32 %v2281, %v2619
  %v2716 = vadd.f32 %v2282, %v2621
  %v2717 = vadd.f32 %v2283, %v2624
  %v2718 = vadd.f32 %v2284, %v2626
  %v2719 = vadd.f32 %v2285, %v2629
  %v2720 = vadd.f32 %v2286, %v2631
  %v2721 = vadd.f32 %v2287, %v2634
  %v2722 = vadd.f32 %v2288, %v2636
  %v2723 = vadd.f32 %v2289, %v2639
  %v2724 = vadd.f32 %v2290, %v2641
  %v2725 = vadd.f32 %v2291, %v2644
  %v2726 = vadd.f32 %v2292, %v2646
  %v2727 = vadd.f32 %v2293, %v2649
  %v2728 = vadd.f32 %v2294, %v2651
  %v2729 = vadd.f32 %v2295, %v2654
  %v2730 = vadd.f32 %v2296, %v2656
  %v2731 = vadd.f32 %v2297, %v2659
  %v2732 = vadd.f32 %v2298, %v2661
  %v2733 = vadd.f32 %v2299, %v2664
  %v2734 = vadd.f32 %v2300, %v2666
  %v2735 = vadd.f32 %v2301, %v2669
  %v2736 = vadd.f32 %v2302, %v2671
  %s2737 = scalar_lea.vmem [#allocation2], 48
  %v2738 = vld [vmem:[%s2737] sm:$0xff]
  %v2739 = vld [vmem:[%s2737 + $0x8] sm:$0xff]
  %v2740 = vld [vmem:[%s2737 + $0x18] sm:$0xff]
  %v2741 = vld [vmem:[%s2737 + $0x20] sm:$0xff]
  %v2742 = vld [vmem:[%s2737 + $0x30] sm:$0xff]
  %v2743 = vld [vmem:[%s2737 + $0x38] sm:$0xff]
  %v2744 = vld [vmem:[%s2737 + $0x48] sm:$0xff]
  %v2745 = vld [vmem:[%s2737 + $0x50] sm:$0xff]
  %v2746 = vld [vmem:[%s2737 + $0x60] sm:$0xff]
  %v2747 = vld [vmem:[%s2737 + $0x68] sm:$0xff]
  %v2748 = vld [vmem:[%s2737 + $0x78] sm:$0xff]
  %v2749 = vld [vmem:[%s2737 + $0x80] sm:$0xff]
  %v2750 = vld [vmem:[%s2737 + $0x90] sm:$0xff]
  %v2751 = vld [vmem:[%s2737 + $0x98] sm:$0xff]
  %v2752 = vld [vmem:[%s2737 + $0xa8] sm:$0xff]
  %v2753 = vld [vmem:[%s2737 + $0xb0] sm:$0xff]
  %v2754 = vld [vmem:[%s2737 + $0xc0] sm:$0xff]
  %v2755 = vld [vmem:[%s2737 + $0xc8] sm:$0xff]
  %v2756 = vld [vmem:[%s2737 + $0xd8] sm:$0xff]
  %v2757 = vld [vmem:[%s2737 + $0xe0] sm:$0xff]
  %v2758 = vld [vmem:[%s2737 + $0xf0] sm:$0xff]
  %v2759 = vld [vmem:[%s2737 + $0xf8] sm:$0xff]
  %v2760 = vld [vmem:[%s2737 + $0x108] sm:$0xff]
  %v2761 = vld [vmem:[%s2737 + $0x110] sm:$0xff]
  %v2762 = vld [vmem:[%s2737 + $0x120] sm:$0xff]
  %v2763 = vld [vmem:[%s2737 + $0x128] sm:$0xff]
  %v2764 = vld [vmem:[%s2737 + $0x138] sm:$0xff]
  %v2765 = vld [vmem:[%s2737 + $0x140] sm:$0xff]
  %v2766 = vld [vmem:[%s2737 + $0x150] sm:$0xff]
  %v2767 = vld [vmem:[%s2737 + $0x158] sm:$0xff]
  %v2768 = vld [vmem:[%s2737 + $0x168] sm:$0xff]
  %v2769 = vld [vmem:[%s2737 + $0x170] sm:$0xff]
  %v2770 = vld [vmem:[%s2737 + $0x1b0] sm:$0xff]
  %v2771 = vld [vmem:[%s2737 + $0x1b8] sm:$0xff]
  %v2772 = vld [vmem:[%s2737 + $0x1c8] sm:$0xff]
  %v2773 = vld [vmem:[%s2737 + $0x1d0] sm:$0xff]
  %v2774 = vld [vmem:[%s2737 + $0x1e0] sm:$0xff]
  %v2775 = vld [vmem:[%s2737 + $0x1e8] sm:$0xff]
  %v2776 = vld [vmem:[%s2737 + $0x1f8] sm:$0xff]
  %v2777 = vld [vmem:[%s2737 + $0x200] sm:$0xff]
  %v2778 = vld [vmem:[%s2737 + $0x210] sm:$0xff]
  %v2779 = vld [vmem:[%s2737 + $0x218] sm:$0xff]
  %v2780 = vld [vmem:[%s2737 + $0x228] sm:$0xff]
  %v2781 = vld [vmem:[%s2737 + $0x230] sm:$0xff]
  %v2782 = vld [vmem:[%s2737 + $0x240] sm:$0xff]
  %v2783 = vld [vmem:[%s2737 + $0x248] sm:$0xff]
  %v2784 = vld [vmem:[%s2737 + $0x258] sm:$0xff]
  %v2785 = vld [vmem:[%s2737 + $0x260] sm:$0xff]
  %v2786 = vld [vmem:[%s2737 + $0x270] sm:$0xff]
  %v2787 = vld [vmem:[%s2737 + $0x278] sm:$0xff]
  %v2788 = vld [vmem:[%s2737 + $0x288] sm:$0xff]
  %v2789 = vld [vmem:[%s2737 + $0x290] sm:$0xff]
  %v2790 = vld [vmem:[%s2737 + $0x2a0] sm:$0xff]
  %v2791 = vld [vmem:[%s2737 + $0x2a8] sm:$0xff]
  %v2792 = vld [vmem:[%s2737 + $0x2b8] sm:$0xff]
  %v2793 = vld [vmem:[%s2737 + $0x2c0] sm:$0xff]
  %v2794 = vld [vmem:[%s2737 + $0x2d0] sm:$0xff]
  %v2795 = vld [vmem:[%s2737 + $0x2d8] sm:$0xff]
  %v2796 = vld [vmem:[%s2737 + $0x2e8] sm:$0xff]
  %v2797 = vld [vmem:[%s2737 + $0x2f0] sm:$0xff]
  %v2798 = vld [vmem:[%s2737 + $0x300] sm:$0xff]
  %v2799 = vld [vmem:[%s2737 + $0x308] sm:$0xff]
  %v2800 = vld [vmem:[%s2737 + $0x318] sm:$0xff]
  %v2801 = vld [vmem:[%s2737 + $0x320] sm:$0xff]
  %v2802 = vpack.c.bf16 %v2739, %v2738
  %v2803 = vpack.c.bf16 %v2741, %v2740
  %v2804 = vpack.c.bf16 %v2743, %v2742
  %v2805 = vpack.c.bf16 %v2745, %v2744
  %v2806 = vpack.c.bf16 %v2747, %v2746
  %v2807 = vpack.c.bf16 %v2749, %v2748
  %v2808 = vpack.c.bf16 %v2751, %v2750
  %v2809 = vpack.c.bf16 %v2753, %v2752
  %v2810 = vpack.c.bf16 %v2755, %v2754
  %v2811 = vpack.c.bf16 %v2757, %v2756
  %v2812 = vpack.c.bf16 %v2759, %v2758
  %v2813 = vpack.c.bf16 %v2761, %v2760
  %v2814 = vpack.c.bf16 %v2763, %v2762
  %v2815 = vpack.c.bf16 %v2765, %v2764
  %v2816 = vpack.c.bf16 %v2767, %v2766
  %v2817 = vpack.c.bf16 %v2769, %v2768
  %v2818 = vpack.c.bf16 %v2771, %v2770
  %v2819 = vpack.c.bf16 %v2773, %v2772
  %v2820 = vpack.c.bf16 %v2775, %v2774
  %v2821 = vpack.c.bf16 %v2777, %v2776
  %v2822 = vpack.c.bf16 %v2779, %v2778
  %v2823 = vpack.c.bf16 %v2781, %v2780
  %v2824 = vpack.c.bf16 %v2783, %v2782
  %v2825 = vpack.c.bf16 %v2785, %v2784
  %v2826 = vpack.c.bf16 %v2787, %v2786
  %v2827 = vpack.c.bf16 %v2789, %v2788
  %v2828 = vpack.c.bf16 %v2791, %v2790
  %v2829 = vpack.c.bf16 %v2793, %v2792
  %v2830 = vpack.c.bf16 %v2795, %v2794
  %v2831 = vpack.c.bf16 %v2797, %v2796
  %v2832 = vpack.c.bf16 %v2799, %v2798
  %v2833 = vpack.c.bf16 %v2801, %v2800
  %s2834 = scalar_lea.vmem %s1, 48
  %v2835 = vld [vmem:[%s2834] sm:$0xf]
  %v2836 = vld [vmem:[%s2834 + $0x4] sm:$0xf]
  %v2839 = vunpack.c.l.b16 %v2835
  %v2840 = vunpack.c.l.b16 %v2836
  %v2841 = vpack.c.b16 %v2840, %v2839
  %v2844 = vsel %vm21, %v2802, 0
  %v2847 = vsel %vm21, %v2803, 0
  %v2850 = vsel %vm21, %v2804, 0
  %v2853 = vsel %vm21, %v2805, 0
  %v2856 = vsel %vm21, %v2806, 0
  %v2859 = vsel %vm21, %v2807, 0
  %v2862 = vsel %vm21, %v2808, 0
  %v2865 = vsel %vm21, %v2809, 0
  %v2868 = vsel %vm21, %v2810, 0
  %v2871 = vsel %vm21, %v2811, 0
  %v2874 = vsel %vm21, %v2812, 0
  %v2877 = vsel %vm21, %v2813, 0
  %v2880 = vsel %vm21, %v2814, 0
  %v2883 = vsel %vm21, %v2815, 0
  %v2886 = vsel %vm21, %v2816, 0
  %v2889 = vsel %vm21, %v2817, 0
  %v2892 = vsel %vm21, %v2818, 0
  %v2895 = vsel %vm21, %v2819, 0
  %v2898 = vsel %vm21, %v2820, 0
  %v2901 = vsel %vm21, %v2821, 0
  %v2904 = vsel %vm21, %v2822, 0
  %v2907 = vsel %vm21, %v2823, 0
  %v2910 = vsel %vm21, %v2824, 0
  %v2913 = vsel %vm21, %v2825, 0
  %v2916 = vsel %vm21, %v2826, 0
  %v2919 = vsel %vm21, %v2827, 0
  %v2922 = vsel %vm21, %v2828, 0
  %v2925 = vsel %vm21, %v2829, 0
  %v2928 = vsel %vm21, %v2830, 0
  %v2931 = vsel %vm21, %v2831, 0
  %v2934 = vsel %vm21, %v2832, 0
  %v2937 = vsel %vm21, %v2833, 0
  %2939 = vmatpush.bf16.msra.mxu0 0
  %2940 = vmatpush.bf16.msra.mxu0 0
  %2941 = vmatpush.bf16.msra.mxu0 0
  %2942 = vmatpush.bf16.msra.mxu0 0
  %2943 = vmatpush.bf16.msra.mxu0 0
  %2944 = vmatpush.bf16.msra.mxu0 0
  %2945 = vmatpush.bf16.msra.mxu0 0
  %2946 = vmatpush.bf16.msra.mxu0 %v2841
  %2947 = vmatmul.bf16.gmra.mxu0 %v2844
  %v2948 = vpop.f32.mrf.mxu0
  %v2949 = vadd.f32 0.0, %v2948
  %v2950 = vpop.f32.mrf.mxu0
  %v2951 = vadd.f32 0.0, %v2950
  %2952 = vmatmul.bf16.gmra.mxu0 %v2847
  %v2953 = vpop.f32.mrf.mxu0
  %v2954 = vadd.f32 0.0, %v2953
  %v2955 = vpop.f32.mrf.mxu0
  %v2956 = vadd.f32 0.0, %v2955
  %2957 = vmatmul.bf16.gmra.mxu0 %v2850
  %v2958 = vpop.f32.mrf.mxu0
  %v2959 = vadd.f32 0.0, %v2958
  %v2960 = vpop.f32.mrf.mxu0
  %v2961 = vadd.f32 0.0, %v2960
  %2962 = vmatmul.bf16.gmra.mxu0 %v2853
  %v2963 = vpop.f32.mrf.mxu0
  %v2964 = vadd.f32 0.0, %v2963
  %v2965 = vpop.f32.mrf.mxu0
  %v2966 = vadd.f32 0.0, %v2965
  %2967 = vmatmul.bf16.gmra.mxu0 %v2856
  %v2968 = vpop.f32.mrf.mxu0
  %v2969 = vadd.f32 0.0, %v2968
  %v2970 = vpop.f32.mrf.mxu0
  %v2971 = vadd.f32 0.0, %v2970
  %2972 = vmatmul.bf16.gmra.mxu0 %v2859
  %v2973 = vpop.f32.mrf.mxu0
  %v2974 = vadd.f32 0.0, %v2973
  %v2975 = vpop.f32.mrf.mxu0
  %v2976 = vadd.f32 0.0, %v2975
  %2977 = vmatmul.bf16.gmra.mxu0 %v2862
  %v2978 = vpop.f32.mrf.mxu0
  %v2979 = vadd.f32 0.0, %v2978
  %v2980 = vpop.f32.mrf.mxu0
  %v2981 = vadd.f32 0.0, %v2980
  %2982 = vmatmul.bf16.gmra.mxu0 %v2865
  %v2983 = vpop.f32.mrf.mxu0
  %v2984 = vadd.f32 0.0, %v2983
  %v2985 = vpop.f32.mrf.mxu0
  %v2986 = vadd.f32 0.0, %v2985
  %2987 = vmatmul.bf16.gmra.mxu0 %v2868
  %v2988 = vpop.f32.mrf.mxu0
  %v2989 = vadd.f32 0.0, %v2988
  %v2990 = vpop.f32.mrf.mxu0
  %v2991 = vadd.f32 0.0, %v2990
  %2992 = vmatmul.bf16.gmra.mxu0 %v2871
  %v2993 = vpop.f32.mrf.mxu0
  %v2994 = vadd.f32 0.0, %v2993
  %v2995 = vpop.f32.mrf.mxu0
  %v2996 = vadd.f32 0.0, %v2995
  %2997 = vmatmul.bf16.gmra.mxu0 %v2874
  %v2998 = vpop.f32.mrf.mxu0
  %v2999 = vadd.f32 0.0, %v2998
  %v3000 = vpop.f32.mrf.mxu0
  %v3001 = vadd.f32 0.0, %v3000
  %3002 = vmatmul.bf16.gmra.mxu0 %v2877
  %v3003 = vpop.f32.mrf.mxu0
  %v3004 = vadd.f32 0.0, %v3003
  %v3005 = vpop.f32.mrf.mxu0
  %v3006 = vadd.f32 0.0, %v3005
  %3007 = vmatmul.bf16.gmra.mxu0 %v2880
  %v3008 = vpop.f32.mrf.mxu0
  %v3009 = vadd.f32 0.0, %v3008
  %v3010 = vpop.f32.mrf.mxu0
  %v3011 = vadd.f32 0.0, %v3010
  %3012 = vmatmul.bf16.gmra.mxu0 %v2883
  %v3013 = vpop.f32.mrf.mxu0
  %v3014 = vadd.f32 0.0, %v3013
  %v3015 = vpop.f32.mrf.mxu0
  %v3016 = vadd.f32 0.0, %v3015
  %3017 = vmatmul.bf16.gmra.mxu0 %v2886
  %v3018 = vpop.f32.mrf.mxu0
  %v3019 = vadd.f32 0.0, %v3018
  %v3020 = vpop.f32.mrf.mxu0
  %v3021 = vadd.f32 0.0, %v3020
  %3022 = vmatmul.bf16.gmra.mxu0 %v2889
  %v3023 = vpop.f32.mrf.mxu0
  %v3024 = vadd.f32 0.0, %v3023
  %v3025 = vpop.f32.mrf.mxu0
  %v3026 = vadd.f32 0.0, %v3025
  %3027 = vmatmul.bf16.gmra.mxu0 %v2892
  %v3028 = vpop.f32.mrf.mxu0
  %v3029 = vadd.f32 0.0, %v3028
  %v3030 = vpop.f32.mrf.mxu0
  %v3031 = vadd.f32 0.0, %v3030
  %3032 = vmatmul.bf16.gmra.mxu0 %v2895
  %v3033 = vpop.f32.mrf.mxu0
  %v3034 = vadd.f32 0.0, %v3033
  %v3035 = vpop.f32.mrf.mxu0
  %v3036 = vadd.f32 0.0, %v3035
  %3037 = vmatmul.bf16.gmra.mxu0 %v2898
  %v3038 = vpop.f32.mrf.mxu0
  %v3039 = vadd.f32 0.0, %v3038
  %v3040 = vpop.f32.mrf.mxu0
  %v3041 = vadd.f32 0.0, %v3040
  %3042 = vmatmul.bf16.gmra.mxu0 %v2901
  %v3043 = vpop.f32.mrf.mxu0
  %v3044 = vadd.f32 0.0, %v3043
  %v3045 = vpop.f32.mrf.mxu0
  %v3046 = vadd.f32 0.0, %v3045
  %3047 = vmatmul.bf16.gmra.mxu0 %v2904
  %v3048 = vpop.f32.mrf.mxu0
  %v3049 = vadd.f32 0.0, %v3048
  %v3050 = vpop.f32.mrf.mxu0
  %v3051 = vadd.f32 0.0, %v3050
  %3052 = vmatmul.bf16.gmra.mxu0 %v2907
  %v3053 = vpop.f32.mrf.mxu0
  %v3054 = vadd.f32 0.0, %v3053
  %v3055 = vpop.f32.mrf.mxu0
  %v3056 = vadd.f32 0.0, %v3055
  %3057 = vmatmul.bf16.gmra.mxu0 %v2910
  %v3058 = vpop.f32.mrf.mxu0
  %v3059 = vadd.f32 0.0, %v3058
  %v3060 = vpop.f32.mrf.mxu0
  %v3061 = vadd.f32 0.0, %v3060
  %3062 = vmatmul.bf16.gmra.mxu0 %v2913
  %v3063 = vpop.f32.mrf.mxu0
  %v3064 = vadd.f32 0.0, %v3063
  %v3065 = vpop.f32.mrf.mxu0
  %v3066 = vadd.f32 0.0, %v3065
  %3067 = vmatmul.bf16.gmra.mxu0 %v2916
  %v3068 = vpop.f32.mrf.mxu0
  %v3069 = vadd.f32 0.0, %v3068
  %v3070 = vpop.f32.mrf.mxu0
  %v3071 = vadd.f32 0.0, %v3070
  %3072 = vmatmul.bf16.gmra.mxu0 %v2919
  %v3073 = vpop.f32.mrf.mxu0
  %v3074 = vadd.f32 0.0, %v3073
  %v3075 = vpop.f32.mrf.mxu0
  %v3076 = vadd.f32 0.0, %v3075
  %3077 = vmatmul.bf16.gmra.mxu0 %v2922
  %v3078 = vpop.f32.mrf.mxu0
  %v3079 = vadd.f32 0.0, %v3078
  %v3080 = vpop.f32.mrf.mxu0
  %v3081 = vadd.f32 0.0, %v3080
  %3082 = vmatmul.bf16.gmra.mxu0 %v2925
  %v3083 = vpop.f32.mrf.mxu0
  %v3084 = vadd.f32 0.0, %v3083
  %v3085 = vpop.f32.mrf.mxu0
  %v3086 = vadd.f32 0.0, %v3085
  %3087 = vmatmul.bf16.gmra.mxu0 %v2928
  %v3088 = vpop.f32.mrf.mxu0
  %v3089 = vadd.f32 0.0, %v3088
  %v3090 = vpop.f32.mrf.mxu0
  %v3091 = vadd.f32 0.0, %v3090
  %3092 = vmatmul.bf16.gmra.mxu0 %v2931
  %v3093 = vpop.f32.mrf.mxu0
  %v3094 = vadd.f32 0.0, %v3093
  %v3095 = vpop.f32.mrf.mxu0
  %v3096 = vadd.f32 0.0, %v3095
  %3097 = vmatmul.bf16.gmra.mxu0 %v2934
  %v3098 = vpop.f32.mrf.mxu0
  %v3099 = vadd.f32 0.0, %v3098
  %v3100 = vpop.f32.mrf.mxu0
  %v3101 = vadd.f32 0.0, %v3100
  %3102 = vmatmul.bf16.gmra.mxu0 %v2937
  %v3103 = vpop.f32.mrf.mxu0
  %v3104 = vadd.f32 0.0, %v3103
  %v3105 = vpop.f32.mrf.mxu0
  %v3106 = vadd.f32 0.0, %v3105
  %3107 = vdwg.mxu0
  %v3108 = vadd.f32 %v2673, %v2949
  %v3109 = vadd.f32 %v2674, %v2951
  %v3110 = vadd.f32 %v2675, %v2954
  %v3111 = vadd.f32 %v2676, %v2956
  %v3112 = vadd.f32 %v2677, %v2959
  %v3113 = vadd.f32 %v2678, %v2961
  %v3114 = vadd.f32 %v2679, %v2964
  %v3115 = vadd.f32 %v2680, %v2966
  %v3116 = vadd.f32 %v2681, %v2969
  %v3117 = vadd.f32 %v2682, %v2971
  %v3118 = vadd.f32 %v2683, %v2974
  %v3119 = vadd.f32 %v2684, %v2976
  %v3120 = vadd.f32 %v2685, %v2979
  %v3121 = vadd.f32 %v2686, %v2981
  %v3122 = vadd.f32 %v2687, %v2984
  %v3123 = vadd.f32 %v2688, %v2986
  %v3124 = vadd.f32 %v2689, %v2989
  %v3125 = vadd.f32 %v2690, %v2991
  %v3126 = vadd.f32 %v2691, %v2994
  %v3127 = vadd.f32 %v2692, %v2996
  %v3128 = vadd.f32 %v2693, %v2999
  %v3129 = vadd.f32 %v2694, %v3001
  %v3130 = vadd.f32 %v2695, %v3004
  %v3131 = vadd.f32 %v2696, %v3006
  %v3132 = vadd.f32 %v2697, %v3009
  %v3133 = vadd.f32 %v2698, %v3011
  %v3134 = vadd.f32 %v2699, %v3014
  %v3135 = vadd.f32 %v2700, %v3016
  %v3136 = vadd.f32 %v2701, %v3019
  %v3137 = vadd.f32 %v2702, %v3021
  %v3138 = vadd.f32 %v2703, %v3024
  %v3139 = vadd.f32 %v2704, %v3026
  %v3140 = vadd.f32 %v2705, %v3029
  %v3141 = vadd.f32 %v2706, %v3031
  %v3142 = vadd.f32 %v2707, %v3034
  %v3143 = vadd.f32 %v2708, %v3036
  %v3144 = vadd.f32 %v2709, %v3039
  %v3145 = vadd.f32 %v2710, %v3041
  %v3146 = vadd.f32 %v2711, %v3044
  %v3147 = vadd.f32 %v2712, %v3046
  %v3148 = vadd.f32 %v2713, %v3049
  %v3149 = vadd.f32 %v2714, %v3051
  %v3150 = vadd.f32 %v2715, %v3054
  %v3151 = vadd.f32 %v2716, %v3056
  %v3152 = vadd.f32 %v2717, %v3059
  %v3153 = vadd.f32 %v2718, %v3061
  %v3154 = vadd.f32 %v2719, %v3064
  %v3155 = vadd.f32 %v2720, %v3066
  %v3156 = vadd.f32 %v2721, %v3069
  %v3157 = vadd.f32 %v2722, %v3071
  %v3158 = vadd.f32 %v2723, %v3074
  %v3159 = vadd.f32 %v2724, %v3076
  %v3160 = vadd.f32 %v2725, %v3079
  %v3161 = vadd.f32 %v2726, %v3081
  %v3162 = vadd.f32 %v2727, %v3084
  %v3163 = vadd.f32 %v2728, %v3086
  %v3164 = vadd.f32 %v2729, %v3089
  %v3165 = vadd.f32 %v2730, %v3091
  %v3166 = vadd.f32 %v2731, %v3094
  %v3167 = vadd.f32 %v2732, %v3096
  %v3168 = vadd.f32 %v2733, %v3099
  %v3169 = vadd.f32 %v2734, %v3101
  %v3170 = vadd.f32 %v2735, %v3104
  %v3171 = vadd.f32 %v2736, %v3106
  %v3172 = vld [vmem:[%s2737 + $0x1] sm:$0xff]
  %v3173 = vld [vmem:[%s2737 + $0x9] sm:$0xff]
  %v3174 = vld [vmem:[%s2737 + $0x19] sm:$0xff]
  %v3175 = vld [vmem:[%s2737 + $0x21] sm:$0xff]
  %v3176 = vld [vmem:[%s2737 + $0x31] sm:$0xff]
  %v3177 = vld [vmem:[%s2737 + $0x39] sm:$0xff]
  %v3178 = vld [vmem:[%s2737 + $0x49] sm:$0xff]
  %v3179 = vld [vmem:[%s2737 + $0x51] sm:$0xff]
  %v3180 = vld [vmem:[%s2737 + $0x61] sm:$0xff]
  %v3181 = vld [vmem:[%s2737 + $0x69] sm:$0xff]
  %v3182 = vld [vmem:[%s2737 + $0x79] sm:$0xff]
  %v3183 = vld [vmem:[%s2737 + $0x81] sm:$0xff]
  %v3184 = vld [vmem:[%s2737 + $0x91] sm:$0xff]
  %v3185 = vld [vmem:[%s2737 + $0x99] sm:$0xff]
  %v3186 = vld [vmem:[%s2737 + $0xa9] sm:$0xff]
  %v3187 = vld [vmem:[%s2737 + $0xb1] sm:$0xff]
  %v3188 = vld [vmem:[%s2737 + $0xc1] sm:$0xff]
  %v3189 = vld [vmem:[%s2737 + $0xc9] sm:$0xff]
  %v3190 = vld [vmem:[%s2737 + $0xd9] sm:$0xff]
  %v3191 = vld [vmem:[%s2737 + $0xe1] sm:$0xff]
  %v3192 = vld [vmem:[%s2737 + $0xf1] sm:$0xff]
  %v3193 = vld [vmem:[%s2737 + $0xf9] sm:$0xff]
  %v3194 = vld [vmem:[%s2737 + $0x109] sm:$0xff]
  %v3195 = vld [vmem:[%s2737 + $0x111] sm:$0xff]
  %v3196 = vld [vmem:[%s2737 + $0x121] sm:$0xff]
  %v3197 = vld [vmem:[%s2737 + $0x129] sm:$0xff]
  %v3198 = vld [vmem:[%s2737 + $0x139] sm:$0xff]
  %v3199 = vld [vmem:[%s2737 + $0x141] sm:$0xff]
  %v3200 = vld [vmem:[%s2737 + $0x151] sm:$0xff]
  %v3201 = vld [vmem:[%s2737 + $0x159] sm:$0xff]
  %v3202 = vld [vmem:[%s2737 + $0x169] sm:$0xff]
  %v3203 = vld [vmem:[%s2737 + $0x171] sm:$0xff]
  %v3204 = vld [vmem:[%s2737 + $0x1b1] sm:$0xff]
  %v3205 = vld [vmem:[%s2737 + $0x1b9] sm:$0xff]
  %v3206 = vld [vmem:[%s2737 + $0x1c9] sm:$0xff]
  %v3207 = vld [vmem:[%s2737 + $0x1d1] sm:$0xff]
  %v3208 = vld [vmem:[%s2737 + $0x1e1] sm:$0xff]
  %v3209 = vld [vmem:[%s2737 + $0x1e9] sm:$0xff]
  %v3210 = vld [vmem:[%s2737 + $0x1f9] sm:$0xff]
  %v3211 = vld [vmem:[%s2737 + $0x201] sm:$0xff]
  %v3212 = vld [vmem:[%s2737 + $0x211] sm:$0xff]
  %v3213 = vld [vmem:[%s2737 + $0x219] sm:$0xff]
  %v3214 = vld [vmem:[%s2737 + $0x229] sm:$0xff]
  %v3215 = vld [vmem:[%s2737 + $0x231] sm:$0xff]
  %v3216 = vld [vmem:[%s2737 + $0x241] sm:$0xff]
  %v3217 = vld [vmem:[%s2737 + $0x249] sm:$0xff]
  %v3218 = vld [vmem:[%s2737 + $0x259] sm:$0xff]
  %v3219 = vld [vmem:[%s2737 + $0x261] sm:$0xff]
  %v3220 = vld [vmem:[%s2737 + $0x271] sm:$0xff]
  %v3221 = vld [vmem:[%s2737 + $0x279] sm:$0xff]
  %v3222 = vld [vmem:[%s2737 + $0x289] sm:$0xff]
  %v3223 = vld [vmem:[%s2737 + $0x291] sm:$0xff]
  %v3224 = vld [vmem:[%s2737 + $0x2a1] sm:$0xff]
  %v3225 = vld [vmem:[%s2737 + $0x2a9] sm:$0xff]
  %v3226 = vld [vmem:[%s2737 + $0x2b9] sm:$0xff]
  %v3227 = vld [vmem:[%s2737 + $0x2c1] sm:$0xff]
  %v3228 = vld [vmem:[%s2737 + $0x2d1] sm:$0xff]
  %v3229 = vld [vmem:[%s2737 + $0x2d9] sm:$0xff]
  %v3230 = vld [vmem:[%s2737 + $0x2e9] sm:$0xff]
  %v3231 = vld [vmem:[%s2737 + $0x2f1] sm:$0xff]
  %v3232 = vld [vmem:[%s2737 + $0x301] sm:$0xff]
  %v3233 = vld [vmem:[%s2737 + $0x309] sm:$0xff]
  %v3234 = vld [vmem:[%s2737 + $0x319] sm:$0xff]
  %v3235 = vld [vmem:[%s2737 + $0x321] sm:$0xff]
  %v3236 = vpack.c.bf16 %v3173, %v3172
  %v3237 = vpack.c.bf16 %v3175, %v3174
  %v3238 = vpack.c.bf16 %v3177, %v3176
  %v3239 = vpack.c.bf16 %v3179, %v3178
  %v3240 = vpack.c.bf16 %v3181, %v3180
  %v3241 = vpack.c.bf16 %v3183, %v3182
  %v3242 = vpack.c.bf16 %v3185, %v3184
  %v3243 = vpack.c.bf16 %v3187, %v3186
  %v3244 = vpack.c.bf16 %v3189, %v3188
  %v3245 = vpack.c.bf16 %v3191, %v3190
  %v3246 = vpack.c.bf16 %v3193, %v3192
  %v3247 = vpack.c.bf16 %v3195, %v3194
  %v3248 = vpack.c.bf16 %v3197, %v3196
  %v3249 = vpack.c.bf16 %v3199, %v3198
  %v3250 = vpack.c.bf16 %v3201, %v3200
  %v3251 = vpack.c.bf16 %v3203, %v3202
  %v3252 = vpack.c.bf16 %v3205, %v3204
  %v3253 = vpack.c.bf16 %v3207, %v3206
  %v3254 = vpack.c.bf16 %v3209, %v3208
  %v3255 = vpack.c.bf16 %v3211, %v3210
  %v3256 = vpack.c.bf16 %v3213, %v3212
  %v3257 = vpack.c.bf16 %v3215, %v3214
  %v3258 = vpack.c.bf16 %v3217, %v3216
  %v3259 = vpack.c.bf16 %v3219, %v3218
  %v3260 = vpack.c.bf16 %v3221, %v3220
  %v3261 = vpack.c.bf16 %v3223, %v3222
  %v3262 = vpack.c.bf16 %v3225, %v3224
  %v3263 = vpack.c.bf16 %v3227, %v3226
  %v3264 = vpack.c.bf16 %v3229, %v3228
  %v3265 = vpack.c.bf16 %v3231, %v3230
  %v3266 = vpack.c.bf16 %v3233, %v3232
  %v3267 = vpack.c.bf16 %v3235, %v3234
  %s3268 = scalar_lea.vmem %s1, 56
  %v3269 = vld [vmem:[%s3268] sm:$0xf]
  %v3270 = vld [vmem:[%s3268 + $0x4] sm:$0xf]
  %v3273 = vunpack.c.l.b16 %v3269
  %v3274 = vunpack.c.l.b16 %v3270
  %v3275 = vpack.c.b16 %v3274, %v3273
  %v3278 = vsel %vm21, %v3236, 0
  %v3281 = vsel %vm21, %v3237, 0
  %v3284 = vsel %vm21, %v3238, 0
  %v3287 = vsel %vm21, %v3239, 0
  %v3290 = vsel %vm21, %v3240, 0
  %v3293 = vsel %vm21, %v3241, 0
  %v3296 = vsel %vm21, %v3242, 0
  %v3299 = vsel %vm21, %v3243, 0
  %v3302 = vsel %vm21, %v3244, 0
  %v3305 = vsel %vm21, %v3245, 0
  %v3308 = vsel %vm21, %v3246, 0
  %v3311 = vsel %vm21, %v3247, 0
  %v3314 = vsel %vm21, %v3248, 0
  %v3317 = vsel %vm21, %v3249, 0
  %v3320 = vsel %vm21, %v3250, 0
  %v3323 = vsel %vm21, %v3251, 0
  %v3326 = vsel %vm21, %v3252, 0
  %v3329 = vsel %vm21, %v3253, 0
  %v3332 = vsel %vm21, %v3254, 0
  %v3335 = vsel %vm21, %v3255, 0
  %v3338 = vsel %vm21, %v3256, 0
  %v3341 = vsel %vm21, %v3257, 0
  %v3344 = vsel %vm21, %v3258, 0
  %v3347 = vsel %vm21, %v3259, 0
  %v3350 = vsel %vm21, %v3260, 0
  %v3353 = vsel %vm21, %v3261, 0
  %v3356 = vsel %vm21, %v3262, 0
  %v3359 = vsel %vm21, %v3263, 0
  %v3362 = vsel %vm21, %v3264, 0
  %v3365 = vsel %vm21, %v3265, 0
  %v3368 = vsel %vm21, %v3266, 0
  %v3371 = vsel %vm21, %v3267, 0
  %3373 = vmatpush.bf16.msra.mxu0 0
  %3374 = vmatpush.bf16.msra.mxu0 0
  %3375 = vmatpush.bf16.msra.mxu0 0
  %3376 = vmatpush.bf16.msra.mxu0 0
  %3377 = vmatpush.bf16.msra.mxu0 0
  %3378 = vmatpush.bf16.msra.mxu0 0
  %3379 = vmatpush.bf16.msra.mxu0 0
  %3380 = vmatpush.bf16.msra.mxu0 %v3275
  %3381 = vmatmul.bf16.gmra.mxu0 %v3278
  %v3382 = vpop.f32.mrf.mxu0
  %v3383 = vadd.f32 0.0, %v3382
  %v3384 = vpop.f32.mrf.mxu0
  %v3385 = vadd.f32 0.0, %v3384
  %3386 = vmatmul.bf16.gmra.mxu0 %v3281
  %v3387 = vpop.f32.mrf.mxu0
  %v3388 = vadd.f32 0.0, %v3387
  %v3389 = vpop.f32.mrf.mxu0
  %v3390 = vadd.f32 0.0, %v3389
  %3391 = vmatmul.bf16.gmra.mxu0 %v3284
  %v3392 = vpop.f32.mrf.mxu0
  %v3393 = vadd.f32 0.0, %v3392
  %v3394 = vpop.f32.mrf.mxu0
  %v3395 = vadd.f32 0.0, %v3394
  %3396 = vmatmul.bf16.gmra.mxu0 %v3287
  %v3397 = vpop.f32.mrf.mxu0
  %v3398 = vadd.f32 0.0, %v3397
  %v3399 = vpop.f32.mrf.mxu0
  %v3400 = vadd.f32 0.0, %v3399
  %3401 = vmatmul.bf16.gmra.mxu0 %v3290
  %v3402 = vpop.f32.mrf.mxu0
  %v3403 = vadd.f32 0.0, %v3402
  %v3404 = vpop.f32.mrf.mxu0
  %v3405 = vadd.f32 0.0, %v3404
  %3406 = vmatmul.bf16.gmra.mxu0 %v3293
  %v3407 = vpop.f32.mrf.mxu0
  %v3408 = vadd.f32 0.0, %v3407
  %v3409 = vpop.f32.mrf.mxu0
  %v3410 = vadd.f32 0.0, %v3409
  %3411 = vmatmul.bf16.gmra.mxu0 %v3296
  %v3412 = vpop.f32.mrf.mxu0
  %v3413 = vadd.f32 0.0, %v3412
  %v3414 = vpop.f32.mrf.mxu0
  %v3415 = vadd.f32 0.0, %v3414
  %3416 = vmatmul.bf16.gmra.mxu0 %v3299
  %v3417 = vpop.f32.mrf.mxu0
  %v3418 = vadd.f32 0.0, %v3417
  %v3419 = vpop.f32.mrf.mxu0
  %v3420 = vadd.f32 0.0, %v3419
  %3421 = vmatmul.bf16.gmra.mxu0 %v3302
  %v3422 = vpop.f32.mrf.mxu0
  %v3423 = vadd.f32 0.0, %v3422
  %v3424 = vpop.f32.mrf.mxu0
  %v3425 = vadd.f32 0.0, %v3424
  %3426 = vmatmul.bf16.gmra.mxu0 %v3305
  %v3427 = vpop.f32.mrf.mxu0
  %v3428 = vadd.f32 0.0, %v3427
  %v3429 = vpop.f32.mrf.mxu0
  %v3430 = vadd.f32 0.0, %v3429
  %3431 = vmatmul.bf16.gmra.mxu0 %v3308
  %v3432 = vpop.f32.mrf.mxu0
  %v3433 = vadd.f32 0.0, %v3432
  %v3434 = vpop.f32.mrf.mxu0
  %v3435 = vadd.f32 0.0, %v3434
  %3436 = vmatmul.bf16.gmra.mxu0 %v3311
  %v3437 = vpop.f32.mrf.mxu0
  %v3438 = vadd.f32 0.0, %v3437
  %v3439 = vpop.f32.mrf.mxu0
  %v3440 = vadd.f32 0.0, %v3439
  %3441 = vmatmul.bf16.gmra.mxu0 %v3314
  %v3442 = vpop.f32.mrf.mxu0
  %v3443 = vadd.f32 0.0, %v3442
  %v3444 = vpop.f32.mrf.mxu0
  %v3445 = vadd.f32 0.0, %v3444
  %3446 = vmatmul.bf16.gmra.mxu0 %v3317
  %v3447 = vpop.f32.mrf.mxu0
  %v3448 = vadd.f32 0.0, %v3447
  %v3449 = vpop.f32.mrf.mxu0
  %v3450 = vadd.f32 0.0, %v3449
  %3451 = vmatmul.bf16.gmra.mxu0 %v3320
  %v3452 = vpop.f32.mrf.mxu0
  %v3453 = vadd.f32 0.0, %v3452
  %v3454 = vpop.f32.mrf.mxu0
  %v3455 = vadd.f32 0.0, %v3454
  %3456 = vmatmul.bf16.gmra.mxu0 %v3323
  %v3457 = vpop.f32.mrf.mxu0
  %v3458 = vadd.f32 0.0, %v3457
  %v3459 = vpop.f32.mrf.mxu0
  %v3460 = vadd.f32 0.0, %v3459
  %3461 = vmatmul.bf16.gmra.mxu0 %v3326
  %v3462 = vpop.f32.mrf.mxu0
  %v3463 = vadd.f32 0.0, %v3462
  %v3464 = vpop.f32.mrf.mxu0
  %v3465 = vadd.f32 0.0, %v3464
  %3466 = vmatmul.bf16.gmra.mxu0 %v3329
  %v3467 = vpop.f32.mrf.mxu0
  %v3468 = vadd.f32 0.0, %v3467
  %v3469 = vpop.f32.mrf.mxu0
  %v3470 = vadd.f32 0.0, %v3469
  %3471 = vmatmul.bf16.gmra.mxu0 %v3332
  %v3472 = vpop.f32.mrf.mxu0
  %v3473 = vadd.f32 0.0, %v3472
  %v3474 = vpop.f32.mrf.mxu0
  %v3475 = vadd.f32 0.0, %v3474
  %3476 = vmatmul.bf16.gmra.mxu0 %v3335
  %v3477 = vpop.f32.mrf.mxu0
  %v3478 = vadd.f32 0.0, %v3477
  %v3479 = vpop.f32.mrf.mxu0
  %v3480 = vadd.f32 0.0, %v3479
  %3481 = vmatmul.bf16.gmra.mxu0 %v3338
  %v3482 = vpop.f32.mrf.mxu0
  %v3483 = vadd.f32 0.0, %v3482
  %v3484 = vpop.f32.mrf.mxu0
  %v3485 = vadd.f32 0.0, %v3484
  %3486 = vmatmul.bf16.gmra.mxu0 %v3341
  %v3487 = vpop.f32.mrf.mxu0
  %v3488 = vadd.f32 0.0, %v3487
  %v3489 = vpop.f32.mrf.mxu0
  %v3490 = vadd.f32 0.0, %v3489
  %3491 = vmatmul.bf16.gmra.mxu0 %v3344
  %v3492 = vpop.f32.mrf.mxu0
  %v3493 = vadd.f32 0.0, %v3492
  %v3494 = vpop.f32.mrf.mxu0
  %v3495 = vadd.f32 0.0, %v3494
  %3496 = vmatmul.bf16.gmra.mxu0 %v3347
  %v3497 = vpop.f32.mrf.mxu0
  %v3498 = vadd.f32 0.0, %v3497
  %v3499 = vpop.f32.mrf.mxu0
  %v3500 = vadd.f32 0.0, %v3499
  %3501 = vmatmul.bf16.gmra.mxu0 %v3350
  %v3502 = vpop.f32.mrf.mxu0
  %v3503 = vadd.f32 0.0, %v3502
  %v3504 = vpop.f32.mrf.mxu0
  %v3505 = vadd.f32 0.0, %v3504
  %3506 = vmatmul.bf16.gmra.mxu0 %v3353
  %v3507 = vpop.f32.mrf.mxu0
  %v3508 = vadd.f32 0.0, %v3507
  %v3509 = vpop.f32.mrf.mxu0
  %v3510 = vadd.f32 0.0, %v3509
  %3511 = vmatmul.bf16.gmra.mxu0 %v3356
  %v3512 = vpop.f32.mrf.mxu0
  %v3513 = vadd.f32 0.0, %v3512
  %v3514 = vpop.f32.mrf.mxu0
  %v3515 = vadd.f32 0.0, %v3514
  %3516 = vmatmul.bf16.gmra.mxu0 %v3359
  %v3517 = vpop.f32.mrf.mxu0
  %v3518 = vadd.f32 0.0, %v3517
  %v3519 = vpop.f32.mrf.mxu0
  %v3520 = vadd.f32 0.0, %v3519
  %3521 = vmatmul.bf16.gmra.mxu0 %v3362
  %v3522 = vpop.f32.mrf.mxu0
  %v3523 = vadd.f32 0.0, %v3522
  %v3524 = vpop.f32.mrf.mxu0
  %v3525 = vadd.f32 0.0, %v3524
  %3526 = vmatmul.bf16.gmra.mxu0 %v3365
  %v3527 = vpop.f32.mrf.mxu0
  %v3528 = vadd.f32 0.0, %v3527
  %v3529 = vpop.f32.mrf.mxu0
  %v3530 = vadd.f32 0.0, %v3529
  %3531 = vmatmul.bf16.gmra.mxu0 %v3368
  %v3532 = vpop.f32.mrf.mxu0
  %v3533 = vadd.f32 0.0, %v3532
  %v3534 = vpop.f32.mrf.mxu0
  %v3535 = vadd.f32 0.0, %v3534
  %3536 = vmatmul.bf16.gmra.mxu0 %v3371
  %v3537 = vpop.f32.mrf.mxu0
  %v3538 = vadd.f32 0.0, %v3537
  %v3539 = vpop.f32.mrf.mxu0
  %v3540 = vadd.f32 0.0, %v3539
  %3541 = vdwg.mxu0
  %v3542 = vadd.f32 %v3108, %v3383
  %v3543 = vadd.f32 %v3109, %v3385
  %v3544 = vadd.f32 %v3110, %v3388
  %v3545 = vadd.f32 %v3111, %v3390
  %v3546 = vadd.f32 %v3112, %v3393
  %v3547 = vadd.f32 %v3113, %v3395
  %v3548 = vadd.f32 %v3114, %v3398
  %v3549 = vadd.f32 %v3115, %v3400
  %v3550 = vadd.f32 %v3116, %v3403
  %v3551 = vadd.f32 %v3117, %v3405
  %v3552 = vadd.f32 %v3118, %v3408
  %v3553 = vadd.f32 %v3119, %v3410
  %v3554 = vadd.f32 %v3120, %v3413
  %v3555 = vadd.f32 %v3121, %v3415
  %v3556 = vadd.f32 %v3122, %v3418
  %v3557 = vadd.f32 %v3123, %v3420
  %v3558 = vadd.f32 %v3124, %v3423
  %v3559 = vadd.f32 %v3125, %v3425
  %v3560 = vadd.f32 %v3126, %v3428
  %v3561 = vadd.f32 %v3127, %v3430
  %v3562 = vadd.f32 %v3128, %v3433
  %v3563 = vadd.f32 %v3129, %v3435
  %v3564 = vadd.f32 %v3130, %v3438
  %v3565 = vadd.f32 %v3131, %v3440
  %v3566 = vadd.f32 %v3132, %v3443
  %v3567 = vadd.f32 %v3133, %v3445
  %v3568 = vadd.f32 %v3134, %v3448
  %v3569 = vadd.f32 %v3135, %v3450
  %v3570 = vadd.f32 %v3136, %v3453
  %v3571 = vadd.f32 %v3137, %v3455
  %v3572 = vadd.f32 %v3138, %v3458
  %v3573 = vadd.f32 %v3139, %v3460
  %v3574 = vadd.f32 %v3140, %v3463
  %v3575 = vadd.f32 %v3141, %v3465
  %v3576 = vadd.f32 %v3142, %v3468
  %v3577 = vadd.f32 %v3143, %v3470
  %v3578 = vadd.f32 %v3144, %v3473
  %v3579 = vadd.f32 %v3145, %v3475
  %v3580 = vadd.f32 %v3146, %v3478
  %v3581 = vadd.f32 %v3147, %v3480
  %v3582 = vadd.f32 %v3148, %v3483
  %v3583 = vadd.f32 %v3149, %v3485
  %v3584 = vadd.f32 %v3150, %v3488
  %v3585 = vadd.f32 %v3151, %v3490
  %v3586 = vadd.f32 %v3152, %v3493
  %v3587 = vadd.f32 %v3153, %v3495
  %v3588 = vadd.f32 %v3154, %v3498
  %v3589 = vadd.f32 %v3155, %v3500
  %v3590 = vadd.f32 %v3156, %v3503
  %v3591 = vadd.f32 %v3157, %v3505
  %v3592 = vadd.f32 %v3158, %v3508
  %v3593 = vadd.f32 %v3159, %v3510
  %v3594 = vadd.f32 %v3160, %v3513
  %v3595 = vadd.f32 %v3161, %v3515
  %v3596 = vadd.f32 %v3162, %v3518
  %v3597 = vadd.f32 %v3163, %v3520
  %v3598 = vadd.f32 %v3164, %v3523
  %v3599 = vadd.f32 %v3165, %v3525
  %v3600 = vadd.f32 %v3166, %v3528
  %v3601 = vadd.f32 %v3167, %v3530
  %v3602 = vadd.f32 %v3168, %v3533
  %v3603 = vadd.f32 %v3169, %v3535
  %v3604 = vadd.f32 %v3170, %v3538
  %v3605 = vadd.f32 %v3171, %v3540
  %v3606 = vld [vmem:[%s2737 + $0x2] sm:$0xff]
  %v3607 = vld [vmem:[%s2737 + $0xa] sm:$0xff]
  %v3608 = vld [vmem:[%s2737 + $0x1a] sm:$0xff]
  %v3609 = vld [vmem:[%s2737 + $0x22] sm:$0xff]
  %v3610 = vld [vmem:[%s2737 + $0x32] sm:$0xff]
  %v3611 = vld [vmem:[%s2737 + $0x3a] sm:$0xff]
  %v3612 = vld [vmem:[%s2737 + $0x4a] sm:$0xff]
  %v3613 = vld [vmem:[%s2737 + $0x52] sm:$0xff]
  %v3614 = vld [vmem:[%s2737 + $0x62] sm:$0xff]
  %v3615 = vld [vmem:[%s2737 + $0x6a] sm:$0xff]
  %v3616 = vld [vmem:[%s2737 + $0x7a] sm:$0xff]
  %v3617 = vld [vmem:[%s2737 + $0x82] sm:$0xff]
  %v3618 = vld [vmem:[%s2737 + $0x92] sm:$0xff]
  %v3619 = vld [vmem:[%s2737 + $0x9a] sm:$0xff]
  %v3620 = vld [vmem:[%s2737 + $0xaa] sm:$0xff]
  %v3621 = vld [vmem:[%s2737 + $0xb2] sm:$0xff]
  %v3622 = vld [vmem:[%s2737 + $0xc2] sm:$0xff]
  %v3623 = vld [vmem:[%s2737 + $0xca] sm:$0xff]
  %v3624 = vld [vmem:[%s2737 + $0xda] sm:$0xff]
  %v3625 = vld [vmem:[%s2737 + $0xe2] sm:$0xff]
  %v3626 = vld [vmem:[%s2737 + $0xf2] sm:$0xff]
  %v3627 = vld [vmem:[%s2737 + $0xfa] sm:$0xff]
  %v3628 = vld [vmem:[%s2737 + $0x10a] sm:$0xff]
  %v3629 = vld [vmem:[%s2737 + $0x112] sm:$0xff]
  %v3630 = vld [vmem:[%s2737 + $0x122] sm:$0xff]
  %v3631 = vld [vmem:[%s2737 + $0x12a] sm:$0xff]
  %v3632 = vld [vmem:[%s2737 + $0x13a] sm:$0xff]
  %v3633 = vld [vmem:[%s2737 + $0x142] sm:$0xff]
  %v3634 = vld [vmem:[%s2737 + $0x152] sm:$0xff]
  %v3635 = vld [vmem:[%s2737 + $0x15a] sm:$0xff]
  %v3636 = vld [vmem:[%s2737 + $0x16a] sm:$0xff]
  %v3637 = vld [vmem:[%s2737 + $0x172] sm:$0xff]
  %v3638 = vld [vmem:[%s2737 + $0x1b2] sm:$0xff]
  %v3639 = vld [vmem:[%s2737 + $0x1ba] sm:$0xff]
  %v3640 = vld [vmem:[%s2737 + $0x1ca] sm:$0xff]
  %v3641 = vld [vmem:[%s2737 + $0x1d2] sm:$0xff]
  %v3642 = vld [vmem:[%s2737 + $0x1e2] sm:$0xff]
  %v3643 = vld [vmem:[%s2737 + $0x1ea] sm:$0xff]
  %v3644 = vld [vmem:[%s2737 + $0x1fa] sm:$0xff]
  %v3645 = vld [vmem:[%s2737 + $0x202] sm:$0xff]
  %v3646 = vld [vmem:[%s2737 + $0x212] sm:$0xff]
  %v3647 = vld [vmem:[%s2737 + $0x21a] sm:$0xff]
  %v3648 = vld [vmem:[%s2737 + $0x22a] sm:$0xff]
  %v3649 = vld [vmem:[%s2737 + $0x232] sm:$0xff]
  %v3650 = vld [vmem:[%s2737 + $0x242] sm:$0xff]
  %v3651 = vld [vmem:[%s2737 + $0x24a] sm:$0xff]
  %v3652 = vld [vmem:[%s2737 + $0x25a] sm:$0xff]
  %v3653 = vld [vmem:[%s2737 + $0x262] sm:$0xff]
  %v3654 = vld [vmem:[%s2737 + $0x272] sm:$0xff]
  %v3655 = vld [vmem:[%s2737 + $0x27a] sm:$0xff]
  %v3656 = vld [vmem:[%s2737 + $0x28a] sm:$0xff]
  %v3657 = vld [vmem:[%s2737 + $0x292] sm:$0xff]
  %v3658 = vld [vmem:[%s2737 + $0x2a2] sm:$0xff]
  %v3659 = vld [vmem:[%s2737 + $0x2aa] sm:$0xff]
  %v3660 = vld [vmem:[%s2737 + $0x2ba] sm:$0xff]
  %v3661 = vld [vmem:[%s2737 + $0x2c2] sm:$0xff]
  %v3662 = vld [vmem:[%s2737 + $0x2d2] sm:$0xff]
  %v3663 = vld [vmem:[%s2737 + $0x2da] sm:$0xff]
  %v3664 = vld [vmem:[%s2737 + $0x2ea] sm:$0xff]
  %v3665 = vld [vmem:[%s2737 + $0x2f2] sm:$0xff]
  %v3666 = vld [vmem:[%s2737 + $0x302] sm:$0xff]
  %v3667 = vld [vmem:[%s2737 + $0x30a] sm:$0xff]
  %v3668 = vld [vmem:[%s2737 + $0x31a] sm:$0xff]
  %v3669 = vld [vmem:[%s2737 + $0x322] sm:$0xff]
  %v3670 = vpack.c.bf16 %v3607, %v3606
  %v3671 = vpack.c.bf16 %v3609, %v3608
  %v3672 = vpack.c.bf16 %v3611, %v3610
  %v3673 = vpack.c.bf16 %v3613, %v3612
  %v3674 = vpack.c.bf16 %v3615, %v3614
  %v3675 = vpack.c.bf16 %v3617, %v3616
  %v3676 = vpack.c.bf16 %v3619, %v3618
  %v3677 = vpack.c.bf16 %v3621, %v3620
  %v3678 = vpack.c.bf16 %v3623, %v3622
  %v3679 = vpack.c.bf16 %v3625, %v3624
  %v3680 = vpack.c.bf16 %v3627, %v3626
  %v3681 = vpack.c.bf16 %v3629, %v3628
  %v3682 = vpack.c.bf16 %v3631, %v3630
  %v3683 = vpack.c.bf16 %v3633, %v3632
  %v3684 = vpack.c.bf16 %v3635, %v3634
  %v3685 = vpack.c.bf16 %v3637, %v3636
  %v3686 = vpack.c.bf16 %v3639, %v3638
  %v3687 = vpack.c.bf16 %v3641, %v3640
  %v3688 = vpack.c.bf16 %v3643, %v3642
  %v3689 = vpack.c.bf16 %v3645, %v3644
  %v3690 = vpack.c.bf16 %v3647, %v3646
  %v3691 = vpack.c.bf16 %v3649, %v3648
  %v3692 = vpack.c.bf16 %v3651, %v3650
  %v3693 = vpack.c.bf16 %v3653, %v3652
  %v3694 = vpack.c.bf16 %v3655, %v3654
  %v3695 = vpack.c.bf16 %v3657, %v3656
  %v3696 = vpack.c.bf16 %v3659, %v3658
  %v3697 = vpack.c.bf16 %v3661, %v3660
  %v3698 = vpack.c.bf16 %v3663, %v3662
  %v3699 = vpack.c.bf16 %v3665, %v3664
  %v3700 = vpack.c.bf16 %v3667, %v3666
  %v3701 = vpack.c.bf16 %v3669, %v3668
  %s3702 = scalar_lea.vmem %s1, 64
  %v3703 = vld [vmem:[%s3702] sm:$0xf]
  %v3704 = vld [vmem:[%s3702 + $0x4] sm:$0xf]
  %v3707 = vunpack.c.l.b16 %v3703
  %v3708 = vunpack.c.l.b16 %v3704
  %v3709 = vpack.c.b16 %v3708, %v3707
  %v3712 = vsel %vm21, %v3670, 0
  %v3715 = vsel %vm21, %v3671, 0
  %v3718 = vsel %vm21, %v3672, 0
  %v3721 = vsel %vm21, %v3673, 0
  %v3724 = vsel %vm21, %v3674, 0
  %v3727 = vsel %vm21, %v3675, 0
  %v3730 = vsel %vm21, %v3676, 0
  %v3733 = vsel %vm21, %v3677, 0
  %v3736 = vsel %vm21, %v3678, 0
  %v3739 = vsel %vm21, %v3679, 0
  %v3742 = vsel %vm21, %v3680, 0
  %v3745 = vsel %vm21, %v3681, 0
  %v3748 = vsel %vm21, %v3682, 0
  %v3751 = vsel %vm21, %v3683, 0
  %v3754 = vsel %vm21, %v3684, 0
  %v3757 = vsel %vm21, %v3685, 0
  %v3760 = vsel %vm21, %v3686, 0
  %v3763 = vsel %vm21, %v3687, 0
  %v3766 = vsel %vm21, %v3688, 0
  %v3769 = vsel %vm21, %v3689, 0
  %v3772 = vsel %vm21, %v3690, 0
  %v3775 = vsel %vm21, %v3691, 0
  %v3778 = vsel %vm21, %v3692, 0
  %v3781 = vsel %vm21, %v3693, 0
  %v3784 = vsel %vm21, %v3694, 0
  %v3787 = vsel %vm21, %v3695, 0
  %v3790 = vsel %vm21, %v3696, 0
  %v3793 = vsel %vm21, %v3697, 0
  %v3796 = vsel %vm21, %v3698, 0
  %v3799 = vsel %vm21, %v3699, 0
  %v3802 = vsel %vm21, %v3700, 0
  %v3805 = vsel %vm21, %v3701, 0
  %3807 = vmatpush.bf16.msra.mxu0 0
  %3808 = vmatpush.bf16.msra.mxu0 0
  %3809 = vmatpush.bf16.msra.mxu0 0
  %3810 = vmatpush.bf16.msra.mxu0 0
  %3811 = vmatpush.bf16.msra.mxu0 0
  %3812 = vmatpush.bf16.msra.mxu0 0
  %3813 = vmatpush.bf16.msra.mxu0 0
  %3814 = vmatpush.bf16.msra.mxu0 %v3709
  %3815 = vmatmul.bf16.gmra.mxu0 %v3712
  %v3816 = vpop.f32.mrf.mxu0
  %v3817 = vadd.f32 0.0, %v3816
  %v3818 = vpop.f32.mrf.mxu0
  %v3819 = vadd.f32 0.0, %v3818
  %3820 = vmatmul.bf16.gmra.mxu0 %v3715
  %v3821 = vpop.f32.mrf.mxu0
  %v3822 = vadd.f32 0.0, %v3821
  %v3823 = vpop.f32.mrf.mxu0
  %v3824 = vadd.f32 0.0, %v3823
  %3825 = vmatmul.bf16.gmra.mxu0 %v3718
  %v3826 = vpop.f32.mrf.mxu0
  %v3827 = vadd.f32 0.0, %v3826
  %v3828 = vpop.f32.mrf.mxu0
  %v3829 = vadd.f32 0.0, %v3828
  %3830 = vmatmul.bf16.gmra.mxu0 %v3721
  %v3831 = vpop.f32.mrf.mxu0
  %v3832 = vadd.f32 0.0, %v3831
  %v3833 = vpop.f32.mrf.mxu0
  %v3834 = vadd.f32 0.0, %v3833
  %3835 = vmatmul.bf16.gmra.mxu0 %v3724
  %v3836 = vpop.f32.mrf.mxu0
  %v3837 = vadd.f32 0.0, %v3836
  %v3838 = vpop.f32.mrf.mxu0
  %v3839 = vadd.f32 0.0, %v3838
  %3840 = vmatmul.bf16.gmra.mxu0 %v3727
  %v3841 = vpop.f32.mrf.mxu0
  %v3842 = vadd.f32 0.0, %v3841
  %v3843 = vpop.f32.mrf.mxu0
  %v3844 = vadd.f32 0.0, %v3843
  %3845 = vmatmul.bf16.gmra.mxu0 %v3730
  %v3846 = vpop.f32.mrf.mxu0
  %v3847 = vadd.f32 0.0, %v3846
  %v3848 = vpop.f32.mrf.mxu0
  %v3849 = vadd.f32 0.0, %v3848
  %3850 = vmatmul.bf16.gmra.mxu0 %v3733
  %v3851 = vpop.f32.mrf.mxu0
  %v3852 = vadd.f32 0.0, %v3851
  %v3853 = vpop.f32.mrf.mxu0
  %v3854 = vadd.f32 0.0, %v3853
  %3855 = vmatmul.bf16.gmra.mxu0 %v3736
  %v3856 = vpop.f32.mrf.mxu0
  %v3857 = vadd.f32 0.0, %v3856
  %v3858 = vpop.f32.mrf.mxu0
  %v3859 = vadd.f32 0.0, %v3858
  %3860 = vmatmul.bf16.gmra.mxu0 %v3739
  %v3861 = vpop.f32.mrf.mxu0
  %v3862 = vadd.f32 0.0, %v3861
  %v3863 = vpop.f32.mrf.mxu0
  %v3864 = vadd.f32 0.0, %v3863
  %3865 = vmatmul.bf16.gmra.mxu0 %v3742
  %v3866 = vpop.f32.mrf.mxu0
  %v3867 = vadd.f32 0.0, %v3866
  %v3868 = vpop.f32.mrf.mxu0
  %v3869 = vadd.f32 0.0, %v3868
  %3870 = vmatmul.bf16.gmra.mxu0 %v3745
  %v3871 = vpop.f32.mrf.mxu0
  %v3872 = vadd.f32 0.0, %v3871
  %v3873 = vpop.f32.mrf.mxu0
  %v3874 = vadd.f32 0.0, %v3873
  %3875 = vmatmul.bf16.gmra.mxu0 %v3748
  %v3876 = vpop.f32.mrf.mxu0
  %v3877 = vadd.f32 0.0, %v3876
  %v3878 = vpop.f32.mrf.mxu0
  %v3879 = vadd.f32 0.0, %v3878
  %3880 = vmatmul.bf16.gmra.mxu0 %v3751
  %v3881 = vpop.f32.mrf.mxu0
  %v3882 = vadd.f32 0.0, %v3881
  %v3883 = vpop.f32.mrf.mxu0
  %v3884 = vadd.f32 0.0, %v3883
  %3885 = vmatmul.bf16.gmra.mxu0 %v3754
  %v3886 = vpop.f32.mrf.mxu0
  %v3887 = vadd.f32 0.0, %v3886
  %v3888 = vpop.f32.mrf.mxu0
  %v3889 = vadd.f32 0.0, %v3888
  %3890 = vmatmul.bf16.gmra.mxu0 %v3757
  %v3891 = vpop.f32.mrf.mxu0
  %v3892 = vadd.f32 0.0, %v3891
  %v3893 = vpop.f32.mrf.mxu0
  %v3894 = vadd.f32 0.0, %v3893
  %3895 = vmatmul.bf16.gmra.mxu0 %v3760
  %v3896 = vpop.f32.mrf.mxu0
  %v3897 = vadd.f32 0.0, %v3896
  %v3898 = vpop.f32.mrf.mxu0
  %v3899 = vadd.f32 0.0, %v3898
  %3900 = vmatmul.bf16.gmra.mxu0 %v3763
  %v3901 = vpop.f32.mrf.mxu0
  %v3902 = vadd.f32 0.0, %v3901
  %v3903 = vpop.f32.mrf.mxu0
  %v3904 = vadd.f32 0.0, %v3903
  %3905 = vmatmul.bf16.gmra.mxu0 %v3766
  %v3906 = vpop.f32.mrf.mxu0
  %v3907 = vadd.f32 0.0, %v3906
  %v3908 = vpop.f32.mrf.mxu0
  %v3909 = vadd.f32 0.0, %v3908
  %3910 = vmatmul.bf16.gmra.mxu0 %v3769
  %v3911 = vpop.f32.mrf.mxu0
  %v3912 = vadd.f32 0.0, %v3911
  %v3913 = vpop.f32.mrf.mxu0
  %v3914 = vadd.f32 0.0, %v3913
  %3915 = vmatmul.bf16.gmra.mxu0 %v3772
  %v3916 = vpop.f32.mrf.mxu0
  %v3917 = vadd.f32 0.0, %v3916
  %v3918 = vpop.f32.mrf.mxu0
  %v3919 = vadd.f32 0.0, %v3918
  %3920 = vmatmul.bf16.gmra.mxu0 %v3775
  %v3921 = vpop.f32.mrf.mxu0
  %v3922 = vadd.f32 0.0, %v3921
  %v3923 = vpop.f32.mrf.mxu0
  %v3924 = vadd.f32 0.0, %v3923
  %3925 = vmatmul.bf16.gmra.mxu0 %v3778
  %v3926 = vpop.f32.mrf.mxu0
  %v3927 = vadd.f32 0.0, %v3926
  %v3928 = vpop.f32.mrf.mxu0
  %v3929 = vadd.f32 0.0, %v3928
  %3930 = vmatmul.bf16.gmra.mxu0 %v3781
  %v3931 = vpop.f32.mrf.mxu0
  %v3932 = vadd.f32 0.0, %v3931
  %v3933 = vpop.f32.mrf.mxu0
  %v3934 = vadd.f32 0.0, %v3933
  %3935 = vmatmul.bf16.gmra.mxu0 %v3784
  %v3936 = vpop.f32.mrf.mxu0
  %v3937 = vadd.f32 0.0, %v3936
  %v3938 = vpop.f32.mrf.mxu0
  %v3939 = vadd.f32 0.0, %v3938
  %3940 = vmatmul.bf16.gmra.mxu0 %v3787
  %v3941 = vpop.f32.mrf.mxu0
  %v3942 = vadd.f32 0.0, %v3941
  %v3943 = vpop.f32.mrf.mxu0
  %v3944 = vadd.f32 0.0, %v3943
  %3945 = vmatmul.bf16.gmra.mxu0 %v3790
  %v3946 = vpop.f32.mrf.mxu0
  %v3947 = vadd.f32 0.0, %v3946
  %v3948 = vpop.f32.mrf.mxu0
  %v3949 = vadd.f32 0.0, %v3948
  %3950 = vmatmul.bf16.gmra.mxu0 %v3793
  %v3951 = vpop.f32.mrf.mxu0
  %v3952 = vadd.f32 0.0, %v3951
  %v3953 = vpop.f32.mrf.mxu0
  %v3954 = vadd.f32 0.0, %v3953
  %3955 = vmatmul.bf16.gmra.mxu0 %v3796
  %v3956 = vpop.f32.mrf.mxu0
  %v3957 = vadd.f32 0.0, %v3956
  %v3958 = vpop.f32.mrf.mxu0
  %v3959 = vadd.f32 0.0, %v3958
  %3960 = vmatmul.bf16.gmra.mxu0 %v3799
  %v3961 = vpop.f32.mrf.mxu0
  %v3962 = vadd.f32 0.0, %v3961
  %v3963 = vpop.f32.mrf.mxu0
  %v3964 = vadd.f32 0.0, %v3963
  %3965 = vmatmul.bf16.gmra.mxu0 %v3802
  %v3966 = vpop.f32.mrf.mxu0
  %v3967 = vadd.f32 0.0, %v3966
  %v3968 = vpop.f32.mrf.mxu0
  %v3969 = vadd.f32 0.0, %v3968
  %3970 = vmatmul.bf16.gmra.mxu0 %v3805
  %v3971 = vpop.f32.mrf.mxu0
  %v3972 = vadd.f32 0.0, %v3971
  %v3973 = vpop.f32.mrf.mxu0
  %v3974 = vadd.f32 0.0, %v3973
  %3975 = vdwg.mxu0
  %v3976 = vadd.f32 %v3542, %v3817
  %v3977 = vadd.f32 %v3543, %v3819
  %v3978 = vadd.f32 %v3544, %v3822
  %v3979 = vadd.f32 %v3545, %v3824
  %v3980 = vadd.f32 %v3546, %v3827
  %v3981 = vadd.f32 %v3547, %v3829
  %v3982 = vadd.f32 %v3548, %v3832
  %v3983 = vadd.f32 %v3549, %v3834
  %v3984 = vadd.f32 %v3550, %v3837
  %v3985 = vadd.f32 %v3551, %v3839
  %v3986 = vadd.f32 %v3552, %v3842
  %v3987 = vadd.f32 %v3553, %v3844
  %v3988 = vadd.f32 %v3554, %v3847
  %v3989 = vadd.f32 %v3555, %v3849
  %v3990 = vadd.f32 %v3556, %v3852
  %v3991 = vadd.f32 %v3557, %v3854
  %v3992 = vadd.f32 %v3558, %v3857
  %v3993 = vadd.f32 %v3559, %v3859
  %v3994 = vadd.f32 %v3560, %v3862
  %v3995 = vadd.f32 %v3561, %v3864
  %v3996 = vadd.f32 %v3562, %v3867
  %v3997 = vadd.f32 %v3563, %v3869
  %v3998 = vadd.f32 %v3564, %v3872
  %v3999 = vadd.f32 %v3565, %v3874
  %v4000 = vadd.f32 %v3566, %v3877
  %v4001 = vadd.f32 %v3567, %v3879
  %v4002 = vadd.f32 %v3568, %v3882
  %v4003 = vadd.f32 %v3569, %v3884
  %v4004 = vadd.f32 %v3570, %v3887
  %v4005 = vadd.f32 %v3571, %v3889
  %v4006 = vadd.f32 %v3572, %v3892
  %v4007 = vadd.f32 %v3573, %v3894
  %v4008 = vadd.f32 %v3574, %v3897
  %v4009 = vadd.f32 %v3575, %v3899
  %v4010 = vadd.f32 %v3576, %v3902
  %v4011 = vadd.f32 %v3577, %v3904
  %v4012 = vadd.f32 %v3578, %v3907
  %v4013 = vadd.f32 %v3579, %v3909
  %v4014 = vadd.f32 %v3580, %v3912
  %v4015 = vadd.f32 %v3581, %v3914
  %v4016 = vadd.f32 %v3582, %v3917
  %v4017 = vadd.f32 %v3583, %v3919
  %v4018 = vadd.f32 %v3584, %v3922
  %v4019 = vadd.f32 %v3585, %v3924
  %v4020 = vadd.f32 %v3586, %v3927
  %v4021 = vadd.f32 %v3587, %v3929
  %v4022 = vadd.f32 %v3588, %v3932
  %v4023 = vadd.f32 %v3589, %v3934
  %v4024 = vadd.f32 %v3590, %v3937
  %v4025 = vadd.f32 %v3591, %v3939
  %v4026 = vadd.f32 %v3592, %v3942
  %v4027 = vadd.f32 %v3593, %v3944
  %v4028 = vadd.f32 %v3594, %v3947
  %v4029 = vadd.f32 %v3595, %v3949
  %v4030 = vadd.f32 %v3596, %v3952
  %v4031 = vadd.f32 %v3597, %v3954
  %v4032 = vadd.f32 %v3598, %v3957
  %v4033 = vadd.f32 %v3599, %v3959
  %v4034 = vadd.f32 %v3600, %v3962
  %v4035 = vadd.f32 %v3601, %v3964
  %v4036 = vadd.f32 %v3602, %v3967
  %v4037 = vadd.f32 %v3603, %v3969
  %v4038 = vadd.f32 %v3604, %v3972
  %v4039 = vadd.f32 %v3605, %v3974
  %4040 = vst.msk [vmem:[#allocation3] sm:$0xff] %vm21, %v3976
  %4041 = vst.msk [vmem:[#allocation3 + $0x8] sm:$0xff] %vm21, %v3977
  %4042 = vst.msk [vmem:[#allocation3 + $0x10] sm:$0xff] %vm21, %v3978
  %4043 = vst.msk [vmem:[#allocation3 + $0x18] sm:$0xff] %vm21, %v3979
  %4044 = vst.msk [vmem:[#allocation3 + $0x20] sm:$0xff] %vm21, %v3980
  %4045 = vst.msk [vmem:[#allocation3 + $0x28] sm:$0xff] %vm21, %v3981
  %4046 = vst.msk [vmem:[#allocation3 + $0x30] sm:$0xff] %vm21, %v3982
  %4047 = vst.msk [vmem:[#allocation3 + $0x38] sm:$0xff] %vm21, %v3983
  %4048 = vst.msk [vmem:[#allocation3 + $0x40] sm:$0xff] %vm21, %v3984
  %4049 = vst.msk [vmem:[#allocation3 + $0x48] sm:$0xff] %vm21, %v3985
  %4050 = vst.msk [vmem:[#allocation3 + $0x50] sm:$0xff] %vm21, %v3986
  %4051 = vst.msk [vmem:[#allocation3 + $0x58] sm:$0xff] %vm21, %v3987
  %4052 = vst.msk [vmem:[#allocation3 + $0x60] sm:$0xff] %vm21, %v3988
  %4053 = vst.msk [vmem:[#allocation3 + $0x68] sm:$0xff] %vm21, %v3989
  %4054 = vst.msk [vmem:[#allocation3 + $0x70] sm:$0xff] %vm21, %v3990
  %4055 = vst.msk [vmem:[#allocation3 + $0x78] sm:$0xff] %vm21, %v3991
  %4056 = vst.msk [vmem:[#allocation3 + $0x80] sm:$0xff] %vm21, %v3992
  %4057 = vst.msk [vmem:[#allocation3 + $0x88] sm:$0xff] %vm21, %v3993
  %4058 = vst.msk [vmem:[#allocation3 + $0x90] sm:$0xff] %vm21, %v3994
  %4059 = vst.msk [vmem:[#allocation3 + $0x98] sm:$0xff] %vm21, %v3995
  %4060 = vst.msk [vmem:[#allocation3 + $0xa0] sm:$0xff] %vm21, %v3996
  %4061 = vst.msk [vmem:[#allocation3 + $0xa8] sm:$0xff] %vm21, %v3997
  %4062 = vst.msk [vmem:[#allocation3 + $0xb0] sm:$0xff] %vm21, %v3998
  %4063 = vst.msk [vmem:[#allocation3 + $0xb8] sm:$0xff] %vm21, %v3999
  %4064 = vst.msk [vmem:[#allocation3 + $0xc0] sm:$0xff] %vm21, %v4000
  %4065 = vst.msk [vmem:[#allocation3 + $0xc8] sm:$0xff] %vm21, %v4001
  %4066 = vst.msk [vmem:[#allocation3 + $0xd0] sm:$0xff] %vm21, %v4002
  %4067 = vst.msk [vmem:[#allocation3 + $0xd8] sm:$0xff] %vm21, %v4003
  %4068 = vst.msk [vmem:[#allocation3 + $0xe0] sm:$0xff] %vm21, %v4004
  %4069 = vst.msk [vmem:[#allocation3 + $0xe8] sm:$0xff] %vm21, %v4005
  %4070 = vst.msk [vmem:[#allocation3 + $0xf0] sm:$0xff] %vm21, %v4006
  %4071 = vst.msk [vmem:[#allocation3 + $0xf8] sm:$0xff] %vm21, %v4007
  %4072 = vst.msk [vmem:[#allocation3 + $0x100] sm:$0xff] %vm21, %v4008
  %4073 = vst.msk [vmem:[#allocation3 + $0x108] sm:$0xff] %vm21, %v4009
  %4074 = vst.msk [vmem:[#allocation3 + $0x110] sm:$0xff] %vm21, %v4010
  %4075 = vst.msk [vmem:[#allocation3 + $0x118] sm:$0xff] %vm21, %v4011
  %4076 = vst.msk [vmem:[#allocation3 + $0x120] sm:$0xff] %vm21, %v4012
  %4077 = vst.msk [vmem:[#allocation3 + $0x128] sm:$0xff] %vm21, %v4013
  %4078 = vst.msk [vmem:[#allocation3 + $0x130] sm:$0xff] %vm21, %v4014
  %4079 = vst.msk [vmem:[#allocation3 + $0x138] sm:$0xff] %vm21, %v4015
  %4080 = vst.msk [vmem:[#allocation3 + $0x140] sm:$0xff] %vm21, %v4016
  %4081 = vst.msk [vmem:[#allocation3 + $0x148] sm:$0xff] %vm21, %v4017
  %4082 = vst.msk [vmem:[#allocation3 + $0x150] sm:$0xff] %vm21, %v4018
  %4083 = vst.msk [vmem:[#allocation3 + $0x158] sm:$0xff] %vm21, %v4019
  %4084 = vst.msk [vmem:[#allocation3 + $0x160] sm:$0xff] %vm21, %v4020
  %4085 = vst.msk [vmem:[#allocation3 + $0x168] sm:$0xff] %vm21, %v4021
  %4086 = vst.msk [vmem:[#allocation3 + $0x170] sm:$0xff] %vm21, %v4022
  %4087 = vst.msk [vmem:[#allocation3 + $0x178] sm:$0xff] %vm21, %v4023
  %4088 = vst.msk [vmem:[#allocation3 + $0x180] sm:$0xff] %vm21, %v4024
  %4089 = vst.msk [vmem:[#allocation3 + $0x188] sm:$0xff] %vm21, %v4025
  %4090 = vst.msk [vmem:[#allocation3 + $0x190] sm:$0xff] %vm21, %v4026
  %4091 = vst.msk [vmem:[#allocation3 + $0x198] sm:$0xff] %vm21, %v4027
  %4092 = vst.msk [vmem:[#allocation3 + $0x1a0] sm:$0xff] %vm21, %v4028
  %4093 = vst.msk [vmem:[#allocation3 + $0x1a8] sm:$0xff] %vm21, %v4029
  %4094 = vst.msk [vmem:[#allocation3 + $0x1b0] sm:$0xff] %vm21, %v4030
  %4095 = vst.msk [vmem:[#allocation3 + $0x1b8] sm:$0xff] %vm21, %v4031
  %4096 = vst.msk [vmem:[#allocation3 + $0x1c0] sm:$0xff] %vm21, %v4032
  %4097 = vst.msk [vmem:[#allocation3 + $0x1c8] sm:$0xff] %vm21, %v4033
  %4098 = vst.msk [vmem:[#allocation3 + $0x1d0] sm:$0xff] %vm21, %v4034
  %4099 = vst.msk [vmem:[#allocation3 + $0x1d8] sm:$0xff] %vm21, %v4035
  %4100 = vst.msk [vmem:[#allocation3 + $0x1e0] sm:$0xff] %vm21, %v4036
  %4101 = vst.msk [vmem:[#allocation3 + $0x1e8] sm:$0xff] %vm21, %v4037
  %4102 = vst.msk [vmem:[#allocation3 + $0x1f0] sm:$0xff] %vm21, %v4038
  %4103 = vst.msk [vmem:[#allocation3 + $0x1f8] sm:$0xff] %vm21, %v4039
  %v4104 = vld [vmem:[#allocation3] sm:$0xff]
  %v4105 = vld [vmem:[#allocation3 + $0x8] sm:$0xff]
  %v4106 = vld [vmem:[#allocation3 + $0x10] sm:$0xff]
  %v4107 = vld [vmem:[#allocation3 + $0x18] sm:$0xff]
  %v4108 = vld [vmem:[#allocation3 + $0x20] sm:$0xff]
  %v4109 = vld [vmem:[#allocation3 + $0x28] sm:$0xff]
  %v4110 = vld [vmem:[#allocation3 + $0x30] sm:$0xff]
  %v4111 = vld [vmem:[#allocation3 + $0x38] sm:$0xff]
  %v4112 = vld [vmem:[#allocation3 + $0x40] sm:$0xff]
  %v4113 = vld [vmem:[#allocation3 + $0x48] sm:$0xff]
  %v4114 = vld [vmem:[#allocation3 + $0x50] sm:$0xff]
  %v4115 = vld [vmem:[#allocation3 + $0x58] sm:$0xff]
  %v4116 = vld [vmem:[#allocation3 + $0x60] sm:$0xff]
  %v4117 = vld [vmem:[#allocation3 + $0x68] sm:$0xff]
  %v4118 = vld [vmem:[#allocation3 + $0x70] sm:$0xff]
  %v4119 = vld [vmem:[#allocation3 + $0x78] sm:$0xff]
  %v4120 = vld [vmem:[#allocation3 + $0x80] sm:$0xff]
  %v4121 = vld [vmem:[#allocation3 + $0x88] sm:$0xff]
  %v4122 = vld [vmem:[#allocation3 + $0x90] sm:$0xff]
  %v4123 = vld [vmem:[#allocation3 + $0x98] sm:$0xff]
  %v4124 = vld [vmem:[#allocation3 + $0xa0] sm:$0xff]
  %v4125 = vld [vmem:[#allocation3 + $0xa8] sm:$0xff]
  %v4126 = vld [vmem:[#allocation3 + $0xb0] sm:$0xff]
  %v4127 = vld [vmem:[#allocation3 + $0xb8] sm:$0xff]
  %v4128 = vld [vmem:[#allocation3 + $0xc0] sm:$0xff]
  %v4129 = vld [vmem:[#allocation3 + $0xc8] sm:$0xff]
  %v4130 = vld [vmem:[#allocation3 + $0xd0] sm:$0xff]
  %v4131 = vld [vmem:[#allocation3 + $0xd8] sm:$0xff]
  %v4132 = vld [vmem:[#allocation3 + $0xe0] sm:$0xff]
  %v4133 = vld [vmem:[#allocation3 + $0xe8] sm:$0xff]
  %v4134 = vld [vmem:[#allocation3 + $0xf0] sm:$0xff]
  %v4135 = vld [vmem:[#allocation3 + $0xf8] sm:$0xff]
  %v4136 = vld [vmem:[#allocation3 + $0x100] sm:$0xff]
  %v4137 = vld [vmem:[#allocation3 + $0x108] sm:$0xff]
  %v4138 = vld [vmem:[#allocation3 + $0x110] sm:$0xff]
  %v4139 = vld [vmem:[#allocation3 + $0x118] sm:$0xff]
  %v4140 = vld [vmem:[#allocation3 + $0x120] sm:$0xff]
  %v4141 = vld [vmem:[#allocation3 + $0x128] sm:$0xff]
  %v4142 = vld [vmem:[#allocation3 + $0x130] sm:$0xff]
  %v4143 = vld [vmem:[#allocation3 + $0x138] sm:$0xff]
  %v4144 = vld [vmem:[#allocation3 + $0x140] sm:$0xff]
  %v4145 = vld [vmem:[#allocation3 + $0x148] sm:$0xff]
  %v4146 = vld [vmem:[#allocation3 + $0x150] sm:$0xff]
  %v4147 = vld [vmem:[#allocation3 + $0x158] sm:$0xff]
  %v4148 = vld [vmem:[#allocation3 + $0x160] sm:$0xff]
  %v4149 = vld [vmem:[#allocation3 + $0x168] sm:$0xff]
  %v4150 = vld [vmem:[#allocation3 + $0x170] sm:$0xff]
  %v4151 = vld [vmem:[#allocation3 + $0x178] sm:$0xff]
  %v4152 = vld [vmem:[#allocation3 + $0x180] sm:$0xff]
  %v4153 = vld [vmem:[#allocation3 + $0x188] sm:$0xff]
  %v4154 = vld [vmem:[#allocation3 + $0x190] sm:$0xff]
  %v4155 = vld [vmem:[#allocation3 + $0x198] sm:$0xff]
  %v4156 = vld [vmem:[#allocation3 + $0x1a0] sm:$0xff]
  %v4157 = vld [vmem:[#allocation3 + $0x1a8] sm:$0xff]
  %v4158 = vld [vmem:[#allocation3 + $0x1b0] sm:$0xff]
  %v4159 = vld [vmem:[#allocation3 + $0x1b8] sm:$0xff]
  %v4160 = vld [vmem:[#allocation3 + $0x1c0] sm:$0xff]
  %v4161 = vld [vmem:[#allocation3 + $0x1c8] sm:$0xff]
  %v4162 = vld [vmem:[#allocation3 + $0x1d0] sm:$0xff]
  %v4163 = vld [vmem:[#allocation3 + $0x1d8] sm:$0xff]
  %v4164 = vld [vmem:[#allocation3 + $0x1e0] sm:$0xff]
  %v4165 = vld [vmem:[#allocation3 + $0x1e8] sm:$0xff]
  %v4166 = vld [vmem:[#allocation3 + $0x1f0] sm:$0xff]
  %v4167 = vld [vmem:[#allocation3 + $0x1f8] sm:$0xff]
  %v4168 = vsel %vm21, %v4104, 0.0
  %v4169 = vsel %vm21, %v4105, 0.0
  %v4170 = vadd.f32 %v4168, %v4169
  %v4171 = vsel %vm21, %v4106, 0.0
  %v4172 = vadd.f32 %v4170, %v4171
  %v4173 = vsel %vm21, %v4107, 0.0
  %v4174 = vadd.f32 %v4172, %v4173
  %v4175 = vsel %vm21, %v4108, 0.0
  %v4176 = vadd.f32 %v4174, %v4175
  %v4177 = vsel %vm21, %v4109, 0.0
  %v4178 = vadd.f32 %v4176, %v4177
  %v4179 = vsel %vm21, %v4110, 0.0
  %v4180 = vadd.f32 %v4178, %v4179
  %v4181 = vsel %vm21, %v4111, 0.0
  %v4182 = vadd.f32 %v4180, %v4181
  %v4183 = vsel %vm21, %v4112, 0.0
  %v4184 = vadd.f32 %v4182, %v4183
  %v4185 = vsel %vm21, %v4113, 0.0
  %v4186 = vadd.f32 %v4184, %v4185
  %v4187 = vsel %vm21, %v4114, 0.0
  %v4188 = vadd.f32 %v4186, %v4187
  %v4189 = vsel %vm21, %v4115, 0.0
  %v4190 = vadd.f32 %v4188, %v4189
  %v4191 = vsel %vm21, %v4116, 0.0
  %v4192 = vadd.f32 %v4190, %v4191
  %v4193 = vsel %vm21, %v4117, 0.0
  %v4194 = vadd.f32 %v4192, %v4193
  %v4195 = vsel %vm21, %v4118, 0.0
  %v4196 = vadd.f32 %v4194, %v4195
  %v4197 = vsel %vm21, %v4119, 0.0
  %v4198 = vadd.f32 %v4196, %v4197
  %v4199 = vsel %vm21, %v4120, 0.0
  %v4200 = vadd.f32 %v4198, %v4199
  %v4201 = vsel %vm21, %v4121, 0.0
  %v4202 = vadd.f32 %v4200, %v4201
  %v4203 = vsel %vm21, %v4122, 0.0
  %v4204 = vadd.f32 %v4202, %v4203
  %v4205 = vsel %vm21, %v4123, 0.0
  %v4206 = vadd.f32 %v4204, %v4205
  %v4207 = vsel %vm21, %v4124, 0.0
  %v4208 = vadd.f32 %v4206, %v4207
  %v4209 = vsel %vm21, %v4125, 0.0
  %v4210 = vadd.f32 %v4208, %v4209
  %v4211 = vsel %vm21, %v4126, 0.0
  %v4212 = vadd.f32 %v4210, %v4211
  %v4213 = vsel %vm21, %v4127, 0.0
  %v4214 = vadd.f32 %v4212, %v4213
  %v4215 = vsel %vm21, %v4128, 0.0
  %v4216 = vadd.f32 %v4214, %v4215
  %v4217 = vsel %vm21, %v4129, 0.0
  %v4218 = vadd.f32 %v4216, %v4217
  %v4219 = vsel %vm21, %v4130, 0.0
  %v4220 = vadd.f32 %v4218, %v4219
  %v4221 = vsel %vm21, %v4131, 0.0
  %v4222 = vadd.f32 %v4220, %v4221
  %v4223 = vsel %vm21, %v4132, 0.0
  %v4224 = vadd.f32 %v4222, %v4223
  %v4225 = vsel %vm21, %v4133, 0.0
  %v4226 = vadd.f32 %v4224, %v4225
  %v4227 = vsel %vm21, %v4134, 0.0
  %v4228 = vadd.f32 %v4226, %v4227
  %v4229 = vsel %vm21, %v4135, 0.0
  %v4230 = vadd.f32 %v4228, %v4229
  %v4231 = vsel %vm21, %v4136, 0.0
  %v4232 = vadd.f32 %v4230, %v4231
  %v4233 = vsel %vm21, %v4137, 0.0
  %v4234 = vadd.f32 %v4232, %v4233
  %v4235 = vsel %vm21, %v4138, 0.0
  %v4236 = vadd.f32 %v4234, %v4235
  %v4237 = vsel %vm21, %v4139, 0.0
  %v4238 = vadd.f32 %v4236, %v4237
  %v4239 = vsel %vm21, %v4140, 0.0
  %v4240 = vadd.f32 %v4238, %v4239
  %v4241 = vsel %vm21, %v4141, 0.0
  %v4242 = vadd.f32 %v4240, %v4241
  %v4243 = vsel %vm21, %v4142, 0.0
  %v4244 = vadd.f32 %v4242, %v4243
  %v4245 = vsel %vm21, %v4143, 0.0
  %v4246 = vadd.f32 %v4244, %v4245
  %v4247 = vsel %vm21, %v4144, 0.0
  %v4248 = vadd.f32 %v4246, %v4247
  %v4249 = vsel %vm21, %v4145, 0.0
  %v4250 = vadd.f32 %v4248, %v4249
  %v4251 = vsel %vm21, %v4146, 0.0
  %v4252 = vadd.f32 %v4250, %v4251
  %v4253 = vsel %vm21, %v4147, 0.0
  %v4254 = vadd.f32 %v4252, %v4253
  %v4255 = vsel %vm21, %v4148, 0.0
  %v4256 = vadd.f32 %v4254, %v4255
  %v4257 = vsel %vm21, %v4149, 0.0
  %v4258 = vadd.f32 %v4256, %v4257
  %v4259 = vsel %vm21, %v4150, 0.0
  %v4260 = vadd.f32 %v4258, %v4259
  %v4261 = vsel %vm21, %v4151, 0.0
  %v4262 = vadd.f32 %v4260, %v4261
  %v4263 = vsel %vm21, %v4152, 0.0
  %v4264 = vadd.f32 %v4262, %v4263
  %v4265 = vsel %vm21, %v4153, 0.0
  %v4266 = vadd.f32 %v4264, %v4265
  %v4267 = vsel %vm21, %v4154, 0.0
  %v4268 = vadd.f32 %v4266, %v4267
  %v4269 = vsel %vm21, %v4155, 0.0
  %v4270 = vadd.f32 %v4268, %v4269
  %v4271 = vsel %vm21, %v4156, 0.0
  %v4272 = vadd.f32 %v4270, %v4271
  %v4273 = vsel %vm21, %v4157, 0.0
  %v4274 = vadd.f32 %v4272, %v4273
  %v4275 = vsel %vm21, %v4158, 0.0
  %v4276 = vadd.f32 %v4274, %v4275
  %v4277 = vsel %vm21, %v4159, 0.0
  %v4278 = vadd.f32 %v4276, %v4277
  %v4279 = vsel %vm21, %v4160, 0.0
  %v4280 = vadd.f32 %v4278, %v4279
  %v4281 = vsel %vm21, %v4161, 0.0
  %v4282 = vadd.f32 %v4280, %v4281
  %v4283 = vsel %vm21, %v4162, 0.0
  %v4284 = vadd.f32 %v4282, %v4283
  %v4285 = vsel %vm21, %v4163, 0.0
  %v4286 = vadd.f32 %v4284, %v4285
  %v4287 = vsel %vm21, %v4164, 0.0
  %v4288 = vadd.f32 %v4286, %v4287
  %v4289 = vsel %vm21, %v4165, 0.0
  %v4290 = vadd.f32 %v4288, %v4289
  %v4291 = vsel %vm21, %v4166, 0.0
  %v4292 = vadd.f32 %v4290, %v4291
  %v4293 = vsel %vm21, %v4167, 0.0
  %v4294 = vadd.f32 %v4292, %v4293
  %v4295 = vrot.slane %v4294, 4
  %v4296 = vadd.f32 %v4294, %v4295
  %v4297 = vrot.slane %v4296, 2
  %v4298 = vadd.f32 %v4296, %v4297
  %v4299 = vrot.slane %v4298, 1
  %v4300 = vadd.f32 %v4298, %v4299
  %v4301 = vmul.f32 %v4300, 0.001953125
  %v4302 = vmul.f32 %v4104, %v4104
  %v4303 = vmul.f32 %v4105, %v4105
  %v4304 = vmul.f32 %v4106, %v4106
  %v4305 = vmul.f32 %v4107, %v4107
  %v4306 = vmul.f32 %v4108, %v4108
  %v4307 = vmul.f32 %v4109, %v4109
  %v4308 = vmul.f32 %v4110, %v4110
  %v4309 = vmul.f32 %v4111, %v4111
  %v4310 = vmul.f32 %v4112, %v4112
  %v4311 = vmul.f32 %v4113, %v4113
  %v4312 = vmul.f32 %v4114, %v4114
  %v4313 = vmul.f32 %v4115, %v4115
  %v4314 = vmul.f32 %v4116, %v4116
  %v4315 = vmul.f32 %v4117, %v4117
  %v4316 = vmul.f32 %v4118, %v4118
  %v4317 = vmul.f32 %v4119, %v4119
  %v4318 = vmul.f32 %v4120, %v4120
  %v4319 = vmul.f32 %v4121, %v4121
  %v4320 = vmul.f32 %v4122, %v4122
  %v4321 = vmul.f32 %v4123, %v4123
  %v4322 = vmul.f32 %v4124, %v4124
  %v4323 = vmul.f32 %v4125, %v4125
  %v4324 = vmul.f32 %v4126, %v4126
  %v4325 = vmul.f32 %v4127, %v4127
  %v4326 = vmul.f32 %v4128, %v4128
  %v4327 = vmul.f32 %v4129, %v4129
  %v4328 = vmul.f32 %v4130, %v4130
  %v4329 = vmul.f32 %v4131, %v4131
  %v4330 = vmul.f32 %v4132, %v4132
  %v4331 = vmul.f32 %v4133, %v4133
  %v4332 = vmul.f32 %v4134, %v4134
  %v4333 = vmul.f32 %v4135, %v4135
  %v4334 = vmul.f32 %v4136, %v4136
  %v4335 = vmul.f32 %v4137, %v4137
  %v4336 = vmul.f32 %v4138, %v4138
  %v4337 = vmul.f32 %v4139, %v4139
  %v4338 = vmul.f32 %v4140, %v4140
  %v4339 = vmul.f32 %v4141, %v4141
  %v4340 = vmul.f32 %v4142, %v4142
  %v4341 = vmul.f32 %v4143, %v4143
  %v4342 = vmul.f32 %v4144, %v4144
  %v4343 = vmul.f32 %v4145, %v4145
  %v4344 = vmul.f32 %v4146, %v4146
  %v4345 = vmul.f32 %v4147, %v4147
  %v4346 = vmul.f32 %v4148, %v4148
  %v4347 = vmul.f32 %v4149, %v4149
  %v4348 = vmul.f32 %v4150, %v4150
  %v4349 = vmul.f32 %v4151, %v4151
  %v4350 = vmul.f32 %v4152, %v4152
  %v4351 = vmul.f32 %v4153, %v4153
  %v4352 = vmul.f32 %v4154, %v4154
  %v4353 = vmul.f32 %v4155, %v4155
  %v4354 = vmul.f32 %v4156, %v4156
  %v4355 = vmul.f32 %v4157, %v4157
  %v4356 = vmul.f32 %v4158, %v4158
  %v4357 = vmul.f32 %v4159, %v4159
  %v4358 = vmul.f32 %v4160, %v4160
  %v4359 = vmul.f32 %v4161, %v4161
  %v4360 = vmul.f32 %v4162, %v4162
  %v4361 = vmul.f32 %v4163, %v4163
  %v4362 = vmul.f32 %v4164, %v4164
  %v4363 = vmul.f32 %v4165, %v4165
  %v4364 = vmul.f32 %v4166, %v4166
  %v4365 = vmul.f32 %v4167, %v4167
  %v4366 = vsel %vm21, %v4302, 0.0
  %v4367 = vsel %vm21, %v4303, 0.0
  %v4368 = vadd.f32 %v4366, %v4367
  %v4369 = vsel %vm21, %v4304, 0.0
  %v4370 = vadd.f32 %v4368, %v4369
  %v4371 = vsel %vm21, %v4305, 0.0
  %v4372 = vadd.f32 %v4370, %v4371
  %v4373 = vsel %vm21, %v4306, 0.0
  %v4374 = vadd.f32 %v4372, %v4373
  %v4375 = vsel %vm21, %v4307, 0.0
  %v4376 = vadd.f32 %v4374, %v4375
  %v4377 = vsel %vm21, %v4308, 0.0
  %v4378 = vadd.f32 %v4376, %v4377
  %v4379 = vsel %vm21, %v4309, 0.0
  %v4380 = vadd.f32 %v4378, %v4379
  %v4381 = vsel %vm21, %v4310, 0.0
  %v4382 = vadd.f32 %v4380, %v4381
  %v4383 = vsel %vm21, %v4311, 0.0
  %v4384 = vadd.f32 %v4382, %v4383
  %v4385 = vsel %vm21, %v4312, 0.0
  %v4386 = vadd.f32 %v4384, %v4385
  %v4387 = vsel %vm21, %v4313, 0.0
  %v4388 = vadd.f32 %v4386, %v4387
  %v4389 = vsel %vm21, %v4314, 0.0
  %v4390 = vadd.f32 %v4388, %v4389
  %v4391 = vsel %vm21, %v4315, 0.0
  %v4392 = vadd.f32 %v4390, %v4391
  %v4393 = vsel %vm21, %v4316, 0.0
  %v4394 = vadd.f32 %v4392, %v4393
  %v4395 = vsel %vm21, %v4317, 0.0
  %v4396 = vadd.f32 %v4394, %v4395
  %v4397 = vsel %vm21, %v4318, 0.0
  %v4398 = vadd.f32 %v4396, %v4397
  %v4399 = vsel %vm21, %v4319, 0.0
  %v4400 = vadd.f32 %v4398, %v4399
  %v4401 = vsel %vm21, %v4320, 0.0
  %v4402 = vadd.f32 %v4400, %v4401
  %v4403 = vsel %vm21, %v4321, 0.0
  %v4404 = vadd.f32 %v4402, %v4403
  %v4405 = vsel %vm21, %v4322, 0.0
  %v4406 = vadd.f32 %v4404, %v4405
  %v4407 = vsel %vm21, %v4323, 0.0
  %v4408 = vadd.f32 %v4406, %v4407
  %v4409 = vsel %vm21, %v4324, 0.0
  %v4410 = vadd.f32 %v4408, %v4409
  %v4411 = vsel %vm21, %v4325, 0.0
  %v4412 = vadd.f32 %v4410, %v4411
  %v4413 = vsel %vm21, %v4326, 0.0
  %v4414 = vadd.f32 %v4412, %v4413
  %v4415 = vsel %vm21, %v4327, 0.0
  %v4416 = vadd.f32 %v4414, %v4415
  %v4417 = vsel %vm21, %v4328, 0.0
  %v4418 = vadd.f32 %v4416, %v4417
  %v4419 = vsel %vm21, %v4329, 0.0
  %v4420 = vadd.f32 %v4418, %v4419
  %v4421 = vsel %vm21, %v4330, 0.0
  %v4422 = vadd.f32 %v4420, %v4421
  %v4423 = vsel %vm21, %v4331, 0.0
  %v4424 = vadd.f32 %v4422, %v4423
  %v4425 = vsel %vm21, %v4332, 0.0
  %v4426 = vadd.f32 %v4424, %v4425
  %v4427 = vsel %vm21, %v4333, 0.0
  %v4428 = vadd.f32 %v4426, %v4427
  %v4429 = vsel %vm21, %v4334, 0.0
  %v4430 = vadd.f32 %v4428, %v4429
  %v4431 = vsel %vm21, %v4335, 0.0
  %v4432 = vadd.f32 %v4430, %v4431
  %v4433 = vsel %vm21, %v4336, 0.0
  %v4434 = vadd.f32 %v4432, %v4433
  %v4435 = vsel %vm21, %v4337, 0.0
  %v4436 = vadd.f32 %v4434, %v4435
  %v4437 = vsel %vm21, %v4338, 0.0
  %v4438 = vadd.f32 %v4436, %v4437
  %v4439 = vsel %vm21, %v4339, 0.0
  %v4440 = vadd.f32 %v4438, %v4439
  %v4441 = vsel %vm21, %v4340, 0.0
  %v4442 = vadd.f32 %v4440, %v4441
  %v4443 = vsel %vm21, %v4341, 0.0
  %v4444 = vadd.f32 %v4442, %v4443
  %v4445 = vsel %vm21, %v4342, 0.0
  %v4446 = vadd.f32 %v4444, %v4445
  %v4447 = vsel %vm21, %v4343, 0.0
  %v4448 = vadd.f32 %v4446, %v4447
  %v4449 = vsel %vm21, %v4344, 0.0
  %v4450 = vadd.f32 %v4448, %v4449
  %v4451 = vsel %vm21, %v4345, 0.0
  %v4452 = vadd.f32 %v4450, %v4451
  %v4453 = vsel %vm21, %v4346, 0.0
  %v4454 = vadd.f32 %v4452, %v4453
  %v4455 = vsel %vm21, %v4347, 0.0
  %v4456 = vadd.f32 %v4454, %v4455
  %v4457 = vsel %vm21, %v4348, 0.0
  %v4458 = vadd.f32 %v4456, %v4457
  %v4459 = vsel %vm21, %v4349, 0.0
  %v4460 = vadd.f32 %v4458, %v4459
  %v4461 = vsel %vm21, %v4350, 0.0
  %v4462 = vadd.f32 %v4460, %v4461
  %v4463 = vsel %vm21, %v4351, 0.0
  %v4464 = vadd.f32 %v4462, %v4463
  %v4465 = vsel %vm21, %v4352, 0.0
  %v4466 = vadd.f32 %v4464, %v4465
  %v4467 = vsel %vm21, %v4353, 0.0
  %v4468 = vadd.f32 %v4466, %v4467
  %v4469 = vsel %vm21, %v4354, 0.0
  %v4470 = vadd.f32 %v4468, %v4469
  %v4471 = vsel %vm21, %v4355, 0.0
  %v4472 = vadd.f32 %v4470, %v4471
  %v4473 = vsel %vm21, %v4356, 0.0
  %v4474 = vadd.f32 %v4472, %v4473
  %v4475 = vsel %vm21, %v4357, 0.0
  %v4476 = vadd.f32 %v4474, %v4475
  %v4477 = vsel %vm21, %v4358, 0.0
  %v4478 = vadd.f32 %v4476, %v4477
  %v4479 = vsel %vm21, %v4359, 0.0
  %v4480 = vadd.f32 %v4478, %v4479
  %v4481 = vsel %vm21, %v4360, 0.0
  %v4482 = vadd.f32 %v4480, %v4481
  %v4483 = vsel %vm21, %v4361, 0.0
  %v4484 = vadd.f32 %v4482, %v4483
  %v4485 = vsel %vm21, %v4362, 0.0
  %v4486 = vadd.f32 %v4484, %v4485
  %v4487 = vsel %vm21, %v4363, 0.0
  %v4488 = vadd.f32 %v4486, %v4487
  %v4489 = vsel %vm21, %v4364, 0.0
  %v4490 = vadd.f32 %v4488, %v4489
  %v4491 = vsel %vm21, %v4365, 0.0
  %v4492 = vadd.f32 %v4490, %v4491
  %v4493 = vrot.slane %v4492, 4
  %v4494 = vadd.f32 %v4492, %v4493
  %v4495 = vrot.slane %v4494, 2
  %v4496 = vadd.f32 %v4494, %v4495
  %v4497 = vrot.slane %v4496, 1
  %v4498 = vadd.f32 %v4496, %v4497
  %v4499 = vmul.f32 %v4498, 0.001953125
  %v4500 = vmul.f32 %v4301, %v4301
  %v4501 = vsub.f32 %v4499, %v4500
  %v4502 = vmax.f32 %v4501, 0.0
  %v4503 = vld [vmem:[%s3] sm:$0x1]
  %v4504 = vadd.f32 %v4502, 1e-05
  %v4505 = vrsqrt.pop %v4504
  %v4506 = vmul.f32 %v4505, %v4504
  %v4507 = vmul.f32 %v4506, %v4505
  %v4508 = vmul.f32 0.5, %v4507
  %v4509 = vsub.f32 1.5, %v4508
  %v4510 = vmul.f32 %v4505, %v4509
  %vm4511 = vweird.f32 %v4504
  %vm4512 = vweird.f32 %v4505
  %vm4513 = vmor %vm4511, %vm4512
  %v4514 = vsel %vm4513, %v4505, %v4510
  %v4515 = vmul.f32 %v4503, %v4514
  %v4516 = vld [vmem:[%s4] sm:$0x1]
  %v4517 = vmul.f32 %v4301, %v4515
  %v4518 = vsub.f32 %v4516, %v4517
  %v4520 = vperm.slane %v4515, 0
  %v4522 = vmul.f32 %v4104, %v4520
  %v4523 = vmul.f32 %v4105, %v4520
  %v4524 = vmul.f32 %v4106, %v4520
  %v4525 = vmul.f32 %v4107, %v4520
  %v4526 = vmul.f32 %v4108, %v4520
  %v4527 = vmul.f32 %v4109, %v4520
  %v4528 = vmul.f32 %v4110, %v4520
  %v4529 = vmul.f32 %v4111, %v4520
  %v4530 = vmul.f32 %v4112, %v4520
  %v4531 = vmul.f32 %v4113, %v4520
  %v4532 = vmul.f32 %v4114, %v4520
  %v4533 = vmul.f32 %v4115, %v4520
  %v4534 = vmul.f32 %v4116, %v4520
  %v4535 = vmul.f32 %v4117, %v4520
  %v4536 = vmul.f32 %v4118, %v4520
  %v4537 = vmul.f32 %v4119, %v4520
  %v4538 = vmul.f32 %v4120, %v4520
  %v4539 = vmul.f32 %v4121, %v4520
  %v4540 = vmul.f32 %v4122, %v4520
  %v4541 = vmul.f32 %v4123, %v4520
  %v4542 = vmul.f32 %v4124, %v4520
  %v4543 = vmul.f32 %v4125, %v4520
  %v4544 = vmul.f32 %v4126, %v4520
  %v4545 = vmul.f32 %v4127, %v4520
  %v4546 = vmul.f32 %v4128, %v4520
  %v4547 = vmul.f32 %v4129, %v4520
  %v4548 = vmul.f32 %v4130, %v4520
  %v4549 = vmul.f32 %v4131, %v4520
  %v4550 = vmul.f32 %v4132, %v4520
  %v4551 = vmul.f32 %v4133, %v4520
  %v4552 = vmul.f32 %v4134, %v4520
  %v4553 = vmul.f32 %v4135, %v4520
  %v4554 = vmul.f32 %v4136, %v4520
  %v4555 = vmul.f32 %v4137, %v4520
  %v4556 = vmul.f32 %v4138, %v4520
  %v4557 = vmul.f32 %v4139, %v4520
  %v4558 = vmul.f32 %v4140, %v4520
  %v4559 = vmul.f32 %v4141, %v4520
  %v4560 = vmul.f32 %v4142, %v4520
  %v4561 = vmul.f32 %v4143, %v4520
  %v4562 = vmul.f32 %v4144, %v4520
  %v4563 = vmul.f32 %v4145, %v4520
  %v4564 = vmul.f32 %v4146, %v4520
  %v4565 = vmul.f32 %v4147, %v4520
  %v4566 = vmul.f32 %v4148, %v4520
  %v4567 = vmul.f32 %v4149, %v4520
  %v4568 = vmul.f32 %v4150, %v4520
  %v4569 = vmul.f32 %v4151, %v4520
  %v4570 = vmul.f32 %v4152, %v4520
  %v4571 = vmul.f32 %v4153, %v4520
  %v4572 = vmul.f32 %v4154, %v4520
  %v4573 = vmul.f32 %v4155, %v4520
  %v4574 = vmul.f32 %v4156, %v4520
  %v4575 = vmul.f32 %v4157, %v4520
  %v4576 = vmul.f32 %v4158, %v4520
  %v4577 = vmul.f32 %v4159, %v4520
  %v4578 = vmul.f32 %v4160, %v4520
  %v4579 = vmul.f32 %v4161, %v4520
  %v4580 = vmul.f32 %v4162, %v4520
  %v4581 = vmul.f32 %v4163, %v4520
  %v4582 = vmul.f32 %v4164, %v4520
  %v4583 = vmul.f32 %v4165, %v4520
  %v4584 = vmul.f32 %v4166, %v4520
  %v4585 = vmul.f32 %v4167, %v4520
  %v4587 = vperm.slane %v4518, 0
  %v4589 = vadd.f32 %v4522, %v4587
  %v4590 = vadd.f32 %v4523, %v4587
  %v4591 = vadd.f32 %v4524, %v4587
  %v4592 = vadd.f32 %v4525, %v4587
  %v4593 = vadd.f32 %v4526, %v4587
  %v4594 = vadd.f32 %v4527, %v4587
  %v4595 = vadd.f32 %v4528, %v4587
  %v4596 = vadd.f32 %v4529, %v4587
  %v4597 = vadd.f32 %v4530, %v4587
  %v4598 = vadd.f32 %v4531, %v4587
  %v4599 = vadd.f32 %v4532, %v4587
  %v4600 = vadd.f32 %v4533, %v4587
  %v4601 = vadd.f32 %v4534, %v4587
  %v4602 = vadd.f32 %v4535, %v4587
  %v4603 = vadd.f32 %v4536, %v4587
  %v4604 = vadd.f32 %v4537, %v4587
  %v4605 = vadd.f32 %v4538, %v4587
  %v4606 = vadd.f32 %v4539, %v4587
  %v4607 = vadd.f32 %v4540, %v4587
  %v4608 = vadd.f32 %v4541, %v4587
  %v4609 = vadd.f32 %v4542, %v4587
  %v4610 = vadd.f32 %v4543, %v4587
  %v4611 = vadd.f32 %v4544, %v4587
  %v4612 = vadd.f32 %v4545, %v4587
  %v4613 = vadd.f32 %v4546, %v4587
  %v4614 = vadd.f32 %v4547, %v4587
  %v4615 = vadd.f32 %v4548, %v4587
  %v4616 = vadd.f32 %v4549, %v4587
  %v4617 = vadd.f32 %v4550, %v4587
  %v4618 = vadd.f32 %v4551, %v4587
  %v4619 = vadd.f32 %v4552, %v4587
  %v4620 = vadd.f32 %v4553, %v4587
  %v4621 = vadd.f32 %v4554, %v4587
  %v4622 = vadd.f32 %v4555, %v4587
  %v4623 = vadd.f32 %v4556, %v4587
  %v4624 = vadd.f32 %v4557, %v4587
  %v4625 = vadd.f32 %v4558, %v4587
  %v4626 = vadd.f32 %v4559, %v4587
  %v4627 = vadd.f32 %v4560, %v4587
  %v4628 = vadd.f32 %v4561, %v4587
  %v4629 = vadd.f32 %v4562, %v4587
  %v4630 = vadd.f32 %v4563, %v4587
  %v4631 = vadd.f32 %v4564, %v4587
  %v4632 = vadd.f32 %v4565, %v4587
  %v4633 = vadd.f32 %v4566, %v4587
  %v4634 = vadd.f32 %v4567, %v4587
  %v4635 = vadd.f32 %v4568, %v4587
  %v4636 = vadd.f32 %v4569, %v4587
  %v4637 = vadd.f32 %v4570, %v4587
  %v4638 = vadd.f32 %v4571, %v4587
  %v4639 = vadd.f32 %v4572, %v4587
  %v4640 = vadd.f32 %v4573, %v4587
  %v4641 = vadd.f32 %v4574, %v4587
  %v4642 = vadd.f32 %v4575, %v4587
  %v4643 = vadd.f32 %v4576, %v4587
  %v4644 = vadd.f32 %v4577, %v4587
  %v4645 = vadd.f32 %v4578, %v4587
  %v4646 = vadd.f32 %v4579, %v4587
  %v4647 = vadd.f32 %v4580, %v4587
  %v4648 = vadd.f32 %v4581, %v4587
  %v4649 = vadd.f32 %v4582, %v4587
  %v4650 = vadd.f32 %v4583, %v4587
  %v4651 = vadd.f32 %v4584, %v4587
  %v4652 = vadd.f32 %v4585, %v4587
  %v4653 = vmax.f32 %v4589, 0.0
  %v4654 = vmax.f32 %v4590, 0.0
  %v4655 = vmax.f32 %v4591, 0.0
  %v4656 = vmax.f32 %v4592, 0.0
  %v4657 = vmax.f32 %v4593, 0.0
  %v4658 = vmax.f32 %v4594, 0.0
  %v4659 = vmax.f32 %v4595, 0.0
  %v4660 = vmax.f32 %v4596, 0.0
  %v4661 = vmax.f32 %v4597, 0.0
  %v4662 = vmax.f32 %v4598, 0.0
  %v4663 = vmax.f32 %v4599, 0.0
  %v4664 = vmax.f32 %v4600, 0.0
  %v4665 = vmax.f32 %v4601, 0.0
  %v4666 = vmax.f32 %v4602, 0.0
  %v4667 = vmax.f32 %v4603, 0.0
  %v4668 = vmax.f32 %v4604, 0.0
  %v4669 = vmax.f32 %v4605, 0.0
  %v4670 = vmax.f32 %v4606, 0.0
  %v4671 = vmax.f32 %v4607, 0.0
  %v4672 = vmax.f32 %v4608, 0.0
  %v4673 = vmax.f32 %v4609, 0.0
  %v4674 = vmax.f32 %v4610, 0.0
  %v4675 = vmax.f32 %v4611, 0.0
  %v4676 = vmax.f32 %v4612, 0.0
  %v4677 = vmax.f32 %v4613, 0.0
  %v4678 = vmax.f32 %v4614, 0.0
  %v4679 = vmax.f32 %v4615, 0.0
  %v4680 = vmax.f32 %v4616, 0.0
  %v4681 = vmax.f32 %v4617, 0.0
  %v4682 = vmax.f32 %v4618, 0.0
  %v4683 = vmax.f32 %v4619, 0.0
  %v4684 = vmax.f32 %v4620, 0.0
  %v4685 = vmax.f32 %v4621, 0.0
  %v4686 = vmax.f32 %v4622, 0.0
  %v4687 = vmax.f32 %v4623, 0.0
  %v4688 = vmax.f32 %v4624, 0.0
  %v4689 = vmax.f32 %v4625, 0.0
  %v4690 = vmax.f32 %v4626, 0.0
  %v4691 = vmax.f32 %v4627, 0.0
  %v4692 = vmax.f32 %v4628, 0.0
  %v4693 = vmax.f32 %v4629, 0.0
  %v4694 = vmax.f32 %v4630, 0.0
  %v4695 = vmax.f32 %v4631, 0.0
  %v4696 = vmax.f32 %v4632, 0.0
  %v4697 = vmax.f32 %v4633, 0.0
  %v4698 = vmax.f32 %v4634, 0.0
  %v4699 = vmax.f32 %v4635, 0.0
  %v4700 = vmax.f32 %v4636, 0.0
  %v4701 = vmax.f32 %v4637, 0.0
  %v4702 = vmax.f32 %v4638, 0.0
  %v4703 = vmax.f32 %v4639, 0.0
  %v4704 = vmax.f32 %v4640, 0.0
  %v4705 = vmax.f32 %v4641, 0.0
  %v4706 = vmax.f32 %v4642, 0.0
  %v4707 = vmax.f32 %v4643, 0.0
  %v4708 = vmax.f32 %v4644, 0.0
  %v4709 = vmax.f32 %v4645, 0.0
  %v4710 = vmax.f32 %v4646, 0.0
  %v4711 = vmax.f32 %v4647, 0.0
  %v4712 = vmax.f32 %v4648, 0.0
  %v4713 = vmax.f32 %v4649, 0.0
  %v4714 = vmax.f32 %v4650, 0.0
  %v4715 = vmax.f32 %v4651, 0.0
  %v4716 = vmax.f32 %v4652, 0.0
  %4717 = vst.msk [vmem:[%s163 + $0x1] sm:$0xff] %vm21, %v4653
  %4718 = vst.msk [vmem:[%s163 + $0x9] sm:$0xff] %vm21, %v4654
  %4719 = vst.msk [vmem:[%s163 + $0x19] sm:$0xff] %vm21, %v4655
  %4720 = vst.msk [vmem:[%s163 + $0x21] sm:$0xff] %vm21, %v4656
  %4721 = vst.msk [vmem:[%s163 + $0x31] sm:$0xff] %vm21, %v4657
  %4722 = vst.msk [vmem:[%s163 + $0x39] sm:$0xff] %vm21, %v4658
  %4723 = vst.msk [vmem:[%s163 + $0x49] sm:$0xff] %vm21, %v4659
  %4724 = vst.msk [vmem:[%s163 + $0x51] sm:$0xff] %vm21, %v4660
  %4725 = vst.msk [vmem:[%s163 + $0x61] sm:$0xff] %vm21, %v4661
  %4726 = vst.msk [vmem:[%s163 + $0x69] sm:$0xff] %vm21, %v4662
  %4727 = vst.msk [vmem:[%s163 + $0x79] sm:$0xff] %vm21, %v4663
  %4728 = vst.msk [vmem:[%s163 + $0x81] sm:$0xff] %vm21, %v4664
  %4729 = vst.msk [vmem:[%s163 + $0x91] sm:$0xff] %vm21, %v4665
  %4730 = vst.msk [vmem:[%s163 + $0x99] sm:$0xff] %vm21, %v4666
  %4731 = vst.msk [vmem:[%s163 + $0xa9] sm:$0xff] %vm21, %v4667
  %4732 = vst.msk [vmem:[%s163 + $0xb1] sm:$0xff] %vm21, %v4668
  %4733 = vst.msk [vmem:[%s163 + $0xc1] sm:$0xff] %vm21, %v4669
  %4734 = vst.msk [vmem:[%s163 + $0xc9] sm:$0xff] %vm21, %v4670
  %4735 = vst.msk [vmem:[%s163 + $0xd9] sm:$0xff] %vm21, %v4671
  %4736 = vst.msk [vmem:[%s163 + $0xe1] sm:$0xff] %vm21, %v4672
  %4737 = vst.msk [vmem:[%s163 + $0xf1] sm:$0xff] %vm21, %v4673
  %4738 = vst.msk [vmem:[%s163 + $0xf9] sm:$0xff] %vm21, %v4674
  %4739 = vst.msk [vmem:[%s163 + $0x109] sm:$0xff] %vm21, %v4675
  %4740 = vst.msk [vmem:[%s163 + $0x111] sm:$0xff] %vm21, %v4676
  %4741 = vst.msk [vmem:[%s163 + $0x121] sm:$0xff] %vm21, %v4677
  %4742 = vst.msk [vmem:[%s163 + $0x129] sm:$0xff] %vm21, %v4678
  %4743 = vst.msk [vmem:[%s163 + $0x139] sm:$0xff] %vm21, %v4679
  %4744 = vst.msk [vmem:[%s163 + $0x141] sm:$0xff] %vm21, %v4680
  %4745 = vst.msk [vmem:[%s163 + $0x151] sm:$0xff] %vm21, %v4681
  %4746 = vst.msk [vmem:[%s163 + $0x159] sm:$0xff] %vm21, %v4682
  %4747 = vst.msk [vmem:[%s163 + $0x169] sm:$0xff] %vm21, %v4683
  %4748 = vst.msk [vmem:[%s163 + $0x171] sm:$0xff] %vm21, %v4684
  %4749 = vst.msk [vmem:[%s229 + $0x1] sm:$0xff] %vm21, %v4685
  %4750 = vst.msk [vmem:[%s229 + $0x9] sm:$0xff] %vm21, %v4686
  %4751 = vst.msk [vmem:[%s229 + $0x19] sm:$0xff] %vm21, %v4687
  %4752 = vst.msk [vmem:[%s229 + $0x21] sm:$0xff] %vm21, %v4688
  %4753 = vst.msk [vmem:[%s229 + $0x31] sm:$0xff] %vm21, %v4689
  %4754 = vst.msk [vmem:[%s229 + $0x39] sm:$0xff] %vm21, %v4690
  %4755 = vst.msk [vmem:[%s229 + $0x49] sm:$0xff] %vm21, %v4691
  %4756 = vst.msk [vmem:[%s229 + $0x51] sm:$0xff] %vm21, %v4692
  %4757 = vst.msk [vmem:[%s229 + $0x61] sm:$0xff] %vm21, %v4693
  %4758 = vst.msk [vmem:[%s229 + $0x69] sm:$0xff] %vm21, %v4694
  %4759 = vst.msk [vmem:[%s229 + $0x79] sm:$0xff] %vm21, %v4695
  %4760 = vst.msk [vmem:[%s229 + $0x81] sm:$0xff] %vm21, %v4696
  %4761 = vst.msk [vmem:[%s229 + $0x91] sm:$0xff] %vm21, %v4697
  %4762 = vst.msk [vmem:[%s229 + $0x99] sm:$0xff] %vm21, %v4698
  %4763 = vst.msk [vmem:[%s229 + $0xa9] sm:$0xff] %vm21, %v4699
  %4764 = vst.msk [vmem:[%s229 + $0xb1] sm:$0xff] %vm21, %v4700
  %4765 = vst.msk [vmem:[%s229 + $0xc1] sm:$0xff] %vm21, %v4701
  %4766 = vst.msk [vmem:[%s229 + $0xc9] sm:$0xff] %vm21, %v4702
  %4767 = vst.msk [vmem:[%s229 + $0xd9] sm:$0xff] %vm21, %v4703
  %4768 = vst.msk [vmem:[%s229 + $0xe1] sm:$0xff] %vm21, %v4704
  %4769 = vst.msk [vmem:[%s229 + $0xf1] sm:$0xff] %vm21, %v4705
  %4770 = vst.msk [vmem:[%s229 + $0xf9] sm:$0xff] %vm21, %v4706
  %4771 = vst.msk [vmem:[%s229 + $0x109] sm:$0xff] %vm21, %v4707
  %4772 = vst.msk [vmem:[%s229 + $0x111] sm:$0xff] %vm21, %v4708
  %4773 = vst.msk [vmem:[%s229 + $0x121] sm:$0xff] %vm21, %v4709
  %4774 = vst.msk [vmem:[%s229 + $0x129] sm:$0xff] %vm21, %v4710
  %4775 = vst.msk [vmem:[%s229 + $0x139] sm:$0xff] %vm21, %v4711
  %4776 = vst.msk [vmem:[%s229 + $0x141] sm:$0xff] %vm21, %v4712
  %4777 = vst.msk [vmem:[%s229 + $0x151] sm:$0xff] %vm21, %v4713
  %4778 = vst.msk [vmem:[%s229 + $0x159] sm:$0xff] %vm21, %v4714
  %4779 = vst.msk [vmem:[%s229 + $0x169] sm:$0xff] %vm21, %v4715
  %4780 = vst.msk [vmem:[%s229 + $0x171] sm:$0xff] %vm21, %v4716
  %v4781 = vld [vmem:[#allocation2] sm:$0xff]
  %v4782 = vld [vmem:[#allocation2 + $0x8] sm:$0xff]
  %v4783 = vld [vmem:[#allocation2 + $0x18] sm:$0xff]
  %v4784 = vld [vmem:[#allocation2 + $0x20] sm:$0xff]
  %v4785 = vld [vmem:[#allocation2 + $0x30] sm:$0xff]
  %v4786 = vld [vmem:[#allocation2 + $0x38] sm:$0xff]
  %v4787 = vld [vmem:[#allocation2 + $0x48] sm:$0xff]
  %v4788 = vld [vmem:[#allocation2 + $0x50] sm:$0xff]
  %v4789 = vld [vmem:[#allocation2 + $0x60] sm:$0xff]
  %v4790 = vld [vmem:[#allocation2 + $0x68] sm:$0xff]
  %v4791 = vld [vmem:[#allocation2 + $0x78] sm:$0xff]
  %v4792 = vld [vmem:[#allocation2 + $0x80] sm:$0xff]
  %v4793 = vld [vmem:[#allocation2 + $0x90] sm:$0xff]
  %v4794 = vld [vmem:[#allocation2 + $0x98] sm:$0xff]
  %v4795 = vld [vmem:[#allocation2 + $0xa8] sm:$0xff]
  %v4796 = vld [vmem:[#allocation2 + $0xb0] sm:$0xff]
  %v4797 = vld [vmem:[#allocation2 + $0xc0] sm:$0xff]
  %v4798 = vld [vmem:[#allocation2 + $0xc8] sm:$0xff]
  %v4799 = vld [vmem:[#allocation2 + $0xd8] sm:$0xff]
  %v4800 = vld [vmem:[#allocation2 + $0xe0] sm:$0xff]
  %v4801 = vld [vmem:[#allocation2 + $0xf0] sm:$0xff]
  %v4802 = vld [vmem:[#allocation2 + $0xf8] sm:$0xff]
  %v4803 = vld [vmem:[#allocation2 + $0x108] sm:$0xff]
  %v4804 = vld [vmem:[#allocation2 + $0x110] sm:$0xff]
  %v4805 = vld [vmem:[#allocation2 + $0x120] sm:$0xff]
  %v4806 = vld [vmem:[#allocation2 + $0x128] sm:$0xff]
  %v4807 = vld [vmem:[#allocation2 + $0x138] sm:$0xff]
  %v4808 = vld [vmem:[#allocation2 + $0x140] sm:$0xff]
  %v4809 = vld [vmem:[#allocation2 + $0x150] sm:$0xff]
  %v4810 = vld [vmem:[#allocation2 + $0x158] sm:$0xff]
  %v4811 = vld [vmem:[#allocation2 + $0x168] sm:$0xff]
  %v4812 = vld [vmem:[#allocation2 + $0x170] sm:$0xff]
  %v4813 = vld [vmem:[#allocation2 + $0x1b0] sm:$0xff]
  %v4814 = vld [vmem:[#allocation2 + $0x1b8] sm:$0xff]
  %v4815 = vld [vmem:[#allocation2 + $0x1c8] sm:$0xff]
  %v4816 = vld [vmem:[#allocation2 + $0x1d0] sm:$0xff]
  %v4817 = vld [vmem:[#allocation2 + $0x1e0] sm:$0xff]
  %v4818 = vld [vmem:[#allocation2 + $0x1e8] sm:$0xff]
  %v4819 = vld [vmem:[#allocation2 + $0x1f8] sm:$0xff]
  %v4820 = vld [vmem:[#allocation2 + $0x200] sm:$0xff]
  %v4821 = vld [vmem:[#allocation2 + $0x210] sm:$0xff]
  %v4822 = vld [vmem:[#allocation2 + $0x218] sm:$0xff]
  %v4823 = vld [vmem:[#allocation2 + $0x228] sm:$0xff]
  %v4824 = vld [vmem:[#allocation2 + $0x230] sm:$0xff]
  %v4825 = vld [vmem:[#allocation2 + $0x240] sm:$0xff]
  %v4826 = vld [vmem:[#allocation2 + $0x248] sm:$0xff]
  %v4827 = vld [vmem:[#allocation2 + $0x258] sm:$0xff]
  %v4828 = vld [vmem:[#allocation2 + $0x260] sm:$0xff]
  %v4829 = vld [vmem:[#allocation2 + $0x270] sm:$0xff]
  %v4830 = vld [vmem:[#allocation2 + $0x278] sm:$0xff]
  %v4831 = vld [vmem:[#allocation2 + $0x288] sm:$0xff]
  %v4832 = vld [vmem:[#allocation2 + $0x290] sm:$0xff]
  %v4833 = vld [vmem:[#allocation2 + $0x2a0] sm:$0xff]
  %v4834 = vld [vmem:[#allocation2 + $0x2a8] sm:$0xff]
  %v4835 = vld [vmem:[#allocation2 + $0x2b8] sm:$0xff]
  %v4836 = vld [vmem:[#allocation2 + $0x2c0] sm:$0xff]
  %v4837 = vld [vmem:[#allocation2 + $0x2d0] sm:$0xff]
  %v4838 = vld [vmem:[#allocation2 + $0x2d8] sm:$0xff]
  %v4839 = vld [vmem:[#allocation2 + $0x2e8] sm:$0xff]
  %v4840 = vld [vmem:[#allocation2 + $0x2f0] sm:$0xff]
  %v4841 = vld [vmem:[#allocation2 + $0x300] sm:$0xff]
  %v4842 = vld [vmem:[#allocation2 + $0x308] sm:$0xff]
  %v4843 = vld [vmem:[#allocation2 + $0x318] sm:$0xff]
  %v4844 = vld [vmem:[#allocation2 + $0x320] sm:$0xff]
  %v4845 = vpack.c.bf16 %v4782, %v4781
  %v4846 = vpack.c.bf16 %v4784, %v4783
  %v4847 = vpack.c.bf16 %v4786, %v4785
  %v4848 = vpack.c.bf16 %v4788, %v4787
  %v4849 = vpack.c.bf16 %v4790, %v4789
  %v4850 = vpack.c.bf16 %v4792, %v4791
  %v4851 = vpack.c.bf16 %v4794, %v4793
  %v4852 = vpack.c.bf16 %v4796, %v4795
  %v4853 = vpack.c.bf16 %v4798, %v4797
  %v4854 = vpack.c.bf16 %v4800, %v4799
  %v4855 = vpack.c.bf16 %v4802, %v4801
  %v4856 = vpack.c.bf16 %v4804, %v4803
  %v4857 = vpack.c.bf16 %v4806, %v4805
  %v4858 = vpack.c.bf16 %v4808, %v4807
  %v4859 = vpack.c.bf16 %v4810, %v4809
  %v4860 = vpack.c.bf16 %v4812, %v4811
  %v4861 = vpack.c.bf16 %v4814, %v4813
  %v4862 = vpack.c.bf16 %v4816, %v4815
  %v4863 = vpack.c.bf16 %v4818, %v4817
  %v4864 = vpack.c.bf16 %v4820, %v4819
  %v4865 = vpack.c.bf16 %v4822, %v4821
  %v4866 = vpack.c.bf16 %v4824, %v4823
  %v4867 = vpack.c.bf16 %v4826, %v4825
  %v4868 = vpack.c.bf16 %v4828, %v4827
  %v4869 = vpack.c.bf16 %v4830, %v4829
  %v4870 = vpack.c.bf16 %v4832, %v4831
  %v4871 = vpack.c.bf16 %v4834, %v4833
  %v4872 = vpack.c.bf16 %v4836, %v4835
  %v4873 = vpack.c.bf16 %v4838, %v4837
  %v4874 = vpack.c.bf16 %v4840, %v4839
  %v4875 = vpack.c.bf16 %v4842, %v4841
  %v4876 = vpack.c.bf16 %v4844, %v4843
  %v4877 = vld [vmem:[%s2] sm:$0xf]
  %v4878 = vld [vmem:[%s2 + $0x4] sm:$0xf]
  %v4879 = vld [vmem:[#allocation2 + $0x1] sm:$0xff]
  %v4880 = vld [vmem:[#allocation2 + $0x9] sm:$0xff]
  %v4881 = vld [vmem:[#allocation2 + $0x19] sm:$0xff]
  %v4882 = vld [vmem:[#allocation2 + $0x21] sm:$0xff]
  %v4883 = vld [vmem:[#allocation2 + $0x31] sm:$0xff]
  %v4884 = vld [vmem:[#allocation2 + $0x39] sm:$0xff]
  %v4885 = vld [vmem:[#allocation2 + $0x49] sm:$0xff]
  %v4886 = vld [vmem:[#allocation2 + $0x51] sm:$0xff]
  %v4887 = vld [vmem:[#allocation2 + $0x61] sm:$0xff]
  %v4888 = vld [vmem:[#allocation2 + $0x69] sm:$0xff]
  %v4889 = vld [vmem:[#allocation2 + $0x79] sm:$0xff]
  %v4890 = vld [vmem:[#allocation2 + $0x81] sm:$0xff]
  %v4891 = vld [vmem:[#allocation2 + $0x91] sm:$0xff]
  %v4892 = vld [vmem:[#allocation2 + $0x99] sm:$0xff]
  %v4893 = vld [vmem:[#allocation2 + $0xa9] sm:$0xff]
  %v4894 = vld [vmem:[#allocation2 + $0xb1] sm:$0xff]
  %v4895 = vld [vmem:[#allocation2 + $0xc1] sm:$0xff]
  %v4896 = vld [vmem:[#allocation2 + $0xc9] sm:$0xff]
  %v4897 = vld [vmem:[#allocation2 + $0xd9] sm:$0xff]
  %v4898 = vld [vmem:[#allocation2 + $0xe1] sm:$0xff]
  %v4899 = vld [vmem:[#allocation2 + $0xf1] sm:$0xff]
  %v4900 = vld [vmem:[#allocation2 + $0xf9] sm:$0xff]
  %v4901 = vld [vmem:[#allocation2 + $0x109] sm:$0xff]
  %v4902 = vld [vmem:[#allocation2 + $0x111] sm:$0xff]
  %v4903 = vld [vmem:[#allocation2 + $0x121] sm:$0xff]
  %v4904 = vld [vmem:[#allocation2 + $0x129] sm:$0xff]
  %v4905 = vld [vmem:[#allocation2 + $0x139] sm:$0xff]
  %v4906 = vld [vmem:[#allocation2 + $0x141] sm:$0xff]
  %v4907 = vld [vmem:[#allocation2 + $0x151] sm:$0xff]
  %v4908 = vld [vmem:[#allocation2 + $0x159] sm:$0xff]
  %v4909 = vld [vmem:[#allocation2 + $0x169] sm:$0xff]
  %v4910 = vld [vmem:[#allocation2 + $0x171] sm:$0xff]
  %v4911 = vld [vmem:[#allocation2 + $0x1b1] sm:$0xff]
  %v4912 = vld [vmem:[#allocation2 + $0x1b9] sm:$0xff]
  %v4913 = vld [vmem:[#allocation2 + $0x1c9] sm:$0xff]
  %v4914 = vld [vmem:[#allocation2 + $0x1d1] sm:$0xff]
  %v4915 = vld [vmem:[#allocation2 + $0x1e1] sm:$0xff]
  %v4916 = vld [vmem:[#allocation2 + $0x1e9] sm:$0xff]
  %v4917 = vld [vmem:[#allocation2 + $0x1f9] sm:$0xff]
  %v4918 = vld [vmem:[#allocation2 + $0x201] sm:$0xff]
  %v4919 = vld [vmem:[#allocation2 + $0x211] sm:$0xff]
  %v4920 = vld [vmem:[#allocation2 + $0x219] sm:$0xff]
  %v4921 = vld [vmem:[#allocation2 + $0x229] sm:$0xff]
  %v4922 = vld [vmem:[#allocation2 + $0x231] sm:$0xff]
  %v4923 = vld [vmem:[#allocation2 + $0x241] sm:$0xff]
  %v4924 = vld [vmem:[#allocation2 + $0x249] sm:$0xff]
  %v4925 = vld [vmem:[#allocation2 + $0x259] sm:$0xff]
  %v4926 = vld [vmem:[#allocation2 + $0x261] sm:$0xff]
  %v4927 = vld [vmem:[#allocation2 + $0x271] sm:$0xff]
  %v4928 = vld [vmem:[#allocation2 + $0x279] sm:$0xff]
  %v4929 = vld [vmem:[#allocation2 + $0x289] sm:$0xff]
  %v4930 = vld [vmem:[#allocation2 + $0x291] sm:$0xff]
  %v4931 = vld [vmem:[#allocation2 + $0x2a1] sm:$0xff]
  %v4932 = vld [vmem:[#allocation2 + $0x2a9] sm:$0xff]
  %v4933 = vld [vmem:[#allocation2 + $0x2b9] sm:$0xff]
  %v4934 = vld [vmem:[#allocation2 + $0x2c1] sm:$0xff]
  %v4935 = vld [vmem:[#allocation2 + $0x2d1] sm:$0xff]
  %v4936 = vld [vmem:[#allocation2 + $0x2d9] sm:$0xff]
  %v4937 = vld [vmem:[#allocation2 + $0x2e9] sm:$0xff]
  %v4938 = vld [vmem:[#allocation2 + $0x2f1] sm:$0xff]
  %v4939 = vld [vmem:[#allocation2 + $0x301] sm:$0xff]
  %v4940 = vld [vmem:[#allocation2 + $0x309] sm:$0xff]
  %v4941 = vld [vmem:[#allocation2 + $0x319] sm:$0xff]
  %v4942 = vld [vmem:[#allocation2 + $0x321] sm:$0xff]
  %v4943 = vpack.c.bf16 %v4880, %v4879
  %v4944 = vpack.c.bf16 %v4882, %v4881
  %v4945 = vpack.c.bf16 %v4884, %v4883
  %v4946 = vpack.c.bf16 %v4886, %v4885
  %v4947 = vpack.c.bf16 %v4888, %v4887
  %v4948 = vpack.c.bf16 %v4890, %v4889
  %v4949 = vpack.c.bf16 %v4892, %v4891
  %v4950 = vpack.c.bf16 %v4894, %v4893
  %v4951 = vpack.c.bf16 %v4896, %v4895
  %v4952 = vpack.c.bf16 %v4898, %v4897
  %v4953 = vpack.c.bf16 %v4900, %v4899
  %v4954 = vpack.c.bf16 %v4902, %v4901
  %v4955 = vpack.c.bf16 %v4904, %v4903
  %v4956 = vpack.c.bf16 %v4906, %v4905
  %v4957 = vpack.c.bf16 %v4908, %v4907
  %v4958 = vpack.c.bf16 %v4910, %v4909
  %v4959 = vpack.c.bf16 %v4912, %v4911
  %v4960 = vpack.c.bf16 %v4914, %v4913
  %v4961 = vpack.c.bf16 %v4916, %v4915
  %v4962 = vpack.c.bf16 %v4918, %v4917
  %v4963 = vpack.c.bf16 %v4920, %v4919
  %v4964 = vpack.c.bf16 %v4922, %v4921
  %v4965 = vpack.c.bf16 %v4924, %v4923
  %v4966 = vpack.c.bf16 %v4926, %v4925
  %v4967 = vpack.c.bf16 %v4928, %v4927
  %v4968 = vpack.c.bf16 %v4930, %v4929
  %v4969 = vpack.c.bf16 %v4932, %v4931
  %v4970 = vpack.c.bf16 %v4934, %v4933
  %v4971 = vpack.c.bf16 %v4936, %v4935
  %v4972 = vpack.c.bf16 %v4938, %v4937
  %v4973 = vpack.c.bf16 %v4940, %v4939
  %v4974 = vpack.c.bf16 %v4942, %v4941
  %s4975 = scalar_lea.vmem %s2, 8
  %v4976 = vld [vmem:[%s4975] sm:$0xf]
  %v4977 = vld [vmem:[%s4975 + $0x4] sm:$0xf]
  %v4980 = vunpack.c.l.b16 %v4976
  %v4981 = vunpack.c.l.b16 %v4977
  %v4982 = vpack.c.b16 %v4981, %v4980
  %v4985 = vsel %vm21, %v4943, 0
  %v4988 = vsel %vm21, %v4944, 0
  %v4991 = vsel %vm21, %v4945, 0
  %v4994 = vsel %vm21, %v4946, 0
  %v4997 = vsel %vm21, %v4947, 0
  %v5000 = vsel %vm21, %v4948, 0
  %v5003 = vsel %vm21, %v4949, 0
  %v5006 = vsel %vm21, %v4950, 0
  %v5009 = vsel %vm21, %v4951, 0
  %v5012 = vsel %vm21, %v4952, 0
  %v5015 = vsel %vm21, %v4953, 0
  %v5018 = vsel %vm21, %v4954, 0
  %v5021 = vsel %vm21, %v4955, 0
  %v5024 = vsel %vm21, %v4956, 0
  %v5027 = vsel %vm21, %v4957, 0
  %v5030 = vsel %vm21, %v4958, 0
  %v5033 = vsel %vm21, %v4959, 0
  %v5036 = vsel %vm21, %v4960, 0
  %v5039 = vsel %vm21, %v4961, 0
  %v5042 = vsel %vm21, %v4962, 0
  %v5045 = vsel %vm21, %v4963, 0
  %v5048 = vsel %vm21, %v4964, 0
  %v5051 = vsel %vm21, %v4965, 0
  %v5054 = vsel %vm21, %v4966, 0
  %v5057 = vsel %vm21, %v4967, 0
  %v5060 = vsel %vm21, %v4968, 0
  %v5063 = vsel %vm21, %v4969, 0
  %v5066 = vsel %vm21, %v4970, 0
  %v5069 = vsel %vm21, %v4971, 0
  %v5072 = vsel %vm21, %v4972, 0
  %v5075 = vsel %vm21, %v4973, 0
  %v5078 = vsel %vm21, %v4974, 0
  %5080 = vmatpush.bf16.msra.mxu0 0
  %5081 = vmatpush.bf16.msra.mxu0 0
  %5082 = vmatpush.bf16.msra.mxu0 0
  %5083 = vmatpush.bf16.msra.mxu0 0
  %5084 = vmatpush.bf16.msra.mxu0 0
  %5085 = vmatpush.bf16.msra.mxu0 0
  %5086 = vmatpush.bf16.msra.mxu0 0
  %5087 = vmatpush.bf16.msra.mxu0 %v4982
  %5088 = vmatmul.bf16.gmra.mxu0 %v4985
  %v5089 = vpop.f32.mrf.mxu0
  %v5090 = vadd.f32 0.0, %v5089
  %v5091 = vpop.f32.mrf.mxu0
  %v5092 = vadd.f32 0.0, %v5091
  %5093 = vmatmul.bf16.gmra.mxu0 %v4988
  %v5094 = vpop.f32.mrf.mxu0
  %v5095 = vadd.f32 0.0, %v5094
  %v5096 = vpop.f32.mrf.mxu0
  %v5097 = vadd.f32 0.0, %v5096
  %5098 = vmatmul.bf16.gmra.mxu0 %v4991
  %v5099 = vpop.f32.mrf.mxu0
  %v5100 = vadd.f32 0.0, %v5099
  %v5101 = vpop.f32.mrf.mxu0
  %v5102 = vadd.f32 0.0, %v5101
  %5103 = vmatmul.bf16.gmra.mxu0 %v4994
  %v5104 = vpop.f32.mrf.mxu0
  %v5105 = vadd.f32 0.0, %v5104
  %v5106 = vpop.f32.mrf.mxu0
  %v5107 = vadd.f32 0.0, %v5106
  %5108 = vmatmul.bf16.gmra.mxu0 %v4997
  %v5109 = vpop.f32.mrf.mxu0
  %v5110 = vadd.f32 0.0, %v5109
  %v5111 = vpop.f32.mrf.mxu0
  %v5112 = vadd.f32 0.0, %v5111
  %5113 = vmatmul.bf16.gmra.mxu0 %v5000
  %v5114 = vpop.f32.mrf.mxu0
  %v5115 = vadd.f32 0.0, %v5114
  %v5116 = vpop.f32.mrf.mxu0
  %v5117 = vadd.f32 0.0, %v5116
  %5118 = vmatmul.bf16.gmra.mxu0 %v5003
  %v5119 = vpop.f32.mrf.mxu0
  %v5120 = vadd.f32 0.0, %v5119
  %v5121 = vpop.f32.mrf.mxu0
  %v5122 = vadd.f32 0.0, %v5121
  %5123 = vmatmul.bf16.gmra.mxu0 %v5006
  %v5124 = vpop.f32.mrf.mxu0
  %v5125 = vadd.f32 0.0, %v5124
  %v5126 = vpop.f32.mrf.mxu0
  %v5127 = vadd.f32 0.0, %v5126
  %5128 = vmatmul.bf16.gmra.mxu0 %v5009
  %v5129 = vpop.f32.mrf.mxu0
  %v5130 = vadd.f32 0.0, %v5129
  %v5131 = vpop.f32.mrf.mxu0
  %v5132 = vadd.f32 0.0, %v5131
  %5133 = vmatmul.bf16.gmra.mxu0 %v5012
  %v5134 = vpop.f32.mrf.mxu0
  %v5135 = vadd.f32 0.0, %v5134
  %v5136 = vpop.f32.mrf.mxu0
  %v5137 = vadd.f32 0.0, %v5136
  %5138 = vmatmul.bf16.gmra.mxu0 %v5015
  %v5139 = vpop.f32.mrf.mxu0
  %v5140 = vadd.f32 0.0, %v5139
  %v5141 = vpop.f32.mrf.mxu0
  %v5142 = vadd.f32 0.0, %v5141
  %5143 = vmatmul.bf16.gmra.mxu0 %v5018
  %v5144 = vpop.f32.mrf.mxu0
  %v5145 = vadd.f32 0.0, %v5144
  %v5146 = vpop.f32.mrf.mxu0
  %v5147 = vadd.f32 0.0, %v5146
  %5148 = vmatmul.bf16.gmra.mxu0 %v5021
  %v5149 = vpop.f32.mrf.mxu0
  %v5150 = vadd.f32 0.0, %v5149
  %v5151 = vpop.f32.mrf.mxu0
  %v5152 = vadd.f32 0.0, %v5151
  %5153 = vmatmul.bf16.gmra.mxu0 %v5024
  %v5154 = vpop.f32.mrf.mxu0
  %v5155 = vadd.f32 0.0, %v5154
  %v5156 = vpop.f32.mrf.mxu0
  %v5157 = vadd.f32 0.0, %v5156
  %5158 = vmatmul.bf16.gmra.mxu0 %v5027
  %v5159 = vpop.f32.mrf.mxu0
  %v5160 = vadd.f32 0.0, %v5159
  %v5161 = vpop.f32.mrf.mxu0
  %v5162 = vadd.f32 0.0, %v5161
  %5163 = vmatmul.bf16.gmra.mxu0 %v5030
  %v5164 = vpop.f32.mrf.mxu0
  %v5165 = vadd.f32 0.0, %v5164
  %v5166 = vpop.f32.mrf.mxu0
  %v5167 = vadd.f32 0.0, %v5166
  %5168 = vmatmul.bf16.gmra.mxu0 %v5033
  %v5169 = vpop.f32.mrf.mxu0
  %v5170 = vadd.f32 0.0, %v5169
  %v5171 = vpop.f32.mrf.mxu0
  %v5172 = vadd.f32 0.0, %v5171
  %5173 = vmatmul.bf16.gmra.mxu0 %v5036
  %v5174 = vpop.f32.mrf.mxu0
  %v5175 = vadd.f32 0.0, %v5174
  %v5176 = vpop.f32.mrf.mxu0
  %v5177 = vadd.f32 0.0, %v5176
  %5178 = vmatmul.bf16.gmra.mxu0 %v5039
  %v5179 = vpop.f32.mrf.mxu0
  %v5180 = vadd.f32 0.0, %v5179
  %v5181 = vpop.f32.mrf.mxu0
  %v5182 = vadd.f32 0.0, %v5181
  %5183 = vmatmul.bf16.gmra.mxu0 %v5042
  %v5184 = vpop.f32.mrf.mxu0
  %v5185 = vadd.f32 0.0, %v5184
  %v5186 = vpop.f32.mrf.mxu0
  %v5187 = vadd.f32 0.0, %v5186
  %5188 = vmatmul.bf16.gmra.mxu0 %v5045
  %v5189 = vpop.f32.mrf.mxu0
  %v5190 = vadd.f32 0.0, %v5189
  %v5191 = vpop.f32.mrf.mxu0
  %v5192 = vadd.f32 0.0, %v5191
  %5193 = vmatmul.bf16.gmra.mxu0 %v5048
  %v5194 = vpop.f32.mrf.mxu0
  %v5195 = vadd.f32 0.0, %v5194
  %v5196 = vpop.f32.mrf.mxu0
  %v5197 = vadd.f32 0.0, %v5196
  %5198 = vmatmul.bf16.gmra.mxu0 %v5051
  %v5199 = vpop.f32.mrf.mxu0
  %v5200 = vadd.f32 0.0, %v5199
  %v5201 = vpop.f32.mrf.mxu0
  %v5202 = vadd.f32 0.0, %v5201
  %5203 = vmatmul.bf16.gmra.mxu0 %v5054
  %v5204 = vpop.f32.mrf.mxu0
  %v5205 = vadd.f32 0.0, %v5204
  %v5206 = vpop.f32.mrf.mxu0
  %v5207 = vadd.f32 0.0, %v5206
  %5208 = vmatmul.bf16.gmra.mxu0 %v5057
  %v5209 = vpop.f32.mrf.mxu0
  %v5210 = vadd.f32 0.0, %v5209
  %v5211 = vpop.f32.mrf.mxu0
  %v5212 = vadd.f32 0.0, %v5211
  %5213 = vmatmul.bf16.gmra.mxu0 %v5060
  %v5214 = vpop.f32.mrf.mxu0
  %v5215 = vadd.f32 0.0, %v5214
  %v5216 = vpop.f32.mrf.mxu0
  %v5217 = vadd.f32 0.0, %v5216
  %5218 = vmatmul.bf16.gmra.mxu0 %v5063
  %v5219 = vpop.f32.mrf.mxu0
  %v5220 = vadd.f32 0.0, %v5219
  %v5221 = vpop.f32.mrf.mxu0
  %v5222 = vadd.f32 0.0, %v5221
  %5223 = vmatmul.bf16.gmra.mxu0 %v5066
  %v5224 = vpop.f32.mrf.mxu0
  %v5225 = vadd.f32 0.0, %v5224
  %v5226 = vpop.f32.mrf.mxu0
  %v5227 = vadd.f32 0.0, %v5226
  %5228 = vmatmul.bf16.gmra.mxu0 %v5069
  %v5229 = vpop.f32.mrf.mxu0
  %v5230 = vadd.f32 0.0, %v5229
  %v5231 = vpop.f32.mrf.mxu0
  %v5232 = vadd.f32 0.0, %v5231
  %5233 = vmatmul.bf16.gmra.mxu0 %v5072
  %v5234 = vpop.f32.mrf.mxu0
  %v5235 = vadd.f32 0.0, %v5234
  %v5236 = vpop.f32.mrf.mxu0
  %v5237 = vadd.f32 0.0, %v5236
  %5238 = vmatmul.bf16.gmra.mxu0 %v5075
  %v5239 = vpop.f32.mrf.mxu0
  %v5240 = vadd.f32 0.0, %v5239
  %v5241 = vpop.f32.mrf.mxu0
  %v5242 = vadd.f32 0.0, %v5241
  %5243 = vmatmul.bf16.gmra.mxu0 %v5078
  %v5244 = vpop.f32.mrf.mxu0
  %v5245 = vadd.f32 0.0, %v5244
  %v5246 = vpop.f32.mrf.mxu0
  %v5247 = vadd.f32 0.0, %v5246
  %5248 = vdwg.mxu0
  %v5251 = vunpack.c.l.b16 %v4877
  %v5252 = vunpack.c.l.b16 %v4878
  %v5253 = vpack.c.b16 %v5252, %v5251
  %v5256 = vsel %vm21, %v4845, 0
  %v5259 = vsel %vm21, %v4846, 0
  %v5262 = vsel %vm21, %v4847, 0
  %v5265 = vsel %vm21, %v4848, 0
  %v5268 = vsel %vm21, %v4849, 0
  %v5271 = vsel %vm21, %v4850, 0
  %v5274 = vsel %vm21, %v4851, 0
  %v5277 = vsel %vm21, %v4852, 0
  %v5280 = vsel %vm21, %v4853, 0
  %v5283 = vsel %vm21, %v4854, 0
  %v5286 = vsel %vm21, %v4855, 0
  %v5289 = vsel %vm21, %v4856, 0
  %v5292 = vsel %vm21, %v4857, 0
  %v5295 = vsel %vm21, %v4858, 0
  %v5298 = vsel %vm21, %v4859, 0
  %v5301 = vsel %vm21, %v4860, 0
  %v5304 = vsel %vm21, %v4861, 0
  %v5307 = vsel %vm21, %v4862, 0
  %v5310 = vsel %vm21, %v4863, 0
  %v5313 = vsel %vm21, %v4864, 0
  %v5316 = vsel %vm21, %v4865, 0
  %v5319 = vsel %vm21, %v4866, 0
  %v5322 = vsel %vm21, %v4867, 0
  %v5325 = vsel %vm21, %v4868, 0
  %v5328 = vsel %vm21, %v4869, 0
  %v5331 = vsel %vm21, %v4870, 0
  %v5334 = vsel %vm21, %v4871, 0
  %v5337 = vsel %vm21, %v4872, 0
  %v5340 = vsel %vm21, %v4873, 0
  %v5343 = vsel %vm21, %v4874, 0
  %v5346 = vsel %vm21, %v4875, 0
  %v5349 = vsel %vm21, %v4876, 0
  %5351 = vmatpush.bf16.msra.mxu0 0
  %5352 = vmatpush.bf16.msra.mxu0 0
  %5353 = vmatpush.bf16.msra.mxu0 0
  %5354 = vmatpush.bf16.msra.mxu0 0
  %5355 = vmatpush.bf16.msra.mxu0 0
  %5356 = vmatpush.bf16.msra.mxu0 0
  %5357 = vmatpush.bf16.msra.mxu0 0
  %5358 = vmatpush.bf16.msra.mxu0 %v5253
  %5359 = vmatmul.bf16.gmra.mxu0 %v5256
  %v5360 = vpop.f32.mrf.mxu0
  %v5361 = vadd.f32 %v5090, %v5360
  %v5362 = vpop.f32.mrf.mxu0
  %v5363 = vadd.f32 %v5092, %v5362
  %5364 = vmatmul.bf16.gmra.mxu0 %v5259
  %v5365 = vpop.f32.mrf.mxu0
  %v5366 = vadd.f32 %v5095, %v5365
  %v5367 = vpop.f32.mrf.mxu0
  %v5368 = vadd.f32 %v5097, %v5367
  %5369 = vmatmul.bf16.gmra.mxu0 %v5262
  %v5370 = vpop.f32.mrf.mxu0
  %v5371 = vadd.f32 %v5100, %v5370
  %v5372 = vpop.f32.mrf.mxu0
  %v5373 = vadd.f32 %v5102, %v5372
  %5374 = vmatmul.bf16.gmra.mxu0 %v5265
  %v5375 = vpop.f32.mrf.mxu0
  %v5376 = vadd.f32 %v5105, %v5375
  %v5377 = vpop.f32.mrf.mxu0
  %v5378 = vadd.f32 %v5107, %v5377
  %5379 = vmatmul.bf16.gmra.mxu0 %v5268
  %v5380 = vpop.f32.mrf.mxu0
  %v5381 = vadd.f32 %v5110, %v5380
  %v5382 = vpop.f32.mrf.mxu0
  %v5383 = vadd.f32 %v5112, %v5382
  %5384 = vmatmul.bf16.gmra.mxu0 %v5271
  %v5385 = vpop.f32.mrf.mxu0
  %v5386 = vadd.f32 %v5115, %v5385
  %v5387 = vpop.f32.mrf.mxu0
  %v5388 = vadd.f32 %v5117, %v5387
  %5389 = vmatmul.bf16.gmra.mxu0 %v5274
  %v5390 = vpop.f32.mrf.mxu0
  %v5391 = vadd.f32 %v5120, %v5390
  %v5392 = vpop.f32.mrf.mxu0
  %v5393 = vadd.f32 %v5122, %v5392
  %5394 = vmatmul.bf16.gmra.mxu0 %v5277
  %v5395 = vpop.f32.mrf.mxu0
  %v5396 = vadd.f32 %v5125, %v5395
  %v5397 = vpop.f32.mrf.mxu0
  %v5398 = vadd.f32 %v5127, %v5397
  %5399 = vmatmul.bf16.gmra.mxu0 %v5280
  %v5400 = vpop.f32.mrf.mxu0
  %v5401 = vadd.f32 %v5130, %v5400
  %v5402 = vpop.f32.mrf.mxu0
  %v5403 = vadd.f32 %v5132, %v5402
  %5404 = vmatmul.bf16.gmra.mxu0 %v5283
  %v5405 = vpop.f32.mrf.mxu0
  %v5406 = vadd.f32 %v5135, %v5405
  %v5407 = vpop.f32.mrf.mxu0
  %v5408 = vadd.f32 %v5137, %v5407
  %5409 = vmatmul.bf16.gmra.mxu0 %v5286
  %v5410 = vpop.f32.mrf.mxu0
  %v5411 = vadd.f32 %v5140, %v5410
  %v5412 = vpop.f32.mrf.mxu0
  %v5413 = vadd.f32 %v5142, %v5412
  %5414 = vmatmul.bf16.gmra.mxu0 %v5289
  %v5415 = vpop.f32.mrf.mxu0
  %v5416 = vadd.f32 %v5145, %v5415
  %v5417 = vpop.f32.mrf.mxu0
  %v5418 = vadd.f32 %v5147, %v5417
  %5419 = vmatmul.bf16.gmra.mxu0 %v5292
  %v5420 = vpop.f32.mrf.mxu0
  %v5421 = vadd.f32 %v5150, %v5420
  %v5422 = vpop.f32.mrf.mxu0
  %v5423 = vadd.f32 %v5152, %v5422
  %5424 = vmatmul.bf16.gmra.mxu0 %v5295
  %v5425 = vpop.f32.mrf.mxu0
  %v5426 = vadd.f32 %v5155, %v5425
  %v5427 = vpop.f32.mrf.mxu0
  %v5428 = vadd.f32 %v5157, %v5427
  %5429 = vmatmul.bf16.gmra.mxu0 %v5298
  %v5430 = vpop.f32.mrf.mxu0
  %v5431 = vadd.f32 %v5160, %v5430
  %v5432 = vpop.f32.mrf.mxu0
  %v5433 = vadd.f32 %v5162, %v5432
  %5434 = vmatmul.bf16.gmra.mxu0 %v5301
  %v5435 = vpop.f32.mrf.mxu0
  %v5436 = vadd.f32 %v5165, %v5435
  %v5437 = vpop.f32.mrf.mxu0
  %v5438 = vadd.f32 %v5167, %v5437
  %5439 = vmatmul.bf16.gmra.mxu0 %v5304
  %v5440 = vpop.f32.mrf.mxu0
  %v5441 = vadd.f32 %v5170, %v5440
  %v5442 = vpop.f32.mrf.mxu0
  %v5443 = vadd.f32 %v5172, %v5442
  %5444 = vmatmul.bf16.gmra.mxu0 %v5307
  %v5445 = vpop.f32.mrf.mxu0
  %v5446 = vadd.f32 %v5175, %v5445
  %v5447 = vpop.f32.mrf.mxu0
  %v5448 = vadd.f32 %v5177, %v5447
  %5449 = vmatmul.bf16.gmra.mxu0 %v5310
  %v5450 = vpop.f32.mrf.mxu0
  %v5451 = vadd.f32 %v5180, %v5450
  %v5452 = vpop.f32.mrf.mxu0
  %v5453 = vadd.f32 %v5182, %v5452
  %5454 = vmatmul.bf16.gmra.mxu0 %v5313
  %v5455 = vpop.f32.mrf.mxu0
  %v5456 = vadd.f32 %v5185, %v5455
  %v5457 = vpop.f32.mrf.mxu0
  %v5458 = vadd.f32 %v5187, %v5457
  %5459 = vmatmul.bf16.gmra.mxu0 %v5316
  %v5460 = vpop.f32.mrf.mxu0
  %v5461 = vadd.f32 %v5190, %v5460
  %v5462 = vpop.f32.mrf.mxu0
  %v5463 = vadd.f32 %v5192, %v5462
  %5464 = vmatmul.bf16.gmra.mxu0 %v5319
  %v5465 = vpop.f32.mrf.mxu0
  %v5466 = vadd.f32 %v5195, %v5465
  %v5467 = vpop.f32.mrf.mxu0
  %v5468 = vadd.f32 %v5197, %v5467
  %5469 = vmatmul.bf16.gmra.mxu0 %v5322
  %v5470 = vpop.f32.mrf.mxu0
  %v5471 = vadd.f32 %v5200, %v5470
  %v5472 = vpop.f32.mrf.mxu0
  %v5473 = vadd.f32 %v5202, %v5472
  %5474 = vmatmul.bf16.gmra.mxu0 %v5325
  %v5475 = vpop.f32.mrf.mxu0
  %v5476 = vadd.f32 %v5205, %v5475
  %v5477 = vpop.f32.mrf.mxu0
  %v5478 = vadd.f32 %v5207, %v5477
  %5479 = vmatmul.bf16.gmra.mxu0 %v5328
  %v5480 = vpop.f32.mrf.mxu0
  %v5481 = vadd.f32 %v5210, %v5480
  %v5482 = vpop.f32.mrf.mxu0
  %v5483 = vadd.f32 %v5212, %v5482
  %5484 = vmatmul.bf16.gmra.mxu0 %v5331
  %v5485 = vpop.f32.mrf.mxu0
  %v5486 = vadd.f32 %v5215, %v5485
  %v5487 = vpop.f32.mrf.mxu0
  %v5488 = vadd.f32 %v5217, %v5487
  %5489 = vmatmul.bf16.gmra.mxu0 %v5334
  %v5490 = vpop.f32.mrf.mxu0
  %v5491 = vadd.f32 %v5220, %v5490
  %v5492 = vpop.f32.mrf.mxu0
  %v5493 = vadd.f32 %v5222, %v5492
  %5494 = vmatmul.bf16.gmra.mxu0 %v5337
  %v5495 = vpop.f32.mrf.mxu0
  %v5496 = vadd.f32 %v5225, %v5495
  %v5497 = vpop.f32.mrf.mxu0
  %v5498 = vadd.f32 %v5227, %v5497
  %5499 = vmatmul.bf16.gmra.mxu0 %v5340
  %v5500 = vpop.f32.mrf.mxu0
  %v5501 = vadd.f32 %v5230, %v5500
  %v5502 = vpop.f32.mrf.mxu0
  %v5503 = vadd.f32 %v5232, %v5502
  %5504 = vmatmul.bf16.gmra.mxu0 %v5343
  %v5505 = vpop.f32.mrf.mxu0
  %v5506 = vadd.f32 %v5235, %v5505
  %v5507 = vpop.f32.mrf.mxu0
  %v5508 = vadd.f32 %v5237, %v5507
  %5509 = vmatmul.bf16.gmra.mxu0 %v5346
  %v5510 = vpop.f32.mrf.mxu0
  %v5511 = vadd.f32 %v5240, %v5510
  %v5512 = vpop.f32.mrf.mxu0
  %v5513 = vadd.f32 %v5242, %v5512
  %5514 = vmatmul.bf16.gmra.mxu0 %v5349
  %v5515 = vpop.f32.mrf.mxu0
  %v5516 = vadd.f32 %v5245, %v5515
  %v5517 = vpop.f32.mrf.mxu0
  %v5518 = vadd.f32 %v5247, %v5517
  %5519 = vdwg.mxu0
  %v5520 = vld [vmem:[#allocation2 + $0x2] sm:$0xff]
  %v5521 = vld [vmem:[#allocation2 + $0xa] sm:$0xff]
  %v5522 = vld [vmem:[#allocation2 + $0x1a] sm:$0xff]
  %v5523 = vld [vmem:[#allocation2 + $0x22] sm:$0xff]
  %v5524 = vld [vmem:[#allocation2 + $0x32] sm:$0xff]
  %v5525 = vld [vmem:[#allocation2 + $0x3a] sm:$0xff]
  %v5526 = vld [vmem:[#allocation2 + $0x4a] sm:$0xff]
  %v5527 = vld [vmem:[#allocation2 + $0x52] sm:$0xff]
  %v5528 = vld [vmem:[#allocation2 + $0x62] sm:$0xff]
  %v5529 = vld [vmem:[#allocation2 + $0x6a] sm:$0xff]
  %v5530 = vld [vmem:[#allocation2 + $0x7a] sm:$0xff]
  %v5531 = vld [vmem:[#allocation2 + $0x82] sm:$0xff]
  %v5532 = vld [vmem:[#allocation2 + $0x92] sm:$0xff]
  %v5533 = vld [vmem:[#allocation2 + $0x9a] sm:$0xff]
  %v5534 = vld [vmem:[#allocation2 + $0xaa] sm:$0xff]
  %v5535 = vld [vmem:[#allocation2 + $0xb2] sm:$0xff]
  %v5536 = vld [vmem:[#allocation2 + $0xc2] sm:$0xff]
  %v5537 = vld [vmem:[#allocation2 + $0xca] sm:$0xff]
  %v5538 = vld [vmem:[#allocation2 + $0xda] sm:$0xff]
  %v5539 = vld [vmem:[#allocation2 + $0xe2] sm:$0xff]
  %v5540 = vld [vmem:[#allocation2 + $0xf2] sm:$0xff]
  %v5541 = vld [vmem:[#allocation2 + $0xfa] sm:$0xff]
  %v5542 = vld [vmem:[#allocation2 + $0x10a] sm:$0xff]
  %v5543 = vld [vmem:[#allocation2 + $0x112] sm:$0xff]
  %v5544 = vld [vmem:[#allocation2 + $0x122] sm:$0xff]
  %v5545 = vld [vmem:[#allocation2 + $0x12a] sm:$0xff]
  %v5546 = vld [vmem:[#allocation2 + $0x13a] sm:$0xff]
  %v5547 = vld [vmem:[#allocation2 + $0x142] sm:$0xff]
  %v5548 = vld [vmem:[#allocation2 + $0x152] sm:$0xff]
  %v5549 = vld [vmem:[#allocation2 + $0x15a] sm:$0xff]
  %v5550 = vld [vmem:[#allocation2 + $0x16a] sm:$0xff]
  %v5551 = vld [vmem:[#allocation2 + $0x172] sm:$0xff]
  %v5552 = vld [vmem:[#allocation2 + $0x1b2] sm:$0xff]
  %v5553 = vld [vmem:[#allocation2 + $0x1ba] sm:$0xff]
  %v5554 = vld [vmem:[#allocation2 + $0x1ca] sm:$0xff]
  %v5555 = vld [vmem:[#allocation2 + $0x1d2] sm:$0xff]
  %v5556 = vld [vmem:[#allocation2 + $0x1e2] sm:$0xff]
  %v5557 = vld [vmem:[#allocation2 + $0x1ea] sm:$0xff]
  %v5558 = vld [vmem:[#allocation2 + $0x1fa] sm:$0xff]
  %v5559 = vld [vmem:[#allocation2 + $0x202] sm:$0xff]
  %v5560 = vld [vmem:[#allocation2 + $0x212] sm:$0xff]
  %v5561 = vld [vmem:[#allocation2 + $0x21a] sm:$0xff]
  %v5562 = vld [vmem:[#allocation2 + $0x22a] sm:$0xff]
  %v5563 = vld [vmem:[#allocation2 + $0x232] sm:$0xff]
  %v5564 = vld [vmem:[#allocation2 + $0x242] sm:$0xff]
  %v5565 = vld [vmem:[#allocation2 + $0x24a] sm:$0xff]
  %v5566 = vld [vmem:[#allocation2 + $0x25a] sm:$0xff]
  %v5567 = vld [vmem:[#allocation2 + $0x262] sm:$0xff]
  %v5568 = vld [vmem:[#allocation2 + $0x272] sm:$0xff]
  %v5569 = vld [vmem:[#allocation2 + $0x27a] sm:$0xff]
  %v5570 = vld [vmem:[#allocation2 + $0x28a] sm:$0xff]
  %v5571 = vld [vmem:[#allocation2 + $0x292] sm:$0xff]
  %v5572 = vld [vmem:[#allocation2 + $0x2a2] sm:$0xff]
  %v5573 = vld [vmem:[#allocation2 + $0x2aa] sm:$0xff]
  %v5574 = vld [vmem:[#allocation2 + $0x2ba] sm:$0xff]
  %v5575 = vld [vmem:[#allocation2 + $0x2c2] sm:$0xff]
  %v5576 = vld [vmem:[#allocation2 + $0x2d2] sm:$0xff]
  %v5577 = vld [vmem:[#allocation2 + $0x2da] sm:$0xff]
  %v5578 = vld [vmem:[#allocation2 + $0x2ea] sm:$0xff]
  %v5579 = vld [vmem:[#allocation2 + $0x2f2] sm:$0xff]
  %v5580 = vld [vmem:[#allocation2 + $0x302] sm:$0xff]
  %v5581 = vld [vmem:[#allocation2 + $0x30a] sm:$0xff]
  %v5582 = vld [vmem:[#allocation2 + $0x31a] sm:$0xff]
  %v5583 = vld [vmem:[#allocation2 + $0x322] sm:$0xff]
  %v5584 = vpack.c.bf16 %v5521, %v5520
  %v5585 = vpack.c.bf16 %v5523, %v5522
  %v5586 = vpack.c.bf16 %v5525, %v5524
  %v5587 = vpack.c.bf16 %v5527, %v5526
  %v5588 = vpack.c.bf16 %v5529, %v5528
  %v5589 = vpack.c.bf16 %v5531, %v5530
  %v5590 = vpack.c.bf16 %v5533, %v5532
  %v5591 = vpack.c.bf16 %v5535, %v5534
  %v5592 = vpack.c.bf16 %v5537, %v5536
  %v5593 = vpack.c.bf16 %v5539, %v5538
  %v5594 = vpack.c.bf16 %v5541, %v5540
  %v5595 = vpack.c.bf16 %v5543, %v5542
  %v5596 = vpack.c.bf16 %v5545, %v5544
  %v5597 = vpack.c.bf16 %v5547, %v5546
  %v5598 = vpack.c.bf16 %v5549, %v5548
  %v5599 = vpack.c.bf16 %v5551, %v5550
  %v5600 = vpack.c.bf16 %v5553, %v5552
  %v5601 = vpack.c.bf16 %v5555, %v5554
  %v5602 = vpack.c.bf16 %v5557, %v5556
  %v5603 = vpack.c.bf16 %v5559, %v5558
  %v5604 = vpack.c.bf16 %v5561, %v5560
  %v5605 = vpack.c.bf16 %v5563, %v5562
  %v5606 = vpack.c.bf16 %v5565, %v5564
  %v5607 = vpack.c.bf16 %v5567, %v5566
  %v5608 = vpack.c.bf16 %v5569, %v5568
  %v5609 = vpack.c.bf16 %v5571, %v5570
  %v5610 = vpack.c.bf16 %v5573, %v5572
  %v5611 = vpack.c.bf16 %v5575, %v5574
  %v5612 = vpack.c.bf16 %v5577, %v5576
  %v5613 = vpack.c.bf16 %v5579, %v5578
  %v5614 = vpack.c.bf16 %v5581, %v5580
  %v5615 = vpack.c.bf16 %v5583, %v5582
  %s5616 = scalar_lea.vmem %s2, 16
  %v5617 = vld [vmem:[%s5616] sm:$0xf]
  %v5618 = vld [vmem:[%s5616 + $0x4] sm:$0xf]
  %v5621 = vunpack.c.l.b16 %v5617
  %v5622 = vunpack.c.l.b16 %v5618
  %v5623 = vpack.c.b16 %v5622, %v5621
  %v5626 = vsel %vm21, %v5584, 0
  %v5629 = vsel %vm21, %v5585, 0
  %v5632 = vsel %vm21, %v5586, 0
  %v5635 = vsel %vm21, %v5587, 0
  %v5638 = vsel %vm21, %v5588, 0
  %v5641 = vsel %vm21, %v5589, 0
  %v5644 = vsel %vm21, %v5590, 0
  %v5647 = vsel %vm21, %v5591, 0
  %v5650 = vsel %vm21, %v5592, 0
  %v5653 = vsel %vm21, %v5593, 0
  %v5656 = vsel %vm21, %v5594, 0
  %v5659 = vsel %vm21, %v5595, 0
  %v5662 = vsel %vm21, %v5596, 0
  %v5665 = vsel %vm21, %v5597, 0
  %v5668 = vsel %vm21, %v5598, 0
  %v5671 = vsel %vm21, %v5599, 0
  %v5674 = vsel %vm21, %v5600, 0
  %v5677 = vsel %vm21, %v5601, 0
  %v5680 = vsel %vm21, %v5602, 0
  %v5683 = vsel %vm21, %v5603, 0
  %v5686 = vsel %vm21, %v5604, 0
  %v5689 = vsel %vm21, %v5605, 0
  %v5692 = vsel %vm21, %v5606, 0
  %v5695 = vsel %vm21, %v5607, 0
  %v5698 = vsel %vm21, %v5608, 0
  %v5701 = vsel %vm21, %v5609, 0
  %v5704 = vsel %vm21, %v5610, 0
  %v5707 = vsel %vm21, %v5611, 0
  %v5710 = vsel %vm21, %v5612, 0
  %v5713 = vsel %vm21, %v5613, 0
  %v5716 = vsel %vm21, %v5614, 0
  %v5719 = vsel %vm21, %v5615, 0
  %5721 = vmatpush.bf16.msra.mxu0 0
  %5722 = vmatpush.bf16.msra.mxu0 0
  %5723 = vmatpush.bf16.msra.mxu0 0
  %5724 = vmatpush.bf16.msra.mxu0 0
  %5725 = vmatpush.bf16.msra.mxu0 0
  %5726 = vmatpush.bf16.msra.mxu0 0
  %5727 = vmatpush.bf16.msra.mxu0 0
  %5728 = vmatpush.bf16.msra.mxu0 %v5623
  %5729 = vmatmul.bf16.gmra.mxu0 %v5626
  %v5730 = vpop.f32.mrf.mxu0
  %v5731 = vadd.f32 0.0, %v5730
  %v5732 = vpop.f32.mrf.mxu0
  %v5733 = vadd.f32 0.0, %v5732
  %5734 = vmatmul.bf16.gmra.mxu0 %v5629
  %v5735 = vpop.f32.mrf.mxu0
  %v5736 = vadd.f32 0.0, %v5735
  %v5737 = vpop.f32.mrf.mxu0
  %v5738 = vadd.f32 0.0, %v5737
  %5739 = vmatmul.bf16.gmra.mxu0 %v5632
  %v5740 = vpop.f32.mrf.mxu0
  %v5741 = vadd.f32 0.0, %v5740
  %v5742 = vpop.f32.mrf.mxu0
  %v5743 = vadd.f32 0.0, %v5742
  %5744 = vmatmul.bf16.gmra.mxu0 %v5635
  %v5745 = vpop.f32.mrf.mxu0
  %v5746 = vadd.f32 0.0, %v5745
  %v5747 = vpop.f32.mrf.mxu0
  %v5748 = vadd.f32 0.0, %v5747
  %5749 = vmatmul.bf16.gmra.mxu0 %v5638
  %v5750 = vpop.f32.mrf.mxu0
  %v5751 = vadd.f32 0.0, %v5750
  %v5752 = vpop.f32.mrf.mxu0
  %v5753 = vadd.f32 0.0, %v5752
  %5754 = vmatmul.bf16.gmra.mxu0 %v5641
  %v5755 = vpop.f32.mrf.mxu0
  %v5756 = vadd.f32 0.0, %v5755
  %v5757 = vpop.f32.mrf.mxu0
  %v5758 = vadd.f32 0.0, %v5757
  %5759 = vmatmul.bf16.gmra.mxu0 %v5644
  %v5760 = vpop.f32.mrf.mxu0
  %v5761 = vadd.f32 0.0, %v5760
  %v5762 = vpop.f32.mrf.mxu0
  %v5763 = vadd.f32 0.0, %v5762
  %5764 = vmatmul.bf16.gmra.mxu0 %v5647
  %v5765 = vpop.f32.mrf.mxu0
  %v5766 = vadd.f32 0.0, %v5765
  %v5767 = vpop.f32.mrf.mxu0
  %v5768 = vadd.f32 0.0, %v5767
  %5769 = vmatmul.bf16.gmra.mxu0 %v5650
  %v5770 = vpop.f32.mrf.mxu0
  %v5771 = vadd.f32 0.0, %v5770
  %v5772 = vpop.f32.mrf.mxu0
  %v5773 = vadd.f32 0.0, %v5772
  %5774 = vmatmul.bf16.gmra.mxu0 %v5653
  %v5775 = vpop.f32.mrf.mxu0
  %v5776 = vadd.f32 0.0, %v5775
  %v5777 = vpop.f32.mrf.mxu0
  %v5778 = vadd.f32 0.0, %v5777
  %5779 = vmatmul.bf16.gmra.mxu0 %v5656
  %v5780 = vpop.f32.mrf.mxu0
  %v5781 = vadd.f32 0.0, %v5780
  %v5782 = vpop.f32.mrf.mxu0
  %v5783 = vadd.f32 0.0, %v5782
  %5784 = vmatmul.bf16.gmra.mxu0 %v5659
  %v5785 = vpop.f32.mrf.mxu0
  %v5786 = vadd.f32 0.0, %v5785
  %v5787 = vpop.f32.mrf.mxu0
  %v5788 = vadd.f32 0.0, %v5787
  %5789 = vmatmul.bf16.gmra.mxu0 %v5662
  %v5790 = vpop.f32.mrf.mxu0
  %v5791 = vadd.f32 0.0, %v5790
  %v5792 = vpop.f32.mrf.mxu0
  %v5793 = vadd.f32 0.0, %v5792
  %5794 = vmatmul.bf16.gmra.mxu0 %v5665
  %v5795 = vpop.f32.mrf.mxu0
  %v5796 = vadd.f32 0.0, %v5795
  %v5797 = vpop.f32.mrf.mxu0
  %v5798 = vadd.f32 0.0, %v5797
  %5799 = vmatmul.bf16.gmra.mxu0 %v5668
  %v5800 = vpop.f32.mrf.mxu0
  %v5801 = vadd.f32 0.0, %v5800
  %v5802 = vpop.f32.mrf.mxu0
  %v5803 = vadd.f32 0.0, %v5802
  %5804 = vmatmul.bf16.gmra.mxu0 %v5671
  %v5805 = vpop.f32.mrf.mxu0
  %v5806 = vadd.f32 0.0, %v5805
  %v5807 = vpop.f32.mrf.mxu0
  %v5808 = vadd.f32 0.0, %v5807
  %5809 = vmatmul.bf16.gmra.mxu0 %v5674
  %v5810 = vpop.f32.mrf.mxu0
  %v5811 = vadd.f32 0.0, %v5810
  %v5812 = vpop.f32.mrf.mxu0
  %v5813 = vadd.f32 0.0, %v5812
  %5814 = vmatmul.bf16.gmra.mxu0 %v5677
  %v5815 = vpop.f32.mrf.mxu0
  %v5816 = vadd.f32 0.0, %v5815
  %v5817 = vpop.f32.mrf.mxu0
  %v5818 = vadd.f32 0.0, %v5817
  %5819 = vmatmul.bf16.gmra.mxu0 %v5680
  %v5820 = vpop.f32.mrf.mxu0
  %v5821 = vadd.f32 0.0, %v5820
  %v5822 = vpop.f32.mrf.mxu0
  %v5823 = vadd.f32 0.0, %v5822
  %5824 = vmatmul.bf16.gmra.mxu0 %v5683
  %v5825 = vpop.f32.mrf.mxu0
  %v5826 = vadd.f32 0.0, %v5825
  %v5827 = vpop.f32.mrf.mxu0
  %v5828 = vadd.f32 0.0, %v5827
  %5829 = vmatmul.bf16.gmra.mxu0 %v5686
  %v5830 = vpop.f32.mrf.mxu0
  %v5831 = vadd.f32 0.0, %v5830
  %v5832 = vpop.f32.mrf.mxu0
  %v5833 = vadd.f32 0.0, %v5832
  %5834 = vmatmul.bf16.gmra.mxu0 %v5689
  %v5835 = vpop.f32.mrf.mxu0
  %v5836 = vadd.f32 0.0, %v5835
  %v5837 = vpop.f32.mrf.mxu0
  %v5838 = vadd.f32 0.0, %v5837
  %5839 = vmatmul.bf16.gmra.mxu0 %v5692
  %v5840 = vpop.f32.mrf.mxu0
  %v5841 = vadd.f32 0.0, %v5840
  %v5842 = vpop.f32.mrf.mxu0
  %v5843 = vadd.f32 0.0, %v5842
  %5844 = vmatmul.bf16.gmra.mxu0 %v5695
  %v5845 = vpop.f32.mrf.mxu0
  %v5846 = vadd.f32 0.0, %v5845
  %v5847 = vpop.f32.mrf.mxu0
  %v5848 = vadd.f32 0.0, %v5847
  %5849 = vmatmul.bf16.gmra.mxu0 %v5698
  %v5850 = vpop.f32.mrf.mxu0
  %v5851 = vadd.f32 0.0, %v5850
  %v5852 = vpop.f32.mrf.mxu0
  %v5853 = vadd.f32 0.0, %v5852
  %5854 = vmatmul.bf16.gmra.mxu0 %v5701
  %v5855 = vpop.f32.mrf.mxu0
  %v5856 = vadd.f32 0.0, %v5855
  %v5857 = vpop.f32.mrf.mxu0
  %v5858 = vadd.f32 0.0, %v5857
  %5859 = vmatmul.bf16.gmra.mxu0 %v5704
  %v5860 = vpop.f32.mrf.mxu0
  %v5861 = vadd.f32 0.0, %v5860
  %v5862 = vpop.f32.mrf.mxu0
  %v5863 = vadd.f32 0.0, %v5862
  %5864 = vmatmul.bf16.gmra.mxu0 %v5707
  %v5865 = vpop.f32.mrf.mxu0
  %v5866 = vadd.f32 0.0, %v5865
  %v5867 = vpop.f32.mrf.mxu0
  %v5868 = vadd.f32 0.0, %v5867
  %5869 = vmatmul.bf16.gmra.mxu0 %v5710
  %v5870 = vpop.f32.mrf.mxu0
  %v5871 = vadd.f32 0.0, %v5870
  %v5872 = vpop.f32.mrf.mxu0
  %v5873 = vadd.f32 0.0, %v5872
  %5874 = vmatmul.bf16.gmra.mxu0 %v5713
  %v5875 = vpop.f32.mrf.mxu0
  %v5876 = vadd.f32 0.0, %v5875
  %v5877 = vpop.f32.mrf.mxu0
  %v5878 = vadd.f32 0.0, %v5877
  %5879 = vmatmul.bf16.gmra.mxu0 %v5716
  %v5880 = vpop.f32.mrf.mxu0
  %v5881 = vadd.f32 0.0, %v5880
  %v5882 = vpop.f32.mrf.mxu0
  %v5883 = vadd.f32 0.0, %v5882
  %5884 = vmatmul.bf16.gmra.mxu0 %v5719
  %v5885 = vpop.f32.mrf.mxu0
  %v5886 = vadd.f32 0.0, %v5885
  %v5887 = vpop.f32.mrf.mxu0
  %v5888 = vadd.f32 0.0, %v5887
  %5889 = vdwg.mxu0
  %v5890 = vadd.f32 %v5361, %v5731
  %v5891 = vadd.f32 %v5363, %v5733
  %v5892 = vadd.f32 %v5366, %v5736
  %v5893 = vadd.f32 %v5368, %v5738
  %v5894 = vadd.f32 %v5371, %v5741
  %v5895 = vadd.f32 %v5373, %v5743
  %v5896 = vadd.f32 %v5376, %v5746
  %v5897 = vadd.f32 %v5378, %v5748
  %v5898 = vadd.f32 %v5381, %v5751
  %v5899 = vadd.f32 %v5383, %v5753
  %v5900 = vadd.f32 %v5386, %v5756
  %v5901 = vadd.f32 %v5388, %v5758
  %v5902 = vadd.f32 %v5391, %v5761
  %v5903 = vadd.f32 %v5393, %v5763
  %v5904 = vadd.f32 %v5396, %v5766
  %v5905 = vadd.f32 %v5398, %v5768
  %v5906 = vadd.f32 %v5401, %v5771
  %v5907 = vadd.f32 %v5403, %v5773
  %v5908 = vadd.f32 %v5406, %v5776
  %v5909 = vadd.f32 %v5408, %v5778
  %v5910 = vadd.f32 %v5411, %v5781
  %v5911 = vadd.f32 %v5413, %v5783
  %v5912 = vadd.f32 %v5416, %v5786
  %v5913 = vadd.f32 %v5418, %v5788
  %v5914 = vadd.f32 %v5421, %v5791
  %v5915 = vadd.f32 %v5423, %v5793
  %v5916 = vadd.f32 %v5426, %v5796
  %v5917 = vadd.f32 %v5428, %v5798
  %v5918 = vadd.f32 %v5431, %v5801
  %v5919 = vadd.f32 %v5433, %v5803
  %v5920 = vadd.f32 %v5436, %v5806
  %v5921 = vadd.f32 %v5438, %v5808
  %v5922 = vadd.f32 %v5441, %v5811
  %v5923 = vadd.f32 %v5443, %v5813
  %v5924 = vadd.f32 %v5446, %v5816
  %v5925 = vadd.f32 %v5448, %v5818
  %v5926 = vadd.f32 %v5451, %v5821
  %v5927 = vadd.f32 %v5453, %v5823
  %v5928 = vadd.f32 %v5456, %v5826
  %v5929 = vadd.f32 %v5458, %v5828
  %v5930 = vadd.f32 %v5461, %v5831
  %v5931 = vadd.f32 %v5463, %v5833
  %v5932 = vadd.f32 %v5466, %v5836
  %v5933 = vadd.f32 %v5468, %v5838
  %v5934 = vadd.f32 %v5471, %v5841
  %v5935 = vadd.f32 %v5473, %v5843
  %v5936 = vadd.f32 %v5476, %v5846
  %v5937 = vadd.f32 %v5478, %v5848
  %v5938 = vadd.f32 %v5481, %v5851
  %v5939 = vadd.f32 %v5483, %v5853
  %v5940 = vadd.f32 %v5486, %v5856
  %v5941 = vadd.f32 %v5488, %v5858
  %v5942 = vadd.f32 %v5491, %v5861
  %v5943 = vadd.f32 %v5493, %v5863
  %v5944 = vadd.f32 %v5496, %v5866
  %v5945 = vadd.f32 %v5498, %v5868
  %v5946 = vadd.f32 %v5501, %v5871
  %v5947 = vadd.f32 %v5503, %v5873
  %v5948 = vadd.f32 %v5506, %v5876
  %v5949 = vadd.f32 %v5508, %v5878
  %v5950 = vadd.f32 %v5511, %v5881
  %v5951 = vadd.f32 %v5513, %v5883
  %v5952 = vadd.f32 %v5516, %v5886
  %v5953 = vadd.f32 %v5518, %v5888
  %v5954 = vld [vmem:[%s163] sm:$0xff]
  %v5955 = vld [vmem:[%s163 + $0x8] sm:$0xff]
  %v5956 = vld [vmem:[%s163 + $0x18] sm:$0xff]
  %v5957 = vld [vmem:[%s163 + $0x20] sm:$0xff]
  %v5958 = vld [vmem:[%s163 + $0x30] sm:$0xff]
  %v5959 = vld [vmem:[%s163 + $0x38] sm:$0xff]
  %v5960 = vld [vmem:[%s163 + $0x48] sm:$0xff]
  %v5961 = vld [vmem:[%s163 + $0x50] sm:$0xff]
  %v5962 = vld [vmem:[%s163 + $0x60] sm:$0xff]
  %v5963 = vld [vmem:[%s163 + $0x68] sm:$0xff]
  %v5964 = vld [vmem:[%s163 + $0x78] sm:$0xff]
  %v5965 = vld [vmem:[%s163 + $0x80] sm:$0xff]
  %v5966 = vld [vmem:[%s163 + $0x90] sm:$0xff]
  %v5967 = vld [vmem:[%s163 + $0x98] sm:$0xff]
  %v5968 = vld [vmem:[%s163 + $0xa8] sm:$0xff]
  %v5969 = vld [vmem:[%s163 + $0xb0] sm:$0xff]
  %v5970 = vld [vmem:[%s163 + $0xc0] sm:$0xff]
  %v5971 = vld [vmem:[%s163 + $0xc8] sm:$0xff]
  %v5972 = vld [vmem:[%s163 + $0xd8] sm:$0xff]
  %v5973 = vld [vmem:[%s163 + $0xe0] sm:$0xff]
  %v5974 = vld [vmem:[%s163 + $0xf0] sm:$0xff]
  %v5975 = vld [vmem:[%s163 + $0xf8] sm:$0xff]
  %v5976 = vld [vmem:[%s163 + $0x108] sm:$0xff]
  %v5977 = vld [vmem:[%s163 + $0x110] sm:$0xff]
  %v5978 = vld [vmem:[%s163 + $0x120] sm:$0xff]
  %v5979 = vld [vmem:[%s163 + $0x128] sm:$0xff]
  %v5980 = vld [vmem:[%s163 + $0x138] sm:$0xff]
  %v5981 = vld [vmem:[%s163 + $0x140] sm:$0xff]
  %v5982 = vld [vmem:[%s163 + $0x150] sm:$0xff]
  %v5983 = vld [vmem:[%s163 + $0x158] sm:$0xff]
  %v5984 = vld [vmem:[%s163 + $0x168] sm:$0xff]
  %v5985 = vld [vmem:[%s163 + $0x170] sm:$0xff]
  %v5986 = vld [vmem:[%s163 + $0x1b0] sm:$0xff]
  %v5987 = vld [vmem:[%s163 + $0x1b8] sm:$0xff]
  %v5988 = vld [vmem:[%s163 + $0x1c8] sm:$0xff]
  %v5989 = vld [vmem:[%s163 + $0x1d0] sm:$0xff]
  %v5990 = vld [vmem:[%s163 + $0x1e0] sm:$0xff]
  %v5991 = vld [vmem:[%s163 + $0x1e8] sm:$0xff]
  %v5992 = vld [vmem:[%s163 + $0x1f8] sm:$0xff]
  %v5993 = vld [vmem:[%s163 + $0x200] sm:$0xff]
  %v5994 = vld [vmem:[%s163 + $0x210] sm:$0xff]
  %v5995 = vld [vmem:[%s163 + $0x218] sm:$0xff]
  %v5996 = vld [vmem:[%s163 + $0x228] sm:$0xff]
  %v5997 = vld [vmem:[%s163 + $0x230] sm:$0xff]
  %v5998 = vld [vmem:[%s163 + $0x240] sm:$0xff]
  %v5999 = vld [vmem:[%s163 + $0x248] sm:$0xff]
  %v6000 = vld [vmem:[%s163 + $0x258] sm:$0xff]
  %v6001 = vld [vmem:[%s163 + $0x260] sm:$0xff]
  %v6002 = vld [vmem:[%s163 + $0x270] sm:$0xff]
  %v6003 = vld [vmem:[%s163 + $0x278] sm:$0xff]
  %v6004 = vld [vmem:[%s163 + $0x288] sm:$0xff]
  %v6005 = vld [vmem:[%s163 + $0x290] sm:$0xff]
  %v6006 = vld [vmem:[%s163 + $0x2a0] sm:$0xff]
  %v6007 = vld [vmem:[%s163 + $0x2a8] sm:$0xff]
  %v6008 = vld [vmem:[%s163 + $0x2b8] sm:$0xff]
  %v6009 = vld [vmem:[%s163 + $0x2c0] sm:$0xff]
  %v6010 = vld [vmem:[%s163 + $0x2d0] sm:$0xff]
  %v6011 = vld [vmem:[%s163 + $0x2d8] sm:$0xff]
  %v6012 = vld [vmem:[%s163 + $0x2e8] sm:$0xff]
  %v6013 = vld [vmem:[%s163 + $0x2f0] sm:$0xff]
  %v6014 = vld [vmem:[%s163 + $0x300] sm:$0xff]
  %v6015 = vld [vmem:[%s163 + $0x308] sm:$0xff]
  %v6016 = vld [vmem:[%s163 + $0x318] sm:$0xff]
  %v6017 = vld [vmem:[%s163 + $0x320] sm:$0xff]
  %v6018 = vpack.c.bf16 %v5955, %v5954
  %v6019 = vpack.c.bf16 %v5957, %v5956
  %v6020 = vpack.c.bf16 %v5959, %v5958
  %v6021 = vpack.c.bf16 %v5961, %v5960
  %v6022 = vpack.c.bf16 %v5963, %v5962
  %v6023 = vpack.c.bf16 %v5965, %v5964
  %v6024 = vpack.c.bf16 %v5967, %v5966
  %v6025 = vpack.c.bf16 %v5969, %v5968
  %v6026 = vpack.c.bf16 %v5971, %v5970
  %v6027 = vpack.c.bf16 %v5973, %v5972
  %v6028 = vpack.c.bf16 %v5975, %v5974
  %v6029 = vpack.c.bf16 %v5977, %v5976
  %v6030 = vpack.c.bf16 %v5979, %v5978
  %v6031 = vpack.c.bf16 %v5981, %v5980
  %v6032 = vpack.c.bf16 %v5983, %v5982
  %v6033 = vpack.c.bf16 %v5985, %v5984
  %v6034 = vpack.c.bf16 %v5987, %v5986
  %v6035 = vpack.c.bf16 %v5989, %v5988
  %v6036 = vpack.c.bf16 %v5991, %v5990
  %v6037 = vpack.c.bf16 %v5993, %v5992
  %v6038 = vpack.c.bf16 %v5995, %v5994
  %v6039 = vpack.c.bf16 %v5997, %v5996
  %v6040 = vpack.c.bf16 %v5999, %v5998
  %v6041 = vpack.c.bf16 %v6001, %v6000
  %v6042 = vpack.c.bf16 %v6003, %v6002
  %v6043 = vpack.c.bf16 %v6005, %v6004
  %v6044 = vpack.c.bf16 %v6007, %v6006
  %v6045 = vpack.c.bf16 %v6009, %v6008
  %v6046 = vpack.c.bf16 %v6011, %v6010
  %v6047 = vpack.c.bf16 %v6013, %v6012
  %v6048 = vpack.c.bf16 %v6015, %v6014
  %v6049 = vpack.c.bf16 %v6017, %v6016
  %s6050 = scalar_lea.vmem %s2, 24
  %v6051 = vld [vmem:[%s6050] sm:$0xf]
  %v6052 = vld [vmem:[%s6050 + $0x4] sm:$0xf]
  %v6055 = vunpack.c.l.b16 %v6051
  %v6056 = vunpack.c.l.b16 %v6052
  %v6057 = vpack.c.b16 %v6056, %v6055
  %v6060 = vsel %vm21, %v6018, 0
  %v6063 = vsel %vm21, %v6019, 0
  %v6066 = vsel %vm21, %v6020, 0
  %v6069 = vsel %vm21, %v6021, 0
  %v6072 = vsel %vm21, %v6022, 0
  %v6075 = vsel %vm21, %v6023, 0
  %v6078 = vsel %vm21, %v6024, 0
  %v6081 = vsel %vm21, %v6025, 0
  %v6084 = vsel %vm21, %v6026, 0
  %v6087 = vsel %vm21, %v6027, 0
  %v6090 = vsel %vm21, %v6028, 0
  %v6093 = vsel %vm21, %v6029, 0
  %v6096 = vsel %vm21, %v6030, 0
  %v6099 = vsel %vm21, %v6031, 0
  %v6102 = vsel %vm21, %v6032, 0
  %v6105 = vsel %vm21, %v6033, 0
  %v6108 = vsel %vm21, %v6034, 0
  %v6111 = vsel %vm21, %v6035, 0
  %v6114 = vsel %vm21, %v6036, 0
  %v6117 = vsel %vm21, %v6037, 0
  %v6120 = vsel %vm21, %v6038, 0
  %v6123 = vsel %vm21, %v6039, 0
  %v6126 = vsel %vm21, %v6040, 0
  %v6129 = vsel %vm21, %v6041, 0
  %v6132 = vsel %vm21, %v6042, 0
  %v6135 = vsel %vm21, %v6043, 0
  %v6138 = vsel %vm21, %v6044, 0
  %v6141 = vsel %vm21, %v6045, 0
  %v6144 = vsel %vm21, %v6046, 0
  %v6147 = vsel %vm21, %v6047, 0
  %v6150 = vsel %vm21, %v6048, 0
  %v6153 = vsel %vm21, %v6049, 0
  %6155 = vmatpush.bf16.msra.mxu0 0
  %6156 = vmatpush.bf16.msra.mxu0 0
  %6157 = vmatpush.bf16.msra.mxu0 0
  %6158 = vmatpush.bf16.msra.mxu0 0
  %6159 = vmatpush.bf16.msra.mxu0 0
  %6160 = vmatpush.bf16.msra.mxu0 0
  %6161 = vmatpush.bf16.msra.mxu0 0
  %6162 = vmatpush.bf16.msra.mxu0 %v6057
  %6163 = vmatmul.bf16.gmra.mxu0 %v6060
  %v6164 = vpop.f32.mrf.mxu0
  %v6165 = vadd.f32 0.0, %v6164
  %v6166 = vpop.f32.mrf.mxu0
  %v6167 = vadd.f32 0.0, %v6166
  %6168 = vmatmul.bf16.gmra.mxu0 %v6063
  %v6169 = vpop.f32.mrf.mxu0
  %v6170 = vadd.f32 0.0, %v6169
  %v6171 = vpop.f32.mrf.mxu0
  %v6172 = vadd.f32 0.0, %v6171
  %6173 = vmatmul.bf16.gmra.mxu0 %v6066
  %v6174 = vpop.f32.mrf.mxu0
  %v6175 = vadd.f32 0.0, %v6174
  %v6176 = vpop.f32.mrf.mxu0
  %v6177 = vadd.f32 0.0, %v6176
  %6178 = vmatmul.bf16.gmra.mxu0 %v6069
  %v6179 = vpop.f32.mrf.mxu0
  %v6180 = vadd.f32 0.0, %v6179
  %v6181 = vpop.f32.mrf.mxu0
  %v6182 = vadd.f32 0.0, %v6181
  %6183 = vmatmul.bf16.gmra.mxu0 %v6072
  %v6184 = vpop.f32.mrf.mxu0
  %v6185 = vadd.f32 0.0, %v6184
  %v6186 = vpop.f32.mrf.mxu0
  %v6187 = vadd.f32 0.0, %v6186
  %6188 = vmatmul.bf16.gmra.mxu0 %v6075
  %v6189 = vpop.f32.mrf.mxu0
  %v6190 = vadd.f32 0.0, %v6189
  %v6191 = vpop.f32.mrf.mxu0
  %v6192 = vadd.f32 0.0, %v6191
  %6193 = vmatmul.bf16.gmra.mxu0 %v6078
  %v6194 = vpop.f32.mrf.mxu0
  %v6195 = vadd.f32 0.0, %v6194
  %v6196 = vpop.f32.mrf.mxu0
  %v6197 = vadd.f32 0.0, %v6196
  %6198 = vmatmul.bf16.gmra.mxu0 %v6081
  %v6199 = vpop.f32.mrf.mxu0
  %v6200 = vadd.f32 0.0, %v6199
  %v6201 = vpop.f32.mrf.mxu0
  %v6202 = vadd.f32 0.0, %v6201
  %6203 = vmatmul.bf16.gmra.mxu0 %v6084
  %v6204 = vpop.f32.mrf.mxu0
  %v6205 = vadd.f32 0.0, %v6204
  %v6206 = vpop.f32.mrf.mxu0
  %v6207 = vadd.f32 0.0, %v6206
  %6208 = vmatmul.bf16.gmra.mxu0 %v6087
  %v6209 = vpop.f32.mrf.mxu0
  %v6210 = vadd.f32 0.0, %v6209
  %v6211 = vpop.f32.mrf.mxu0
  %v6212 = vadd.f32 0.0, %v6211
  %6213 = vmatmul.bf16.gmra.mxu0 %v6090
  %v6214 = vpop.f32.mrf.mxu0
  %v6215 = vadd.f32 0.0, %v6214
  %v6216 = vpop.f32.mrf.mxu0
  %v6217 = vadd.f32 0.0, %v6216
  %6218 = vmatmul.bf16.gmra.mxu0 %v6093
  %v6219 = vpop.f32.mrf.mxu0
  %v6220 = vadd.f32 0.0, %v6219
  %v6221 = vpop.f32.mrf.mxu0
  %v6222 = vadd.f32 0.0, %v6221
  %6223 = vmatmul.bf16.gmra.mxu0 %v6096
  %v6224 = vpop.f32.mrf.mxu0
  %v6225 = vadd.f32 0.0, %v6224
  %v6226 = vpop.f32.mrf.mxu0
  %v6227 = vadd.f32 0.0, %v6226
  %6228 = vmatmul.bf16.gmra.mxu0 %v6099
  %v6229 = vpop.f32.mrf.mxu0
  %v6230 = vadd.f32 0.0, %v6229
  %v6231 = vpop.f32.mrf.mxu0
  %v6232 = vadd.f32 0.0, %v6231
  %6233 = vmatmul.bf16.gmra.mxu0 %v6102
  %v6234 = vpop.f32.mrf.mxu0
  %v6235 = vadd.f32 0.0, %v6234
  %v6236 = vpop.f32.mrf.mxu0
  %v6237 = vadd.f32 0.0, %v6236
  %6238 = vmatmul.bf16.gmra.mxu0 %v6105
  %v6239 = vpop.f32.mrf.mxu0
  %v6240 = vadd.f32 0.0, %v6239
  %v6241 = vpop.f32.mrf.mxu0
  %v6242 = vadd.f32 0.0, %v6241
  %6243 = vmatmul.bf16.gmra.mxu0 %v6108
  %v6244 = vpop.f32.mrf.mxu0
  %v6245 = vadd.f32 0.0, %v6244
  %v6246 = vpop.f32.mrf.mxu0
  %v6247 = vadd.f32 0.0, %v6246
  %6248 = vmatmul.bf16.gmra.mxu0 %v6111
  %v6249 = vpop.f32.mrf.mxu0
  %v6250 = vadd.f32 0.0, %v6249
  %v6251 = vpop.f32.mrf.mxu0
  %v6252 = vadd.f32 0.0, %v6251
  %6253 = vmatmul.bf16.gmra.mxu0 %v6114
  %v6254 = vpop.f32.mrf.mxu0
  %v6255 = vadd.f32 0.0, %v6254
  %v6256 = vpop.f32.mrf.mxu0
  %v6257 = vadd.f32 0.0, %v6256
  %6258 = vmatmul.bf16.gmra.mxu0 %v6117
  %v6259 = vpop.f32.mrf.mxu0
  %v6260 = vadd.f32 0.0, %v6259
  %v6261 = vpop.f32.mrf.mxu0
  %v6262 = vadd.f32 0.0, %v6261
  %6263 = vmatmul.bf16.gmra.mxu0 %v6120
  %v6264 = vpop.f32.mrf.mxu0
  %v6265 = vadd.f32 0.0, %v6264
  %v6266 = vpop.f32.mrf.mxu0
  %v6267 = vadd.f32 0.0, %v6266
  %6268 = vmatmul.bf16.gmra.mxu0 %v6123
  %v6269 = vpop.f32.mrf.mxu0
  %v6270 = vadd.f32 0.0, %v6269
  %v6271 = vpop.f32.mrf.mxu0
  %v6272 = vadd.f32 0.0, %v6271
  %6273 = vmatmul.bf16.gmra.mxu0 %v6126
  %v6274 = vpop.f32.mrf.mxu0
  %v6275 = vadd.f32 0.0, %v6274
  %v6276 = vpop.f32.mrf.mxu0
  %v6277 = vadd.f32 0.0, %v6276
  %6278 = vmatmul.bf16.gmra.mxu0 %v6129
  %v6279 = vpop.f32.mrf.mxu0
  %v6280 = vadd.f32 0.0, %v6279
  %v6281 = vpop.f32.mrf.mxu0
  %v6282 = vadd.f32 0.0, %v6281
  %6283 = vmatmul.bf16.gmra.mxu0 %v6132
  %v6284 = vpop.f32.mrf.mxu0
  %v6285 = vadd.f32 0.0, %v6284
  %v6286 = vpop.f32.mrf.mxu0
  %v6287 = vadd.f32 0.0, %v6286
  %6288 = vmatmul.bf16.gmra.mxu0 %v6135
  %v6289 = vpop.f32.mrf.mxu0
  %v6290 = vadd.f32 0.0, %v6289
  %v6291 = vpop.f32.mrf.mxu0
  %v6292 = vadd.f32 0.0, %v6291
  %6293 = vmatmul.bf16.gmra.mxu0 %v6138
  %v6294 = vpop.f32.mrf.mxu0
  %v6295 = vadd.f32 0.0, %v6294
  %v6296 = vpop.f32.mrf.mxu0
  %v6297 = vadd.f32 0.0, %v6296
  %6298 = vmatmul.bf16.gmra.mxu0 %v6141
  %v6299 = vpop.f32.mrf.mxu0
  %v6300 = vadd.f32 0.0, %v6299
  %v6301 = vpop.f32.mrf.mxu0
  %v6302 = vadd.f32 0.0, %v6301
  %6303 = vmatmul.bf16.gmra.mxu0 %v6144
  %v6304 = vpop.f32.mrf.mxu0
  %v6305 = vadd.f32 0.0, %v6304
  %v6306 = vpop.f32.mrf.mxu0
  %v6307 = vadd.f32 0.0, %v6306
  %6308 = vmatmul.bf16.gmra.mxu0 %v6147
  %v6309 = vpop.f32.mrf.mxu0
  %v6310 = vadd.f32 0.0, %v6309
  %v6311 = vpop.f32.mrf.mxu0
  %v6312 = vadd.f32 0.0, %v6311
  %6313 = vmatmul.bf16.gmra.mxu0 %v6150
  %v6314 = vpop.f32.mrf.mxu0
  %v6315 = vadd.f32 0.0, %v6314
  %v6316 = vpop.f32.mrf.mxu0
  %v6317 = vadd.f32 0.0, %v6316
  %6318 = vmatmul.bf16.gmra.mxu0 %v6153
  %v6319 = vpop.f32.mrf.mxu0
  %v6320 = vadd.f32 0.0, %v6319
  %v6321 = vpop.f32.mrf.mxu0
  %v6322 = vadd.f32 0.0, %v6321
  %6323 = vdwg.mxu0
  %v6324 = vadd.f32 %v5890, %v6165
  %v6325 = vadd.f32 %v5891, %v6167
  %v6326 = vadd.f32 %v5892, %v6170
  %v6327 = vadd.f32 %v5893, %v6172
  %v6328 = vadd.f32 %v5894, %v6175
  %v6329 = vadd.f32 %v5895, %v6177
  %v6330 = vadd.f32 %v5896, %v6180
  %v6331 = vadd.f32 %v5897, %v6182
  %v6332 = vadd.f32 %v5898, %v6185
  %v6333 = vadd.f32 %v5899, %v6187
  %v6334 = vadd.f32 %v5900, %v6190
  %v6335 = vadd.f32 %v5901, %v6192
  %v6336 = vadd.f32 %v5902, %v6195
  %v6337 = vadd.f32 %v5903, %v6197
  %v6338 = vadd.f32 %v5904, %v6200
  %v6339 = vadd.f32 %v5905, %v6202
  %v6340 = vadd.f32 %v5906, %v6205
  %v6341 = vadd.f32 %v5907, %v6207
  %v6342 = vadd.f32 %v5908, %v6210
  %v6343 = vadd.f32 %v5909, %v6212
  %v6344 = vadd.f32 %v5910, %v6215
  %v6345 = vadd.f32 %v5911, %v6217
  %v6346 = vadd.f32 %v5912, %v6220
  %v6347 = vadd.f32 %v5913, %v6222
  %v6348 = vadd.f32 %v5914, %v6225
  %v6349 = vadd.f32 %v5915, %v6227
  %v6350 = vadd.f32 %v5916, %v6230
  %v6351 = vadd.f32 %v5917, %v6232
  %v6352 = vadd.f32 %v5918, %v6235
  %v6353 = vadd.f32 %v5919, %v6237
  %v6354 = vadd.f32 %v5920, %v6240
  %v6355 = vadd.f32 %v5921, %v6242
  %v6356 = vadd.f32 %v5922, %v6245
  %v6357 = vadd.f32 %v5923, %v6247
  %v6358 = vadd.f32 %v5924, %v6250
  %v6359 = vadd.f32 %v5925, %v6252
  %v6360 = vadd.f32 %v5926, %v6255
  %v6361 = vadd.f32 %v5927, %v6257
  %v6362 = vadd.f32 %v5928, %v6260
  %v6363 = vadd.f32 %v5929, %v6262
  %v6364 = vadd.f32 %v5930, %v6265
  %v6365 = vadd.f32 %v5931, %v6267
  %v6366 = vadd.f32 %v5932, %v6270
  %v6367 = vadd.f32 %v5933, %v6272
  %v6368 = vadd.f32 %v5934, %v6275
  %v6369 = vadd.f32 %v5935, %v6277
  %v6370 = vadd.f32 %v5936, %v6280
  %v6371 = vadd.f32 %v5937, %v6282
  %v6372 = vadd.f32 %v5938, %v6285
  %v6373 = vadd.f32 %v5939, %v6287
  %v6374 = vadd.f32 %v5940, %v6290
  %v6375 = vadd.f32 %v5941, %v6292
  %v6376 = vadd.f32 %v5942, %v6295
  %v6377 = vadd.f32 %v5943, %v6297
  %v6378 = vadd.f32 %v5944, %v6300
  %v6379 = vadd.f32 %v5945, %v6302
  %v6380 = vadd.f32 %v5946, %v6305
  %v6381 = vadd.f32 %v5947, %v6307
  %v6382 = vadd.f32 %v5948, %v6310
  %v6383 = vadd.f32 %v5949, %v6312
  %v6384 = vadd.f32 %v5950, %v6315
  %v6385 = vadd.f32 %v5951, %v6317
  %v6386 = vadd.f32 %v5952, %v6320
  %v6387 = vadd.f32 %v5953, %v6322
  %v6388 = vld [vmem:[%s163 + $0x1] sm:$0xff]
  %v6389 = vld [vmem:[%s163 + $0x9] sm:$0xff]
  %v6390 = vld [vmem:[%s163 + $0x19] sm:$0xff]
  %v6391 = vld [vmem:[%s163 + $0x21] sm:$0xff]
  %v6392 = vld [vmem:[%s163 + $0x31] sm:$0xff]
  %v6393 = vld [vmem:[%s163 + $0x39] sm:$0xff]
  %v6394 = vld [vmem:[%s163 + $0x49] sm:$0xff]
  %v6395 = vld [vmem:[%s163 + $0x51] sm:$0xff]
  %v6396 = vld [vmem:[%s163 + $0x61] sm:$0xff]
  %v6397 = vld [vmem:[%s163 + $0x69] sm:$0xff]
  %v6398 = vld [vmem:[%s163 + $0x79] sm:$0xff]
  %v6399 = vld [vmem:[%s163 + $0x81] sm:$0xff]
  %v6400 = vld [vmem:[%s163 + $0x91] sm:$0xff]
  %v6401 = vld [vmem:[%s163 + $0x99] sm:$0xff]
  %v6402 = vld [vmem:[%s163 + $0xa9] sm:$0xff]
  %v6403 = vld [vmem:[%s163 + $0xb1] sm:$0xff]
  %v6404 = vld [vmem:[%s163 + $0xc1] sm:$0xff]
  %v6405 = vld [vmem:[%s163 + $0xc9] sm:$0xff]
  %v6406 = vld [vmem:[%s163 + $0xd9] sm:$0xff]
  %v6407 = vld [vmem:[%s163 + $0xe1] sm:$0xff]
  %v6408 = vld [vmem:[%s163 + $0xf1] sm:$0xff]
  %v6409 = vld [vmem:[%s163 + $0xf9] sm:$0xff]
  %v6410 = vld [vmem:[%s163 + $0x109] sm:$0xff]
  %v6411 = vld [vmem:[%s163 + $0x111] sm:$0xff]
  %v6412 = vld [vmem:[%s163 + $0x121] sm:$0xff]
  %v6413 = vld [vmem:[%s163 + $0x129] sm:$0xff]
  %v6414 = vld [vmem:[%s163 + $0x139] sm:$0xff]
  %v6415 = vld [vmem:[%s163 + $0x141] sm:$0xff]
  %v6416 = vld [vmem:[%s163 + $0x151] sm:$0xff]
  %v6417 = vld [vmem:[%s163 + $0x159] sm:$0xff]
  %v6418 = vld [vmem:[%s163 + $0x169] sm:$0xff]
  %v6419 = vld [vmem:[%s163 + $0x171] sm:$0xff]
  %v6420 = vld [vmem:[%s163 + $0x1b1] sm:$0xff]
  %v6421 = vld [vmem:[%s163 + $0x1b9] sm:$0xff]
  %v6422 = vld [vmem:[%s163 + $0x1c9] sm:$0xff]
  %v6423 = vld [vmem:[%s163 + $0x1d1] sm:$0xff]
  %v6424 = vld [vmem:[%s163 + $0x1e1] sm:$0xff]
  %v6425 = vld [vmem:[%s163 + $0x1e9] sm:$0xff]
  %v6426 = vld [vmem:[%s163 + $0x1f9] sm:$0xff]
  %v6427 = vld [vmem:[%s163 + $0x201] sm:$0xff]
  %v6428 = vld [vmem:[%s163 + $0x211] sm:$0xff]
  %v6429 = vld [vmem:[%s163 + $0x219] sm:$0xff]
  %v6430 = vld [vmem:[%s163 + $0x229] sm:$0xff]
  %v6431 = vld [vmem:[%s163 + $0x231] sm:$0xff]
  %v6432 = vld [vmem:[%s163 + $0x241] sm:$0xff]
  %v6433 = vld [vmem:[%s163 + $0x249] sm:$0xff]
  %v6434 = vld [vmem:[%s163 + $0x259] sm:$0xff]
  %v6435 = vld [vmem:[%s163 + $0x261] sm:$0xff]
  %v6436 = vld [vmem:[%s163 + $0x271] sm:$0xff]
  %v6437 = vld [vmem:[%s163 + $0x279] sm:$0xff]
  %v6438 = vld [vmem:[%s163 + $0x289] sm:$0xff]
  %v6439 = vld [vmem:[%s163 + $0x291] sm:$0xff]
  %v6440 = vld [vmem:[%s163 + $0x2a1] sm:$0xff]
  %v6441 = vld [vmem:[%s163 + $0x2a9] sm:$0xff]
  %v6442 = vld [vmem:[%s163 + $0x2b9] sm:$0xff]
  %v6443 = vld [vmem:[%s163 + $0x2c1] sm:$0xff]
  %v6444 = vld [vmem:[%s163 + $0x2d1] sm:$0xff]
  %v6445 = vld [vmem:[%s163 + $0x2d9] sm:$0xff]
  %v6446 = vld [vmem:[%s163 + $0x2e9] sm:$0xff]
  %v6447 = vld [vmem:[%s163 + $0x2f1] sm:$0xff]
  %v6448 = vld [vmem:[%s163 + $0x301] sm:$0xff]
  %v6449 = vld [vmem:[%s163 + $0x309] sm:$0xff]
  %v6450 = vld [vmem:[%s163 + $0x319] sm:$0xff]
  %v6451 = vld [vmem:[%s163 + $0x321] sm:$0xff]
  %v6452 = vpack.c.bf16 %v6389, %v6388
  %v6453 = vpack.c.bf16 %v6391, %v6390
  %v6454 = vpack.c.bf16 %v6393, %v6392
  %v6455 = vpack.c.bf16 %v6395, %v6394
  %v6456 = vpack.c.bf16 %v6397, %v6396
  %v6457 = vpack.c.bf16 %v6399, %v6398
  %v6458 = vpack.c.bf16 %v6401, %v6400
  %v6459 = vpack.c.bf16 %v6403, %v6402
  %v6460 = vpack.c.bf16 %v6405, %v6404
  %v6461 = vpack.c.bf16 %v6407, %v6406
  %v6462 = vpack.c.bf16 %v6409, %v6408
  %v6463 = vpack.c.bf16 %v6411, %v6410
  %v6464 = vpack.c.bf16 %v6413, %v6412
  %v6465 = vpack.c.bf16 %v6415, %v6414
  %v6466 = vpack.c.bf16 %v6417, %v6416
  %v6467 = vpack.c.bf16 %v6419, %v6418
  %v6468 = vpack.c.bf16 %v6421, %v6420
  %v6469 = vpack.c.bf16 %v6423, %v6422
  %v6470 = vpack.c.bf16 %v6425, %v6424
  %v6471 = vpack.c.bf16 %v6427, %v6426
  %v6472 = vpack.c.bf16 %v6429, %v6428
  %v6473 = vpack.c.bf16 %v6431, %v6430
  %v6474 = vpack.c.bf16 %v6433, %v6432
  %v6475 = vpack.c.bf16 %v6435, %v6434
  %v6476 = vpack.c.bf16 %v6437, %v6436
  %v6477 = vpack.c.bf16 %v6439, %v6438
  %v6478 = vpack.c.bf16 %v6441, %v6440
  %v6479 = vpack.c.bf16 %v6443, %v6442
  %v6480 = vpack.c.bf16 %v6445, %v6444
  %v6481 = vpack.c.bf16 %v6447, %v6446
  %v6482 = vpack.c.bf16 %v6449, %v6448
  %v6483 = vpack.c.bf16 %v6451, %v6450
  %s6484 = scalar_lea.vmem %s2, 32
  %v6485 = vld [vmem:[%s6484] sm:$0xf]
  %v6486 = vld [vmem:[%s6484 + $0x4] sm:$0xf]
  %v6489 = vunpack.c.l.b16 %v6485
  %v6490 = vunpack.c.l.b16 %v6486
  %v6491 = vpack.c.b16 %v6490, %v6489
  %v6494 = vsel %vm21, %v6452, 0
  %v6497 = vsel %vm21, %v6453, 0
  %v6500 = vsel %vm21, %v6454, 0
  %v6503 = vsel %vm21, %v6455, 0
  %v6506 = vsel %vm21, %v6456, 0
  %v6509 = vsel %vm21, %v6457, 0
  %v6512 = vsel %vm21, %v6458, 0
  %v6515 = vsel %vm21, %v6459, 0
  %v6518 = vsel %vm21, %v6460, 0
  %v6521 = vsel %vm21, %v6461, 0
  %v6524 = vsel %vm21, %v6462, 0
  %v6527 = vsel %vm21, %v6463, 0
  %v6530 = vsel %vm21, %v6464, 0
  %v6533 = vsel %vm21, %v6465, 0
  %v6536 = vsel %vm21, %v6466, 0
  %v6539 = vsel %vm21, %v6467, 0
  %v6542 = vsel %vm21, %v6468, 0
  %v6545 = vsel %vm21, %v6469, 0
  %v6548 = vsel %vm21, %v6470, 0
  %v6551 = vsel %vm21, %v6471, 0
  %v6554 = vsel %vm21, %v6472, 0
  %v6557 = vsel %vm21, %v6473, 0
  %v6560 = vsel %vm21, %v6474, 0
  %v6563 = vsel %vm21, %v6475, 0
  %v6566 = vsel %vm21, %v6476, 0
  %v6569 = vsel %vm21, %v6477, 0
  %v6572 = vsel %vm21, %v6478, 0
  %v6575 = vsel %vm21, %v6479, 0
  %v6578 = vsel %vm21, %v6480, 0
  %v6581 = vsel %vm21, %v6481, 0
  %v6584 = vsel %vm21, %v6482, 0
  %v6587 = vsel %vm21, %v6483, 0
  %6589 = vmatpush.bf16.msra.mxu0 0
  %6590 = vmatpush.bf16.msra.mxu0 0
  %6591 = vmatpush.bf16.msra.mxu0 0
  %6592 = vmatpush.bf16.msra.mxu0 0
  %6593 = vmatpush.bf16.msra.mxu0 0
  %6594 = vmatpush.bf16.msra.mxu0 0
  %6595 = vmatpush.bf16.msra.mxu0 0
  %6596 = vmatpush.bf16.msra.mxu0 %v6491
  %6597 = vmatmul.bf16.gmra.mxu0 %v6494
  %v6598 = vpop.f32.mrf.mxu0
  %v6599 = vadd.f32 0.0, %v6598
  %v6600 = vpop.f32.mrf.mxu0
  %v6601 = vadd.f32 0.0, %v6600
  %6602 = vmatmul.bf16.gmra.mxu0 %v6497
  %v6603 = vpop.f32.mrf.mxu0
  %v6604 = vadd.f32 0.0, %v6603
  %v6605 = vpop.f32.mrf.mxu0
  %v6606 = vadd.f32 0.0, %v6605
  %6607 = vmatmul.bf16.gmra.mxu0 %v6500
  %v6608 = vpop.f32.mrf.mxu0
  %v6609 = vadd.f32 0.0, %v6608
  %v6610 = vpop.f32.mrf.mxu0
  %v6611 = vadd.f32 0.0, %v6610
  %6612 = vmatmul.bf16.gmra.mxu0 %v6503
  %v6613 = vpop.f32.mrf.mxu0
  %v6614 = vadd.f32 0.0, %v6613
  %v6615 = vpop.f32.mrf.mxu0
  %v6616 = vadd.f32 0.0, %v6615
  %6617 = vmatmul.bf16.gmra.mxu0 %v6506
  %v6618 = vpop.f32.mrf.mxu0
  %v6619 = vadd.f32 0.0, %v6618
  %v6620 = vpop.f32.mrf.mxu0
  %v6621 = vadd.f32 0.0, %v6620
  %6622 = vmatmul.bf16.gmra.mxu0 %v6509
  %v6623 = vpop.f32.mrf.mxu0
  %v6624 = vadd.f32 0.0, %v6623
  %v6625 = vpop.f32.mrf.mxu0
  %v6626 = vadd.f32 0.0, %v6625
  %6627 = vmatmul.bf16.gmra.mxu0 %v6512
  %v6628 = vpop.f32.mrf.mxu0
  %v6629 = vadd.f32 0.0, %v6628
  %v6630 = vpop.f32.mrf.mxu0
  %v6631 = vadd.f32 0.0, %v6630
  %6632 = vmatmul.bf16.gmra.mxu0 %v6515
  %v6633 = vpop.f32.mrf.mxu0
  %v6634 = vadd.f32 0.0, %v6633
  %v6635 = vpop.f32.mrf.mxu0
  %v6636 = vadd.f32 0.0, %v6635
  %6637 = vmatmul.bf16.gmra.mxu0 %v6518
  %v6638 = vpop.f32.mrf.mxu0
  %v6639 = vadd.f32 0.0, %v6638
  %v6640 = vpop.f32.mrf.mxu0
  %v6641 = vadd.f32 0.0, %v6640
  %6642 = vmatmul.bf16.gmra.mxu0 %v6521
  %v6643 = vpop.f32.mrf.mxu0
  %v6644 = vadd.f32 0.0, %v6643
  %v6645 = vpop.f32.mrf.mxu0
  %v6646 = vadd.f32 0.0, %v6645
  %6647 = vmatmul.bf16.gmra.mxu0 %v6524
  %v6648 = vpop.f32.mrf.mxu0
  %v6649 = vadd.f32 0.0, %v6648
  %v6650 = vpop.f32.mrf.mxu0
  %v6651 = vadd.f32 0.0, %v6650
  %6652 = vmatmul.bf16.gmra.mxu0 %v6527
  %v6653 = vpop.f32.mrf.mxu0
  %v6654 = vadd.f32 0.0, %v6653
  %v6655 = vpop.f32.mrf.mxu0
  %v6656 = vadd.f32 0.0, %v6655
  %6657 = vmatmul.bf16.gmra.mxu0 %v6530
  %v6658 = vpop.f32.mrf.mxu0
  %v6659 = vadd.f32 0.0, %v6658
  %v6660 = vpop.f32.mrf.mxu0
  %v6661 = vadd.f32 0.0, %v6660
  %6662 = vmatmul.bf16.gmra.mxu0 %v6533
  %v6663 = vpop.f32.mrf.mxu0
  %v6664 = vadd.f32 0.0, %v6663
  %v6665 = vpop.f32.mrf.mxu0
  %v6666 = vadd.f32 0.0, %v6665
  %6667 = vmatmul.bf16.gmra.mxu0 %v6536
  %v6668 = vpop.f32.mrf.mxu0
  %v6669 = vadd.f32 0.0, %v6668
  %v6670 = vpop.f32.mrf.mxu0
  %v6671 = vadd.f32 0.0, %v6670
  %6672 = vmatmul.bf16.gmra.mxu0 %v6539
  %v6673 = vpop.f32.mrf.mxu0
  %v6674 = vadd.f32 0.0, %v6673
  %v6675 = vpop.f32.mrf.mxu0
  %v6676 = vadd.f32 0.0, %v6675
  %6677 = vmatmul.bf16.gmra.mxu0 %v6542
  %v6678 = vpop.f32.mrf.mxu0
  %v6679 = vadd.f32 0.0, %v6678
  %v6680 = vpop.f32.mrf.mxu0
  %v6681 = vadd.f32 0.0, %v6680
  %6682 = vmatmul.bf16.gmra.mxu0 %v6545
  %v6683 = vpop.f32.mrf.mxu0
  %v6684 = vadd.f32 0.0, %v6683
  %v6685 = vpop.f32.mrf.mxu0
  %v6686 = vadd.f32 0.0, %v6685
  %6687 = vmatmul.bf16.gmra.mxu0 %v6548
  %v6688 = vpop.f32.mrf.mxu0
  %v6689 = vadd.f32 0.0, %v6688
  %v6690 = vpop.f32.mrf.mxu0
  %v6691 = vadd.f32 0.0, %v6690
  %6692 = vmatmul.bf16.gmra.mxu0 %v6551
  %v6693 = vpop.f32.mrf.mxu0
  %v6694 = vadd.f32 0.0, %v6693
  %v6695 = vpop.f32.mrf.mxu0
  %v6696 = vadd.f32 0.0, %v6695
  %6697 = vmatmul.bf16.gmra.mxu0 %v6554
  %v6698 = vpop.f32.mrf.mxu0
  %v6699 = vadd.f32 0.0, %v6698
  %v6700 = vpop.f32.mrf.mxu0
  %v6701 = vadd.f32 0.0, %v6700
  %6702 = vmatmul.bf16.gmra.mxu0 %v6557
  %v6703 = vpop.f32.mrf.mxu0
  %v6704 = vadd.f32 0.0, %v6703
  %v6705 = vpop.f32.mrf.mxu0
  %v6706 = vadd.f32 0.0, %v6705
  %6707 = vmatmul.bf16.gmra.mxu0 %v6560
  %v6708 = vpop.f32.mrf.mxu0
  %v6709 = vadd.f32 0.0, %v6708
  %v6710 = vpop.f32.mrf.mxu0
  %v6711 = vadd.f32 0.0, %v6710
  %6712 = vmatmul.bf16.gmra.mxu0 %v6563
  %v6713 = vpop.f32.mrf.mxu0
  %v6714 = vadd.f32 0.0, %v6713
  %v6715 = vpop.f32.mrf.mxu0
  %v6716 = vadd.f32 0.0, %v6715
  %6717 = vmatmul.bf16.gmra.mxu0 %v6566
  %v6718 = vpop.f32.mrf.mxu0
  %v6719 = vadd.f32 0.0, %v6718
  %v6720 = vpop.f32.mrf.mxu0
  %v6721 = vadd.f32 0.0, %v6720
  %6722 = vmatmul.bf16.gmra.mxu0 %v6569
  %v6723 = vpop.f32.mrf.mxu0
  %v6724 = vadd.f32 0.0, %v6723
  %v6725 = vpop.f32.mrf.mxu0
  %v6726 = vadd.f32 0.0, %v6725
  %6727 = vmatmul.bf16.gmra.mxu0 %v6572
  %v6728 = vpop.f32.mrf.mxu0
  %v6729 = vadd.f32 0.0, %v6728
  %v6730 = vpop.f32.mrf.mxu0
  %v6731 = vadd.f32 0.0, %v6730
  %6732 = vmatmul.bf16.gmra.mxu0 %v6575
  %v6733 = vpop.f32.mrf.mxu0
  %v6734 = vadd.f32 0.0, %v6733
  %v6735 = vpop.f32.mrf.mxu0
  %v6736 = vadd.f32 0.0, %v6735
  %6737 = vmatmul.bf16.gmra.mxu0 %v6578
  %v6738 = vpop.f32.mrf.mxu0
  %v6739 = vadd.f32 0.0, %v6738
  %v6740 = vpop.f32.mrf.mxu0
  %v6741 = vadd.f32 0.0, %v6740
  %6742 = vmatmul.bf16.gmra.mxu0 %v6581
  %v6743 = vpop.f32.mrf.mxu0
  %v6744 = vadd.f32 0.0, %v6743
  %v6745 = vpop.f32.mrf.mxu0
  %v6746 = vadd.f32 0.0, %v6745
  %6747 = vmatmul.bf16.gmra.mxu0 %v6584
  %v6748 = vpop.f32.mrf.mxu0
  %v6749 = vadd.f32 0.0, %v6748
  %v6750 = vpop.f32.mrf.mxu0
  %v6751 = vadd.f32 0.0, %v6750
  %6752 = vmatmul.bf16.gmra.mxu0 %v6587
  %v6753 = vpop.f32.mrf.mxu0
  %v6754 = vadd.f32 0.0, %v6753
  %v6755 = vpop.f32.mrf.mxu0
  %v6756 = vadd.f32 0.0, %v6755
  %6757 = vdwg.mxu0
  %v6758 = vadd.f32 %v6324, %v6599
  %v6759 = vadd.f32 %v6325, %v6601
  %v6760 = vadd.f32 %v6326, %v6604
  %v6761 = vadd.f32 %v6327, %v6606
  %v6762 = vadd.f32 %v6328, %v6609
  %v6763 = vadd.f32 %v6329, %v6611
  %v6764 = vadd.f32 %v6330, %v6614
  %v6765 = vadd.f32 %v6331, %v6616
  %v6766 = vadd.f32 %v6332, %v6619
  %v6767 = vadd.f32 %v6333, %v6621
  %v6768 = vadd.f32 %v6334, %v6624
  %v6769 = vadd.f32 %v6335, %v6626
  %v6770 = vadd.f32 %v6336, %v6629
  %v6771 = vadd.f32 %v6337, %v6631
  %v6772 = vadd.f32 %v6338, %v6634
  %v6773 = vadd.f32 %v6339, %v6636
  %v6774 = vadd.f32 %v6340, %v6639
  %v6775 = vadd.f32 %v6341, %v6641
  %v6776 = vadd.f32 %v6342, %v6644
  %v6777 = vadd.f32 %v6343, %v6646
  %v6778 = vadd.f32 %v6344, %v6649
  %v6779 = vadd.f32 %v6345, %v6651
  %v6780 = vadd.f32 %v6346, %v6654
  %v6781 = vadd.f32 %v6347, %v6656
  %v6782 = vadd.f32 %v6348, %v6659
  %v6783 = vadd.f32 %v6349, %v6661
  %v6784 = vadd.f32 %v6350, %v6664
  %v6785 = vadd.f32 %v6351, %v6666
  %v6786 = vadd.f32 %v6352, %v6669
  %v6787 = vadd.f32 %v6353, %v6671
  %v6788 = vadd.f32 %v6354, %v6674
  %v6789 = vadd.f32 %v6355, %v6676
  %v6790 = vadd.f32 %v6356, %v6679
  %v6791 = vadd.f32 %v6357, %v6681
  %v6792 = vadd.f32 %v6358, %v6684
  %v6793 = vadd.f32 %v6359, %v6686
  %v6794 = vadd.f32 %v6360, %v6689
  %v6795 = vadd.f32 %v6361, %v6691
  %v6796 = vadd.f32 %v6362, %v6694
  %v6797 = vadd.f32 %v6363, %v6696
  %v6798 = vadd.f32 %v6364, %v6699
  %v6799 = vadd.f32 %v6365, %v6701
  %v6800 = vadd.f32 %v6366, %v6704
  %v6801 = vadd.f32 %v6367, %v6706
  %v6802 = vadd.f32 %v6368, %v6709
  %v6803 = vadd.f32 %v6369, %v6711
  %v6804 = vadd.f32 %v6370, %v6714
  %v6805 = vadd.f32 %v6371, %v6716
  %v6806 = vadd.f32 %v6372, %v6719
  %v6807 = vadd.f32 %v6373, %v6721
  %v6808 = vadd.f32 %v6374, %v6724
  %v6809 = vadd.f32 %v6375, %v6726
  %v6810 = vadd.f32 %v6376, %v6729
  %v6811 = vadd.f32 %v6377, %v6731
  %v6812 = vadd.f32 %v6378, %v6734
  %v6813 = vadd.f32 %v6379, %v6736
  %v6814 = vadd.f32 %v6380, %v6739
  %v6815 = vadd.f32 %v6381, %v6741
  %v6816 = vadd.f32 %v6382, %v6744
  %v6817 = vadd.f32 %v6383, %v6746
  %v6818 = vadd.f32 %v6384, %v6749
  %v6819 = vadd.f32 %v6385, %v6751
  %v6820 = vadd.f32 %v6386, %v6754
  %v6821 = vadd.f32 %v6387, %v6756
  %v6822 = vld [vmem:[%s163 + $0x2] sm:$0xff]
  %v6823 = vld [vmem:[%s163 + $0xa] sm:$0xff]
  %v6824 = vld [vmem:[%s163 + $0x1a] sm:$0xff]
  %v6825 = vld [vmem:[%s163 + $0x22] sm:$0xff]
  %v6826 = vld [vmem:[%s163 + $0x32] sm:$0xff]
  %v6827 = vld [vmem:[%s163 + $0x3a] sm:$0xff]
  %v6828 = vld [vmem:[%s163 + $0x4a] sm:$0xff]
  %v6829 = vld [vmem:[%s163 + $0x52] sm:$0xff]
  %v6830 = vld [vmem:[%s163 + $0x62] sm:$0xff]
  %v6831 = vld [vmem:[%s163 + $0x6a] sm:$0xff]
  %v6832 = vld [vmem:[%s163 + $0x7a] sm:$0xff]
  %v6833 = vld [vmem:[%s163 + $0x82] sm:$0xff]
  %v6834 = vld [vmem:[%s163 + $0x92] sm:$0xff]
  %v6835 = vld [vmem:[%s163 + $0x9a] sm:$0xff]
  %v6836 = vld [vmem:[%s163 + $0xaa] sm:$0xff]
  %v6837 = vld [vmem:[%s163 + $0xb2] sm:$0xff]
  %v6838 = vld [vmem:[%s163 + $0xc2] sm:$0xff]
  %v6839 = vld [vmem:[%s163 + $0xca] sm:$0xff]
  %v6840 = vld [vmem:[%s163 + $0xda] sm:$0xff]
  %v6841 = vld [vmem:[%s163 + $0xe2] sm:$0xff]
  %v6842 = vld [vmem:[%s163 + $0xf2] sm:$0xff]
  %v6843 = vld [vmem:[%s163 + $0xfa] sm:$0xff]
  %v6844 = vld [vmem:[%s163 + $0x10a] sm:$0xff]
  %v6845 = vld [vmem:[%s163 + $0x112] sm:$0xff]
  %v6846 = vld [vmem:[%s163 + $0x122] sm:$0xff]
  %v6847 = vld [vmem:[%s163 + $0x12a] sm:$0xff]
  %v6848 = vld [vmem:[%s163 + $0x13a] sm:$0xff]
  %v6849 = vld [vmem:[%s163 + $0x142] sm:$0xff]
  %v6850 = vld [vmem:[%s163 + $0x152] sm:$0xff]
  %v6851 = vld [vmem:[%s163 + $0x15a] sm:$0xff]
  %v6852 = vld [vmem:[%s163 + $0x16a] sm:$0xff]
  %v6853 = vld [vmem:[%s163 + $0x172] sm:$0xff]
  %v6854 = vld [vmem:[%s163 + $0x1b2] sm:$0xff]
  %v6855 = vld [vmem:[%s163 + $0x1ba] sm:$0xff]
  %v6856 = vld [vmem:[%s163 + $0x1ca] sm:$0xff]
  %v6857 = vld [vmem:[%s163 + $0x1d2] sm:$0xff]
  %v6858 = vld [vmem:[%s163 + $0x1e2] sm:$0xff]
  %v6859 = vld [vmem:[%s163 + $0x1ea] sm:$0xff]
  %v6860 = vld [vmem:[%s163 + $0x1fa] sm:$0xff]
  %v6861 = vld [vmem:[%s163 + $0x202] sm:$0xff]
  %v6862 = vld [vmem:[%s163 + $0x212] sm:$0xff]
  %v6863 = vld [vmem:[%s163 + $0x21a] sm:$0xff]
  %v6864 = vld [vmem:[%s163 + $0x22a] sm:$0xff]
  %v6865 = vld [vmem:[%s163 + $0x232] sm:$0xff]
  %v6866 = vld [vmem:[%s163 + $0x242] sm:$0xff]
  %v6867 = vld [vmem:[%s163 + $0x24a] sm:$0xff]
  %v6868 = vld [vmem:[%s163 + $0x25a] sm:$0xff]
  %v6869 = vld [vmem:[%s163 + $0x262] sm:$0xff]
  %v6870 = vld [vmem:[%s163 + $0x272] sm:$0xff]
  %v6871 = vld [vmem:[%s163 + $0x27a] sm:$0xff]
  %v6872 = vld [vmem:[%s163 + $0x28a] sm:$0xff]
  %v6873 = vld [vmem:[%s163 + $0x292] sm:$0xff]
  %v6874 = vld [vmem:[%s163 + $0x2a2] sm:$0xff]
  %v6875 = vld [vmem:[%s163 + $0x2aa] sm:$0xff]
  %v6876 = vld [vmem:[%s163 + $0x2ba] sm:$0xff]
  %v6877 = vld [vmem:[%s163 + $0x2c2] sm:$0xff]
  %v6878 = vld [vmem:[%s163 + $0x2d2] sm:$0xff]
  %v6879 = vld [vmem:[%s163 + $0x2da] sm:$0xff]
  %v6880 = vld [vmem:[%s163 + $0x2ea] sm:$0xff]
  %v6881 = vld [vmem:[%s163 + $0x2f2] sm:$0xff]
  %v6882 = vld [vmem:[%s163 + $0x302] sm:$0xff]
  %v6883 = vld [vmem:[%s163 + $0x30a] sm:$0xff]
  %v6884 = vld [vmem:[%s163 + $0x31a] sm:$0xff]
  %v6885 = vld [vmem:[%s163 + $0x322] sm:$0xff]
  %v6886 = vpack.c.bf16 %v6823, %v6822
  %v6887 = vpack.c.bf16 %v6825, %v6824
  %v6888 = vpack.c.bf16 %v6827, %v6826
  %v6889 = vpack.c.bf16 %v6829, %v6828
  %v6890 = vpack.c.bf16 %v6831, %v6830
  %v6891 = vpack.c.bf16 %v6833, %v6832
  %v6892 = vpack.c.bf16 %v6835, %v6834
  %v6893 = vpack.c.bf16 %v6837, %v6836
  %v6894 = vpack.c.bf16 %v6839, %v6838
  %v6895 = vpack.c.bf16 %v6841, %v6840
  %v6896 = vpack.c.bf16 %v6843, %v6842
  %v6897 = vpack.c.bf16 %v6845, %v6844
  %v6898 = vpack.c.bf16 %v6847, %v6846
  %v6899 = vpack.c.bf16 %v6849, %v6848
  %v6900 = vpack.c.bf16 %v6851, %v6850
  %v6901 = vpack.c.bf16 %v6853, %v6852
  %v6902 = vpack.c.bf16 %v6855, %v6854
  %v6903 = vpack.c.bf16 %v6857, %v6856
  %v6904 = vpack.c.bf16 %v6859, %v6858
  %v6905 = vpack.c.bf16 %v6861, %v6860
  %v6906 = vpack.c.bf16 %v6863, %v6862
  %v6907 = vpack.c.bf16 %v6865, %v6864
  %v6908 = vpack.c.bf16 %v6867, %v6866
  %v6909 = vpack.c.bf16 %v6869, %v6868
  %v6910 = vpack.c.bf16 %v6871, %v6870
  %v6911 = vpack.c.bf16 %v6873, %v6872
  %v6912 = vpack.c.bf16 %v6875, %v6874
  %v6913 = vpack.c.bf16 %v6877, %v6876
  %v6914 = vpack.c.bf16 %v6879, %v6878
  %v6915 = vpack.c.bf16 %v6881, %v6880
  %v6916 = vpack.c.bf16 %v6883, %v6882
  %v6917 = vpack.c.bf16 %v6885, %v6884
  %s6918 = scalar_lea.vmem %s2, 40
  %v6919 = vld [vmem:[%s6918] sm:$0xf]
  %v6920 = vld [vmem:[%s6918 + $0x4] sm:$0xf]
  %v6923 = vunpack.c.l.b16 %v6919
  %v6924 = vunpack.c.l.b16 %v6920
  %v6925 = vpack.c.b16 %v6924, %v6923
  %v6928 = vsel %vm21, %v6886, 0
  %v6931 = vsel %vm21, %v6887, 0
  %v6934 = vsel %vm21, %v6888, 0
  %v6937 = vsel %vm21, %v6889, 0
  %v6940 = vsel %vm21, %v6890, 0
  %v6943 = vsel %vm21, %v6891, 0
  %v6946 = vsel %vm21, %v6892, 0
  %v6949 = vsel %vm21, %v6893, 0
  %v6952 = vsel %vm21, %v6894, 0
  %v6955 = vsel %vm21, %v6895, 0
  %v6958 = vsel %vm21, %v6896, 0
  %v6961 = vsel %vm21, %v6897, 0
  %v6964 = vsel %vm21, %v6898, 0
  %v6967 = vsel %vm21, %v6899, 0
  %v6970 = vsel %vm21, %v6900, 0
  %v6973 = vsel %vm21, %v6901, 0
  %v6976 = vsel %vm21, %v6902, 0
  %v6979 = vsel %vm21, %v6903, 0
  %v6982 = vsel %vm21, %v6904, 0
  %v6985 = vsel %vm21, %v6905, 0
  %v6988 = vsel %vm21, %v6906, 0
  %v6991 = vsel %vm21, %v6907, 0
  %v6994 = vsel %vm21, %v6908, 0
  %v6997 = vsel %vm21, %v6909, 0
  %v7000 = vsel %vm21, %v6910, 0
  %v7003 = vsel %vm21, %v6911, 0
  %v7006 = vsel %vm21, %v6912, 0
  %v7009 = vsel %vm21, %v6913, 0
  %v7012 = vsel %vm21, %v6914, 0
  %v7015 = vsel %vm21, %v6915, 0
  %v7018 = vsel %vm21, %v6916, 0
  %v7021 = vsel %vm21, %v6917, 0
  %7023 = vmatpush.bf16.msra.mxu0 0
  %7024 = vmatpush.bf16.msra.mxu0 0
  %7025 = vmatpush.bf16.msra.mxu0 0
  %7026 = vmatpush.bf16.msra.mxu0 0
  %7027 = vmatpush.bf16.msra.mxu0 0
  %7028 = vmatpush.bf16.msra.mxu0 0
  %7029 = vmatpush.bf16.msra.mxu0 0
  %7030 = vmatpush.bf16.msra.mxu0 %v6925
  %7031 = vmatmul.bf16.gmra.mxu0 %v6928
  %v7032 = vpop.f32.mrf.mxu0
  %v7033 = vadd.f32 0.0, %v7032
  %v7034 = vpop.f32.mrf.mxu0
  %v7035 = vadd.f32 0.0, %v7034
  %7036 = vmatmul.bf16.gmra.mxu0 %v6931
  %v7037 = vpop.f32.mrf.mxu0
  %v7038 = vadd.f32 0.0, %v7037
  %v7039 = vpop.f32.mrf.mxu0
  %v7040 = vadd.f32 0.0, %v7039
  %7041 = vmatmul.bf16.gmra.mxu0 %v6934
  %v7042 = vpop.f32.mrf.mxu0
  %v7043 = vadd.f32 0.0, %v7042
  %v7044 = vpop.f32.mrf.mxu0
  %v7045 = vadd.f32 0.0, %v7044
  %7046 = vmatmul.bf16.gmra.mxu0 %v6937
  %v7047 = vpop.f32.mrf.mxu0
  %v7048 = vadd.f32 0.0, %v7047
  %v7049 = vpop.f32.mrf.mxu0
  %v7050 = vadd.f32 0.0, %v7049
  %7051 = vmatmul.bf16.gmra.mxu0 %v6940
  %v7052 = vpop.f32.mrf.mxu0
  %v7053 = vadd.f32 0.0, %v7052
  %v7054 = vpop.f32.mrf.mxu0
  %v7055 = vadd.f32 0.0, %v7054
  %7056 = vmatmul.bf16.gmra.mxu0 %v6943
  %v7057 = vpop.f32.mrf.mxu0
  %v7058 = vadd.f32 0.0, %v7057
  %v7059 = vpop.f32.mrf.mxu0
  %v7060 = vadd.f32 0.0, %v7059
  %7061 = vmatmul.bf16.gmra.mxu0 %v6946
  %v7062 = vpop.f32.mrf.mxu0
  %v7063 = vadd.f32 0.0, %v7062
  %v7064 = vpop.f32.mrf.mxu0
  %v7065 = vadd.f32 0.0, %v7064
  %7066 = vmatmul.bf16.gmra.mxu0 %v6949
  %v7067 = vpop.f32.mrf.mxu0
  %v7068 = vadd.f32 0.0, %v7067
  %v7069 = vpop.f32.mrf.mxu0
  %v7070 = vadd.f32 0.0, %v7069
  %7071 = vmatmul.bf16.gmra.mxu0 %v6952
  %v7072 = vpop.f32.mrf.mxu0
  %v7073 = vadd.f32 0.0, %v7072
  %v7074 = vpop.f32.mrf.mxu0
  %v7075 = vadd.f32 0.0, %v7074
  %7076 = vmatmul.bf16.gmra.mxu0 %v6955
  %v7077 = vpop.f32.mrf.mxu0
  %v7078 = vadd.f32 0.0, %v7077
  %v7079 = vpop.f32.mrf.mxu0
  %v7080 = vadd.f32 0.0, %v7079
  %7081 = vmatmul.bf16.gmra.mxu0 %v6958
  %v7082 = vpop.f32.mrf.mxu0
  %v7083 = vadd.f32 0.0, %v7082
  %v7084 = vpop.f32.mrf.mxu0
  %v7085 = vadd.f32 0.0, %v7084
  %7086 = vmatmul.bf16.gmra.mxu0 %v6961
  %v7087 = vpop.f32.mrf.mxu0
  %v7088 = vadd.f32 0.0, %v7087
  %v7089 = vpop.f32.mrf.mxu0
  %v7090 = vadd.f32 0.0, %v7089
  %7091 = vmatmul.bf16.gmra.mxu0 %v6964
  %v7092 = vpop.f32.mrf.mxu0
  %v7093 = vadd.f32 0.0, %v7092
  %v7094 = vpop.f32.mrf.mxu0
  %v7095 = vadd.f32 0.0, %v7094
  %7096 = vmatmul.bf16.gmra.mxu0 %v6967
  %v7097 = vpop.f32.mrf.mxu0
  %v7098 = vadd.f32 0.0, %v7097
  %v7099 = vpop.f32.mrf.mxu0
  %v7100 = vadd.f32 0.0, %v7099
  %7101 = vmatmul.bf16.gmra.mxu0 %v6970
  %v7102 = vpop.f32.mrf.mxu0
  %v7103 = vadd.f32 0.0, %v7102
  %v7104 = vpop.f32.mrf.mxu0
  %v7105 = vadd.f32 0.0, %v7104
  %7106 = vmatmul.bf16.gmra.mxu0 %v6973
  %v7107 = vpop.f32.mrf.mxu0
  %v7108 = vadd.f32 0.0, %v7107
  %v7109 = vpop.f32.mrf.mxu0
  %v7110 = vadd.f32 0.0, %v7109
  %7111 = vmatmul.bf16.gmra.mxu0 %v6976
  %v7112 = vpop.f32.mrf.mxu0
  %v7113 = vadd.f32 0.0, %v7112
  %v7114 = vpop.f32.mrf.mxu0
  %v7115 = vadd.f32 0.0, %v7114
  %7116 = vmatmul.bf16.gmra.mxu0 %v6979
  %v7117 = vpop.f32.mrf.mxu0
  %v7118 = vadd.f32 0.0, %v7117
  %v7119 = vpop.f32.mrf.mxu0
  %v7120 = vadd.f32 0.0, %v7119
  %7121 = vmatmul.bf16.gmra.mxu0 %v6982
  %v7122 = vpop.f32.mrf.mxu0
  %v7123 = vadd.f32 0.0, %v7122
  %v7124 = vpop.f32.mrf.mxu0
  %v7125 = vadd.f32 0.0, %v7124
  %7126 = vmatmul.bf16.gmra.mxu0 %v6985
  %v7127 = vpop.f32.mrf.mxu0
  %v7128 = vadd.f32 0.0, %v7127
  %v7129 = vpop.f32.mrf.mxu0
  %v7130 = vadd.f32 0.0, %v7129
  %7131 = vmatmul.bf16.gmra.mxu0 %v6988
  %v7132 = vpop.f32.mrf.mxu0
  %v7133 = vadd.f32 0.0, %v7132
  %v7134 = vpop.f32.mrf.mxu0
  %v7135 = vadd.f32 0.0, %v7134
  %7136 = vmatmul.bf16.gmra.mxu0 %v6991
  %v7137 = vpop.f32.mrf.mxu0
  %v7138 = vadd.f32 0.0, %v7137
  %v7139 = vpop.f32.mrf.mxu0
  %v7140 = vadd.f32 0.0, %v7139
  %7141 = vmatmul.bf16.gmra.mxu0 %v6994
  %v7142 = vpop.f32.mrf.mxu0
  %v7143 = vadd.f32 0.0, %v7142
  %v7144 = vpop.f32.mrf.mxu0
  %v7145 = vadd.f32 0.0, %v7144
  %7146 = vmatmul.bf16.gmra.mxu0 %v6997
  %v7147 = vpop.f32.mrf.mxu0
  %v7148 = vadd.f32 0.0, %v7147
  %v7149 = vpop.f32.mrf.mxu0
  %v7150 = vadd.f32 0.0, %v7149
  %7151 = vmatmul.bf16.gmra.mxu0 %v7000
  %v7152 = vpop.f32.mrf.mxu0
  %v7153 = vadd.f32 0.0, %v7152
  %v7154 = vpop.f32.mrf.mxu0
  %v7155 = vadd.f32 0.0, %v7154
  %7156 = vmatmul.bf16.gmra.mxu0 %v7003
  %v7157 = vpop.f32.mrf.mxu0
  %v7158 = vadd.f32 0.0, %v7157
  %v7159 = vpop.f32.mrf.mxu0
  %v7160 = vadd.f32 0.0, %v7159
  %7161 = vmatmul.bf16.gmra.mxu0 %v7006
  %v7162 = vpop.f32.mrf.mxu0
  %v7163 = vadd.f32 0.0, %v7162
  %v7164 = vpop.f32.mrf.mxu0
  %v7165 = vadd.f32 0.0, %v7164
  %7166 = vmatmul.bf16.gmra.mxu0 %v7009
  %v7167 = vpop.f32.mrf.mxu0
  %v7168 = vadd.f32 0.0, %v7167
  %v7169 = vpop.f32.mrf.mxu0
  %v7170 = vadd.f32 0.0, %v7169
  %7171 = vmatmul.bf16.gmra.mxu0 %v7012
  %v7172 = vpop.f32.mrf.mxu0
  %v7173 = vadd.f32 0.0, %v7172
  %v7174 = vpop.f32.mrf.mxu0
  %v7175 = vadd.f32 0.0, %v7174
  %7176 = vmatmul.bf16.gmra.mxu0 %v7015
  %v7177 = vpop.f32.mrf.mxu0
  %v7178 = vadd.f32 0.0, %v7177
  %v7179 = vpop.f32.mrf.mxu0
  %v7180 = vadd.f32 0.0, %v7179
  %7181 = vmatmul.bf16.gmra.mxu0 %v7018
  %v7182 = vpop.f32.mrf.mxu0
  %v7183 = vadd.f32 0.0, %v7182
  %v7184 = vpop.f32.mrf.mxu0
  %v7185 = vadd.f32 0.0, %v7184
  %7186 = vmatmul.bf16.gmra.mxu0 %v7021
  %v7187 = vpop.f32.mrf.mxu0
  %v7188 = vadd.f32 0.0, %v7187
  %v7189 = vpop.f32.mrf.mxu0
  %v7190 = vadd.f32 0.0, %v7189
  %7191 = vdwg.mxu0
  %v7192 = vadd.f32 %v6758, %v7033
  %v7193 = vadd.f32 %v6759, %v7035
  %v7194 = vadd.f32 %v6760, %v7038
  %v7195 = vadd.f32 %v6761, %v7040
  %v7196 = vadd.f32 %v6762, %v7043
  %v7197 = vadd.f32 %v6763, %v7045
  %v7198 = vadd.f32 %v6764, %v7048
  %v7199 = vadd.f32 %v6765, %v7050
  %v7200 = vadd.f32 %v6766, %v7053
  %v7201 = vadd.f32 %v6767, %v7055
  %v7202 = vadd.f32 %v6768, %v7058
  %v7203 = vadd.f32 %v6769, %v7060
  %v7204 = vadd.f32 %v6770, %v7063
  %v7205 = vadd.f32 %v6771, %v7065
  %v7206 = vadd.f32 %v6772, %v7068
  %v7207 = vadd.f32 %v6773, %v7070
  %v7208 = vadd.f32 %v6774, %v7073
  %v7209 = vadd.f32 %v6775, %v7075
  %v7210 = vadd.f32 %v6776, %v7078
  %v7211 = vadd.f32 %v6777, %v7080
  %v7212 = vadd.f32 %v6778, %v7083
  %v7213 = vadd.f32 %v6779, %v7085
  %v7214 = vadd.f32 %v6780, %v7088
  %v7215 = vadd.f32 %v6781, %v7090
  %v7216 = vadd.f32 %v6782, %v7093
  %v7217 = vadd.f32 %v6783, %v7095
  %v7218 = vadd.f32 %v6784, %v7098
  %v7219 = vadd.f32 %v6785, %v7100
  %v7220 = vadd.f32 %v6786, %v7103
  %v7221 = vadd.f32 %v6787, %v7105
  %v7222 = vadd.f32 %v6788, %v7108
  %v7223 = vadd.f32 %v6789, %v7110
  %v7224 = vadd.f32 %v6790, %v7113
  %v7225 = vadd.f32 %v6791, %v7115
  %v7226 = vadd.f32 %v6792, %v7118
  %v7227 = vadd.f32 %v6793, %v7120
  %v7228 = vadd.f32 %v6794, %v7123
  %v7229 = vadd.f32 %v6795, %v7125
  %v7230 = vadd.f32 %v6796, %v7128
  %v7231 = vadd.f32 %v6797, %v7130
  %v7232 = vadd.f32 %v6798, %v7133
  %v7233 = vadd.f32 %v6799, %v7135
  %v7234 = vadd.f32 %v6800, %v7138
  %v7235 = vadd.f32 %v6801, %v7140
  %v7236 = vadd.f32 %v6802, %v7143
  %v7237 = vadd.f32 %v6803, %v7145
  %v7238 = vadd.f32 %v6804, %v7148
  %v7239 = vadd.f32 %v6805, %v7150
  %v7240 = vadd.f32 %v6806, %v7153
  %v7241 = vadd.f32 %v6807, %v7155
  %v7242 = vadd.f32 %v6808, %v7158
  %v7243 = vadd.f32 %v6809, %v7160
  %v7244 = vadd.f32 %v6810, %v7163
  %v7245 = vadd.f32 %v6811, %v7165
  %v7246 = vadd.f32 %v6812, %v7168
  %v7247 = vadd.f32 %v6813, %v7170
  %v7248 = vadd.f32 %v6814, %v7173
  %v7249 = vadd.f32 %v6815, %v7175
  %v7250 = vadd.f32 %v6816, %v7178
  %v7251 = vadd.f32 %v6817, %v7180
  %v7252 = vadd.f32 %v6818, %v7183
  %v7253 = vadd.f32 %v6819, %v7185
  %v7254 = vadd.f32 %v6820, %v7188
  %v7255 = vadd.f32 %v6821, %v7190
  %v7256 = vld [vmem:[%s2737] sm:$0xff]
  %v7257 = vld [vmem:[%s2737 + $0x8] sm:$0xff]
  %v7258 = vld [vmem:[%s2737 + $0x18] sm:$0xff]
  %v7259 = vld [vmem:[%s2737 + $0x20] sm:$0xff]
  %v7260 = vld [vmem:[%s2737 + $0x30] sm:$0xff]
  %v7261 = vld [vmem:[%s2737 + $0x38] sm:$0xff]
  %v7262 = vld [vmem:[%s2737 + $0x48] sm:$0xff]
  %v7263 = vld [vmem:[%s2737 + $0x50] sm:$0xff]
  %v7264 = vld [vmem:[%s2737 + $0x60] sm:$0xff]
  %v7265 = vld [vmem:[%s2737 + $0x68] sm:$0xff]
  %v7266 = vld [vmem:[%s2737 + $0x78] sm:$0xff]
  %v7267 = vld [vmem:[%s2737 + $0x80] sm:$0xff]
  %v7268 = vld [vmem:[%s2737 + $0x90] sm:$0xff]
  %v7269 = vld [vmem:[%s2737 + $0x98] sm:$0xff]
  %v7270 = vld [vmem:[%s2737 + $0xa8] sm:$0xff]
  %v7271 = vld [vmem:[%s2737 + $0xb0] sm:$0xff]
  %v7272 = vld [vmem:[%s2737 + $0xc0] sm:$0xff]
  %v7273 = vld [vmem:[%s2737 + $0xc8] sm:$0xff]
  %v7274 = vld [vmem:[%s2737 + $0xd8] sm:$0xff]
  %v7275 = vld [vmem:[%s2737 + $0xe0] sm:$0xff]
  %v7276 = vld [vmem:[%s2737 + $0xf0] sm:$0xff]
  %v7277 = vld [vmem:[%s2737 + $0xf8] sm:$0xff]
  %v7278 = vld [vmem:[%s2737 + $0x108] sm:$0xff]
  %v7279 = vld [vmem:[%s2737 + $0x110] sm:$0xff]
  %v7280 = vld [vmem:[%s2737 + $0x120] sm:$0xff]
  %v7281 = vld [vmem:[%s2737 + $0x128] sm:$0xff]
  %v7282 = vld [vmem:[%s2737 + $0x138] sm:$0xff]
  %v7283 = vld [vmem:[%s2737 + $0x140] sm:$0xff]
  %v7284 = vld [vmem:[%s2737 + $0x150] sm:$0xff]
  %v7285 = vld [vmem:[%s2737 + $0x158] sm:$0xff]
  %v7286 = vld [vmem:[%s2737 + $0x168] sm:$0xff]
  %v7287 = vld [vmem:[%s2737 + $0x170] sm:$0xff]
  %v7288 = vld [vmem:[%s2737 + $0x1b0] sm:$0xff]
  %v7289 = vld [vmem:[%s2737 + $0x1b8] sm:$0xff]
  %v7290 = vld [vmem:[%s2737 + $0x1c8] sm:$0xff]
  %v7291 = vld [vmem:[%s2737 + $0x1d0] sm:$0xff]
  %v7292 = vld [vmem:[%s2737 + $0x1e0] sm:$0xff]
  %v7293 = vld [vmem:[%s2737 + $0x1e8] sm:$0xff]
  %v7294 = vld [vmem:[%s2737 + $0x1f8] sm:$0xff]
  %v7295 = vld [vmem:[%s2737 + $0x200] sm:$0xff]
  %v7296 = vld [vmem:[%s2737 + $0x210] sm:$0xff]
  %v7297 = vld [vmem:[%s2737 + $0x218] sm:$0xff]
  %v7298 = vld [vmem:[%s2737 + $0x228] sm:$0xff]
  %v7299 = vld [vmem:[%s2737 + $0x230] sm:$0xff]
  %v7300 = vld [vmem:[%s2737 + $0x240] sm:$0xff]
  %v7301 = vld [vmem:[%s2737 + $0x248] sm:$0xff]
  %v7302 = vld [vmem:[%s2737 + $0x258] sm:$0xff]
  %v7303 = vld [vmem:[%s2737 + $0x260] sm:$0xff]
  %v7304 = vld [vmem:[%s2737 + $0x270] sm:$0xff]
  %v7305 = vld [vmem:[%s2737 + $0x278] sm:$0xff]
  %v7306 = vld [vmem:[%s2737 + $0x288] sm:$0xff]
  %v7307 = vld [vmem:[%s2737 + $0x290] sm:$0xff]
  %v7308 = vld [vmem:[%s2737 + $0x2a0] sm:$0xff]
  %v7309 = vld [vmem:[%s2737 + $0x2a8] sm:$0xff]
  %v7310 = vld [vmem:[%s2737 + $0x2b8] sm:$0xff]
  %v7311 = vld [vmem:[%s2737 + $0x2c0] sm:$0xff]
  %v7312 = vld [vmem:[%s2737 + $0x2d0] sm:$0xff]
  %v7313 = vld [vmem:[%s2737 + $0x2d8] sm:$0xff]
  %v7314 = vld [vmem:[%s2737 + $0x2e8] sm:$0xff]
  %v7315 = vld [vmem:[%s2737 + $0x2f0] sm:$0xff]
  %v7316 = vld [vmem:[%s2737 + $0x300] sm:$0xff]
  %v7317 = vld [vmem:[%s2737 + $0x308] sm:$0xff]
  %v7318 = vld [vmem:[%s2737 + $0x318] sm:$0xff]
  %v7319 = vld [vmem:[%s2737 + $0x320] sm:$0xff]
  %v7320 = vpack.c.bf16 %v7257, %v7256
  %v7321 = vpack.c.bf16 %v7259, %v7258
  %v7322 = vpack.c.bf16 %v7261, %v7260
  %v7323 = vpack.c.bf16 %v7263, %v7262
  %v7324 = vpack.c.bf16 %v7265, %v7264
  %v7325 = vpack.c.bf16 %v7267, %v7266
  %v7326 = vpack.c.bf16 %v7269, %v7268
  %v7327 = vpack.c.bf16 %v7271, %v7270
  %v7328 = vpack.c.bf16 %v7273, %v7272
  %v7329 = vpack.c.bf16 %v7275, %v7274
  %v7330 = vpack.c.bf16 %v7277, %v7276
  %v7331 = vpack.c.bf16 %v7279, %v7278
  %v7332 = vpack.c.bf16 %v7281, %v7280
  %v7333 = vpack.c.bf16 %v7283, %v7282
  %v7334 = vpack.c.bf16 %v7285, %v7284
  %v7335 = vpack.c.bf16 %v7287, %v7286
  %v7336 = vpack.c.bf16 %v7289, %v7288
  %v7337 = vpack.c.bf16 %v7291, %v7290
  %v7338 = vpack.c.bf16 %v7293, %v7292
  %v7339 = vpack.c.bf16 %v7295, %v7294
  %v7340 = vpack.c.bf16 %v7297, %v7296
  %v7341 = vpack.c.bf16 %v7299, %v7298
  %v7342 = vpack.c.bf16 %v7301, %v7300
  %v7343 = vpack.c.bf16 %v7303, %v7302
  %v7344 = vpack.c.bf16 %v7305, %v7304
  %v7345 = vpack.c.bf16 %v7307, %v7306
  %v7346 = vpack.c.bf16 %v7309, %v7308
  %v7347 = vpack.c.bf16 %v7311, %v7310
  %v7348 = vpack.c.bf16 %v7313, %v7312
  %v7349 = vpack.c.bf16 %v7315, %v7314
  %v7350 = vpack.c.bf16 %v7317, %v7316
  %v7351 = vpack.c.bf16 %v7319, %v7318
  %s7352 = scalar_lea.vmem %s2, 48
  %v7353 = vld [vmem:[%s7352] sm:$0xf]
  %v7354 = vld [vmem:[%s7352 + $0x4] sm:$0xf]
  %v7357 = vunpack.c.l.b16 %v7353
  %v7358 = vunpack.c.l.b16 %v7354
  %v7359 = vpack.c.b16 %v7358, %v7357
  %v7362 = vsel %vm21, %v7320, 0
  %v7365 = vsel %vm21, %v7321, 0
  %v7368 = vsel %vm21, %v7322, 0
  %v7371 = vsel %vm21, %v7323, 0
  %v7374 = vsel %vm21, %v7324, 0
  %v7377 = vsel %vm21, %v7325, 0
  %v7380 = vsel %vm21, %v7326, 0
  %v7383 = vsel %vm21, %v7327, 0
  %v7386 = vsel %vm21, %v7328, 0
  %v7389 = vsel %vm21, %v7329, 0
  %v7392 = vsel %vm21, %v7330, 0
  %v7395 = vsel %vm21, %v7331, 0
  %v7398 = vsel %vm21, %v7332, 0
  %v7401 = vsel %vm21, %v7333, 0
  %v7404 = vsel %vm21, %v7334, 0
  %v7407 = vsel %vm21, %v7335, 0
  %v7410 = vsel %vm21, %v7336, 0
  %v7413 = vsel %vm21, %v7337, 0
  %v7416 = vsel %vm21, %v7338, 0
  %v7419 = vsel %vm21, %v7339, 0
  %v7422 = vsel %vm21, %v7340, 0
  %v7425 = vsel %vm21, %v7341, 0
  %v7428 = vsel %vm21, %v7342, 0
  %v7431 = vsel %vm21, %v7343, 0
  %v7434 = vsel %vm21, %v7344, 0
  %v7437 = vsel %vm21, %v7345, 0
  %v7440 = vsel %vm21, %v7346, 0
  %v7443 = vsel %vm21, %v7347, 0
  %v7446 = vsel %vm21, %v7348, 0
  %v7449 = vsel %vm21, %v7349, 0
  %v7452 = vsel %vm21, %v7350, 0
  %v7455 = vsel %vm21, %v7351, 0
  %7457 = vmatpush.bf16.msra.mxu0 0
  %7458 = vmatpush.bf16.msra.mxu0 0
  %7459 = vmatpush.bf16.msra.mxu0 0
  %7460 = vmatpush.bf16.msra.mxu0 0
  %7461 = vmatpush.bf16.msra.mxu0 0
  %7462 = vmatpush.bf16.msra.mxu0 0
  %7463 = vmatpush.bf16.msra.mxu0 0
  %7464 = vmatpush.bf16.msra.mxu0 %v7359
  %7465 = vmatmul.bf16.gmra.mxu0 %v7362
  %v7466 = vpop.f32.mrf.mxu0
  %v7467 = vadd.f32 0.0, %v7466
  %v7468 = vpop.f32.mrf.mxu0
  %v7469 = vadd.f32 0.0, %v7468
  %7470 = vmatmul.bf16.gmra.mxu0 %v7365
  %v7471 = vpop.f32.mrf.mxu0
  %v7472 = vadd.f32 0.0, %v7471
  %v7473 = vpop.f32.mrf.mxu0
  %v7474 = vadd.f32 0.0, %v7473
  %7475 = vmatmul.bf16.gmra.mxu0 %v7368
  %v7476 = vpop.f32.mrf.mxu0
  %v7477 = vadd.f32 0.0, %v7476
  %v7478 = vpop.f32.mrf.mxu0
  %v7479 = vadd.f32 0.0, %v7478
  %7480 = vmatmul.bf16.gmra.mxu0 %v7371
  %v7481 = vpop.f32.mrf.mxu0
  %v7482 = vadd.f32 0.0, %v7481
  %v7483 = vpop.f32.mrf.mxu0
  %v7484 = vadd.f32 0.0, %v7483
  %7485 = vmatmul.bf16.gmra.mxu0 %v7374
  %v7486 = vpop.f32.mrf.mxu0
  %v7487 = vadd.f32 0.0, %v7486
  %v7488 = vpop.f32.mrf.mxu0
  %v7489 = vadd.f32 0.0, %v7488
  %7490 = vmatmul.bf16.gmra.mxu0 %v7377
  %v7491 = vpop.f32.mrf.mxu0
  %v7492 = vadd.f32 0.0, %v7491
  %v7493 = vpop.f32.mrf.mxu0
  %v7494 = vadd.f32 0.0, %v7493
  %7495 = vmatmul.bf16.gmra.mxu0 %v7380
  %v7496 = vpop.f32.mrf.mxu0
  %v7497 = vadd.f32 0.0, %v7496
  %v7498 = vpop.f32.mrf.mxu0
  %v7499 = vadd.f32 0.0, %v7498
  %7500 = vmatmul.bf16.gmra.mxu0 %v7383
  %v7501 = vpop.f32.mrf.mxu0
  %v7502 = vadd.f32 0.0, %v7501
  %v7503 = vpop.f32.mrf.mxu0
  %v7504 = vadd.f32 0.0, %v7503
  %7505 = vmatmul.bf16.gmra.mxu0 %v7386
  %v7506 = vpop.f32.mrf.mxu0
  %v7507 = vadd.f32 0.0, %v7506
  %v7508 = vpop.f32.mrf.mxu0
  %v7509 = vadd.f32 0.0, %v7508
  %7510 = vmatmul.bf16.gmra.mxu0 %v7389
  %v7511 = vpop.f32.mrf.mxu0
  %v7512 = vadd.f32 0.0, %v7511
  %v7513 = vpop.f32.mrf.mxu0
  %v7514 = vadd.f32 0.0, %v7513
  %7515 = vmatmul.bf16.gmra.mxu0 %v7392
  %v7516 = vpop.f32.mrf.mxu0
  %v7517 = vadd.f32 0.0, %v7516
  %v7518 = vpop.f32.mrf.mxu0
  %v7519 = vadd.f32 0.0, %v7518
  %7520 = vmatmul.bf16.gmra.mxu0 %v7395
  %v7521 = vpop.f32.mrf.mxu0
  %v7522 = vadd.f32 0.0, %v7521
  %v7523 = vpop.f32.mrf.mxu0
  %v7524 = vadd.f32 0.0, %v7523
  %7525 = vmatmul.bf16.gmra.mxu0 %v7398
  %v7526 = vpop.f32.mrf.mxu0
  %v7527 = vadd.f32 0.0, %v7526
  %v7528 = vpop.f32.mrf.mxu0
  %v7529 = vadd.f32 0.0, %v7528
  %7530 = vmatmul.bf16.gmra.mxu0 %v7401
  %v7531 = vpop.f32.mrf.mxu0
  %v7532 = vadd.f32 0.0, %v7531
  %v7533 = vpop.f32.mrf.mxu0
  %v7534 = vadd.f32 0.0, %v7533
  %7535 = vmatmul.bf16.gmra.mxu0 %v7404
  %v7536 = vpop.f32.mrf.mxu0
  %v7537 = vadd.f32 0.0, %v7536
  %v7538 = vpop.f32.mrf.mxu0
  %v7539 = vadd.f32 0.0, %v7538
  %7540 = vmatmul.bf16.gmra.mxu0 %v7407
  %v7541 = vpop.f32.mrf.mxu0
  %v7542 = vadd.f32 0.0, %v7541
  %v7543 = vpop.f32.mrf.mxu0
  %v7544 = vadd.f32 0.0, %v7543
  %7545 = vmatmul.bf16.gmra.mxu0 %v7410
  %v7546 = vpop.f32.mrf.mxu0
  %v7547 = vadd.f32 0.0, %v7546
  %v7548 = vpop.f32.mrf.mxu0
  %v7549 = vadd.f32 0.0, %v7548
  %7550 = vmatmul.bf16.gmra.mxu0 %v7413
  %v7551 = vpop.f32.mrf.mxu0
  %v7552 = vadd.f32 0.0, %v7551
  %v7553 = vpop.f32.mrf.mxu0
  %v7554 = vadd.f32 0.0, %v7553
  %7555 = vmatmul.bf16.gmra.mxu0 %v7416
  %v7556 = vpop.f32.mrf.mxu0
  %v7557 = vadd.f32 0.0, %v7556
  %v7558 = vpop.f32.mrf.mxu0
  %v7559 = vadd.f32 0.0, %v7558
  %7560 = vmatmul.bf16.gmra.mxu0 %v7419
  %v7561 = vpop.f32.mrf.mxu0
  %v7562 = vadd.f32 0.0, %v7561
  %v7563 = vpop.f32.mrf.mxu0
  %v7564 = vadd.f32 0.0, %v7563
  %7565 = vmatmul.bf16.gmra.mxu0 %v7422
  %v7566 = vpop.f32.mrf.mxu0
  %v7567 = vadd.f32 0.0, %v7566
  %v7568 = vpop.f32.mrf.mxu0
  %v7569 = vadd.f32 0.0, %v7568
  %7570 = vmatmul.bf16.gmra.mxu0 %v7425
  %v7571 = vpop.f32.mrf.mxu0
  %v7572 = vadd.f32 0.0, %v7571
  %v7573 = vpop.f32.mrf.mxu0
  %v7574 = vadd.f32 0.0, %v7573
  %7575 = vmatmul.bf16.gmra.mxu0 %v7428
  %v7576 = vpop.f32.mrf.mxu0
  %v7577 = vadd.f32 0.0, %v7576
  %v7578 = vpop.f32.mrf.mxu0
  %v7579 = vadd.f32 0.0, %v7578
  %7580 = vmatmul.bf16.gmra.mxu0 %v7431
  %v7581 = vpop.f32.mrf.mxu0
  %v7582 = vadd.f32 0.0, %v7581
  %v7583 = vpop.f32.mrf.mxu0
  %v7584 = vadd.f32 0.0, %v7583
  %7585 = vmatmul.bf16.gmra.mxu0 %v7434
  %v7586 = vpop.f32.mrf.mxu0
  %v7587 = vadd.f32 0.0, %v7586
  %v7588 = vpop.f32.mrf.mxu0
  %v7589 = vadd.f32 0.0, %v7588
  %7590 = vmatmul.bf16.gmra.mxu0 %v7437
  %v7591 = vpop.f32.mrf.mxu0
  %v7592 = vadd.f32 0.0, %v7591
  %v7593 = vpop.f32.mrf.mxu0
  %v7594 = vadd.f32 0.0, %v7593
  %7595 = vmatmul.bf16.gmra.mxu0 %v7440
  %v7596 = vpop.f32.mrf.mxu0
  %v7597 = vadd.f32 0.0, %v7596
  %v7598 = vpop.f32.mrf.mxu0
  %v7599 = vadd.f32 0.0, %v7598
  %7600 = vmatmul.bf16.gmra.mxu0 %v7443
  %v7601 = vpop.f32.mrf.mxu0
  %v7602 = vadd.f32 0.0, %v7601
  %v7603 = vpop.f32.mrf.mxu0
  %v7604 = vadd.f32 0.0, %v7603
  %7605 = vmatmul.bf16.gmra.mxu0 %v7446
  %v7606 = vpop.f32.mrf.mxu0
  %v7607 = vadd.f32 0.0, %v7606
  %v7608 = vpop.f32.mrf.mxu0
  %v7609 = vadd.f32 0.0, %v7608
  %7610 = vmatmul.bf16.gmra.mxu0 %v7449
  %v7611 = vpop.f32.mrf.mxu0
  %v7612 = vadd.f32 0.0, %v7611
  %v7613 = vpop.f32.mrf.mxu0
  %v7614 = vadd.f32 0.0, %v7613
  %7615 = vmatmul.bf16.gmra.mxu0 %v7452
  %v7616 = vpop.f32.mrf.mxu0
  %v7617 = vadd.f32 0.0, %v7616
  %v7618 = vpop.f32.mrf.mxu0
  %v7619 = vadd.f32 0.0, %v7618
  %7620 = vmatmul.bf16.gmra.mxu0 %v7455
  %v7621 = vpop.f32.mrf.mxu0
  %v7622 = vadd.f32 0.0, %v7621
  %v7623 = vpop.f32.mrf.mxu0
  %v7624 = vadd.f32 0.0, %v7623
  %7625 = vdwg.mxu0
  %v7626 = vadd.f32 %v7192, %v7467
  %v7627 = vadd.f32 %v7193, %v7469
  %v7628 = vadd.f32 %v7194, %v7472
  %v7629 = vadd.f32 %v7195, %v7474
  %v7630 = vadd.f32 %v7196, %v7477
  %v7631 = vadd.f32 %v7197, %v7479
  %v7632 = vadd.f32 %v7198, %v7482
  %v7633 = vadd.f32 %v7199, %v7484
  %v7634 = vadd.f32 %v7200, %v7487
  %v7635 = vadd.f32 %v7201, %v7489
  %v7636 = vadd.f32 %v7202, %v7492
  %v7637 = vadd.f32 %v7203, %v7494
  %v7638 = vadd.f32 %v7204, %v7497
  %v7639 = vadd.f32 %v7205, %v7499
  %v7640 = vadd.f32 %v7206, %v7502
  %v7641 = vadd.f32 %v7207, %v7504
  %v7642 = vadd.f32 %v7208, %v7507
  %v7643 = vadd.f32 %v7209, %v7509
  %v7644 = vadd.f32 %v7210, %v7512
  %v7645 = vadd.f32 %v7211, %v7514
  %v7646 = vadd.f32 %v7212, %v7517
  %v7647 = vadd.f32 %v7213, %v7519
  %v7648 = vadd.f32 %v7214, %v7522
  %v7649 = vadd.f32 %v7215, %v7524
  %v7650 = vadd.f32 %v7216, %v7527
  %v7651 = vadd.f32 %v7217, %v7529
  %v7652 = vadd.f32 %v7218, %v7532
  %v7653 = vadd.f32 %v7219, %v7534
  %v7654 = vadd.f32 %v7220, %v7537
  %v7655 = vadd.f32 %v7221, %v7539
  %v7656 = vadd.f32 %v7222, %v7542
  %v7657 = vadd.f32 %v7223, %v7544
  %v7658 = vadd.f32 %v7224, %v7547
  %v7659 = vadd.f32 %v7225, %v7549
  %v7660 = vadd.f32 %v7226, %v7552
  %v7661 = vadd.f32 %v7227, %v7554
  %v7662 = vadd.f32 %v7228, %v7557
  %v7663 = vadd.f32 %v7229, %v7559
  %v7664 = vadd.f32 %v7230, %v7562
  %v7665 = vadd.f32 %v7231, %v7564
  %v7666 = vadd.f32 %v7232, %v7567
  %v7667 = vadd.f32 %v7233, %v7569
  %v7668 = vadd.f32 %v7234, %v7572
  %v7669 = vadd.f32 %v7235, %v7574
  %v7670 = vadd.f32 %v7236, %v7577
  %v7671 = vadd.f32 %v7237, %v7579
  %v7672 = vadd.f32 %v7238, %v7582
  %v7673 = vadd.f32 %v7239, %v7584
  %v7674 = vadd.f32 %v7240, %v7587
  %v7675 = vadd.f32 %v7241, %v7589
  %v7676 = vadd.f32 %v7242, %v7592
  %v7677 = vadd.f32 %v7243, %v7594
  %v7678 = vadd.f32 %v7244, %v7597
  %v7679 = vadd.f32 %v7245, %v7599
  %v7680 = vadd.f32 %v7246, %v7602
  %v7681 = vadd.f32 %v7247, %v7604
  %v7682 = vadd.f32 %v7248, %v7607
  %v7683 = vadd.f32 %v7249, %v7609
  %v7684 = vadd.f32 %v7250, %v7612
  %v7685 = vadd.f32 %v7251, %v7614
  %v7686 = vadd.f32 %v7252, %v7617
  %v7687 = vadd.f32 %v7253, %v7619
  %v7688 = vadd.f32 %v7254, %v7622
  %v7689 = vadd.f32 %v7255, %v7624
  %v7690 = vld [vmem:[%s2737 + $0x1] sm:$0xff]
  %v7691 = vld [vmem:[%s2737 + $0x9] sm:$0xff]
  %v7692 = vld [vmem:[%s2737 + $0x19] sm:$0xff]
  %v7693 = vld [vmem:[%s2737 + $0x21] sm:$0xff]
  %v7694 = vld [vmem:[%s2737 + $0x31] sm:$0xff]
  %v7695 = vld [vmem:[%s2737 + $0x39] sm:$0xff]
  %v7696 = vld [vmem:[%s2737 + $0x49] sm:$0xff]
  %v7697 = vld [vmem:[%s2737 + $0x51] sm:$0xff]
  %v7698 = vld [vmem:[%s2737 + $0x61] sm:$0xff]
  %v7699 = vld [vmem:[%s2737 + $0x69] sm:$0xff]
  %v7700 = vld [vmem:[%s2737 + $0x79] sm:$0xff]
  %v7701 = vld [vmem:[%s2737 + $0x81] sm:$0xff]
  %v7702 = vld [vmem:[%s2737 + $0x91] sm:$0xff]
  %v7703 = vld [vmem:[%s2737 + $0x99] sm:$0xff]
  %v7704 = vld [vmem:[%s2737 + $0xa9] sm:$0xff]
  %v7705 = vld [vmem:[%s2737 + $0xb1] sm:$0xff]
  %v7706 = vld [vmem:[%s2737 + $0xc1] sm:$0xff]
  %v7707 = vld [vmem:[%s2737 + $0xc9] sm:$0xff]
  %v7708 = vld [vmem:[%s2737 + $0xd9] sm:$0xff]
  %v7709 = vld [vmem:[%s2737 + $0xe1] sm:$0xff]
  %v7710 = vld [vmem:[%s2737 + $0xf1] sm:$0xff]
  %v7711 = vld [vmem:[%s2737 + $0xf9] sm:$0xff]
  %v7712 = vld [vmem:[%s2737 + $0x109] sm:$0xff]
  %v7713 = vld [vmem:[%s2737 + $0x111] sm:$0xff]
  %v7714 = vld [vmem:[%s2737 + $0x121] sm:$0xff]
  %v7715 = vld [vmem:[%s2737 + $0x129] sm:$0xff]
  %v7716 = vld [vmem:[%s2737 + $0x139] sm:$0xff]
  %v7717 = vld [vmem:[%s2737 + $0x141] sm:$0xff]
  %v7718 = vld [vmem:[%s2737 + $0x151] sm:$0xff]
  %v7719 = vld [vmem:[%s2737 + $0x159] sm:$0xff]
  %v7720 = vld [vmem:[%s2737 + $0x169] sm:$0xff]
  %v7721 = vld [vmem:[%s2737 + $0x171] sm:$0xff]
  %v7722 = vld [vmem:[%s2737 + $0x1b1] sm:$0xff]
  %v7723 = vld [vmem:[%s2737 + $0x1b9] sm:$0xff]
  %v7724 = vld [vmem:[%s2737 + $0x1c9] sm:$0xff]
  %v7725 = vld [vmem:[%s2737 + $0x1d1] sm:$0xff]
  %v7726 = vld [vmem:[%s2737 + $0x1e1] sm:$0xff]
  %v7727 = vld [vmem:[%s2737 + $0x1e9] sm:$0xff]
  %v7728 = vld [vmem:[%s2737 + $0x1f9] sm:$0xff]
  %v7729 = vld [vmem:[%s2737 + $0x201] sm:$0xff]
  %v7730 = vld [vmem:[%s2737 + $0x211] sm:$0xff]
  %v7731 = vld [vmem:[%s2737 + $0x219] sm:$0xff]
  %v7732 = vld [vmem:[%s2737 + $0x229] sm:$0xff]
  %v7733 = vld [vmem:[%s2737 + $0x231] sm:$0xff]
  %v7734 = vld [vmem:[%s2737 + $0x241] sm:$0xff]
  %v7735 = vld [vmem:[%s2737 + $0x249] sm:$0xff]
  %v7736 = vld [vmem:[%s2737 + $0x259] sm:$0xff]
  %v7737 = vld [vmem:[%s2737 + $0x261] sm:$0xff]
  %v7738 = vld [vmem:[%s2737 + $0x271] sm:$0xff]
  %v7739 = vld [vmem:[%s2737 + $0x279] sm:$0xff]
  %v7740 = vld [vmem:[%s2737 + $0x289] sm:$0xff]
  %v7741 = vld [vmem:[%s2737 + $0x291] sm:$0xff]
  %v7742 = vld [vmem:[%s2737 + $0x2a1] sm:$0xff]
  %v7743 = vld [vmem:[%s2737 + $0x2a9] sm:$0xff]
  %v7744 = vld [vmem:[%s2737 + $0x2b9] sm:$0xff]
  %v7745 = vld [vmem:[%s2737 + $0x2c1] sm:$0xff]
  %v7746 = vld [vmem:[%s2737 + $0x2d1] sm:$0xff]
  %v7747 = vld [vmem:[%s2737 + $0x2d9] sm:$0xff]
  %v7748 = vld [vmem:[%s2737 + $0x2e9] sm:$0xff]
  %v7749 = vld [vmem:[%s2737 + $0x2f1] sm:$0xff]
  %v7750 = vld [vmem:[%s2737 + $0x301] sm:$0xff]
  %v7751 = vld [vmem:[%s2737 + $0x309] sm:$0xff]
  %v7752 = vld [vmem:[%s2737 + $0x319] sm:$0xff]
  %v7753 = vld [vmem:[%s2737 + $0x321] sm:$0xff]
  %v7754 = vpack.c.bf16 %v7691, %v7690
  %v7755 = vpack.c.bf16 %v7693, %v7692
  %v7756 = vpack.c.bf16 %v7695, %v7694
  %v7757 = vpack.c.bf16 %v7697, %v7696
  %v7758 = vpack.c.bf16 %v7699, %v7698
  %v7759 = vpack.c.bf16 %v7701, %v7700
  %v7760 = vpack.c.bf16 %v7703, %v7702
  %v7761 = vpack.c.bf16 %v7705, %v7704
  %v7762 = vpack.c.bf16 %v7707, %v7706
  %v7763 = vpack.c.bf16 %v7709, %v7708
  %v7764 = vpack.c.bf16 %v7711, %v7710
  %v7765 = vpack.c.bf16 %v7713, %v7712
  %v7766 = vpack.c.bf16 %v7715, %v7714
  %v7767 = vpack.c.bf16 %v7717, %v7716
  %v7768 = vpack.c.bf16 %v7719, %v7718
  %v7769 = vpack.c.bf16 %v7721, %v7720
  %v7770 = vpack.c.bf16 %v7723, %v7722
  %v7771 = vpack.c.bf16 %v7725, %v7724
  %v7772 = vpack.c.bf16 %v7727, %v7726
  %v7773 = vpack.c.bf16 %v7729, %v7728
  %v7774 = vpack.c.bf16 %v7731, %v7730
  %v7775 = vpack.c.bf16 %v7733, %v7732
  %v7776 = vpack.c.bf16 %v7735, %v7734
  %v7777 = vpack.c.bf16 %v7737, %v7736
  %v7778 = vpack.c.bf16 %v7739, %v7738
  %v7779 = vpack.c.bf16 %v7741, %v7740
  %v7780 = vpack.c.bf16 %v7743, %v7742
  %v7781 = vpack.c.bf16 %v7745, %v7744
  %v7782 = vpack.c.bf16 %v7747, %v7746
  %v7783 = vpack.c.bf16 %v7749, %v7748
  %v7784 = vpack.c.bf16 %v7751, %v7750
  %v7785 = vpack.c.bf16 %v7753, %v7752
  %s7786 = scalar_lea.vmem %s2, 56
  %v7787 = vld [vmem:[%s7786] sm:$0xf]
  %v7788 = vld [vmem:[%s7786 + $0x4] sm:$0xf]
  %v7791 = vunpack.c.l.b16 %v7787
  %v7792 = vunpack.c.l.b16 %v7788
  %v7793 = vpack.c.b16 %v7792, %v7791
  %v7796 = vsel %vm21, %v7754, 0
  %v7799 = vsel %vm21, %v7755, 0
  %v7802 = vsel %vm21, %v7756, 0
  %v7805 = vsel %vm21, %v7757, 0
  %v7808 = vsel %vm21, %v7758, 0
  %v7811 = vsel %vm21, %v7759, 0
  %v7814 = vsel %vm21, %v7760, 0
  %v7817 = vsel %vm21, %v7761, 0
  %v7820 = vsel %vm21, %v7762, 0
  %v7823 = vsel %vm21, %v7763, 0
  %v7826 = vsel %vm21, %v7764, 0
  %v7829 = vsel %vm21, %v7765, 0
  %v7832 = vsel %vm21, %v7766, 0
  %v7835 = vsel %vm21, %v7767, 0
  %v7838 = vsel %vm21, %v7768, 0
  %v7841 = vsel %vm21, %v7769, 0
  %v7844 = vsel %vm21, %v7770, 0
  %v7847 = vsel %vm21, %v7771, 0
  %v7850 = vsel %vm21, %v7772, 0
  %v7853 = vsel %vm21, %v7773, 0
  %v7856 = vsel %vm21, %v7774, 0
  %v7859 = vsel %vm21, %v7775, 0
  %v7862 = vsel %vm21, %v7776, 0
  %v7865 = vsel %vm21, %v7777, 0
  %v7868 = vsel %vm21, %v7778, 0
  %v7871 = vsel %vm21, %v7779, 0
  %v7874 = vsel %vm21, %v7780, 0
  %v7877 = vsel %vm21, %v7781, 0
  %v7880 = vsel %vm21, %v7782, 0
  %v7883 = vsel %vm21, %v7783, 0
  %v7886 = vsel %vm21, %v7784, 0
  %v7889 = vsel %vm21, %v7785, 0
  %7891 = vmatpush.bf16.msra.mxu0 0
  %7892 = vmatpush.bf16.msra.mxu0 0
  %7893 = vmatpush.bf16.msra.mxu0 0
  %7894 = vmatpush.bf16.msra.mxu0 0
  %7895 = vmatpush.bf16.msra.mxu0 0
  %7896 = vmatpush.bf16.msra.mxu0 0
  %7897 = vmatpush.bf16.msra.mxu0 0
  %7898 = vmatpush.bf16.msra.mxu0 %v7793
  %7899 = vmatmul.bf16.gmra.mxu0 %v7796
  %v7900 = vpop.f32.mrf.mxu0
  %v7901 = vadd.f32 0.0, %v7900
  %v7902 = vpop.f32.mrf.mxu0
  %v7903 = vadd.f32 0.0, %v7902
  %7904 = vmatmul.bf16.gmra.mxu0 %v7799
  %v7905 = vpop.f32.mrf.mxu0
  %v7906 = vadd.f32 0.0, %v7905
  %v7907 = vpop.f32.mrf.mxu0
  %v7908 = vadd.f32 0.0, %v7907
  %7909 = vmatmul.bf16.gmra.mxu0 %v7802
  %v7910 = vpop.f32.mrf.mxu0
  %v7911 = vadd.f32 0.0, %v7910
  %v7912 = vpop.f32.mrf.mxu0
  %v7913 = vadd.f32 0.0, %v7912
  %7914 = vmatmul.bf16.gmra.mxu0 %v7805
  %v7915 = vpop.f32.mrf.mxu0
  %v7916 = vadd.f32 0.0, %v7915
  %v7917 = vpop.f32.mrf.mxu0
  %v7918 = vadd.f32 0.0, %v7917
  %7919 = vmatmul.bf16.gmra.mxu0 %v7808
  %v7920 = vpop.f32.mrf.mxu0
  %v7921 = vadd.f32 0.0, %v7920
  %v7922 = vpop.f32.mrf.mxu0
  %v7923 = vadd.f32 0.0, %v7922
  %7924 = vmatmul.bf16.gmra.mxu0 %v7811
  %v7925 = vpop.f32.mrf.mxu0
  %v7926 = vadd.f32 0.0, %v7925
  %v7927 = vpop.f32.mrf.mxu0
  %v7928 = vadd.f32 0.0, %v7927
  %7929 = vmatmul.bf16.gmra.mxu0 %v7814
  %v7930 = vpop.f32.mrf.mxu0
  %v7931 = vadd.f32 0.0, %v7930
  %v7932 = vpop.f32.mrf.mxu0
  %v7933 = vadd.f32 0.0, %v7932
  %7934 = vmatmul.bf16.gmra.mxu0 %v7817
  %v7935 = vpop.f32.mrf.mxu0
  %v7936 = vadd.f32 0.0, %v7935
  %v7937 = vpop.f32.mrf.mxu0
  %v7938 = vadd.f32 0.0, %v7937
  %7939 = vmatmul.bf16.gmra.mxu0 %v7820
  %v7940 = vpop.f32.mrf.mxu0
  %v7941 = vadd.f32 0.0, %v7940
  %v7942 = vpop.f32.mrf.mxu0
  %v7943 = vadd.f32 0.0, %v7942
  %7944 = vmatmul.bf16.gmra.mxu0 %v7823
  %v7945 = vpop.f32.mrf.mxu0
  %v7946 = vadd.f32 0.0, %v7945
  %v7947 = vpop.f32.mrf.mxu0
  %v7948 = vadd.f32 0.0, %v7947
  %7949 = vmatmul.bf16.gmra.mxu0 %v7826
  %v7950 = vpop.f32.mrf.mxu0
  %v7951 = vadd.f32 0.0, %v7950
  %v7952 = vpop.f32.mrf.mxu0
  %v7953 = vadd.f32 0.0, %v7952
  %7954 = vmatmul.bf16.gmra.mxu0 %v7829
  %v7955 = vpop.f32.mrf.mxu0
  %v7956 = vadd.f32 0.0, %v7955
  %v7957 = vpop.f32.mrf.mxu0
  %v7958 = vadd.f32 0.0, %v7957
  %7959 = vmatmul.bf16.gmra.mxu0 %v7832
  %v7960 = vpop.f32.mrf.mxu0
  %v7961 = vadd.f32 0.0, %v7960
  %v7962 = vpop.f32.mrf.mxu0
  %v7963 = vadd.f32 0.0, %v7962
  %7964 = vmatmul.bf16.gmra.mxu0 %v7835
  %v7965 = vpop.f32.mrf.mxu0
  %v7966 = vadd.f32 0.0, %v7965
  %v7967 = vpop.f32.mrf.mxu0
  %v7968 = vadd.f32 0.0, %v7967
  %7969 = vmatmul.bf16.gmra.mxu0 %v7838
  %v7970 = vpop.f32.mrf.mxu0
  %v7971 = vadd.f32 0.0, %v7970
  %v7972 = vpop.f32.mrf.mxu0
  %v7973 = vadd.f32 0.0, %v7972
  %7974 = vmatmul.bf16.gmra.mxu0 %v7841
  %v7975 = vpop.f32.mrf.mxu0
  %v7976 = vadd.f32 0.0, %v7975
  %v7977 = vpop.f32.mrf.mxu0
  %v7978 = vadd.f32 0.0, %v7977
  %7979 = vmatmul.bf16.gmra.mxu0 %v7844
  %v7980 = vpop.f32.mrf.mxu0
  %v7981 = vadd.f32 0.0, %v7980
  %v7982 = vpop.f32.mrf.mxu0
  %v7983 = vadd.f32 0.0, %v7982
  %7984 = vmatmul.bf16.gmra.mxu0 %v7847
  %v7985 = vpop.f32.mrf.mxu0
  %v7986 = vadd.f32 0.0, %v7985
  %v7987 = vpop.f32.mrf.mxu0
  %v7988 = vadd.f32 0.0, %v7987
  %7989 = vmatmul.bf16.gmra.mxu0 %v7850
  %v7990 = vpop.f32.mrf.mxu0
  %v7991 = vadd.f32 0.0, %v7990
  %v7992 = vpop.f32.mrf.mxu0
  %v7993 = vadd.f32 0.0, %v7992
  %7994 = vmatmul.bf16.gmra.mxu0 %v7853
  %v7995 = vpop.f32.mrf.mxu0
  %v7996 = vadd.f32 0.0, %v7995
  %v7997 = vpop.f32.mrf.mxu0
  %v7998 = vadd.f32 0.0, %v7997
  %7999 = vmatmul.bf16.gmra.mxu0 %v7856
  %v8000 = vpop.f32.mrf.mxu0
  %v8001 = vadd.f32 0.0, %v8000
  %v8002 = vpop.f32.mrf.mxu0
  %v8003 = vadd.f32 0.0, %v8002
  %8004 = vmatmul.bf16.gmra.mxu0 %v7859
  %v8005 = vpop.f32.mrf.mxu0
  %v8006 = vadd.f32 0.0, %v8005
  %v8007 = vpop.f32.mrf.mxu0
  %v8008 = vadd.f32 0.0, %v8007
  %8009 = vmatmul.bf16.gmra.mxu0 %v7862
  %v8010 = vpop.f32.mrf.mxu0
  %v8011 = vadd.f32 0.0, %v8010
  %v8012 = vpop.f32.mrf.mxu0
  %v8013 = vadd.f32 0.0, %v8012
  %8014 = vmatmul.bf16.gmra.mxu0 %v7865
  %v8015 = vpop.f32.mrf.mxu0
  %v8016 = vadd.f32 0.0, %v8015
  %v8017 = vpop.f32.mrf.mxu0
  %v8018 = vadd.f32 0.0, %v8017
  %8019 = vmatmul.bf16.gmra.mxu0 %v7868
  %v8020 = vpop.f32.mrf.mxu0
  %v8021 = vadd.f32 0.0, %v8020
  %v8022 = vpop.f32.mrf.mxu0
  %v8023 = vadd.f32 0.0, %v8022
  %8024 = vmatmul.bf16.gmra.mxu0 %v7871
  %v8025 = vpop.f32.mrf.mxu0
  %v8026 = vadd.f32 0.0, %v8025
  %v8027 = vpop.f32.mrf.mxu0
  %v8028 = vadd.f32 0.0, %v8027
  %8029 = vmatmul.bf16.gmra.mxu0 %v7874
  %v8030 = vpop.f32.mrf.mxu0
  %v8031 = vadd.f32 0.0, %v8030
  %v8032 = vpop.f32.mrf.mxu0
  %v8033 = vadd.f32 0.0, %v8032
  %8034 = vmatmul.bf16.gmra.mxu0 %v7877
  %v8035 = vpop.f32.mrf.mxu0
  %v8036 = vadd.f32 0.0, %v8035
  %v8037 = vpop.f32.mrf.mxu0
  %v8038 = vadd.f32 0.0, %v8037
  %8039 = vmatmul.bf16.gmra.mxu0 %v7880
  %v8040 = vpop.f32.mrf.mxu0
  %v8041 = vadd.f32 0.0, %v8040
  %v8042 = vpop.f32.mrf.mxu0
  %v8043 = vadd.f32 0.0, %v8042
  %8044 = vmatmul.bf16.gmra.mxu0 %v7883
  %v8045 = vpop.f32.mrf.mxu0
  %v8046 = vadd.f32 0.0, %v8045
  %v8047 = vpop.f32.mrf.mxu0
  %v8048 = vadd.f32 0.0, %v8047
  %8049 = vmatmul.bf16.gmra.mxu0 %v7886
  %v8050 = vpop.f32.mrf.mxu0
  %v8051 = vadd.f32 0.0, %v8050
  %v8052 = vpop.f32.mrf.mxu0
  %v8053 = vadd.f32 0.0, %v8052
  %8054 = vmatmul.bf16.gmra.mxu0 %v7889
  %v8055 = vpop.f32.mrf.mxu0
  %v8056 = vadd.f32 0.0, %v8055
  %v8057 = vpop.f32.mrf.mxu0
  %v8058 = vadd.f32 0.0, %v8057
  %8059 = vdwg.mxu0
  %v8060 = vadd.f32 %v7626, %v7901
  %v8061 = vadd.f32 %v7627, %v7903
  %v8062 = vadd.f32 %v7628, %v7906
  %v8063 = vadd.f32 %v7629, %v7908
  %v8064 = vadd.f32 %v7630, %v7911
  %v8065 = vadd.f32 %v7631, %v7913
  %v8066 = vadd.f32 %v7632, %v7916
  %v8067 = vadd.f32 %v7633, %v7918
  %v8068 = vadd.f32 %v7634, %v7921
  %v8069 = vadd.f32 %v7635, %v7923
  %v8070 = vadd.f32 %v7636, %v7926
  %v8071 = vadd.f32 %v7637, %v7928
  %v8072 = vadd.f32 %v7638, %v7931
  %v8073 = vadd.f32 %v7639, %v7933
  %v8074 = vadd.f32 %v7640, %v7936
  %v8075 = vadd.f32 %v7641, %v7938
  %v8076 = vadd.f32 %v7642, %v7941
  %v8077 = vadd.f32 %v7643, %v7943
  %v8078 = vadd.f32 %v7644, %v7946
  %v8079 = vadd.f32 %v7645, %v7948
  %v8080 = vadd.f32 %v7646, %v7951
  %v8081 = vadd.f32 %v7647, %v7953
  %v8082 = vadd.f32 %v7648, %v7956
  %v8083 = vadd.f32 %v7649, %v7958
  %v8084 = vadd.f32 %v7650, %v7961
  %v8085 = vadd.f32 %v7651, %v7963
  %v8086 = vadd.f32 %v7652, %v7966
  %v8087 = vadd.f32 %v7653, %v7968
  %v8088 = vadd.f32 %v7654, %v7971
  %v8089 = vadd.f32 %v7655, %v7973
  %v8090 = vadd.f32 %v7656, %v7976
  %v8091 = vadd.f32 %v7657, %v7978
  %v8092 = vadd.f32 %v7658, %v7981
  %v8093 = vadd.f32 %v7659, %v7983
  %v8094 = vadd.f32 %v7660, %v7986
  %v8095 = vadd.f32 %v7661, %v7988
  %v8096 = vadd.f32 %v7662, %v7991
  %v8097 = vadd.f32 %v7663, %v7993
  %v8098 = vadd.f32 %v7664, %v7996
  %v8099 = vadd.f32 %v7665, %v7998
  %v8100 = vadd.f32 %v7666, %v8001
  %v8101 = vadd.f32 %v7667, %v8003
  %v8102 = vadd.f32 %v7668, %v8006
  %v8103 = vadd.f32 %v7669, %v8008
  %v8104 = vadd.f32 %v7670, %v8011
  %v8105 = vadd.f32 %v7671, %v8013
  %v8106 = vadd.f32 %v7672, %v8016
  %v8107 = vadd.f32 %v7673, %v8018
  %v8108 = vadd.f32 %v7674, %v8021
  %v8109 = vadd.f32 %v7675, %v8023
  %v8110 = vadd.f32 %v7676, %v8026
  %v8111 = vadd.f32 %v7677, %v8028
  %v8112 = vadd.f32 %v7678, %v8031
  %v8113 = vadd.f32 %v7679, %v8033
  %v8114 = vadd.f32 %v7680, %v8036
  %v8115 = vadd.f32 %v7681, %v8038
  %v8116 = vadd.f32 %v7682, %v8041
  %v8117 = vadd.f32 %v7683, %v8043
  %v8118 = vadd.f32 %v7684, %v8046
  %v8119 = vadd.f32 %v7685, %v8048
  %v8120 = vadd.f32 %v7686, %v8051
  %v8121 = vadd.f32 %v7687, %v8053
  %v8122 = vadd.f32 %v7688, %v8056
  %v8123 = vadd.f32 %v7689, %v8058
  %v8124 = vld [vmem:[%s2737 + $0x2] sm:$0xff]
  %v8125 = vld [vmem:[%s2737 + $0xa] sm:$0xff]
  %v8126 = vld [vmem:[%s2737 + $0x1a] sm:$0xff]
  %v8127 = vld [vmem:[%s2737 + $0x22] sm:$0xff]
  %v8128 = vld [vmem:[%s2737 + $0x32] sm:$0xff]
  %v8129 = vld [vmem:[%s2737 + $0x3a] sm:$0xff]
  %v8130 = vld [vmem:[%s2737 + $0x4a] sm:$0xff]
  %v8131 = vld [vmem:[%s2737 + $0x52] sm:$0xff]
  %v8132 = vld [vmem:[%s2737 + $0x62] sm:$0xff]
  %v8133 = vld [vmem:[%s2737 + $0x6a] sm:$0xff]
  %v8134 = vld [vmem:[%s2737 + $0x7a] sm:$0xff]
  %v8135 = vld [vmem:[%s2737 + $0x82] sm:$0xff]
  %v8136 = vld [vmem:[%s2737 + $0x92] sm:$0xff]
  %v8137 = vld [vmem:[%s2737 + $0x9a] sm:$0xff]
  %v8138 = vld [vmem:[%s2737 + $0xaa] sm:$0xff]
  %v8139 = vld [vmem:[%s2737 + $0xb2] sm:$0xff]
  %v8140 = vld [vmem:[%s2737 + $0xc2] sm:$0xff]
  %v8141 = vld [vmem:[%s2737 + $0xca] sm:$0xff]
  %v8142 = vld [vmem:[%s2737 + $0xda] sm:$0xff]
  %v8143 = vld [vmem:[%s2737 + $0xe2] sm:$0xff]
  %v8144 = vld [vmem:[%s2737 + $0xf2] sm:$0xff]
  %v8145 = vld [vmem:[%s2737 + $0xfa] sm:$0xff]
  %v8146 = vld [vmem:[%s2737 + $0x10a] sm:$0xff]
  %v8147 = vld [vmem:[%s2737 + $0x112] sm:$0xff]
  %v8148 = vld [vmem:[%s2737 + $0x122] sm:$0xff]
  %v8149 = vld [vmem:[%s2737 + $0x12a] sm:$0xff]
  %v8150 = vld [vmem:[%s2737 + $0x13a] sm:$0xff]
  %v8151 = vld [vmem:[%s2737 + $0x142] sm:$0xff]
  %v8152 = vld [vmem:[%s2737 + $0x152] sm:$0xff]
  %v8153 = vld [vmem:[%s2737 + $0x15a] sm:$0xff]
  %v8154 = vld [vmem:[%s2737 + $0x16a] sm:$0xff]
  %v8155 = vld [vmem:[%s2737 + $0x172] sm:$0xff]
  %v8156 = vld [vmem:[%s2737 + $0x1b2] sm:$0xff]
  %v8157 = vld [vmem:[%s2737 + $0x1ba] sm:$0xff]
  %v8158 = vld [vmem:[%s2737 + $0x1ca] sm:$0xff]
  %v8159 = vld [vmem:[%s2737 + $0x1d2] sm:$0xff]
  %v8160 = vld [vmem:[%s2737 + $0x1e2] sm:$0xff]
  %v8161 = vld [vmem:[%s2737 + $0x1ea] sm:$0xff]
  %v8162 = vld [vmem:[%s2737 + $0x1fa] sm:$0xff]
  %v8163 = vld [vmem:[%s2737 + $0x202] sm:$0xff]
  %v8164 = vld [vmem:[%s2737 + $0x212] sm:$0xff]
  %v8165 = vld [vmem:[%s2737 + $0x21a] sm:$0xff]
  %v8166 = vld [vmem:[%s2737 + $0x22a] sm:$0xff]
  %v8167 = vld [vmem:[%s2737 + $0x232] sm:$0xff]
  %v8168 = vld [vmem:[%s2737 + $0x242] sm:$0xff]
  %v8169 = vld [vmem:[%s2737 + $0x24a] sm:$0xff]
  %v8170 = vld [vmem:[%s2737 + $0x25a] sm:$0xff]
  %v8171 = vld [vmem:[%s2737 + $0x262] sm:$0xff]
  %v8172 = vld [vmem:[%s2737 + $0x272] sm:$0xff]
  %v8173 = vld [vmem:[%s2737 + $0x27a] sm:$0xff]
  %v8174 = vld [vmem:[%s2737 + $0x28a] sm:$0xff]
  %v8175 = vld [vmem:[%s2737 + $0x292] sm:$0xff]
  %v8176 = vld [vmem:[%s2737 + $0x2a2] sm:$0xff]
  %v8177 = vld [vmem:[%s2737 + $0x2aa] sm:$0xff]
  %v8178 = vld [vmem:[%s2737 + $0x2ba] sm:$0xff]
  %v8179 = vld [vmem:[%s2737 + $0x2c2] sm:$0xff]
  %v8180 = vld [vmem:[%s2737 + $0x2d2] sm:$0xff]
  %v8181 = vld [vmem:[%s2737 + $0x2da] sm:$0xff]
  %v8182 = vld [vmem:[%s2737 + $0x2ea] sm:$0xff]
  %v8183 = vld [vmem:[%s2737 + $0x2f2] sm:$0xff]
  %v8184 = vld [vmem:[%s2737 + $0x302] sm:$0xff]
  %v8185 = vld [vmem:[%s2737 + $0x30a] sm:$0xff]
  %v8186 = vld [vmem:[%s2737 + $0x31a] sm:$0xff]
  %v8187 = vld [vmem:[%s2737 + $0x322] sm:$0xff]
  %v8188 = vpack.c.bf16 %v8125, %v8124
  %v8189 = vpack.c.bf16 %v8127, %v8126
  %v8190 = vpack.c.bf16 %v8129, %v8128
  %v8191 = vpack.c.bf16 %v8131, %v8130
  %v8192 = vpack.c.bf16 %v8133, %v8132
  %v8193 = vpack.c.bf16 %v8135, %v8134
  %v8194 = vpack.c.bf16 %v8137, %v8136
  %v8195 = vpack.c.bf16 %v8139, %v8138
  %v8196 = vpack.c.bf16 %v8141, %v8140
  %v8197 = vpack.c.bf16 %v8143, %v8142
  %v8198 = vpack.c.bf16 %v8145, %v8144
  %v8199 = vpack.c.bf16 %v8147, %v8146
  %v8200 = vpack.c.bf16 %v8149, %v8148
  %v8201 = vpack.c.bf16 %v8151, %v8150
  %v8202 = vpack.c.bf16 %v8153, %v8152
  %v8203 = vpack.c.bf16 %v8155, %v8154
  %v8204 = vpack.c.bf16 %v8157, %v8156
  %v8205 = vpack.c.bf16 %v8159, %v8158
  %v8206 = vpack.c.bf16 %v8161, %v8160
  %v8207 = vpack.c.bf16 %v8163, %v8162
  %v8208 = vpack.c.bf16 %v8165, %v8164
  %v8209 = vpack.c.bf16 %v8167, %v8166
  %v8210 = vpack.c.bf16 %v8169, %v8168
  %v8211 = vpack.c.bf16 %v8171, %v8170
  %v8212 = vpack.c.bf16 %v8173, %v8172
  %v8213 = vpack.c.bf16 %v8175, %v8174
  %v8214 = vpack.c.bf16 %v8177, %v8176
  %v8215 = vpack.c.bf16 %v8179, %v8178
  %v8216 = vpack.c.bf16 %v8181, %v8180
  %v8217 = vpack.c.bf16 %v8183, %v8182
  %v8218 = vpack.c.bf16 %v8185, %v8184
  %v8219 = vpack.c.bf16 %v8187, %v8186
  %s8220 = scalar_lea.vmem %s2, 64
  %v8221 = vld [vmem:[%s8220] sm:$0xf]
  %v8222 = vld [vmem:[%s8220 + $0x4] sm:$0xf]
  %v8225 = vunpack.c.l.b16 %v8221
  %v8226 = vunpack.c.l.b16 %v8222
  %v8227 = vpack.c.b16 %v8226, %v8225
  %v8230 = vsel %vm21, %v8188, 0
  %v8233 = vsel %vm21, %v8189, 0
  %v8236 = vsel %vm21, %v8190, 0
  %v8239 = vsel %vm21, %v8191, 0
  %v8242 = vsel %vm21, %v8192, 0
  %v8245 = vsel %vm21, %v8193, 0
  %v8248 = vsel %vm21, %v8194, 0
  %v8251 = vsel %vm21, %v8195, 0
  %v8254 = vsel %vm21, %v8196, 0
  %v8257 = vsel %vm21, %v8197, 0
  %v8260 = vsel %vm21, %v8198, 0
  %v8263 = vsel %vm21, %v8199, 0
  %v8266 = vsel %vm21, %v8200, 0
  %v8269 = vsel %vm21, %v8201, 0
  %v8272 = vsel %vm21, %v8202, 0
  %v8275 = vsel %vm21, %v8203, 0
  %v8278 = vsel %vm21, %v8204, 0
  %v8281 = vsel %vm21, %v8205, 0
  %v8284 = vsel %vm21, %v8206, 0
  %v8287 = vsel %vm21, %v8207, 0
  %v8290 = vsel %vm21, %v8208, 0
  %v8293 = vsel %vm21, %v8209, 0
  %v8296 = vsel %vm21, %v8210, 0
  %v8299 = vsel %vm21, %v8211, 0
  %v8302 = vsel %vm21, %v8212, 0
  %v8305 = vsel %vm21, %v8213, 0
  %v8308 = vsel %vm21, %v8214, 0
  %v8311 = vsel %vm21, %v8215, 0
  %v8314 = vsel %vm21, %v8216, 0
  %v8317 = vsel %vm21, %v8217, 0
  %v8320 = vsel %vm21, %v8218, 0
  %v8323 = vsel %vm21, %v8219, 0
  %8325 = vmatpush.bf16.msra.mxu0 0
  %8326 = vmatpush.bf16.msra.mxu0 0
  %8327 = vmatpush.bf16.msra.mxu0 0
  %8328 = vmatpush.bf16.msra.mxu0 0
  %8329 = vmatpush.bf16.msra.mxu0 0
  %8330 = vmatpush.bf16.msra.mxu0 0
  %8331 = vmatpush.bf16.msra.mxu0 0
  %8332 = vmatpush.bf16.msra.mxu0 %v8227
  %8333 = vmatmul.bf16.gmra.mxu0 %v8230
  %v8334 = vpop.f32.mrf.mxu0
  %v8335 = vadd.f32 0.0, %v8334
  %v8336 = vpop.f32.mrf.mxu0
  %v8337 = vadd.f32 0.0, %v8336
  %8338 = vmatmul.bf16.gmra.mxu0 %v8233
  %v8339 = vpop.f32.mrf.mxu0
  %v8340 = vadd.f32 0.0, %v8339
  %v8341 = vpop.f32.mrf.mxu0
  %v8342 = vadd.f32 0.0, %v8341
  %8343 = vmatmul.bf16.gmra.mxu0 %v8236
  %v8344 = vpop.f32.mrf.mxu0
  %v8345 = vadd.f32 0.0, %v8344
  %v8346 = vpop.f32.mrf.mxu0
  %v8347 = vadd.f32 0.0, %v8346
  %8348 = vmatmul.bf16.gmra.mxu0 %v8239
  %v8349 = vpop.f32.mrf.mxu0
  %v8350 = vadd.f32 0.0, %v8349
  %v8351 = vpop.f32.mrf.mxu0
  %v8352 = vadd.f32 0.0, %v8351
  %8353 = vmatmul.bf16.gmra.mxu0 %v8242
  %v8354 = vpop.f32.mrf.mxu0
  %v8355 = vadd.f32 0.0, %v8354
  %v8356 = vpop.f32.mrf.mxu0
  %v8357 = vadd.f32 0.0, %v8356
  %8358 = vmatmul.bf16.gmra.mxu0 %v8245
  %v8359 = vpop.f32.mrf.mxu0
  %v8360 = vadd.f32 0.0, %v8359
  %v8361 = vpop.f32.mrf.mxu0
  %v8362 = vadd.f32 0.0, %v8361
  %8363 = vmatmul.bf16.gmra.mxu0 %v8248
  %v8364 = vpop.f32.mrf.mxu0
  %v8365 = vadd.f32 0.0, %v8364
  %v8366 = vpop.f32.mrf.mxu0
  %v8367 = vadd.f32 0.0, %v8366
  %8368 = vmatmul.bf16.gmra.mxu0 %v8251
  %v8369 = vpop.f32.mrf.mxu0
  %v8370 = vadd.f32 0.0, %v8369
  %v8371 = vpop.f32.mrf.mxu0
  %v8372 = vadd.f32 0.0, %v8371
  %8373 = vmatmul.bf16.gmra.mxu0 %v8254
  %v8374 = vpop.f32.mrf.mxu0
  %v8375 = vadd.f32 0.0, %v8374
  %v8376 = vpop.f32.mrf.mxu0
  %v8377 = vadd.f32 0.0, %v8376
  %8378 = vmatmul.bf16.gmra.mxu0 %v8257
  %v8379 = vpop.f32.mrf.mxu0
  %v8380 = vadd.f32 0.0, %v8379
  %v8381 = vpop.f32.mrf.mxu0
  %v8382 = vadd.f32 0.0, %v8381
  %8383 = vmatmul.bf16.gmra.mxu0 %v8260
  %v8384 = vpop.f32.mrf.mxu0
  %v8385 = vadd.f32 0.0, %v8384
  %v8386 = vpop.f32.mrf.mxu0
  %v8387 = vadd.f32 0.0, %v8386
  %8388 = vmatmul.bf16.gmra.mxu0 %v8263
  %v8389 = vpop.f32.mrf.mxu0
  %v8390 = vadd.f32 0.0, %v8389
  %v8391 = vpop.f32.mrf.mxu0
  %v8392 = vadd.f32 0.0, %v8391
  %8393 = vmatmul.bf16.gmra.mxu0 %v8266
  %v8394 = vpop.f32.mrf.mxu0
  %v8395 = vadd.f32 0.0, %v8394
  %v8396 = vpop.f32.mrf.mxu0
  %v8397 = vadd.f32 0.0, %v8396
  %8398 = vmatmul.bf16.gmra.mxu0 %v8269
  %v8399 = vpop.f32.mrf.mxu0
  %v8400 = vadd.f32 0.0, %v8399
  %v8401 = vpop.f32.mrf.mxu0
  %v8402 = vadd.f32 0.0, %v8401
  %8403 = vmatmul.bf16.gmra.mxu0 %v8272
  %v8404 = vpop.f32.mrf.mxu0
  %v8405 = vadd.f32 0.0, %v8404
  %v8406 = vpop.f32.mrf.mxu0
  %v8407 = vadd.f32 0.0, %v8406
  %8408 = vmatmul.bf16.gmra.mxu0 %v8275
  %v8409 = vpop.f32.mrf.mxu0
  %v8410 = vadd.f32 0.0, %v8409
  %v8411 = vpop.f32.mrf.mxu0
  %v8412 = vadd.f32 0.0, %v8411
  %8413 = vmatmul.bf16.gmra.mxu0 %v8278
  %v8414 = vpop.f32.mrf.mxu0
  %v8415 = vadd.f32 0.0, %v8414
  %v8416 = vpop.f32.mrf.mxu0
  %v8417 = vadd.f32 0.0, %v8416
  %8418 = vmatmul.bf16.gmra.mxu0 %v8281
  %v8419 = vpop.f32.mrf.mxu0
  %v8420 = vadd.f32 0.0, %v8419
  %v8421 = vpop.f32.mrf.mxu0
  %v8422 = vadd.f32 0.0, %v8421
  %8423 = vmatmul.bf16.gmra.mxu0 %v8284
  %v8424 = vpop.f32.mrf.mxu0
  %v8425 = vadd.f32 0.0, %v8424
  %v8426 = vpop.f32.mrf.mxu0
  %v8427 = vadd.f32 0.0, %v8426
  %8428 = vmatmul.bf16.gmra.mxu0 %v8287
  %v8429 = vpop.f32.mrf.mxu0
  %v8430 = vadd.f32 0.0, %v8429
  %v8431 = vpop.f32.mrf.mxu0
  %v8432 = vadd.f32 0.0, %v8431
  %8433 = vmatmul.bf16.gmra.mxu0 %v8290
  %v8434 = vpop.f32.mrf.mxu0
  %v8435 = vadd.f32 0.0, %v8434
  %v8436 = vpop.f32.mrf.mxu0
  %v8437 = vadd.f32 0.0, %v8436
  %8438 = vmatmul.bf16.gmra.mxu0 %v8293
  %v8439 = vpop.f32.mrf.mxu0
  %v8440 = vadd.f32 0.0, %v8439
  %v8441 = vpop.f32.mrf.mxu0
  %v8442 = vadd.f32 0.0, %v8441
  %8443 = vmatmul.bf16.gmra.mxu0 %v8296
  %v8444 = vpop.f32.mrf.mxu0
  %v8445 = vadd.f32 0.0, %v8444
  %v8446 = vpop.f32.mrf.mxu0
  %v8447 = vadd.f32 0.0, %v8446
  %8448 = vmatmul.bf16.gmra.mxu0 %v8299
  %v8449 = vpop.f32.mrf.mxu0
  %v8450 = vadd.f32 0.0, %v8449
  %v8451 = vpop.f32.mrf.mxu0
  %v8452 = vadd.f32 0.0, %v8451
  %8453 = vmatmul.bf16.gmra.mxu0 %v8302
  %v8454 = vpop.f32.mrf.mxu0
  %v8455 = vadd.f32 0.0, %v8454
  %v8456 = vpop.f32.mrf.mxu0
  %v8457 = vadd.f32 0.0, %v8456
  %8458 = vmatmul.bf16.gmra.mxu0 %v8305
  %v8459 = vpop.f32.mrf.mxu0
  %v8460 = vadd.f32 0.0, %v8459
  %v8461 = vpop.f32.mrf.mxu0
  %v8462 = vadd.f32 0.0, %v8461
  %8463 = vmatmul.bf16.gmra.mxu0 %v8308
  %v8464 = vpop.f32.mrf.mxu0
  %v8465 = vadd.f32 0.0, %v8464
  %v8466 = vpop.f32.mrf.mxu0
  %v8467 = vadd.f32 0.0, %v8466
  %8468 = vmatmul.bf16.gmra.mxu0 %v8311
  %v8469 = vpop.f32.mrf.mxu0
  %v8470 = vadd.f32 0.0, %v8469
  %v8471 = vpop.f32.mrf.mxu0
  %v8472 = vadd.f32 0.0, %v8471
  %8473 = vmatmul.bf16.gmra.mxu0 %v8314
  %v8474 = vpop.f32.mrf.mxu0
  %v8475 = vadd.f32 0.0, %v8474
  %v8476 = vpop.f32.mrf.mxu0
  %v8477 = vadd.f32 0.0, %v8476
  %8478 = vmatmul.bf16.gmra.mxu0 %v8317
  %v8479 = vpop.f32.mrf.mxu0
  %v8480 = vadd.f32 0.0, %v8479
  %v8481 = vpop.f32.mrf.mxu0
  %v8482 = vadd.f32 0.0, %v8481
  %8483 = vmatmul.bf16.gmra.mxu0 %v8320
  %v8484 = vpop.f32.mrf.mxu0
  %v8485 = vadd.f32 0.0, %v8484
  %v8486 = vpop.f32.mrf.mxu0
  %v8487 = vadd.f32 0.0, %v8486
  %8488 = vmatmul.bf16.gmra.mxu0 %v8323
  %v8489 = vpop.f32.mrf.mxu0
  %v8490 = vadd.f32 0.0, %v8489
  %v8491 = vpop.f32.mrf.mxu0
  %v8492 = vadd.f32 0.0, %v8491
  %8493 = vdwg.mxu0
  %v8494 = vadd.f32 %v8060, %v8335
  %v8495 = vadd.f32 %v8061, %v8337
  %v8496 = vadd.f32 %v8062, %v8340
  %v8497 = vadd.f32 %v8063, %v8342
  %v8498 = vadd.f32 %v8064, %v8345
  %v8499 = vadd.f32 %v8065, %v8347
  %v8500 = vadd.f32 %v8066, %v8350
  %v8501 = vadd.f32 %v8067, %v8352
  %v8502 = vadd.f32 %v8068, %v8355
  %v8503 = vadd.f32 %v8069, %v8357
  %v8504 = vadd.f32 %v8070, %v8360
  %v8505 = vadd.f32 %v8071, %v8362
  %v8506 = vadd.f32 %v8072, %v8365
  %v8507 = vadd.f32 %v8073, %v8367
  %v8508 = vadd.f32 %v8074, %v8370
  %v8509 = vadd.f32 %v8075, %v8372
  %v8510 = vadd.f32 %v8076, %v8375
  %v8511 = vadd.f32 %v8077, %v8377
  %v8512 = vadd.f32 %v8078, %v8380
  %v8513 = vadd.f32 %v8079, %v8382
  %v8514 = vadd.f32 %v8080, %v8385
  %v8515 = vadd.f32 %v8081, %v8387
  %v8516 = vadd.f32 %v8082, %v8390
  %v8517 = vadd.f32 %v8083, %v8392
  %v8518 = vadd.f32 %v8084, %v8395
  %v8519 = vadd.f32 %v8085, %v8397
  %v8520 = vadd.f32 %v8086, %v8400
  %v8521 = vadd.f32 %v8087, %v8402
  %v8522 = vadd.f32 %v8088, %v8405
  %v8523 = vadd.f32 %v8089, %v8407
  %v8524 = vadd.f32 %v8090, %v8410
  %v8525 = vadd.f32 %v8091, %v8412
  %v8526 = vadd.f32 %v8092, %v8415
  %v8527 = vadd.f32 %v8093, %v8417
  %v8528 = vadd.f32 %v8094, %v8420
  %v8529 = vadd.f32 %v8095, %v8422
  %v8530 = vadd.f32 %v8096, %v8425
  %v8531 = vadd.f32 %v8097, %v8427
  %v8532 = vadd.f32 %v8098, %v8430
  %v8533 = vadd.f32 %v8099, %v8432
  %v8534 = vadd.f32 %v8100, %v8435
  %v8535 = vadd.f32 %v8101, %v8437
  %v8536 = vadd.f32 %v8102, %v8440
  %v8537 = vadd.f32 %v8103, %v8442
  %v8538 = vadd.f32 %v8104, %v8445
  %v8539 = vadd.f32 %v8105, %v8447
  %v8540 = vadd.f32 %v8106, %v8450
  %v8541 = vadd.f32 %v8107, %v8452
  %v8542 = vadd.f32 %v8108, %v8455
  %v8543 = vadd.f32 %v8109, %v8457
  %v8544 = vadd.f32 %v8110, %v8460
  %v8545 = vadd.f32 %v8111, %v8462
  %v8546 = vadd.f32 %v8112, %v8465
  %v8547 = vadd.f32 %v8113, %v8467
  %v8548 = vadd.f32 %v8114, %v8470
  %v8549 = vadd.f32 %v8115, %v8472
  %v8550 = vadd.f32 %v8116, %v8475
  %v8551 = vadd.f32 %v8117, %v8477
  %v8552 = vadd.f32 %v8118, %v8480
  %v8553 = vadd.f32 %v8119, %v8482
  %v8554 = vadd.f32 %v8120, %v8485
  %v8555 = vadd.f32 %v8121, %v8487
  %v8556 = vadd.f32 %v8122, %v8490
  %v8557 = vadd.f32 %v8123, %v8492
  %v8558 = vld [vmem:[%s0] sm:$0xff]
  %v8559 = vld [vmem:[%s0 + $0x8] sm:$0xff]
  %v8560 = vld [vmem:[%s0 + $0x10] sm:$0xff]
  %v8561 = vld [vmem:[%s0 + $0x18] sm:$0xff]
  %v8562 = vld [vmem:[%s0 + $0x20] sm:$0xff]
  %v8563 = vld [vmem:[%s0 + $0x28] sm:$0xff]
  %v8564 = vld [vmem:[%s0 + $0x30] sm:$0xff]
  %v8565 = vld [vmem:[%s0 + $0x38] sm:$0xff]
  %v8566 = vld [vmem:[%s0 + $0x40] sm:$0xff]
  %v8567 = vld [vmem:[%s0 + $0x48] sm:$0xff]
  %v8568 = vld [vmem:[%s0 + $0x50] sm:$0xff]
  %v8569 = vld [vmem:[%s0 + $0x58] sm:$0xff]
  %v8570 = vld [vmem:[%s0 + $0x60] sm:$0xff]
  %v8571 = vld [vmem:[%s0 + $0x68] sm:$0xff]
  %v8572 = vld [vmem:[%s0 + $0x70] sm:$0xff]
  %v8573 = vld [vmem:[%s0 + $0x78] sm:$0xff]
  %v8574 = vld [vmem:[%s0 + $0x80] sm:$0xff]
  %v8575 = vld [vmem:[%s0 + $0x88] sm:$0xff]
  %v8576 = vld [vmem:[%s0 + $0x90] sm:$0xff]
  %v8577 = vld [vmem:[%s0 + $0x98] sm:$0xff]
  %v8578 = vld [vmem:[%s0 + $0xa0] sm:$0xff]
  %v8579 = vld [vmem:[%s0 + $0xa8] sm:$0xff]
  %v8580 = vld [vmem:[%s0 + $0xb0] sm:$0xff]
  %v8581 = vld [vmem:[%s0 + $0xb8] sm:$0xff]
  %v8582 = vld [vmem:[%s0 + $0xc0] sm:$0xff]
  %v8583 = vld [vmem:[%s0 + $0xc8] sm:$0xff]
  %v8584 = vld [vmem:[%s0 + $0xd0] sm:$0xff]
  %v8585 = vld [vmem:[%s0 + $0xd8] sm:$0xff]
  %v8586 = vld [vmem:[%s0 + $0xe0] sm:$0xff]
  %v8587 = vld [vmem:[%s0 + $0xe8] sm:$0xff]
  %v8588 = vld [vmem:[%s0 + $0xf0] sm:$0xff]
  %v8589 = vld [vmem:[%s0 + $0xf8] sm:$0xff]
  %v8590 = vld [vmem:[%s0 + $0x100] sm:$0xff]
  %v8591 = vld [vmem:[%s0 + $0x108] sm:$0xff]
  %v8592 = vld [vmem:[%s0 + $0x110] sm:$0xff]
  %v8593 = vld [vmem:[%s0 + $0x118] sm:$0xff]
  %v8594 = vld [vmem:[%s0 + $0x120] sm:$0xff]
  %v8595 = vld [vmem:[%s0 + $0x128] sm:$0xff]
  %v8596 = vld [vmem:[%s0 + $0x130] sm:$0xff]
  %v8597 = vld [vmem:[%s0 + $0x138] sm:$0xff]
  %v8598 = vld [vmem:[%s0 + $0x140] sm:$0xff]
  %v8599 = vld [vmem:[%s0 + $0x148] sm:$0xff]
  %v8600 = vld [vmem:[%s0 + $0x150] sm:$0xff]
  %v8601 = vld [vmem:[%s0 + $0x158] sm:$0xff]
  %v8602 = vld [vmem:[%s0 + $0x160] sm:$0xff]
  %v8603 = vld [vmem:[%s0 + $0x168] sm:$0xff]
  %v8604 = vld [vmem:[%s0 + $0x170] sm:$0xff]
  %v8605 = vld [vmem:[%s0 + $0x178] sm:$0xff]
  %v8606 = vld [vmem:[%s0 + $0x180] sm:$0xff]
  %v8607 = vld [vmem:[%s0 + $0x188] sm:$0xff]
  %v8608 = vld [vmem:[%s0 + $0x190] sm:$0xff]
  %v8609 = vld [vmem:[%s0 + $0x198] sm:$0xff]
  %v8610 = vld [vmem:[%s0 + $0x1a0] sm:$0xff]
  %v8611 = vld [vmem:[%s0 + $0x1a8] sm:$0xff]
  %v8612 = vld [vmem:[%s0 + $0x1b0] sm:$0xff]
  %v8613 = vld [vmem:[%s0 + $0x1b8] sm:$0xff]
  %v8614 = vld [vmem:[%s0 + $0x1c0] sm:$0xff]
  %v8615 = vld [vmem:[%s0 + $0x1c8] sm:$0xff]
  %v8616 = vld [vmem:[%s0 + $0x1d0] sm:$0xff]
  %v8617 = vld [vmem:[%s0 + $0x1d8] sm:$0xff]
  %v8618 = vld [vmem:[%s0 + $0x1e0] sm:$0xff]
  %v8619 = vld [vmem:[%s0 + $0x1e8] sm:$0xff]
  %v8620 = vld [vmem:[%s0 + $0x1f0] sm:$0xff]
  %v8621 = vld [vmem:[%s0 + $0x1f8] sm:$0xff]
  %v8622 = vadd.f32 %v8494, %v8558
  %v8623 = vadd.f32 %v8495, %v8559
  %v8624 = vadd.f32 %v8496, %v8560
  %v8625 = vadd.f32 %v8497, %v8561
  %v8626 = vadd.f32 %v8498, %v8562
  %v8627 = vadd.f32 %v8499, %v8563
  %v8628 = vadd.f32 %v8500, %v8564
  %v8629 = vadd.f32 %v8501, %v8565
  %v8630 = vadd.f32 %v8502, %v8566
  %v8631 = vadd.f32 %v8503, %v8567
  %v8632 = vadd.f32 %v8504, %v8568
  %v8633 = vadd.f32 %v8505, %v8569
  %v8634 = vadd.f32 %v8506, %v8570
  %v8635 = vadd.f32 %v8507, %v8571
  %v8636 = vadd.f32 %v8508, %v8572
  %v8637 = vadd.f32 %v8509, %v8573
  %v8638 = vadd.f32 %v8510, %v8574
  %v8639 = vadd.f32 %v8511, %v8575
  %v8640 = vadd.f32 %v8512, %v8576
  %v8641 = vadd.f32 %v8513, %v8577
  %v8642 = vadd.f32 %v8514, %v8578
  %v8643 = vadd.f32 %v8515, %v8579
  %v8644 = vadd.f32 %v8516, %v8580
  %v8645 = vadd.f32 %v8517, %v8581
  %v8646 = vadd.f32 %v8518, %v8582
  %v8647 = vadd.f32 %v8519, %v8583
  %v8648 = vadd.f32 %v8520, %v8584
  %v8649 = vadd.f32 %v8521, %v8585
  %v8650 = vadd.f32 %v8522, %v8586
  %v8651 = vadd.f32 %v8523, %v8587
  %v8652 = vadd.f32 %v8524, %v8588
  %v8653 = vadd.f32 %v8525, %v8589
  %v8654 = vadd.f32 %v8526, %v8590
  %v8655 = vadd.f32 %v8527, %v8591
  %v8656 = vadd.f32 %v8528, %v8592
  %v8657 = vadd.f32 %v8529, %v8593
  %v8658 = vadd.f32 %v8530, %v8594
  %v8659 = vadd.f32 %v8531, %v8595
  %v8660 = vadd.f32 %v8532, %v8596
  %v8661 = vadd.f32 %v8533, %v8597
  %v8662 = vadd.f32 %v8534, %v8598
  %v8663 = vadd.f32 %v8535, %v8599
  %v8664 = vadd.f32 %v8536, %v8600
  %v8665 = vadd.f32 %v8537, %v8601
  %v8666 = vadd.f32 %v8538, %v8602
  %v8667 = vadd.f32 %v8539, %v8603
  %v8668 = vadd.f32 %v8540, %v8604
  %v8669 = vadd.f32 %v8541, %v8605
  %v8670 = vadd.f32 %v8542, %v8606
  %v8671 = vadd.f32 %v8543, %v8607
  %v8672 = vadd.f32 %v8544, %v8608
  %v8673 = vadd.f32 %v8545, %v8609
  %v8674 = vadd.f32 %v8546, %v8610
  %v8675 = vadd.f32 %v8547, %v8611
  %v8676 = vadd.f32 %v8548, %v8612
  %v8677 = vadd.f32 %v8549, %v8613
  %v8678 = vadd.f32 %v8550, %v8614
  %v8679 = vadd.f32 %v8551, %v8615
  %v8680 = vadd.f32 %v8552, %v8616
  %v8681 = vadd.f32 %v8553, %v8617
  %v8682 = vadd.f32 %v8554, %v8618
  %v8683 = vadd.f32 %v8555, %v8619
  %v8684 = vadd.f32 %v8556, %v8620
  %v8685 = vadd.f32 %v8557, %v8621
  %8686 = vst.msk [vmem:[%s5] sm:$0xff] %vm21, %v8622
  %8687 = vst.msk [vmem:[%s5 + $0x8] sm:$0xff] %vm21, %v8623
  %8688 = vst.msk [vmem:[%s5 + $0x10] sm:$0xff] %vm21, %v8624
  %8689 = vst.msk [vmem:[%s5 + $0x18] sm:$0xff] %vm21, %v8625
  %8690 = vst.msk [vmem:[%s5 + $0x20] sm:$0xff] %vm21, %v8626
  %8691 = vst.msk [vmem:[%s5 + $0x28] sm:$0xff] %vm21, %v8627
  %8692 = vst.msk [vmem:[%s5 + $0x30] sm:$0xff] %vm21, %v8628
  %8693 = vst.msk [vmem:[%s5 + $0x38] sm:$0xff] %vm21, %v8629
  %8694 = vst.msk [vmem:[%s5 + $0x40] sm:$0xff] %vm21, %v8630
  %8695 = vst.msk [vmem:[%s5 + $0x48] sm:$0xff] %vm21, %v8631
  %8696 = vst.msk [vmem:[%s5 + $0x50] sm:$0xff] %vm21, %v8632
  %8697 = vst.msk [vmem:[%s5 + $0x58] sm:$0xff] %vm21, %v8633
  %8698 = vst.msk [vmem:[%s5 + $0x60] sm:$0xff] %vm21, %v8634
  %8699 = vst.msk [vmem:[%s5 + $0x68] sm:$0xff] %vm21, %v8635
  %8700 = vst.msk [vmem:[%s5 + $0x70] sm:$0xff] %vm21, %v8636
  %8701 = vst.msk [vmem:[%s5 + $0x78] sm:$0xff] %vm21, %v8637
  %8702 = vst.msk [vmem:[%s5 + $0x80] sm:$0xff] %vm21, %v8638
  %8703 = vst.msk [vmem:[%s5 + $0x88] sm:$0xff] %vm21, %v8639
  %8704 = vst.msk [vmem:[%s5 + $0x90] sm:$0xff] %vm21, %v8640
  %8705 = vst.msk [vmem:[%s5 + $0x98] sm:$0xff] %vm21, %v8641
  %8706 = vst.msk [vmem:[%s5 + $0xa0] sm:$0xff] %vm21, %v8642
  %8707 = vst.msk [vmem:[%s5 + $0xa8] sm:$0xff] %vm21, %v8643
  %8708 = vst.msk [vmem:[%s5 + $0xb0] sm:$0xff] %vm21, %v8644
  %8709 = vst.msk [vmem:[%s5 + $0xb8] sm:$0xff] %vm21, %v8645
  %8710 = vst.msk [vmem:[%s5 + $0xc0] sm:$0xff] %vm21, %v8646
  %8711 = vst.msk [vmem:[%s5 + $0xc8] sm:$0xff] %vm21, %v8647
  %8712 = vst.msk [vmem:[%s5 + $0xd0] sm:$0xff] %vm21, %v8648
  %8713 = vst.msk [vmem:[%s5 + $0xd8] sm:$0xff] %vm21, %v8649
  %8714 = vst.msk [vmem:[%s5 + $0xe0] sm:$0xff] %vm21, %v8650
  %8715 = vst.msk [vmem:[%s5 + $0xe8] sm:$0xff] %vm21, %v8651
  %8716 = vst.msk [vmem:[%s5 + $0xf0] sm:$0xff] %vm21, %v8652
  %8717 = vst.msk [vmem:[%s5 + $0xf8] sm:$0xff] %vm21, %v8653
  %8718 = vst.msk [vmem:[%s5 + $0x100] sm:$0xff] %vm21, %v8654
  %8719 = vst.msk [vmem:[%s5 + $0x108] sm:$0xff] %vm21, %v8655
  %8720 = vst.msk [vmem:[%s5 + $0x110] sm:$0xff] %vm21, %v8656
  %8721 = vst.msk [vmem:[%s5 + $0x118] sm:$0xff] %vm21, %v8657
  %8722 = vst.msk [vmem:[%s5 + $0x120] sm:$0xff] %vm21, %v8658
  %8723 = vst.msk [vmem:[%s5 + $0x128] sm:$0xff] %vm21, %v8659
  %8724 = vst.msk [vmem:[%s5 + $0x130] sm:$0xff] %vm21, %v8660
  %8725 = vst.msk [vmem:[%s5 + $0x138] sm:$0xff] %vm21, %v8661
  %8726 = vst.msk [vmem:[%s5 + $0x140] sm:$0xff] %vm21, %v8662
  %8727 = vst.msk [vmem:[%s5 + $0x148] sm:$0xff] %vm21, %v8663
  %8728 = vst.msk [vmem:[%s5 + $0x150] sm:$0xff] %vm21, %v8664
  %8729 = vst.msk [vmem:[%s5 + $0x158] sm:$0xff] %vm21, %v8665
  %8730 = vst.msk [vmem:[%s5 + $0x160] sm:$0xff] %vm21, %v8666
  %8731 = vst.msk [vmem:[%s5 + $0x168] sm:$0xff] %vm21, %v8667
  %8732 = vst.msk [vmem:[%s5 + $0x170] sm:$0xff] %vm21, %v8668
  %8733 = vst.msk [vmem:[%s5 + $0x178] sm:$0xff] %vm21, %v8669
  %8734 = vst.msk [vmem:[%s5 + $0x180] sm:$0xff] %vm21, %v8670
  %8735 = vst.msk [vmem:[%s5 + $0x188] sm:$0xff] %vm21, %v8671
  %8736 = vst.msk [vmem:[%s5 + $0x190] sm:$0xff] %vm21, %v8672
  %8737 = vst.msk [vmem:[%s5 + $0x198] sm:$0xff] %vm21, %v8673
  %8738 = vst.msk [vmem:[%s5 + $0x1a0] sm:$0xff] %vm21, %v8674
  %8739 = vst.msk [vmem:[%s5 + $0x1a8] sm:$0xff] %vm21, %v8675
  %8740 = vst.msk [vmem:[%s5 + $0x1b0] sm:$0xff] %vm21, %v8676
  %8741 = vst.msk [vmem:[%s5 + $0x1b8] sm:$0xff] %vm21, %v8677
  %8742 = vst.msk [vmem:[%s5 + $0x1c0] sm:$0xff] %vm21, %v8678
  %8743 = vst.msk [vmem:[%s5 + $0x1c8] sm:$0xff] %vm21, %v8679
  %8744 = vst.msk [vmem:[%s5 + $0x1d0] sm:$0xff] %vm21, %v8680
  %8745 = vst.msk [vmem:[%s5 + $0x1d8] sm:$0xff] %vm21, %v8681
  %8746 = vst.msk [vmem:[%s5 + $0x1e0] sm:$0xff] %vm21, %v8682
  %8747 = vst.msk [vmem:[%s5 + $0x1e8] sm:$0xff] %vm21, %v8683
  %8748 = vst.msk [vmem:[%s5 + $0x1f0] sm:$0xff] %vm21, %v8684
  %8749 = vst.msk [vmem:[%s5 + $0x1f8] sm:$0xff] %vm21, %v8685
  // Predicated region
  $region22: #{resnet_forward.1} parent=0 // pred_check
    _
  $region23: #{resnet_forward.1} parent=0 // pred_check_branch
    %8751 = sbr.rel (0) target = $region25
  $region24: #{resnet_forward.1} parent=0 // pred_region
    _
  $region25: #{resnet_forward.1} parent=0 // pred_fallthru
    _
  // Predicated region
  $region26: #{resnet_forward.1} parent=0 // pred_check
    _
  $region27: #{resnet_forward.1} parent=0 // pred_check_branch
    %8753 = sbr.rel (0) target = $region29
  $region28: #{resnet_forward.1} parent=0 // pred_region
    _
  $region29: #{resnet_forward.1} parent=0 // pred_fallthru
    _

</llo_original>
